<compile_context>
chip_gen: v7x
topology: tpu7x:2x2x1
jax: 0.10.0
libtpu: 0.0.40
codegen_flags: <defaults>
</compile_context>

<pallas_src>
import numpy as np

import jax
import jax.numpy as jnp
from jax.experimental import pallas as pl
from jax.experimental.pallas import tpu as pltpu


# ----------------------- host-side weight preparation -----------------------

def _pool_row_select(h_in):
    """T[k] (h_in//2, h_in): T[k][i, r] = 1 iff r == 2*i + k - 1 (else 0)."""
    h_out = h_in // 2
    t = np.zeros((4, h_out, h_in), np.float32)
    for k in range(4):
        for i in range(h_out):
            r = 2 * i + k - 1
            if 0 <= r < h_in:
                t[k, i, r] = 1.0
    return t


def _shift_row_select(h):
    """T[dy] (h, h): T[dy][i, r] = 1 iff r == i + dy - 1 (zero-padded shift)."""
    t = np.zeros((3, h, h), np.float32)
    for dy in range(3):
        for i in range(h):
            r = i + dy - 1
            if 0 <= r < h:
                t[dy, i, r] = 1.0
    return t


def _banded_conv_mat_pool(w, w_in):
    """Banded matrices for conv3x3(pad=1) producing only columns 2j+q.

    w: (3, 3, cin, cout) HWIO.  Returns (6, w_in*cin, (w_in//2)*cout) indexed
    by dy*2+q, so that conv_out[r, 2j+q, co] = sum_dy (row r+dy-1) @ M[dy*2+q].
    """
    cin, cout = w.shape[2], w.shape[3]
    w_out = w_in // 2
    m = np.zeros((6, w_in * cin, w_out * cout), np.float32)
    for dy in range(3):
        for q in range(2):
            for j in range(w_out):
                for dx in range(3):
                    s = 2 * j + q + dx - 1
                    if 0 <= s < w_in:
                        m[dy * 2 + q,
                          s * cin:(s + 1) * cin,
                          j * cout:(j + 1) * cout] = w[dy, dx]
    return m


def _banded_conv_mat(w, w_in):
    """Banded matrices for conv3x3(pad=1), all output columns (no pooling)."""
    cin, cout = w.shape[2], w.shape[3]
    m = np.zeros((3, w_in * cin, w_in * cout), np.float32)
    for dy in range(3):
        for j in range(w_in):
            for dx in range(3):
                s = j + dx - 1
                if 0 <= s < w_in:
                    m[dy,
                      s * cin:(s + 1) * cin,
                      j * cout:(j + 1) * cout] = w[dy, dx]
    return m


def prepare_kernel_params(params):
    """One-time host-side reshuffle of the PyTorch-layout weights."""
    w1 = np.asarray(params["w1"]); b1 = np.asarray(params["b1"])
    w2 = np.asarray(params["w2"]); b2 = np.asarray(params["b2"])
    w3 = np.asarray(params["w3"]); b3 = np.asarray(params["b3"])
    fc1_w = np.asarray(params["fc1_w"]); fc1_b = np.asarray(params["fc1_b"])
    fc2_w = np.asarray(params["fc2_w"]); fc2_b = np.asarray(params["fc2_b"])

    # fc1 rows: PyTorch flatten order (c, h, w) -> kernel flatten order (h, w, c)
    fc1_w_perm = (fc1_w.reshape(64, 7, 7, 128)
                  .transpose(1, 2, 0, 3)
                  .reshape(64 * 7 * 7, 128))

    kp = {
        "t1": _pool_row_select(28),            # (4, 14, 28)
        "m1": _banded_conv_mat_pool(w1, 28),   # (6, 28, 224)
        "b1": np.tile(b1, 14)[None, :],        # (1, 224)
        "t2": _pool_row_select(14),            # (4, 7, 14)
        "m2": _banded_conv_mat_pool(w2, 14),   # (6, 224, 224)
        "b2": np.tile(b2, 7)[None, :],         # (1, 224)
        "t3": _shift_row_select(7),            # (3, 7, 7)
        "m3": _banded_conv_mat(w3, 7),         # (3, 224, 448)
        "b3": np.tile(b3, 7)[None, :],         # (1, 448)
        "fc1_w": fc1_w_perm,                   # (3136, 128)
        "fc1_b": fc1_b[None, :],               # (1, 128)
        "fc2_w": fc2_w,                        # (128, 1)
        "fc2_b": fc2_b[None, :],               # (1, 1)
    }
    return {k: jnp.asarray(v, jnp.float32) for k, v in kp.items()}


# ------------------------------ Pallas kernels ------------------------------

def _features_kernel(x_ref, t1_ref, m1_ref, b1_ref, t2_ref, m2_ref, b2_ref,
                     t3_ref, m3_ref, b3_ref, o_ref):
    """conv1+ReLU+pool -> conv2+ReLU+pool -> conv3+ReLU for one sample."""
    f32 = jnp.float32

    def conv_relu_pool(inp, t_ref, m_ref, b_ref):
        # inp: (H, W*Cin) -> (H//2, (W//2)*Cout)
        # z[k][i, :] = input row (2i + k - 1), zero outside the image.
        z = [jnp.dot(t_ref[k], inp, preferred_element_type=f32)
             for k in range(4)]
        pooled = None
        for p in range(2):          # row parity of the 2x2 window
            for q in range(2):      # column parity of the 2x2 window
                acc = jnp.dot(z[p], m_ref[q], preferred_element_type=f32)
                for dy in range(1, 3):
                    acc = acc + jnp.dot(z[p + dy], m_ref[2 * dy + q],
                                        preferred_element_type=f32)
                pooled = acc if pooled is None else jnp.maximum(pooled, acc)
        # bias + ReLU commute with the max-pool (per-channel bias).
        return jnp.maximum(pooled + b_ref[...], 0.0)

    x = x_ref[0]                                            # (28, 28), Cin=1
    p1 = conv_relu_pool(x, t1_ref, m1_ref, b1_ref)          # (14, 14*16)
    p2 = conv_relu_pool(p1, t2_ref, m2_ref, b2_ref)         # (7, 7*32)

    # conv3 + bias + ReLU (no pooling; AdaptiveAvgPool2d((7,7)) is identity).
    acc = None
    for dy in range(3):
        zr = p2 if dy == 1 else jnp.dot(t3_ref[dy], p2,
                                        preferred_element_type=f32)
        term = jnp.dot(zr, m3_ref[dy], preferred_element_type=f32)
        acc = term if acc is None else acc + term
    o_ref[0] = jnp.maximum(acc + b3_ref[...], 0.0)          # (7, 7*64)


def _classifier_kernel(f_ref, w1_ref, b1_ref, w2_ref, b2_ref, o_ref):
    h = jnp.dot(f_ref[...], w1_ref[...], preferred_element_type=jnp.float32)
    h = jnp.maximum(h + b1_ref[...], 0.0)
    # Dropout(p=0.5): inference mode -> identity.
    o_ref[...] = (jnp.dot(h, w2_ref[...], preferred_element_type=jnp.float32)
                  + b2_ref[...])


# ------------------------------ pallas_call wrappers ------------------------

def _full_block(arr):
    nd = arr.ndim
    return pl.BlockSpec(arr.shape, lambda *_: (0,) * nd)


def features_pallas(x, kp):
    """x: (N, 28, 28) -> (N, 7, 7*64) in (h, w*64 + c) layout."""
    n = x.shape[0]
    assert x.shape[1:] == (28, 28)
    weights = (kp["t1"], kp["m1"], kp["b1"],
               kp["t2"], kp["m2"], kp["b2"],
               kp["t3"], kp["m3"], kp["b3"])
    in_specs = [pl.BlockSpec((1, 28, 28), lambda b: (b, 0, 0))]
    in_specs += [_full_block(w) for w in weights]
    return pl.pallas_call(
        _features_kernel,
        out_shape=jax.ShapeDtypeStruct((n, 7, 7 * 64), jnp.float32),
        grid=(n,),
        in_specs=in_specs,
        out_specs=pl.BlockSpec((1, 7, 7 * 64), lambda b: (b, 0, 0)),
        compiler_params=pltpu.CompilerParams(
            dimension_semantics=("parallel",)),
    )(x, *weights)


def classifier_pallas(feats, kp):
    """feats: (N, 3136) -> logits (N, 1).  Batch-tiled matmul chain."""
    n, d = feats.shape
    bm = n if n <= 128 else 128
    # TODO(synk): pad the batch on the host for sizes not divisible by the tile.
    assert n % bm == 0
    return pl.pallas_call(
        _classifier_kernel,
        out_shape=jax.ShapeDtypeStruct((n, 1), jnp.float32),
        grid=(n // bm,),
        in_specs=[pl.BlockSpec((bm, d), lambda i: (i, 0)),
                  _full_block(kp["fc1_w"]),
                  _full_block(kp["fc1_b"]),
                  _full_block(kp["fc2_w"]),
                  _full_block(kp["fc2_b"])],
        out_specs=pl.BlockSpec((bm, 1), lambda i: (i, 0)),
        compiler_params=pltpu.CompilerParams(
            dimension_semantics=("parallel",)),
    )(feats, kp["fc1_w"], kp["fc1_b"], kp["fc2_w"], kp["fc2_b"])


def circlenet_forward(x_nchw, kp):
    # TODO(synk): spatial size fixed at 28x28 (MNIST-like), where
    # AdaptiveAvgPool2d((7,7)) is the identity; other sizes not implemented.
    n = x_nchw.shape[0]
    x = x_nchw.reshape(n, 28, 28)            # NCHW with C=1 -> (N, H, W)
    feats = features_pallas(x, kp)           # (N, 7, 448), (h, w, c) order
    feats = feats.reshape(n, 7 * 7 * 64)     # contiguous -> free reshape
    return classifier_pallas(feats, kp)      # (N, 1)


# ------------------------------ model setup ---------------------------------

def init_params(key):
    ks = jax.random.split(key, 5)

    def u(k, shape, fan_in):
        s = 1.0 / float(np.sqrt(fan_in))
        return jax.random.uniform(k, shape, jnp.float32, -s, s)

    return {
        "w1": u(ks[0], (3, 3, 1, 16), 9 * 1),
        "b1": 0.01 * jnp.ones((16,), jnp.float32),
        "w2": u(ks[1], (3, 3, 16, 32), 9 * 16),
        "b2": 0.01 * jnp.ones((32,), jnp.float32),
        "w3": u(ks[2], (3, 3, 32, 64), 9 * 32),
        "b3": 0.01 * jnp.ones((64,), jnp.float32),
        "fc1_w": u(ks[3], (64 * 7 * 7, 128), 64 * 7 * 7),
        "fc1_b": 0.01 * jnp.ones((128,), jnp.float32),
        "fc2_w": u(ks[4], (128, 1), 128),
        "fc2_b": 0.01 * jnp.ones((1,), jnp.float32),
    }


# --------------------------- pure-JAX reference ------------------------------

def reference_forward(x_nchw, params):
    def conv(x, w, b):
        y = jax.lax.conv_general_dilated(
            x, w, (1, 1), "SAME",
            dimension_numbers=("NCHW", "HWIO", "NCHW"))
        return jnp.maximum(y + b.reshape(1, -1, 1, 1), 0.0)

    def pool(x):
        n, c, h, w = x.shape
        return x.reshape(n, c, h // 2, 2, w // 2, 2).max(axis=(3, 5))

    x = pool(conv(x_nchw, params["w1"], params["b1"]))
    x = pool(conv(x, params["w2"], params["b2"]))
    x = conv(x, params["w3"], params["b3"])
    x = x.reshape(x.shape[0], -1)                       # (C, H, W) flatten
    x = jnp.maximum(x @ params["fc1_w"] + params["fc1_b"], 0.0)
    return x @ params["fc2_w"] + params["fc2_b"]


# ---------------------------------- main -------------------------------------

if __name__ == "__main__":
    key = jax.random.PRNGKey(0)
    k_in, k_par = jax.random.split(key)
    # MNIST-like input (batch=2, 1 channel, 28x28).
    x = jax.random.normal(k_in, (2, 1, 28, 28), dtype=jnp.float32)
    params = init_params(k_par)
    kp = prepare_kernel_params(params)

    fwd = jax.jit(circlenet_forward)
    out = jax.block_until_ready(fwd(x, kp))
    assert out.shape == (2, 1)

    ref = jax.block_until_ready(reference_forward(x, params))
    assert jnp.allclose(out, ref, rtol=1e-3, atol=1e-3), (out, ref)

    print("KERNEL_OK")
</pallas_src>

<mosaic_0001>
module attributes {stable_mosaic.version = 11 : i64} {
  func.func @_classifier_kernel(%arg0: i32, %arg1: memref<2x3136xf32, #tpu.memory_space<vmem>>, %arg2: memref<3136x128xf32, #tpu.memory_space<vmem>>, %arg3: memref<1x128xf32, #tpu.memory_space<vmem>>, %arg4: memref<128x1xf32, #tpu.memory_space<vmem>>, %arg5: memref<1x1xf32, #tpu.memory_space<vmem>>, %arg6: memref<2x1xf32, #tpu.memory_space<vmem>>) attributes {dimension_semantics = [#tpu.dimension_semantics<parallel>], iteration_bounds = array<i64: 1>, scalar_prefetch = 0 : i64, scratch_operands = 0 : i64, tpu.core_type = #tpu.core_type<tc>, window_params = [{transform_indices = @transform_0, window_bounds = array<i64: 2, 3136>}, {pipeline_mode = #tpu.pipeline_mode<synchronous>, transform_indices = @transform_1, window_bounds = array<i64: 3136, 128>}, {pipeline_mode = #tpu.pipeline_mode<synchronous>, transform_indices = @transform_2, window_bounds = array<i64: 1, 128>}, {pipeline_mode = #tpu.pipeline_mode<synchronous>, transform_indices = @transform_3, window_bounds = array<i64: 128, 1>}, {pipeline_mode = #tpu.pipeline_mode<synchronous>, transform_indices = @transform_4, window_bounds = array<i64: 1, 1>}, {transform_indices = @transform_5, window_bounds = array<i64: 2, 1>}]} {
    %c0 = arith.constant 0 : index
    %c0_0 = arith.constant 0 : index
    %0 = vector.load %arg1[%c0, %c0_0] : memref<2x3136xf32, #tpu.memory_space<vmem>>, vector<2x3136xf32>
    %c0_1 = arith.constant 0 : index
    %c0_2 = arith.constant 0 : index
    %1 = vector.load %arg2[%c0_1, %c0_2] : memref<3136x128xf32, #tpu.memory_space<vmem>>, vector<3136x128xf32>
    %cst = arith.constant dense<0.000000e+00> : vector<2x128xf32>
    %2 = tpu.matmul %0, %1, %cst {dimension_numbers = #tpu.dot_dimension_numbers<[1], [0], [0], [1], [0, 0, 1, 1], [], []>} : vector<2x3136xf32>, vector<3136x128xf32>, vector<2x128xf32> -> vector<2x128xf32>
    %c0_3 = arith.constant 0 : index
    %c0_4 = arith.constant 0 : index
    %3 = vector.load %arg3[%c0_3, %c0_4] : memref<1x128xf32, #tpu.memory_space<vmem>>, vector<1x128xf32>
    %4 = vector.broadcast %3 : vector<1x128xf32> to vector<2x128xf32>
    %5 = arith.addf %2, %4 : vector<2x128xf32>
    %cst_5 = arith.constant 0.000000e+00 : f32
    %6 = vector.broadcast %cst_5 : f32 to vector<2x128xf32>
    %7 = arith.maximumf %5, %6 : vector<2x128xf32>
    %c0_6 = arith.constant 0 : index
    %c0_7 = arith.constant 0 : index
    %8 = vector.load %arg4[%c0_6, %c0_7] : memref<128x1xf32, #tpu.memory_space<vmem>>, vector<128x1xf32>
    %cst_8 = arith.constant dense<0.000000e+00> : vector<2x1xf32>
    %9 = tpu.matmul %7, %8, %cst_8 {dimension_numbers = #tpu.dot_dimension_numbers<[1], [0], [0], [1], [0, 0, 1, 1], [], []>} : vector<2x128xf32>, vector<128x1xf32>, vector<2x1xf32> -> vector<2x1xf32>
    %c0_9 = arith.constant 0 : index
    %c0_10 = arith.constant 0 : index
    %10 = vector.load %arg5[%c0_9, %c0_10] : memref<1x1xf32, #tpu.memory_space<vmem>>, vector<1x1xf32>
    %11 = vector.broadcast %10 : vector<1x1xf32> to vector<2x1xf32>
    %12 = arith.addf %9, %11 : vector<2x1xf32>
    %c0_11 = arith.constant 0 : index
    %c0_12 = arith.constant 0 : index
    %13 = vector.load %arg6[%c0_11, %c0_12] : memref<2x1xf32, #tpu.memory_space<vmem>>, vector<2x1xf32>
    tpu.vector_store %arg6[%c0_11, %c0_12], %12 {strides = array<i32>} : memref<2x1xf32, #tpu.memory_space<vmem>>, vector<2x1xf32>,
    return
  }
  func.func @transform_0(%arg0: i32) -> (i32, i32) {
    %c0_i32 = arith.constant 0 : i32
    %c0_i32_0 = arith.constant 0 : i32
    return %arg0, %c0_i32 : i32, i32
  }
  func.func @transform_1(%arg0: i32) -> (i32, i32) {
    %c0_i32 = arith.constant 0 : i32
    %c0_i32_0 = arith.constant 0 : i32
    %c0_i32_1 = arith.constant 0 : i32
    return %c0_i32, %c0_i32_0 : i32, i32
  }
  func.func @transform_2(%arg0: i32) -> (i32, i32) {
    %c0_i32 = arith.constant 0 : i32
    %c0_i32_0 = arith.constant 0 : i32
    %c0_i32_1 = arith.constant 0 : i32
    return %c0_i32, %c0_i32_0 : i32, i32
  }
  func.func @transform_3(%arg0: i32) -> (i32, i32) {
    %c0_i32 = arith.constant 0 : i32
    %c0_i32_0 = arith.constant 0 : i32
    %c0_i32_1 = arith.constant 0 : i32
    return %c0_i32, %c0_i32_0 : i32, i32
  }
  func.func @transform_4(%arg0: i32) -> (i32, i32) {
    %c0_i32 = arith.constant 0 : i32
    %c0_i32_0 = arith.constant 0 : i32
    %c0_i32_1 = arith.constant 0 : i32
    return %c0_i32, %c0_i32_0 : i32, i32
  }
  func.func @transform_5(%arg0: i32) -> (i32, i32) {
    %c0_i32 = arith.constant 0 : i32
    %c0_i32_0 = arith.constant 0 : i32
    return %arg0, %c0_i32 : i32, i32
  }
}

module attributes {stable_mosaic.version = 11 : i64} {
  func.func @_features_kernel(%arg0: i32, %arg1: memref<1x28x28xf32, #tpu.memory_space<vmem>>, %arg2: memref<4x14x28xf32, #tpu.memory_space<vmem>>, %arg3: memref<6x28x224xf32, #tpu.memory_space<vmem>>, %arg4: memref<1x224xf32, #tpu.memory_space<vmem>>, %arg5: memref<4x7x14xf32, #tpu.memory_space<vmem>>, %arg6: memref<6x224x224xf32, #tpu.memory_space<vmem>>, %arg7: memref<1x224xf32, #tpu.memory_space<vmem>>, %arg8: memref<3x7x7xf32, #tpu.memory_space<vmem>>, %arg9: memref<3x224x448xf32, #tpu.memory_space<vmem>>, %arg10: memref<1x448xf32, #tpu.memory_space<vmem>>, %arg11: memref<1x7x448xf32, #tpu.memory_space<vmem>>) attributes {dimension_semantics = [#tpu.dimension_semantics<parallel>], iteration_bounds = array<i64: 2>, scalar_prefetch = 0 : i64, scratch_operands = 0 : i64, tpu.core_type = #tpu.core_type<tc>, window_params = [{transform_indices = @transform_0, window_bounds = array<i64: 1, 28, 28>}, {pipeline_mode = #tpu.pipeline_mode<synchronous>, transform_indices = @transform_1, window_bounds = array<i64: 4, 14, 28>}, {pipeline_mode = #tpu.pipeline_mode<synchronous>, transform_indices = @transform_2, window_bounds = array<i64: 6, 28, 224>}, {pipeline_mode = #tpu.pipeline_mode<synchronous>, transform_indices = @transform_3, window_bounds = array<i64: 1, 224>}, {pipeline_mode = #tpu.pipeline_mode<synchronous>, transform_indices = @transform_4, window_bounds = array<i64: 4, 7, 14>}, {pipeline_mode = #tpu.pipeline_mode<synchronous>, transform_indices = @transform_5, window_bounds = array<i64: 6, 224, 224>}, {pipeline_mode = #tpu.pipeline_mode<synchronous>, transform_indices = @transform_6, window_bounds = array<i64: 1, 224>}, {pipeline_mode = #tpu.pipeline_mode<synchronous>, transform_indices = @transform_7, window_bounds = array<i64: 3, 7, 7>}, {pipeline_mode = #tpu.pipeline_mode<synchronous>, transform_indices = @transform_8, window_bounds = array<i64: 3, 224, 448>}, {pipeline_mode = #tpu.pipeline_mode<synchronous>, transform_indices = @transform_9, window_bounds = array<i64: 1, 448>}, {transform_indices = @transform_10, window_bounds = array<i64: 1, 7, 448>}]} {
    %c0 = arith.constant 0 : index
    %c0_0 = arith.constant 0 : index
    %c0_1 = arith.constant 0 : index
    %0 = vector.load %arg1[%c0, %c0_0, %c0_1] : memref<1x28x28xf32, #tpu.memory_space<vmem>>, vector<1x28x28xf32>
    %1 = vector.shape_cast %0 : vector<1x28x28xf32> to vector<28x28xf32>
    %c0_2 = arith.constant 0 : index
    %c0_3 = arith.constant 0 : index
    %c0_4 = arith.constant 0 : index
    %2 = vector.load %arg2[%c0_2, %c0_3, %c0_4] : memref<4x14x28xf32, #tpu.memory_space<vmem>>, vector<1x14x28xf32>
    %3 = vector.shape_cast %2 : vector<1x14x28xf32> to vector<14x28xf32>
    %cst = arith.constant dense<0.000000e+00> : vector<14x28xf32>
    %4 = tpu.matmul %3, %1, %cst {dimension_numbers = #tpu.dot_dimension_numbers<[1], [0], [0], [1], [0, 0, 1, 1], [], []>} : vector<14x28xf32>, vector<28x28xf32>, vector<14x28xf32> -> vector<14x28xf32>
    %c1 = arith.constant 1 : index
    %c0_5 = arith.constant 0 : index
    %c0_6 = arith.constant 0 : index
    %5 = vector.load %arg2[%c1, %c0_5, %c0_6] : memref<4x14x28xf32, #tpu.memory_space<vmem>>, vector<1x14x28xf32>
    %6 = vector.shape_cast %5 : vector<1x14x28xf32> to vector<14x28xf32>
    %cst_7 = arith.constant dense<0.000000e+00> : vector<14x28xf32>
    %7 = tpu.matmul %6, %1, %cst_7 {dimension_numbers = #tpu.dot_dimension_numbers<[1], [0], [0], [1], [0, 0, 1, 1], [], []>} : vector<14x28xf32>, vector<28x28xf32>, vector<14x28xf32> -> vector<14x28xf32>
    %c2 = arith.constant 2 : index
    %c0_8 = arith.constant 0 : index
    %c0_9 = arith.constant 0 : index
    %8 = vector.load %arg2[%c2, %c0_8, %c0_9] : memref<4x14x28xf32, #tpu.memory_space<vmem>>, vector<1x14x28xf32>
    %9 = vector.shape_cast %8 : vector<1x14x28xf32> to vector<14x28xf32>
    %cst_10 = arith.constant dense<0.000000e+00> : vector<14x28xf32>
    %10 = tpu.matmul %9, %1, %cst_10 {dimension_numbers = #tpu.dot_dimension_numbers<[1], [0], [0], [1], [0, 0, 1, 1], [], []>} : vector<14x28xf32>, vector<28x28xf32>, vector<14x28xf32> -> vector<14x28xf32>
    %c3 = arith.constant 3 : index
    %c0_11 = arith.constant 0 : index
    %c0_12 = arith.constant 0 : index
    %11 = vector.load %arg2[%c3, %c0_11, %c0_12] : memref<4x14x28xf32, #tpu.memory_space<vmem>>, vector<1x14x28xf32>
    %12 = vector.shape_cast %11 : vector<1x14x28xf32> to vector<14x28xf32>
    %cst_13 = arith.constant dense<0.000000e+00> : vector<14x28xf32>
    %13 = tpu.matmul %12, %1, %cst_13 {dimension_numbers = #tpu.dot_dimension_numbers<[1], [0], [0], [1], [0, 0, 1, 1], [], []>} : vector<14x28xf32>, vector<28x28xf32>, vector<14x28xf32> -> vector<14x28xf32>
    %c0_14 = arith.constant 0 : index
    %c0_15 = arith.constant 0 : index
    %c0_16 = arith.constant 0 : index
    %14 = vector.load %arg3[%c0_14, %c0_15, %c0_16] : memref<6x28x224xf32, #tpu.memory_space<vmem>>, vector<1x28x224xf32>
    %15 = vector.shape_cast %14 : vector<1x28x224xf32> to vector<28x224xf32>
    %cst_17 = arith.constant dense<0.000000e+00> : vector<14x224xf32>
    %16 = tpu.matmul %4, %15, %cst_17 {dimension_numbers = #tpu.dot_dimension_numbers<[1], [0], [0], [1], [0, 0, 1, 1], [], []>} : vector<14x28xf32>, vector<28x224xf32>, vector<14x224xf32> -> vector<14x224xf32>
    %c2_18 = arith.constant 2 : index
    %c0_19 = arith.constant 0 : index
    %c0_20 = arith.constant 0 : index
    %17 = vector.load %arg3[%c2_18, %c0_19, %c0_20] : memref<6x28x224xf32, #tpu.memory_space<vmem>>, vector<1x28x224xf32>
    %18 = vector.shape_cast %17 : vector<1x28x224xf32> to vector<28x224xf32>
    %cst_21 = arith.constant dense<0.000000e+00> : vector<14x224xf32>
    %19 = tpu.matmul %7, %18, %cst_21 {dimension_numbers = #tpu.dot_dimension_numbers<[1], [0], [0], [1], [0, 0, 1, 1], [], []>} : vector<14x28xf32>, vector<28x224xf32>, vector<14x224xf32> -> vector<14x224xf32>
    %20 = arith.addf %16, %19 : vector<14x224xf32>
    %c4 = arith.constant 4 : index
    %c0_22 = arith.constant 0 : index
    %c0_23 = arith.constant 0 : index
    %21 = vector.load %arg3[%c4, %c0_22, %c0_23] : memref<6x28x224xf32, #tpu.memory_space<vmem>>, vector<1x28x224xf32>
    %22 = vector.shape_cast %21 : vector<1x28x224xf32> to vector<28x224xf32>
    %cst_24 = arith.constant dense<0.000000e+00> : vector<14x224xf32>
    %23 = tpu.matmul %10, %22, %cst_24 {dimension_numbers = #tpu.dot_dimension_numbers<[1], [0], [0], [1], [0, 0, 1, 1], [], []>} : vector<14x28xf32>, vector<28x224xf32>, vector<14x224xf32> -> vector<14x224xf32>
    %24 = arith.addf %20, %23 : vector<14x224xf32>
    %c1_25 = arith.constant 1 : index
    %c0_26 = arith.constant 0 : index
    %c0_27 = arith.constant 0 : index
    %25 = vector.load %arg3[%c1_25, %c0_26, %c0_27] : memref<6x28x224xf32, #tpu.memory_space<vmem>>, vector<1x28x224xf32>
    %26 = vector.shape_cast %25 : vector<1x28x224xf32> to vector<28x224xf32>
    %cst_28 = arith.constant dense<0.000000e+00> : vector<14x224xf32>
    %27 = tpu.matmul %4, %26, %cst_28 {dimension_numbers = #tpu.dot_dimension_numbers<[1], [0], [0], [1], [0, 0, 1, 1], [], []>} : vector<14x28xf32>, vector<28x224xf32>, vector<14x224xf32> -> vector<14x224xf32>
    %c3_29 = arith.constant 3 : index
    %c0_30 = arith.constant 0 : index
    %c0_31 = arith.constant 0 : index
    %28 = vector.load %arg3[%c3_29, %c0_30, %c0_31] : memref<6x28x224xf32, #tpu.memory_space<vmem>>, vector<1x28x224xf32>
    %29 = vector.shape_cast %28 : vector<1x28x224xf32> to vector<28x224xf32>
    %cst_32 = arith.constant dense<0.000000e+00> : vector<14x224xf32>
    %30 = tpu.matmul %7, %29, %cst_32 {dimension_numbers = #tpu.dot_dimension_numbers<[1], [0], [0], [1], [0, 0, 1, 1], [], []>} : vector<14x28xf32>, vector<28x224xf32>, vector<14x224xf32> -> vector<14x224xf32>
    %31 = arith.addf %27, %30 : vector<14x224xf32>
    %c5 = arith.constant 5 : index
    %c0_33 = arith.constant 0 : index
    %c0_34 = arith.constant 0 : index
    %32 = vector.load %arg3[%c5, %c0_33, %c0_34] : memref<6x28x224xf32, #tpu.memory_space<vmem>>, vector<1x28x224xf32>
    %33 = vector.shape_cast %32 : vector<1x28x224xf32> to vector<28x224xf32>
    %cst_35 = arith.constant dense<0.000000e+00> : vector<14x224xf32>
    %34 = tpu.matmul %10, %33, %cst_35 {dimension_numbers = #tpu.dot_dimension_numbers<[1], [0], [0], [1], [0, 0, 1, 1], [], []>} : vector<14x28xf32>, vector<28x224xf32>, vector<14x224xf32> -> vector<14x224xf32>
    %35 = arith.addf %31, %34 : vector<14x224xf32>
    %36 = arith.maximumf %24, %35 : vector<14x224xf32>
    %c0_36 = arith.constant 0 : index
    %c0_37 = arith.constant 0 : index
    %c0_38 = arith.constant 0 : index
    %37 = vector.load %arg3[%c0_36, %c0_37, %c0_38] : memref<6x28x224xf32, #tpu.memory_space<vmem>>, vector<1x28x224xf32>
    %38 = vector.shape_cast %37 : vector<1x28x224xf32> to vector<28x224xf32>
    %cst_39 = arith.constant dense<0.000000e+00> : vector<14x224xf32>
    %39 = tpu.matmul %7, %38, %cst_39 {dimension_numbers = #tpu.dot_dimension_numbers<[1], [0], [0], [1], [0, 0, 1, 1], [], []>} : vector<14x28xf32>, vector<28x224xf32>, vector<14x224xf32> -> vector<14x224xf32>
    %c2_40 = arith.constant 2 : index
    %c0_41 = arith.constant 0 : index
    %c0_42 = arith.constant 0 : index
    %40 = vector.load %arg3[%c2_40, %c0_41, %c0_42] : memref<6x28x224xf32, #tpu.memory_space<vmem>>, vector<1x28x224xf32>
    %41 = vector.shape_cast %40 : vector<1x28x224xf32> to vector<28x224xf32>
    %cst_43 = arith.constant dense<0.000000e+00> : vector<14x224xf32>
    %42 = tpu.matmul %10, %41, %cst_43 {dimension_numbers = #tpu.dot_dimension_numbers<[1], [0], [0], [1], [0, 0, 1, 1], [], []>} : vector<14x28xf32>, vector<28x224xf32>, vector<14x224xf32> -> vector<14x224xf32>
    %43 = arith.addf %39, %42 : vector<14x224xf32>
    %c4_44 = arith.constant 4 : index
    %c0_45 = arith.constant 0 : index
    %c0_46 = arith.constant 0 : index
    %44 = vector.load %arg3[%c4_44, %c0_45, %c0_46] : memref<6x28x224xf32, #tpu.memory_space<vmem>>, vector<1x28x224xf32>
    %45 = vector.shape_cast %44 : vector<1x28x224xf32> to vector<28x224xf32>
    %cst_47 = arith.constant dense<0.000000e+00> : vector<14x224xf32>
    %46 = tpu.matmul %13, %45, %cst_47 {dimension_numbers = #tpu.dot_dimension_numbers<[1], [0], [0], [1], [0, 0, 1, 1], [], []>} : vector<14x28xf32>, vector<28x224xf32>, vector<14x224xf32> -> vector<14x224xf32>
    %47 = arith.addf %43, %46 : vector<14x224xf32>
    %48 = arith.maximumf %36, %47 : vector<14x224xf32>
    %c1_48 = arith.constant 1 : index
    %c0_49 = arith.constant 0 : index
    %c0_50 = arith.constant 0 : index
    %49 = vector.load %arg3[%c1_48, %c0_49, %c0_50] : memref<6x28x224xf32, #tpu.memory_space<vmem>>, vector<1x28x224xf32>
    %50 = vector.shape_cast %49 : vector<1x28x224xf32> to vector<28x224xf32>
    %cst_51 = arith.constant dense<0.000000e+00> : vector<14x224xf32>
    %51 = tpu.matmul %7, %50, %cst_51 {dimension_numbers = #tpu.dot_dimension_numbers<[1], [0], [0], [1], [0, 0, 1, 1], [], []>} : vector<14x28xf32>, vector<28x224xf32>, vector<14x224xf32> -> vector<14x224xf32>
    %c3_52 = arith.constant 3 : index
    %c0_53 = arith.constant 0 : index
    %c0_54 = arith.constant 0 : index
    %52 = vector.load %arg3[%c3_52, %c0_53, %c0_54] : memref<6x28x224xf32, #tpu.memory_space<vmem>>, vector<1x28x224xf32>
    %53 = vector.shape_cast %52 : vector<1x28x224xf32> to vector<28x224xf32>
    %cst_55 = arith.constant dense<0.000000e+00> : vector<14x224xf32>
    %54 = tpu.matmul %10, %53, %cst_55 {dimension_numbers = #tpu.dot_dimension_numbers<[1], [0], [0], [1], [0, 0, 1, 1], [], []>} : vector<14x28xf32>, vector<28x224xf32>, vector<14x224xf32> -> vector<14x224xf32>
    %55 = arith.addf %51, %54 : vector<14x224xf32>
    %c5_56 = arith.constant 5 : index
    %c0_57 = arith.constant 0 : index
    %c0_58 = arith.constant 0 : index
    %56 = vector.load %arg3[%c5_56, %c0_57, %c0_58] : memref<6x28x224xf32, #tpu.memory_space<vmem>>, vector<1x28x224xf32>
    %57 = vector.shape_cast %56 : vector<1x28x224xf32> to vector<28x224xf32>
    %cst_59 = arith.constant dense<0.000000e+00> : vector<14x224xf32>
    %58 = tpu.matmul %13, %57, %cst_59 {dimension_numbers = #tpu.dot_dimension_numbers<[1], [0], [0], [1], [0, 0, 1, 1], [], []>} : vector<14x28xf32>, vector<28x224xf32>, vector<14x224xf32> -> vector<14x224xf32>
    %59 = arith.addf %55, %58 : vector<14x224xf32>
    %60 = arith.maximumf %48, %59 : vector<14x224xf32>
    %c0_60 = arith.constant 0 : index
    %c0_61 = arith.constant 0 : index
    %61 = vector.load %arg4[%c0_60, %c0_61] : memref<1x224xf32, #tpu.memory_space<vmem>>, vector<1x224xf32>
    %62 = vector.broadcast %61 : vector<1x224xf32> to vector<14x224xf32>
    %63 = arith.addf %60, %62 : vector<14x224xf32>
    %cst_62 = arith.constant 0.000000e+00 : f32
    %64 = vector.broadcast %cst_62 : f32 to vector<14x224xf32>
    %65 = arith.maximumf %63, %64 : vector<14x224xf32>
    %c0_63 = arith.constant 0 : index
    %c0_64 = arith.constant 0 : index
    %c0_65 = arith.constant 0 : index
    %66 = vector.load %arg5[%c0_63, %c0_64, %c0_65] : memref<4x7x14xf32, #tpu.memory_space<vmem>>, vector<1x7x14xf32>
    %67 = vector.shape_cast %66 : vector<1x7x14xf32> to vector<7x14xf32>
    %cst_66 = arith.constant dense<0.000000e+00> : vector<7x224xf32>
    %68 = tpu.matmul %67, %65, %cst_66 {dimension_numbers = #tpu.dot_dimension_numbers<[1], [0], [0], [1], [0, 0, 1, 1], [], []>} : vector<7x14xf32>, vector<14x224xf32>, vector<7x224xf32> -> vector<7x224xf32>
    %c1_67 = arith.constant 1 : index
    %c0_68 = arith.constant 0 : index
    %c0_69 = arith.constant 0 : index
    %69 = vector.load %arg5[%c1_67, %c0_68, %c0_69] : memref<4x7x14xf32, #tpu.memory_space<vmem>>, vector<1x7x14xf32>
    %70 = vector.shape_cast %69 : vector<1x7x14xf32> to vector<7x14xf32>
    %cst_70 = arith.constant dense<0.000000e+00> : vector<7x224xf32>
    %71 = tpu.matmul %70, %65, %cst_70 {dimension_numbers = #tpu.dot_dimension_numbers<[1], [0], [0], [1], [0, 0, 1, 1], [], []>} : vector<7x14xf32>, vector<14x224xf32>, vector<7x224xf32> -> vector<7x224xf32>
    %c2_71 = arith.constant 2 : index
    %c0_72 = arith.constant 0 : index
    %c0_73 = arith.constant 0 : index
    %72 = vector.load %arg5[%c2_71, %c0_72, %c0_73] : memref<4x7x14xf32, #tpu.memory_space<vmem>>, vector<1x7x14xf32>
    %73 = vector.shape_cast %72 : vector<1x7x14xf32> to vector<7x14xf32>
    %cst_74 = arith.constant dense<0.000000e+00> : vector<7x224xf32>
    %74 = tpu.matmul %73, %65, %cst_74 {dimension_numbers = #tpu.dot_dimension_numbers<[1], [0], [0], [1], [0, 0, 1, 1], [], []>} : vector<7x14xf32>, vector<14x224xf32>, vector<7x224xf32> -> vector<7x224xf32>
    %c3_75 = arith.constant 3 : index
    %c0_76 = arith.constant 0 : index
    %c0_77 = arith.constant 0 : index
    %75 = vector.load %arg5[%c3_75, %c0_76, %c0_77] : memref<4x7x14xf32, #tpu.memory_space<vmem>>, vector<1x7x14xf32>
    %76 = vector.shape_cast %75 : vector<1x7x14xf32> to vector<7x14xf32>
    %cst_78 = arith.constant dense<0.000000e+00> : vector<7x224xf32>
    %77 = tpu.matmul %76, %65, %cst_78 {dimension_numbers = #tpu.dot_dimension_numbers<[1], [0], [0], [1], [0, 0, 1, 1], [], []>} : vector<7x14xf32>, vector<14x224xf32>, vector<7x224xf32> -> vector<7x224xf32>
    %c0_79 = arith.constant 0 : index
    %c0_80 = arith.constant 0 : index
    %c0_81 = arith.constant 0 : index
    %78 = vector.load %arg6[%c0_79, %c0_80, %c0_81] : memref<6x224x224xf32, #tpu.memory_space<vmem>>, vector<1x224x224xf32>
    %79 = vector.shape_cast %78 : vector<1x224x224xf32> to vector<224x224xf32>
    %cst_82 = arith.constant dense<0.000000e+00> : vector<7x224xf32>
    %80 = tpu.matmul %68, %79, %cst_82 {dimension_numbers = #tpu.dot_dimension_numbers<[1], [0], [0], [1], [0, 0, 1, 1], [], []>} : vector<7x224xf32>, vector<224x224xf32>, vector<7x224xf32> -> vector<7x224xf32>
    %c2_83 = arith.constant 2 : index
    %c0_84 = arith.constant 0 : index
    %c0_85 = arith.constant 0 : index
    %81 = vector.load %arg6[%c2_83, %c0_84, %c0_85] : memref<6x224x224xf32, #tpu.memory_space<vmem>>, vector<1x224x224xf32>
    %82 = vector.shape_cast %81 : vector<1x224x224xf32> to vector<224x224xf32>
    %cst_86 = arith.constant dense<0.000000e+00> : vector<7x224xf32>
    %83 = tpu.matmul %71, %82, %cst_86 {dimension_numbers = #tpu.dot_dimension_numbers<[1], [0], [0], [1], [0, 0, 1, 1], [], []>} : vector<7x224xf32>, vector<224x224xf32>, vector<7x224xf32> -> vector<7x224xf32>
    %84 = arith.addf %80, %83 : vector<7x224xf32>
    %c4_87 = arith.constant 4 : index
    %c0_88 = arith.constant 0 : index
    %c0_89 = arith.constant 0 : index
    %85 = vector.load %arg6[%c4_87, %c0_88, %c0_89] : memref<6x224x224xf32, #tpu.memory_space<vmem>>, vector<1x224x224xf32>
    %86 = vector.shape_cast %85 : vector<1x224x224xf32> to vector<224x224xf32>
    %cst_90 = arith.constant dense<0.000000e+00> : vector<7x224xf32>
    %87 = tpu.matmul %74, %86, %cst_90 {dimension_numbers = #tpu.dot_dimension_numbers<[1], [0], [0], [1], [0, 0, 1, 1], [], []>} : vector<7x224xf32>, vector<224x224xf32>, vector<7x224xf32> -> vector<7x224xf32>
    %88 = arith.addf %84, %87 : vector<7x224xf32>
    %c1_91 = arith.constant 1 : index
    %c0_92 = arith.constant 0 : index
    %c0_93 = arith.constant 0 : index
    %89 = vector.load %arg6[%c1_91, %c0_92, %c0_93] : memref<6x224x224xf32, #tpu.memory_space<vmem>>, vector<1x224x224xf32>
    %90 = vector.shape_cast %89 : vector<1x224x224xf32> to vector<224x224xf32>
    %cst_94 = arith.constant dense<0.000000e+00> : vector<7x224xf32>
    %91 = tpu.matmul %68, %90, %cst_94 {dimension_numbers = #tpu.dot_dimension_numbers<[1], [0], [0], [1], [0, 0, 1, 1], [], []>} : vector<7x224xf32>, vector<224x224xf32>, vector<7x224xf32> -> vector<7x224xf32>
    %c3_95 = arith.constant 3 : index
    %c0_96 = arith.constant 0 : index
    %c0_97 = arith.constant 0 : index
    %92 = vector.load %arg6[%c3_95, %c0_96, %c0_97] : memref<6x224x224xf32, #tpu.memory_space<vmem>>, vector<1x224x224xf32>
    %93 = vector.shape_cast %92 : vector<1x224x224xf32> to vector<224x224xf32>
    %cst_98 = arith.constant dense<0.000000e+00> : vector<7x224xf32>
    %94 = tpu.matmul %71, %93, %cst_98 {dimension_numbers = #tpu.dot_dimension_numbers<[1], [0], [0], [1], [0, 0, 1, 1], [], []>} : vector<7x224xf32>, vector<224x224xf32>, vector<7x224xf32> -> vector<7x224xf32>
    %95 = arith.addf %91, %94 : vector<7x224xf32>
    %c5_99 = arith.constant 5 : index
    %c0_100 = arith.constant 0 : index
    %c0_101 = arith.constant 0 : index
    %96 = vector.load %arg6[%c5_99, %c0_100, %c0_101] : memref<6x224x224xf32, #tpu.memory_space<vmem>>, vector<1x224x224xf32>
    %97 = vector.shape_cast %96 : vector<1x224x224xf32> to vector<224x224xf32>
    %cst_102 = arith.constant dense<0.000000e+00> : vector<7x224xf32>
    %98 = tpu.matmul %74, %97, %cst_102 {dimension_numbers = #tpu.dot_dimension_numbers<[1], [0], [0], [1], [0, 0, 1, 1], [], []>} : vector<7x224xf32>, vector<224x224xf32>, vector<7x224xf32> -> vector<7x224xf32>
    %99 = arith.addf %95, %98 : vector<7x224xf32>
    %100 = arith.maximumf %88, %99 : vector<7x224xf32>
    %c0_103 = arith.constant 0 : index
    %c0_104 = arith.constant 0 : index
    %c0_105 = arith.constant 0 : index
    %101 = vector.load %arg6[%c0_103, %c0_104, %c0_105] : memref<6x224x224xf32, #tpu.memory_space<vmem>>, vector<1x224x224xf32>
    %102 = vector.shape_cast %101 : vector<1x224x224xf32> to vector<224x224xf32>
    %cst_106 = arith.constant dense<0.000000e+00> : vector<7x224xf32>
    %103 = tpu.matmul %71, %102, %cst_106 {dimension_numbers = #tpu.dot_dimension_numbers<[1], [0], [0], [1], [0, 0, 1, 1], [], []>} : vector<7x224xf32>, vector<224x224xf32>, vector<7x224xf32> -> vector<7x224xf32>
    %c2_107 = arith.constant 2 : index
    %c0_108 = arith.constant 0 : index
    %c0_109 = arith.constant 0 : index
    %104 = vector.load %arg6[%c2_107, %c0_108, %c0_109] : memref<6x224x224xf32, #tpu.memory_space<vmem>>, vector<1x224x224xf32>
    %105 = vector.shape_cast %104 : vector<1x224x224xf32> to vector<224x224xf32>
    %cst_110 = arith.constant dense<0.000000e+00> : vector<7x224xf32>
    %106 = tpu.matmul %74, %105, %cst_110 {dimension_numbers = #tpu.dot_dimension_numbers<[1], [0], [0], [1], [0, 0, 1, 1], [], []>} : vector<7x224xf32>, vector<224x224xf32>, vector<7x224xf32> -> vector<7x224xf32>
    %107 = arith.addf %103, %106 : vector<7x224xf32>
    %c4_111 = arith.constant 4 : index
    %c0_112 = arith.constant 0 : index
    %c0_113 = arith.constant 0 : index
    %108 = vector.load %arg6[%c4_111, %c0_112, %c0_113] : memref<6x224x224xf32, #tpu.memory_space<vmem>>, vector<1x224x224xf32>
    %109 = vector.shape_cast %108 : vector<1x224x224xf32> to vector<224x224xf32>
    %cst_114 = arith.constant dense<0.000000e+00> : vector<7x224xf32>
    %110 = tpu.matmul %77, %109, %cst_114 {dimension_numbers = #tpu.dot_dimension_numbers<[1], [0], [0], [1], [0, 0, 1, 1], [], []>} : vector<7x224xf32>, vector<224x224xf32>, vector<7x224xf32> -> vector<7x224xf32>
    %111 = arith.addf %107, %110 : vector<7x224xf32>
    %112 = arith.maximumf %100, %111 : vector<7x224xf32>
    %c1_115 = arith.constant 1 : index
    %c0_116 = arith.constant 0 : index
    %c0_117 = arith.constant 0 : index
    %113 = vector.load %arg6[%c1_115, %c0_116, %c0_117] : memref<6x224x224xf32, #tpu.memory_space<vmem>>, vector<1x224x224xf32>
    %114 = vector.shape_cast %113 : vector<1x224x224xf32> to vector<224x224xf32>
    %cst_118 = arith.constant dense<0.000000e+00> : vector<7x224xf32>
    %115 = tpu.matmul %71, %114, %cst_118 {dimension_numbers = #tpu.dot_dimension_numbers<[1], [0], [0], [1], [0, 0, 1, 1], [], []>} : vector<7x224xf32>, vector<224x224xf32>, vector<7x224xf32> -> vector<7x224xf32>
    %c3_119 = arith.constant 3 : index
    %c0_120 = arith.constant 0 : index
    %c0_121 = arith.constant 0 : index
    %116 = vector.load %arg6[%c3_119, %c0_120, %c0_121] : memref<6x224x224xf32, #tpu.memory_space<vmem>>, vector<1x224x224xf32>
    %117 = vector.shape_cast %116 : vector<1x224x224xf32> to vector<224x224xf32>
    %cst_122 = arith.constant dense<0.000000e+00> : vector<7x224xf32>
    %118 = tpu.matmul %74, %117, %cst_122 {dimension_numbers = #tpu.dot_dimension_numbers<[1], [0], [0], [1], [0, 0, 1, 1], [], []>} : vector<7x224xf32>, vector<224x224xf32>, vector<7x224xf32> -> vector<7x224xf32>
    %119 = arith.addf %115, %118 : vector<7x224xf32>
    %c5_123 = arith.constant 5 : index
    %c0_124 = arith.constant 0 : index
    %c0_125 = arith.constant 0 : index
    %120 = vector.load %arg6[%c5_123, %c0_124, %c0_125] : memref<6x224x224xf32, #tpu.memory_space<vmem>>, vector<1x224x224xf32>
    %121 = vector.shape_cast %120 : vector<1x224x224xf32> to vector<224x224xf32>
    %cst_126 = arith.constant dense<0.000000e+00> : vector<7x224xf32>
    %122 = tpu.matmul %77, %121, %cst_126 {dimension_numbers = #tpu.dot_dimension_numbers<[1], [0], [0], [1], [0, 0, 1, 1], [], []>} : vector<7x224xf32>, vector<224x224xf32>, vector<7x224xf32> -> vector<7x224xf32>
    %123 = arith.addf %119, %122 : vector<7x224xf32>
    %124 = arith.maximumf %112, %123 : vector<7x224xf32>
    %c0_127 = arith.constant 0 : index
    %c0_128 = arith.constant 0 : index
    %125 = vector.load %arg7[%c0_127, %c0_128] : memref<1x224xf32, #tpu.memory_space<vmem>>, vector<1x224xf32>
    %126 = vector.broadcast %125 : vector<1x224xf32> to vector<7x224xf32>
    %127 = arith.addf %124, %126 : vector<7x224xf32>
    %cst_129 = arith.constant 0.000000e+00 : f32
    %128 = vector.broadcast %cst_129 : f32 to vector<7x224xf32>
    %129 = arith.maximumf %127, %128 : vector<7x224xf32>
    %c0_130 = arith.constant 0 : index
    %c0_131 = arith.constant 0 : index
    %c0_132 = arith.constant 0 : index
    %130 = vector.load %arg8[%c0_130, %c0_131, %c0_132] : memref<3x7x7xf32, #tpu.memory_space<vmem>>, vector<1x7x7xf32>
    %131 = vector.shape_cast %130 : vector<1x7x7xf32> to vector<7x7xf32>
    %cst_133 = arith.constant dense<0.000000e+00> : vector<7x224xf32>
    %132 = tpu.matmul %131, %129, %cst_133 {dimension_numbers = #tpu.dot_dimension_numbers<[1], [0], [0], [1], [0, 0, 1, 1], [], []>} : vector<7x7xf32>, vector<7x224xf32>, vector<7x224xf32> -> vector<7x224xf32>
    %c0_134 = arith.constant 0 : index
    %c0_135 = arith.constant 0 : index
    %c0_136 = arith.constant 0 : index
    %133 = vector.load %arg9[%c0_134, %c0_135, %c0_136] : memref<3x224x448xf32, #tpu.memory_space<vmem>>, vector<1x224x448xf32>
    %134 = vector.shape_cast %133 : vector<1x224x448xf32> to vector<224x448xf32>
    %cst_137 = arith.constant dense<0.000000e+00> : vector<7x448xf32>
    %135 = tpu.matmul %132, %134, %cst_137 {dimension_numbers = #tpu.dot_dimension_numbers<[1], [0], [0], [1], [0, 0, 1, 1], [], []>} : vector<7x224xf32>, vector<224x448xf32>, vector<7x448xf32> -> vector<7x448xf32>
    %c1_138 = arith.constant 1 : index
    %c0_139 = arith.constant 0 : index
    %c0_140 = arith.constant 0 : index
    %136 = vector.load %arg9[%c1_138, %c0_139, %c0_140] : memref<3x224x448xf32, #tpu.memory_space<vmem>>, vector<1x224x448xf32>
    %137 = vector.shape_cast %136 : vector<1x224x448xf32> to vector<224x448xf32>
    %cst_141 = arith.constant dense<0.000000e+00> : vector<7x448xf32>
    %138 = tpu.matmul %129, %137, %cst_141 {dimension_numbers = #tpu.dot_dimension_numbers<[1], [0], [0], [1], [0, 0, 1, 1], [], []>} : vector<7x224xf32>, vector<224x448xf32>, vector<7x448xf32> -> vector<7x448xf32>
    %139 = arith.addf %135, %138 : vector<7x448xf32>
    %c2_142 = arith.constant 2 : index
    %c0_143 = arith.constant 0 : index
    %c0_144 = arith.constant 0 : index
    %140 = vector.load %arg8[%c2_142, %c0_143, %c0_144] : memref<3x7x7xf32, #tpu.memory_space<vmem>>, vector<1x7x7xf32>
    %141 = vector.shape_cast %140 : vector<1x7x7xf32> to vector<7x7xf32>
    %cst_145 = arith.constant dense<0.000000e+00> : vector<7x224xf32>
    %142 = tpu.matmul %141, %129, %cst_145 {dimension_numbers = #tpu.dot_dimension_numbers<[1], [0], [0], [1], [0, 0, 1, 1], [], []>} : vector<7x7xf32>, vector<7x224xf32>, vector<7x224xf32> -> vector<7x224xf32>
    %c2_146 = arith.constant 2 : index
    %c0_147 = arith.constant 0 : index
    %c0_148 = arith.constant 0 : index
    %143 = vector.load %arg9[%c2_146, %c0_147, %c0_148] : memref<3x224x448xf32, #tpu.memory_space<vmem>>, vector<1x224x448xf32>
    %144 = vector.shape_cast %143 : vector<1x224x448xf32> to vector<224x448xf32>
    %cst_149 = arith.constant dense<0.000000e+00> : vector<7x448xf32>
    %145 = tpu.matmul %142, %144, %cst_149 {dimension_numbers = #tpu.dot_dimension_numbers<[1], [0], [0], [1], [0, 0, 1, 1], [], []>} : vector<7x224xf32>, vector<224x448xf32>, vector<7x448xf32> -> vector<7x448xf32>
    %146 = arith.addf %139, %145 : vector<7x448xf32>
    %c0_150 = arith.constant 0 : index
    %c0_151 = arith.constant 0 : index
    %147 = vector.load %arg10[%c0_150, %c0_151] : memref<1x448xf32, #tpu.memory_space<vmem>>, vector<1x448xf32>
    %148 = vector.broadcast %147 : vector<1x448xf32> to vector<7x448xf32>
    %149 = arith.addf %146, %148 : vector<7x448xf32>
    %cst_152 = arith.constant 0.000000e+00 : f32
    %150 = vector.broadcast %cst_152 : f32 to vector<7x448xf32>
    %151 = arith.maximumf %149, %150 : vector<7x448xf32>
    %c0_153 = arith.constant 0 : index
    %c0_154 = arith.constant 0 : index
    %c0_155 = arith.constant 0 : index
    %152 = vector.load %arg11[%c0_153, %c0_154, %c0_155] : memref<1x7x448xf32, #tpu.memory_space<vmem>>, vector<1x7x448xf32>
    %153 = vector.shape_cast %152 : vector<1x7x448xf32> to vector<7x448xf32>
    %154 = vector.shape_cast %151 : vector<7x448xf32> to vector<1x7x448xf32>
    tpu.vector_store %arg11[%c0_153, %c0_154, %c0_155], %154 {strides = array<i32>} : memref<1x7x448xf32, #tpu.memory_space<vmem>>, vector<1x7x448xf32>,
    return
  }
  func.func @transform_0(%arg0: i32) -> (i32, i32, i32) {
    %c0_i32 = arith.constant 0 : i32
    %c0_i32_0 = arith.constant 0 : i32
    %c0_i32_1 = arith.constant 0 : i32
    return %arg0, %c0_i32, %c0_i32_0 : i32, i32, i32
  }
  func.func @transform_1(%arg0: i32) -> (i32, i32, i32) {
    %c0_i32 = arith.constant 0 : i32
    %c0_i32_0 = arith.constant 0 : i32
    %c0_i32_1 = arith.constant 0 : i32
    %c0_i32_2 = arith.constant 0 : i32
    return %c0_i32, %c0_i32_0, %c0_i32_1 : i32, i32, i32
  }
  func.func @transform_2(%arg0: i32) -> (i32, i32, i32) {
    %c0_i32 = arith.constant 0 : i32
    %c0_i32_0 = arith.constant 0 : i32
    %c0_i32_1 = arith.constant 0 : i32
    %c0_i32_2 = arith.constant 0 : i32
    return %c0_i32, %c0_i32_0, %c0_i32_1 : i32, i32, i32
  }
  func.func @transform_3(%arg0: i32) -> (i32, i32) {
    %c0_i32 = arith.constant 0 : i32
    %c0_i32_0 = arith.constant 0 : i32
    %c0_i32_1 = arith.constant 0 : i32
    return %c0_i32, %c0_i32_0 : i32, i32
  }
  func.func @transform_4(%arg0: i32) -> (i32, i32, i32) {
    %c0_i32 = arith.constant 0 : i32
    %c0_i32_0 = arith.constant 0 : i32
    %c0_i32_1 = arith.constant 0 : i32
    %c0_i32_2 = arith.constant 0 : i32
    return %c0_i32, %c0_i32_0, %c0_i32_1 : i32, i32, i32
  }
  func.func @transform_5(%arg0: i32) -> (i32, i32, i32) {
    %c0_i32 = arith.constant 0 : i32
    %c0_i32_0 = arith.constant 0 : i32
    %c0_i32_1 = arith.constant 0 : i32
    %c0_i32_2 = arith.constant 0 : i32
    return %c0_i32, %c0_i32_0, %c0_i32_1 : i32, i32, i32
  }
  func.func @transform_6(%arg0: i32) -> (i32, i32) {
    %c0_i32 = arith.constant 0 : i32
    %c0_i32_0 = arith.constant 0 : i32
    %c0_i32_1 = arith.constant 0 : i32
    return %c0_i32, %c0_i32_0 : i32, i32
  }
  func.func @transform_7(%arg0: i32) -> (i32, i32, i32) {
    %c0_i32 = arith.constant 0 : i32
    %c0_i32_0 = arith.constant 0 : i32
    %c0_i32_1 = arith.constant 0 : i32
    %c0_i32_2 = arith.constant 0 : i32
    return %c0_i32, %c0_i32_0, %c0_i32_1 : i32, i32, i32
  }
  func.func @transform_8(%arg0: i32) -> (i32, i32, i32) {
    %c0_i32 = arith.constant 0 : i32
    %c0_i32_0 = arith.constant 0 : i32
    %c0_i32_1 = arith.constant 0 : i32
    %c0_i32_2 = arith.constant 0 : i32
    return %c0_i32, %c0_i32_0, %c0_i32_1 : i32, i32, i32
  }
  func.func @transform_9(%arg0: i32) -> (i32, i32) {
    %c0_i32 = arith.constant 0 : i32
    %c0_i32_0 = arith.constant 0 : i32
    %c0_i32_1 = arith.constant 0 : i32
    return %c0_i32, %c0_i32_0 : i32, i32
  }
  func.func @transform_10(%arg0: i32) -> (i32, i32, i32) {
    %c0_i32 = arith.constant 0 : i32
    %c0_i32_0 = arith.constant 0 : i32
    %c0_i32_1 = arith.constant 0 : i32
    return %arg0, %c0_i32, %c0_i32_0 : i32, i32, i32
  }
}

</mosaic_0001>

<llo_original>
// kernel: circlenet_forward.3
$region0: #{circlenet_forward.3}
  #allocation0 [shape = 'u32[]', space=smem, size = 0x4, offset = 0x4, fixed_abs, tag = 'smem constant byte address 0x4 - core index']
  #allocation1 [shape = 'u32[144,128]{1,0:T(1,128)}', space=vmem, size = 0x12000, scoped, tag = 'internal scratch']
  #allocation2 [shape = 'f32[1,1]{1,0:T(1,128)S(1)}', space=vmem, size = 0x200, scoped, tag = 'scoped memory for circlenet_forward.3']
  %s0 = inlined_call_operand.vmem [shape: f32[2,3136], index: 0, kind: input, shape index: {}]
  %s1 = inlined_call_operand.vmem [shape: f32[3136,128], index: 1, kind: input, shape index: {}]
  %s2 = inlined_call_operand.vmem [shape: f32[1,128], index: 2, kind: input, shape index: {}]
  %s3 = inlined_call_operand.vmem [shape: f32[128,1], index: 3, kind: input, shape index: {}]
  %s4 = inlined_call_operand.<no memory space> [shape: f32[1,1], index: 4, kind: input, shape index: {}]
  %s5 = inlined_call_operand.vmem [shape: f32[2,1], index: 5, kind: output, shape index: {}]
  %s6 = sld [smem:[#allocation0]]
  $region30: #{circlenet_forward.3} parent=0
    _
  %s8 = ssub.s32 1, %s6
  %s9 = scalar_select 0, %s8, %s6
  %v10 = vstv %s4
  %11 = vst [vmem:[#allocation2] sm:$0x1] %v10
  // Predicated region
  $region2: #{circlenet_forward.3} parent=0 // pred_check
    _
  $region3: #{circlenet_forward.3} parent=0 // pred_check_branch
    %13 = sbr.rel (0) target = $region5
  $region4: #{circlenet_forward.3} parent=0 // pred_region
    _
  $region5: #{circlenet_forward.3} parent=0 // pred_fallthru
    _
  // Predicated region
  $region6: #{circlenet_forward.3} parent=0 // pred_check
    _
  $region7: #{circlenet_forward.3} parent=0 // pred_check_branch
    %15 = sbr.rel (0) target = $region9
  $region8: #{circlenet_forward.3} parent=0 // pred_region
    _
  $region9: #{circlenet_forward.3} parent=0 // pred_fallthru
    _
  // Predicated region
  $region10: #{circlenet_forward.3} parent=0 // pred_check
    _
  $region11: #{circlenet_forward.3} parent=0 // pred_check_branch
    %17 = sbr.rel (0) target = $region13
  $region12: #{circlenet_forward.3} parent=0 // pred_region
    _
  $region13: #{circlenet_forward.3} parent=0 // pred_fallthru
    _
  // Predicated region
  $region14: #{circlenet_forward.3} parent=0 // pred_check
    _
  $region15: #{circlenet_forward.3} parent=0 // pred_check_branch
    %19 = sbr.rel (0) target = $region17
  $region16: #{circlenet_forward.3} parent=0 // pred_region
    _
  $region17: #{circlenet_forward.3} parent=0 // pred_fallthru
    _
  // Predicated region
  $region18: #{circlenet_forward.3} parent=0 // pred_check
    _
  $region19: #{circlenet_forward.3} parent=0 // pred_check_branch
    %21 = sbr.rel (0) target = $region21
  $region20: #{circlenet_forward.3} parent=0 // pred_region
    _
  $region21: #{circlenet_forward.3} parent=0 // pred_fallthru
    _
  %v22 = vld [vmem:[%s0] sm:$0xff]
  %v23 = vld [vmem:[%s0 + $0x8] sm:$0xff]
  %v24 = vld [vmem:[%s0 + $0x10] sm:$0xff]
  %v25 = vld [vmem:[%s0 + $0x18] sm:$0xff]
  %v26 = vld [vmem:[%s0 + $0x20] sm:$0xff]
  %v27 = vld [vmem:[%s0 + $0x28] sm:$0xff]
  %v28 = vld [vmem:[%s0 + $0x30] sm:$0x3]
  %v29 = vld [vmem:[%s1] sm:$0xff]
  %v30 = vld [vmem:[%s1 + $0x8] sm:$0xff]
  %v31 = vld [vmem:[%s1 + $0x10] sm:$0xff]
  %v32 = vld [vmem:[%s1 + $0x18] sm:$0xff]
  %v33 = vld [vmem:[%s1 + $0x20] sm:$0xff]
  %v34 = vld [vmem:[%s1 + $0x28] sm:$0xff]
  %v35 = vld [vmem:[%s1 + $0x30] sm:$0xff]
  %v36 = vld [vmem:[%s1 + $0x38] sm:$0xff]
  %v37 = vld [vmem:[%s1 + $0x40] sm:$0xff]
  %v38 = vld [vmem:[%s1 + $0x48] sm:$0xff]
  %v39 = vld [vmem:[%s1 + $0x50] sm:$0xff]
  %v40 = vld [vmem:[%s1 + $0x58] sm:$0xff]
  %v41 = vld [vmem:[%s1 + $0x60] sm:$0xff]
  %v42 = vld [vmem:[%s1 + $0x68] sm:$0xff]
  %v43 = vld [vmem:[%s1 + $0x70] sm:$0xff]
  %v44 = vld [vmem:[%s1 + $0x78] sm:$0xff]
  %v45 = vld [vmem:[%s1 + $0x80] sm:$0xff]
  %v46 = vld [vmem:[%s1 + $0x88] sm:$0xff]
  %v47 = vld [vmem:[%s1 + $0x90] sm:$0xff]
  %v48 = vld [vmem:[%s1 + $0x98] sm:$0xff]
  %v49 = vld [vmem:[%s1 + $0xa0] sm:$0xff]
  %v50 = vld [vmem:[%s1 + $0xa8] sm:$0xff]
  %v51 = vld [vmem:[%s1 + $0xb0] sm:$0xff]
  %v52 = vld [vmem:[%s1 + $0xb8] sm:$0xff]
  %v53 = vld [vmem:[%s1 + $0xc0] sm:$0xff]
  %v54 = vld [vmem:[%s1 + $0xc8] sm:$0xff]
  %v55 = vld [vmem:[%s1 + $0xd0] sm:$0xff]
  %v56 = vld [vmem:[%s1 + $0xd8] sm:$0xff]
  %v57 = vld [vmem:[%s1 + $0xe0] sm:$0xff]
  %v58 = vld [vmem:[%s1 + $0xe8] sm:$0xff]
  %v59 = vld [vmem:[%s1 + $0xf0] sm:$0xff]
  %v60 = vld [vmem:[%s1 + $0xf8] sm:$0xff]
  %v61 = vld [vmem:[%s1 + $0x100] sm:$0xff]
  %v62 = vld [vmem:[%s1 + $0x108] sm:$0xff]
  %v63 = vld [vmem:[%s1 + $0x110] sm:$0xff]
  %v64 = vld [vmem:[%s1 + $0x118] sm:$0xff]
  %v65 = vld [vmem:[%s1 + $0x120] sm:$0xff]
  %v66 = vld [vmem:[%s1 + $0x128] sm:$0xff]
  %v67 = vld [vmem:[%s1 + $0x130] sm:$0xff]
  %v68 = vld [vmem:[%s1 + $0x138] sm:$0xff]
  %v69 = vld [vmem:[%s1 + $0x140] sm:$0xff]
  %v70 = vld [vmem:[%s1 + $0x148] sm:$0xff]
  %v71 = vld [vmem:[%s1 + $0x150] sm:$0xff]
  %v72 = vld [vmem:[%s1 + $0x158] sm:$0xff]
  %v73 = vld [vmem:[%s1 + $0x160] sm:$0xff]
  %v74 = vld [vmem:[%s1 + $0x168] sm:$0xff]
  %v75 = vld [vmem:[%s1 + $0x170] sm:$0xff]
  %v76 = vld [vmem:[%s1 + $0x178] sm:$0xff]
  %v77 = vld [vmem:[%s1 + $0x180] sm:$0xff]
  %v78 = vld [vmem:[%s1 + $0x188] sm:$0xff]
  %v79 = vld [vmem:[%s1 + $0x190] sm:$0xff]
  %v80 = vld [vmem:[%s1 + $0x198] sm:$0xff]
  %v81 = vld [vmem:[%s1 + $0x1a0] sm:$0xff]
  %v82 = vld [vmem:[%s1 + $0x1a8] sm:$0xff]
  %v83 = vld [vmem:[%s1 + $0x1b0] sm:$0xff]
  %v84 = vld [vmem:[%s1 + $0x1b8] sm:$0xff]
  %v85 = vld [vmem:[%s1 + $0x1c0] sm:$0xff]
  %v86 = vld [vmem:[%s1 + $0x1c8] sm:$0xff]
  %v87 = vld [vmem:[%s1 + $0x1d0] sm:$0xff]
  %v88 = vld [vmem:[%s1 + $0x1d8] sm:$0xff]
  %v89 = vld [vmem:[%s1 + $0x1e0] sm:$0xff]
  %v90 = vld [vmem:[%s1 + $0x1e8] sm:$0xff]
  %v91 = vld [vmem:[%s1 + $0x1f0] sm:$0xff]
  %v92 = vld [vmem:[%s1 + $0x1f8] sm:$0xff]
  %v93 = vld [vmem:[%s1 + $0x200] sm:$0xff]
  %v94 = vld [vmem:[%s1 + $0x208] sm:$0xff]
  %v95 = vld [vmem:[%s1 + $0x210] sm:$0xff]
  %v96 = vld [vmem:[%s1 + $0x218] sm:$0xff]
  %v97 = vld [vmem:[%s1 + $0x220] sm:$0xff]
  %v98 = vld [vmem:[%s1 + $0x228] sm:$0xff]
  %v99 = vld [vmem:[%s1 + $0x230] sm:$0xff]
  %v100 = vld [vmem:[%s1 + $0x238] sm:$0xff]
  %v101 = vld [vmem:[%s1 + $0x240] sm:$0xff]
  %v102 = vld [vmem:[%s1 + $0x248] sm:$0xff]
  %v103 = vld [vmem:[%s1 + $0x250] sm:$0xff]
  %v104 = vld [vmem:[%s1 + $0x258] sm:$0xff]
  %v105 = vld [vmem:[%s1 + $0x260] sm:$0xff]
  %v106 = vld [vmem:[%s1 + $0x268] sm:$0xff]
  %v107 = vld [vmem:[%s1 + $0x270] sm:$0xff]
  %v108 = vld [vmem:[%s1 + $0x278] sm:$0xff]
  %v109 = vld [vmem:[%s1 + $0x280] sm:$0xff]
  %v110 = vld [vmem:[%s1 + $0x288] sm:$0xff]
  %v111 = vld [vmem:[%s1 + $0x290] sm:$0xff]
  %v112 = vld [vmem:[%s1 + $0x298] sm:$0xff]
  %v113 = vld [vmem:[%s1 + $0x2a0] sm:$0xff]
  %v114 = vld [vmem:[%s1 + $0x2a8] sm:$0xff]
  %v115 = vld [vmem:[%s1 + $0x2b0] sm:$0xff]
  %v116 = vld [vmem:[%s1 + $0x2b8] sm:$0xff]
  %v117 = vld [vmem:[%s1 + $0x2c0] sm:$0xff]
  %v118 = vld [vmem:[%s1 + $0x2c8] sm:$0xff]
  %v119 = vld [vmem:[%s1 + $0x2d0] sm:$0xff]
  %v120 = vld [vmem:[%s1 + $0x2d8] sm:$0xff]
  %v121 = vld [vmem:[%s1 + $0x2e0] sm:$0xff]
  %v122 = vld [vmem:[%s1 + $0x2e8] sm:$0xff]
  %v123 = vld [vmem:[%s1 + $0x2f0] sm:$0xff]
  %v124 = vld [vmem:[%s1 + $0x2f8] sm:$0xff]
  %v125 = vld [vmem:[%s1 + $0x300] sm:$0xff]
  %v126 = vld [vmem:[%s1 + $0x308] sm:$0xff]
  %v127 = vld [vmem:[%s1 + $0x310] sm:$0xff]
  %v128 = vld [vmem:[%s1 + $0x318] sm:$0xff]
  %v129 = vld [vmem:[%s1 + $0x320] sm:$0xff]
  %v130 = vld [vmem:[%s1 + $0x328] sm:$0xff]
  %v131 = vld [vmem:[%s1 + $0x330] sm:$0xff]
  %v132 = vld [vmem:[%s1 + $0x338] sm:$0xff]
  %v133 = vld [vmem:[%s1 + $0x340] sm:$0xff]
  %v134 = vld [vmem:[%s1 + $0x348] sm:$0xff]
  %v135 = vld [vmem:[%s1 + $0x350] sm:$0xff]
  %v136 = vld [vmem:[%s1 + $0x358] sm:$0xff]
  %v137 = vld [vmem:[%s1 + $0x360] sm:$0xff]
  %v138 = vld [vmem:[%s1 + $0x368] sm:$0xff]
  %v139 = vld [vmem:[%s1 + $0x370] sm:$0xff]
  %v140 = vld [vmem:[%s1 + $0x378] sm:$0xff]
  %v141 = vld [vmem:[%s1 + $0x380] sm:$0xff]
  %v142 = vld [vmem:[%s1 + $0x388] sm:$0xff]
  %v143 = vld [vmem:[%s1 + $0x390] sm:$0xff]
  %v144 = vld [vmem:[%s1 + $0x398] sm:$0xff]
  %v145 = vld [vmem:[%s1 + $0x3a0] sm:$0xff]
  %v146 = vld [vmem:[%s1 + $0x3a8] sm:$0xff]
  %v147 = vld [vmem:[%s1 + $0x3b0] sm:$0xff]
  %v148 = vld [vmem:[%s1 + $0x3b8] sm:$0xff]
  %v149 = vld [vmem:[%s1 + $0x3c0] sm:$0xff]
  %v150 = vld [vmem:[%s1 + $0x3c8] sm:$0xff]
  %v151 = vld [vmem:[%s1 + $0x3d0] sm:$0xff]
  %v152 = vld [vmem:[%s1 + $0x3d8] sm:$0xff]
  %v153 = vld [vmem:[%s1 + $0x3e0] sm:$0xff]
  %v154 = vld [vmem:[%s1 + $0x3e8] sm:$0xff]
  %v155 = vld [vmem:[%s1 + $0x3f0] sm:$0xff]
  %v156 = vld [vmem:[%s1 + $0x3f8] sm:$0xff]
  %v157 = vld [vmem:[%s1 + $0x400] sm:$0xff]
  %v158 = vld [vmem:[%s1 + $0x408] sm:$0xff]
  %v159 = vld [vmem:[%s1 + $0x410] sm:$0xff]
  %v160 = vld [vmem:[%s1 + $0x418] sm:$0xff]
  %v161 = vld [vmem:[%s1 + $0x420] sm:$0xff]
  %v162 = vld [vmem:[%s1 + $0x428] sm:$0xff]
  %v163 = vld [vmem:[%s1 + $0x430] sm:$0xff]
  %v164 = vld [vmem:[%s1 + $0x438] sm:$0xff]
  %v165 = vld [vmem:[%s1 + $0x440] sm:$0xff]
  %v166 = vld [vmem:[%s1 + $0x448] sm:$0xff]
  %v167 = vld [vmem:[%s1 + $0x450] sm:$0xff]
  %v168 = vld [vmem:[%s1 + $0x458] sm:$0xff]
  %v169 = vld [vmem:[%s1 + $0x460] sm:$0xff]
  %v170 = vld [vmem:[%s1 + $0x468] sm:$0xff]
  %v171 = vld [vmem:[%s1 + $0x470] sm:$0xff]
  %v172 = vld [vmem:[%s1 + $0x478] sm:$0xff]
  %v173 = vld [vmem:[%s1 + $0x480] sm:$0xff]
  %v174 = vld [vmem:[%s1 + $0x488] sm:$0xff]
  %v175 = vld [vmem:[%s1 + $0x490] sm:$0xff]
  %v176 = vld [vmem:[%s1 + $0x498] sm:$0xff]
  %v177 = vld [vmem:[%s1 + $0x4a0] sm:$0xff]
  %v178 = vld [vmem:[%s1 + $0x4a8] sm:$0xff]
  %v179 = vld [vmem:[%s1 + $0x4b0] sm:$0xff]
  %v180 = vld [vmem:[%s1 + $0x4b8] sm:$0xff]
  %v181 = vld [vmem:[%s1 + $0x4c0] sm:$0xff]
  %v182 = vld [vmem:[%s1 + $0x4c8] sm:$0xff]
  %v183 = vld [vmem:[%s1 + $0x4d0] sm:$0xff]
  %v184 = vld [vmem:[%s1 + $0x4d8] sm:$0xff]
  %v185 = vld [vmem:[%s1 + $0x4e0] sm:$0xff]
  %v186 = vld [vmem:[%s1 + $0x4e8] sm:$0xff]
  %v187 = vld [vmem:[%s1 + $0x4f0] sm:$0xff]
  %v188 = vld [vmem:[%s1 + $0x4f8] sm:$0xff]
  %v189 = vld [vmem:[%s1 + $0x500] sm:$0xff]
  %v190 = vld [vmem:[%s1 + $0x508] sm:$0xff]
  %v191 = vld [vmem:[%s1 + $0x510] sm:$0xff]
  %v192 = vld [vmem:[%s1 + $0x518] sm:$0xff]
  %v193 = vld [vmem:[%s1 + $0x520] sm:$0xff]
  %v194 = vld [vmem:[%s1 + $0x528] sm:$0xff]
  %v195 = vld [vmem:[%s1 + $0x530] sm:$0xff]
  %v196 = vld [vmem:[%s1 + $0x538] sm:$0xff]
  %v197 = vld [vmem:[%s1 + $0x540] sm:$0xff]
  %v198 = vld [vmem:[%s1 + $0x548] sm:$0xff]
  %v199 = vld [vmem:[%s1 + $0x550] sm:$0xff]
  %v200 = vld [vmem:[%s1 + $0x558] sm:$0xff]
  %v201 = vld [vmem:[%s1 + $0x560] sm:$0xff]
  %v202 = vld [vmem:[%s1 + $0x568] sm:$0xff]
  %v203 = vld [vmem:[%s1 + $0x570] sm:$0xff]
  %v204 = vld [vmem:[%s1 + $0x578] sm:$0xff]
  %v205 = vld [vmem:[%s1 + $0x580] sm:$0xff]
  %v206 = vld [vmem:[%s1 + $0x588] sm:$0xff]
  %v207 = vld [vmem:[%s1 + $0x590] sm:$0xff]
  %v208 = vld [vmem:[%s1 + $0x598] sm:$0xff]
  %v209 = vld [vmem:[%s1 + $0x5a0] sm:$0xff]
  %v210 = vld [vmem:[%s1 + $0x5a8] sm:$0xff]
  %v211 = vld [vmem:[%s1 + $0x5b0] sm:$0xff]
  %v212 = vld [vmem:[%s1 + $0x5b8] sm:$0xff]
  %v213 = vld [vmem:[%s1 + $0x5c0] sm:$0xff]
  %v214 = vld [vmem:[%s1 + $0x5c8] sm:$0xff]
  %v215 = vld [vmem:[%s1 + $0x5d0] sm:$0xff]
  %v216 = vld [vmem:[%s1 + $0x5d8] sm:$0xff]
  %v217 = vld [vmem:[%s1 + $0x5e0] sm:$0xff]
  %v218 = vld [vmem:[%s1 + $0x5e8] sm:$0xff]
  %v219 = vld [vmem:[%s1 + $0x5f0] sm:$0xff]
  %v220 = vld [vmem:[%s1 + $0x5f8] sm:$0xff]
  %v221 = vld [vmem:[%s1 + $0x600] sm:$0xff]
  %v222 = vld [vmem:[%s1 + $0x608] sm:$0xff]
  %v223 = vld [vmem:[%s1 + $0x610] sm:$0xff]
  %v224 = vld [vmem:[%s1 + $0x618] sm:$0xff]
  %v225 = vld [vmem:[%s1 + $0x620] sm:$0xff]
  %v226 = vld [vmem:[%s1 + $0x628] sm:$0xff]
  %v227 = vld [vmem:[%s1 + $0x630] sm:$0xff]
  %v228 = vld [vmem:[%s1 + $0x638] sm:$0xff]
  %v229 = vld [vmem:[%s1 + $0x640] sm:$0xff]
  %v230 = vld [vmem:[%s1 + $0x648] sm:$0xff]
  %v231 = vld [vmem:[%s1 + $0x650] sm:$0xff]
  %v232 = vld [vmem:[%s1 + $0x658] sm:$0xff]
  %v233 = vld [vmem:[%s1 + $0x660] sm:$0xff]
  %v234 = vld [vmem:[%s1 + $0x668] sm:$0xff]
  %v235 = vld [vmem:[%s1 + $0x670] sm:$0xff]
  %v236 = vld [vmem:[%s1 + $0x678] sm:$0xff]
  %v237 = vld [vmem:[%s1 + $0x680] sm:$0xff]
  %v238 = vld [vmem:[%s1 + $0x688] sm:$0xff]
  %v239 = vld [vmem:[%s1 + $0x690] sm:$0xff]
  %v240 = vld [vmem:[%s1 + $0x698] sm:$0xff]
  %v241 = vld [vmem:[%s1 + $0x6a0] sm:$0xff]
  %v242 = vld [vmem:[%s1 + $0x6a8] sm:$0xff]
  %v243 = vld [vmem:[%s1 + $0x6b0] sm:$0xff]
  %v244 = vld [vmem:[%s1 + $0x6b8] sm:$0xff]
  %v245 = vld [vmem:[%s1 + $0x6c0] sm:$0xff]
  %v246 = vld [vmem:[%s1 + $0x6c8] sm:$0xff]
  %v247 = vld [vmem:[%s1 + $0x6d0] sm:$0xff]
  %v248 = vld [vmem:[%s1 + $0x6d8] sm:$0xff]
  %v249 = vld [vmem:[%s1 + $0x6e0] sm:$0xff]
  %v250 = vld [vmem:[%s1 + $0x6e8] sm:$0xff]
  %v251 = vld [vmem:[%s1 + $0x6f0] sm:$0xff]
  %v252 = vld [vmem:[%s1 + $0x6f8] sm:$0xff]
  %v253 = vld [vmem:[%s1 + $0x700] sm:$0xff]
  %v254 = vld [vmem:[%s1 + $0x708] sm:$0xff]
  %v255 = vld [vmem:[%s1 + $0x710] sm:$0xff]
  %v256 = vld [vmem:[%s1 + $0x718] sm:$0xff]
  %v257 = vld [vmem:[%s1 + $0x720] sm:$0xff]
  %v258 = vld [vmem:[%s1 + $0x728] sm:$0xff]
  %v259 = vld [vmem:[%s1 + $0x730] sm:$0xff]
  %v260 = vld [vmem:[%s1 + $0x738] sm:$0xff]
  %v261 = vld [vmem:[%s1 + $0x740] sm:$0xff]
  %v262 = vld [vmem:[%s1 + $0x748] sm:$0xff]
  %v263 = vld [vmem:[%s1 + $0x750] sm:$0xff]
  %v264 = vld [vmem:[%s1 + $0x758] sm:$0xff]
  %v265 = vld [vmem:[%s1 + $0x760] sm:$0xff]
  %v266 = vld [vmem:[%s1 + $0x768] sm:$0xff]
  %v267 = vld [vmem:[%s1 + $0x770] sm:$0xff]
  %v268 = vld [vmem:[%s1 + $0x778] sm:$0xff]
  %v269 = vld [vmem:[%s1 + $0x780] sm:$0xff]
  %v270 = vld [vmem:[%s1 + $0x788] sm:$0xff]
  %v271 = vld [vmem:[%s1 + $0x790] sm:$0xff]
  %v272 = vld [vmem:[%s1 + $0x798] sm:$0xff]
  %v273 = vld [vmem:[%s1 + $0x7a0] sm:$0xff]
  %v274 = vld [vmem:[%s1 + $0x7a8] sm:$0xff]
  %v275 = vld [vmem:[%s1 + $0x7b0] sm:$0xff]
  %v276 = vld [vmem:[%s1 + $0x7b8] sm:$0xff]
  %v277 = vld [vmem:[%s1 + $0x7c0] sm:$0xff]
  %v278 = vld [vmem:[%s1 + $0x7c8] sm:$0xff]
  %v279 = vld [vmem:[%s1 + $0x7d0] sm:$0xff]
  %v280 = vld [vmem:[%s1 + $0x7d8] sm:$0xff]
  %v281 = vld [vmem:[%s1 + $0x7e0] sm:$0xff]
  %v282 = vld [vmem:[%s1 + $0x7e8] sm:$0xff]
  %v283 = vld [vmem:[%s1 + $0x7f0] sm:$0xff]
  %v284 = vld [vmem:[%s1 + $0x7f8] sm:$0xff]
  %v285 = vld [vmem:[%s1 + $0x800] sm:$0xff]
  %v286 = vld [vmem:[%s1 + $0x808] sm:$0xff]
  %v287 = vld [vmem:[%s1 + $0x810] sm:$0xff]
  %v288 = vld [vmem:[%s1 + $0x818] sm:$0xff]
  %v289 = vld [vmem:[%s1 + $0x820] sm:$0xff]
  %v290 = vld [vmem:[%s1 + $0x828] sm:$0xff]
  %v291 = vld [vmem:[%s1 + $0x830] sm:$0xff]
  %v292 = vld [vmem:[%s1 + $0x838] sm:$0xff]
  %v293 = vld [vmem:[%s1 + $0x840] sm:$0xff]
  %v294 = vld [vmem:[%s1 + $0x848] sm:$0xff]
  %v295 = vld [vmem:[%s1 + $0x850] sm:$0xff]
  %v296 = vld [vmem:[%s1 + $0x858] sm:$0xff]
  %v297 = vld [vmem:[%s1 + $0x860] sm:$0xff]
  %v298 = vld [vmem:[%s1 + $0x868] sm:$0xff]
  %v299 = vld [vmem:[%s1 + $0x870] sm:$0xff]
  %v300 = vld [vmem:[%s1 + $0x878] sm:$0xff]
  %v301 = vld [vmem:[%s1 + $0x880] sm:$0xff]
  %v302 = vld [vmem:[%s1 + $0x888] sm:$0xff]
  %v303 = vld [vmem:[%s1 + $0x890] sm:$0xff]
  %v304 = vld [vmem:[%s1 + $0x898] sm:$0xff]
  %v305 = vld [vmem:[%s1 + $0x8a0] sm:$0xff]
  %v306 = vld [vmem:[%s1 + $0x8a8] sm:$0xff]
  %v307 = vld [vmem:[%s1 + $0x8b0] sm:$0xff]
  %v308 = vld [vmem:[%s1 + $0x8b8] sm:$0xff]
  %v309 = vld [vmem:[%s1 + $0x8c0] sm:$0xff]
  %v310 = vld [vmem:[%s1 + $0x8c8] sm:$0xff]
  %v311 = vld [vmem:[%s1 + $0x8d0] sm:$0xff]
  %v312 = vld [vmem:[%s1 + $0x8d8] sm:$0xff]
  %v313 = vld [vmem:[%s1 + $0x8e0] sm:$0xff]
  %v314 = vld [vmem:[%s1 + $0x8e8] sm:$0xff]
  %v315 = vld [vmem:[%s1 + $0x8f0] sm:$0xff]
  %v316 = vld [vmem:[%s1 + $0x8f8] sm:$0xff]
  %v317 = vld [vmem:[%s1 + $0x900] sm:$0xff]
  %v318 = vld [vmem:[%s1 + $0x908] sm:$0xff]
  %v319 = vld [vmem:[%s1 + $0x910] sm:$0xff]
  %v320 = vld [vmem:[%s1 + $0x918] sm:$0xff]
  %v321 = vld [vmem:[%s1 + $0x920] sm:$0xff]
  %v322 = vld [vmem:[%s1 + $0x928] sm:$0xff]
  %v323 = vld [vmem:[%s1 + $0x930] sm:$0xff]
  %v324 = vld [vmem:[%s1 + $0x938] sm:$0xff]
  %v325 = vld [vmem:[%s1 + $0x940] sm:$0xff]
  %v326 = vld [vmem:[%s1 + $0x948] sm:$0xff]
  %v327 = vld [vmem:[%s1 + $0x950] sm:$0xff]
  %v328 = vld [vmem:[%s1 + $0x958] sm:$0xff]
  %v329 = vld [vmem:[%s1 + $0x960] sm:$0xff]
  %v330 = vld [vmem:[%s1 + $0x968] sm:$0xff]
  %v331 = vld [vmem:[%s1 + $0x970] sm:$0xff]
  %v332 = vld [vmem:[%s1 + $0x978] sm:$0xff]
  %v333 = vld [vmem:[%s1 + $0x980] sm:$0xff]
  %v334 = vld [vmem:[%s1 + $0x988] sm:$0xff]
  %v335 = vld [vmem:[%s1 + $0x990] sm:$0xff]
  %v336 = vld [vmem:[%s1 + $0x998] sm:$0xff]
  %v337 = vld [vmem:[%s1 + $0x9a0] sm:$0xff]
  %v338 = vld [vmem:[%s1 + $0x9a8] sm:$0xff]
  %v339 = vld [vmem:[%s1 + $0x9b0] sm:$0xff]
  %v340 = vld [vmem:[%s1 + $0x9b8] sm:$0xff]
  %v341 = vld [vmem:[%s1 + $0x9c0] sm:$0xff]
  %v342 = vld [vmem:[%s1 + $0x9c8] sm:$0xff]
  %v343 = vld [vmem:[%s1 + $0x9d0] sm:$0xff]
  %v344 = vld [vmem:[%s1 + $0x9d8] sm:$0xff]
  %v345 = vld [vmem:[%s1 + $0x9e0] sm:$0xff]
  %v346 = vld [vmem:[%s1 + $0x9e8] sm:$0xff]
  %v347 = vld [vmem:[%s1 + $0x9f0] sm:$0xff]
  %v348 = vld [vmem:[%s1 + $0x9f8] sm:$0xff]
  %v349 = vld [vmem:[%s1 + $0xa00] sm:$0xff]
  %v350 = vld [vmem:[%s1 + $0xa08] sm:$0xff]
  %v351 = vld [vmem:[%s1 + $0xa10] sm:$0xff]
  %v352 = vld [vmem:[%s1 + $0xa18] sm:$0xff]
  %v353 = vld [vmem:[%s1 + $0xa20] sm:$0xff]
  %v354 = vld [vmem:[%s1 + $0xa28] sm:$0xff]
  %v355 = vld [vmem:[%s1 + $0xa30] sm:$0xff]
  %v356 = vld [vmem:[%s1 + $0xa38] sm:$0xff]
  %v357 = vld [vmem:[%s1 + $0xa40] sm:$0xff]
  %v358 = vld [vmem:[%s1 + $0xa48] sm:$0xff]
  %v359 = vld [vmem:[%s1 + $0xa50] sm:$0xff]
  %v360 = vld [vmem:[%s1 + $0xa58] sm:$0xff]
  %v361 = vld [vmem:[%s1 + $0xa60] sm:$0xff]
  %v362 = vld [vmem:[%s1 + $0xa68] sm:$0xff]
  %v363 = vld [vmem:[%s1 + $0xa70] sm:$0xff]
  %v364 = vld [vmem:[%s1 + $0xa78] sm:$0xff]
  %v365 = vld [vmem:[%s1 + $0xa80] sm:$0xff]
  %v366 = vld [vmem:[%s1 + $0xa88] sm:$0xff]
  %v367 = vld [vmem:[%s1 + $0xa90] sm:$0xff]
  %v368 = vld [vmem:[%s1 + $0xa98] sm:$0xff]
  %v369 = vld [vmem:[%s1 + $0xaa0] sm:$0xff]
  %v370 = vld [vmem:[%s1 + $0xaa8] sm:$0xff]
  %v371 = vld [vmem:[%s1 + $0xab0] sm:$0xff]
  %v372 = vld [vmem:[%s1 + $0xab8] sm:$0xff]
  %v373 = vld [vmem:[%s1 + $0xac0] sm:$0xff]
  %v374 = vld [vmem:[%s1 + $0xac8] sm:$0xff]
  %v375 = vld [vmem:[%s1 + $0xad0] sm:$0xff]
  %v376 = vld [vmem:[%s1 + $0xad8] sm:$0xff]
  %v377 = vld [vmem:[%s1 + $0xae0] sm:$0xff]
  %v378 = vld [vmem:[%s1 + $0xae8] sm:$0xff]
  %v379 = vld [vmem:[%s1 + $0xaf0] sm:$0xff]
  %v380 = vld [vmem:[%s1 + $0xaf8] sm:$0xff]
  %v381 = vld [vmem:[%s1 + $0xb00] sm:$0xff]
  %v382 = vld [vmem:[%s1 + $0xb08] sm:$0xff]
  %v383 = vld [vmem:[%s1 + $0xb10] sm:$0xff]
  %v384 = vld [vmem:[%s1 + $0xb18] sm:$0xff]
  %v385 = vld [vmem:[%s1 + $0xb20] sm:$0xff]
  %v386 = vld [vmem:[%s1 + $0xb28] sm:$0xff]
  %v387 = vld [vmem:[%s1 + $0xb30] sm:$0xff]
  %v388 = vld [vmem:[%s1 + $0xb38] sm:$0xff]
  %v389 = vld [vmem:[%s1 + $0xb40] sm:$0xff]
  %v390 = vld [vmem:[%s1 + $0xb48] sm:$0xff]
  %v391 = vld [vmem:[%s1 + $0xb50] sm:$0xff]
  %v392 = vld [vmem:[%s1 + $0xb58] sm:$0xff]
  %v393 = vld [vmem:[%s1 + $0xb60] sm:$0xff]
  %v394 = vld [vmem:[%s1 + $0xb68] sm:$0xff]
  %v395 = vld [vmem:[%s1 + $0xb70] sm:$0xff]
  %v396 = vld [vmem:[%s1 + $0xb78] sm:$0xff]
  %v397 = vld [vmem:[%s1 + $0xb80] sm:$0xff]
  %v398 = vld [vmem:[%s1 + $0xb88] sm:$0xff]
  %v399 = vld [vmem:[%s1 + $0xb90] sm:$0xff]
  %v400 = vld [vmem:[%s1 + $0xb98] sm:$0xff]
  %v401 = vld [vmem:[%s1 + $0xba0] sm:$0xff]
  %v402 = vld [vmem:[%s1 + $0xba8] sm:$0xff]
  %v403 = vld [vmem:[%s1 + $0xbb0] sm:$0xff]
  %v404 = vld [vmem:[%s1 + $0xbb8] sm:$0xff]
  %v405 = vld [vmem:[%s1 + $0xbc0] sm:$0xff]
  %v406 = vld [vmem:[%s1 + $0xbc8] sm:$0xff]
  %v407 = vld [vmem:[%s1 + $0xbd0] sm:$0xff]
  %v408 = vld [vmem:[%s1 + $0xbd8] sm:$0xff]
  %v409 = vld [vmem:[%s1 + $0xbe0] sm:$0xff]
  %v410 = vld [vmem:[%s1 + $0xbe8] sm:$0xff]
  %v411 = vld [vmem:[%s1 + $0xbf0] sm:$0xff]
  %v412 = vld [vmem:[%s1 + $0xbf8] sm:$0xff]
  %v413 = vld [vmem:[%s1 + $0xc00] sm:$0xff]
  %v414 = vld [vmem:[%s1 + $0xc08] sm:$0xff]
  %v415 = vld [vmem:[%s1 + $0xc10] sm:$0xff]
  %v416 = vld [vmem:[%s1 + $0xc18] sm:$0xff]
  %v417 = vld [vmem:[%s1 + $0xc20] sm:$0xff]
  %v418 = vld [vmem:[%s1 + $0xc28] sm:$0xff]
  %v419 = vld [vmem:[%s1 + $0xc30] sm:$0xff]
  %v420 = vld [vmem:[%s1 + $0xc38] sm:$0xff]
  %v421 = vld [vmem:[%s2] sm:$0x1]
  %v423 = vlaneseq
  %v424 = vshrl.u32 %v423, 7
  %v425 = vsub.s32 0, %v424
  %v426 = vrot.slane %v421, %v425
  %v435 = vcombine.high %v22, %v22
  %v437 = vunpack.c.l.s4 1983009808
  %v438 = vunpack.c.0.s8 %v437
  %v439 = vlaneseq
  %v440 = vshrl.u32 %v439, 7
  %v441 = vsub.s32 %v438, %v440
  %v442 = vrot.slane %v22, %v441
  %v444 = vunpack.c.l.s4 1983009808
  %v445 = vunpack.c.0.s8 %v444
  %v446 = vlaneseq
  %v447 = vshrl.u32 %v446, 7
  %v448 = vsub.s32 %v445, %v447
  %v449 = vrot.slane %v435, %v448
  %v450 = vcombine.high %v442, %v442
  %v451 = vcombine.high %v449, %v449
  %v452 = vcombine.high %v23, %v23
  %v454 = vunpack.c.l.s4 1983009808
  %v455 = vunpack.c.0.s8 %v454
  %v456 = vlaneseq
  %v457 = vshrl.u32 %v456, 7
  %v458 = vsub.s32 %v455, %v457
  %v459 = vrot.slane %v23, %v458
  %v461 = vunpack.c.l.s4 1983009808
  %v462 = vunpack.c.0.s8 %v461
  %v463 = vlaneseq
  %v464 = vshrl.u32 %v463, 7
  %v465 = vsub.s32 %v462, %v464
  %v466 = vrot.slane %v452, %v465
  %v467 = vcombine.high %v459, %v459
  %v468 = vcombine.high %v466, %v466
  %v469 = vcombine.high %v24, %v24
  %v471 = vunpack.c.l.s4 1983009808
  %v472 = vunpack.c.0.s8 %v471
  %v473 = vlaneseq
  %v474 = vshrl.u32 %v473, 7
  %v475 = vsub.s32 %v472, %v474
  %v476 = vrot.slane %v24, %v475
  %v478 = vunpack.c.l.s4 1983009808
  %v479 = vunpack.c.0.s8 %v478
  %v480 = vlaneseq
  %v481 = vshrl.u32 %v480, 7
  %v482 = vsub.s32 %v479, %v481
  %v483 = vrot.slane %v469, %v482
  %v484 = vcombine.high %v476, %v476
  %v485 = vcombine.high %v483, %v483
  %v486 = vcombine.high %v25, %v25
  %v488 = vunpack.c.l.s4 1983009808
  %v489 = vunpack.c.0.s8 %v488
  %v490 = vlaneseq
  %v491 = vshrl.u32 %v490, 7
  %v492 = vsub.s32 %v489, %v491
  %v493 = vrot.slane %v25, %v492
  %v495 = vunpack.c.l.s4 1983009808
  %v496 = vunpack.c.0.s8 %v495
  %v497 = vlaneseq
  %v498 = vshrl.u32 %v497, 7
  %v499 = vsub.s32 %v496, %v498
  %v500 = vrot.slane %v486, %v499
  %v501 = vcombine.high %v493, %v493
  %v502 = vcombine.high %v500, %v500
  %v503 = vcombine.high %v26, %v26
  %v505 = vunpack.c.l.s4 1983009808
  %v506 = vunpack.c.0.s8 %v505
  %v507 = vlaneseq
  %v508 = vshrl.u32 %v507, 7
  %v509 = vsub.s32 %v506, %v508
  %v510 = vrot.slane %v26, %v509
  %v512 = vunpack.c.l.s4 1983009808
  %v513 = vunpack.c.0.s8 %v512
  %v514 = vlaneseq
  %v515 = vshrl.u32 %v514, 7
  %v516 = vsub.s32 %v513, %v515
  %v517 = vrot.slane %v503, %v516
  %v518 = vcombine.high %v510, %v510
  %v519 = vcombine.high %v517, %v517
  %v520 = vcombine.high %v27, %v27
  %v522 = vunpack.c.l.s4 1983009808
  %v523 = vunpack.c.0.s8 %v522
  %v524 = vlaneseq
  %v525 = vshrl.u32 %v524, 7
  %v526 = vsub.s32 %v523, %v525
  %v527 = vrot.slane %v27, %v526
  %v529 = vunpack.c.l.s4 1983009808
  %v530 = vunpack.c.0.s8 %v529
  %v531 = vlaneseq
  %v532 = vshrl.u32 %v531, 7
  %v533 = vsub.s32 %v530, %v532
  %v534 = vrot.slane %v520, %v533
  %v535 = vcombine.high %v527, %v527
  %v536 = vcombine.high %v534, %v534
  %v538 = vunpack.c.l.s4 1983009808
  %v539 = vunpack.c.0.s8 %v538
  %v540 = vlaneseq
  %v541 = vshrl.u32 %v540, 7
  %v542 = vsub.s32 %v539, %v541
  %v543 = vrot.slane %v28, %v542
  %vm568 = vcmask 523264
  %v569 = vsel %vm568, %v543, 0
  %571 = vmatprep.subr.mxu0 0.0
  %572 = vmatpush1.msra.mxu0 %v29
  %573 = vmatprep.subr.mxu0 0.0
  %574 = vmatpush1.msra.mxu0 %v30
  %575 = vmatprep.subr.mxu0 0.0
  %576 = vmatpush1.msra.mxu0 %v31
  %577 = vmatprep.subr.mxu0 0.0
  %578 = vmatpush1.msra.mxu0 %v32
  %579 = vmatprep.subr.mxu0 0.0
  %580 = vmatpush1.msra.mxu0 %v33
  %581 = vmatprep.subr.mxu0 0.0
  %582 = vmatpush1.msra.mxu0 %v34
  %583 = vmatprep.subr.mxu0 0.0
  %584 = vmatpush1.msra.mxu0 %v35
  %585 = vmatprep.subr.mxu0 0.0
  %586 = vmatpush1.msra.mxu0 %v36
  %587 = vmatprep.subr.mxu0 0.0
  %588 = vmatpush1.msra.mxu0 %v37
  %589 = vmatprep.subr.mxu0 0.0
  %590 = vmatpush1.msra.mxu0 %v38
  %591 = vmatprep.subr.mxu0 0.0
  %592 = vmatpush1.msra.mxu0 %v39
  %593 = vmatprep.subr.mxu0 0.0
  %594 = vmatpush1.msra.mxu0 %v40
  %595 = vmatprep.subr.mxu0 0.0
  %596 = vmatpush1.msra.mxu0 %v41
  %597 = vmatprep.subr.mxu0 0.0
  %598 = vmatpush1.msra.mxu0 %v42
  %599 = vmatprep.subr.mxu0 0.0
  %600 = vmatpush1.msra.mxu0 %v43
  %601 = vmatprep.subr.mxu0 0.0
  %602 = vmatpush1.msra.mxu0 %v44
  %603 = vmatprep.subr.mxu0 0.0
  %604 = vmatpush1.msra.mxu0 %v45
  %605 = vmatprep.subr.mxu0 0.0
  %606 = vmatpush1.msra.mxu0 %v46
  %607 = vmatprep.subr.mxu0 0.0
  %608 = vmatpush1.msra.mxu0 %v47
  %609 = vmatprep.subr.mxu0 0.0
  %610 = vmatpush1.msra.mxu0 %v48
  %611 = vmatprep.subr.mxu0 0.0
  %612 = vmatpush1.msra.mxu0 %v49
  %613 = vmatprep.subr.mxu0 0.0
  %614 = vmatpush1.msra.mxu0 %v50
  %615 = vmatprep.subr.mxu0 0.0
  %616 = vmatpush1.msra.mxu0 %v51
  %617 = vmatprep.subr.mxu0 0.0
  %618 = vmatpush1.msra.mxu0 %v52
  %619 = vmatprep.subr.mxu0 0.0
  %620 = vmatpush1.msra.mxu0 %v53
  %621 = vmatprep.subr.mxu0 0.0
  %622 = vmatpush1.msra.mxu0 %v54
  %623 = vmatprep.subr.mxu0 0.0
  %624 = vmatpush1.msra.mxu0 %v55
  %625 = vmatprep.subr.mxu0 0.0
  %626 = vmatpush1.msra.mxu0 %v56
  %627 = vmatprep.subr.mxu0 0.0
  %628 = vmatpush1.msra.mxu0 %v57
  %629 = vmatprep.subr.mxu0 0.0
  %630 = vmatpush1.msra.mxu0 %v58
  %631 = vmatprep.subr.mxu0 0.0
  %632 = vmatpush1.msra.mxu0 %v59
  %633 = vmatprep.subr.mxu0 0.0
  %634 = vmatpush1.msra.mxu0 %v60
  %635 = vmatprep.mubr.f32.mxu0 %v450
  %636 = vmatmul.mubr.f32.gmra.mrb[0].mxu0 %v442
  %v637 = vpop.f32.mrb[0].mxu0
  %v638 = vadd.f32 %v426, %v637
  %v639 = vpop.f32.mrb[0].mxu0
  %640 = vdwg.mxu0
  %641 = vmatprep.subr.mxu0 0.0
  %642 = vmatpush1.msra.mxu0 %v61
  %643 = vmatprep.subr.mxu0 0.0
  %644 = vmatpush1.msra.mxu0 %v62
  %645 = vmatprep.subr.mxu0 0.0
  %646 = vmatpush1.msra.mxu0 %v63
  %647 = vmatprep.subr.mxu0 0.0
  %648 = vmatpush1.msra.mxu0 %v64
  %649 = vmatprep.subr.mxu0 0.0
  %650 = vmatpush1.msra.mxu0 %v65
  %651 = vmatprep.subr.mxu0 0.0
  %652 = vmatpush1.msra.mxu0 %v66
  %653 = vmatprep.subr.mxu0 0.0
  %654 = vmatpush1.msra.mxu0 %v67
  %655 = vmatprep.subr.mxu0 0.0
  %656 = vmatpush1.msra.mxu0 %v68
  %657 = vmatprep.subr.mxu0 0.0
  %658 = vmatpush1.msra.mxu0 %v69
  %659 = vmatprep.subr.mxu0 0.0
  %660 = vmatpush1.msra.mxu0 %v70
  %661 = vmatprep.subr.mxu0 0.0
  %662 = vmatpush1.msra.mxu0 %v71
  %663 = vmatprep.subr.mxu0 0.0
  %664 = vmatpush1.msra.mxu0 %v72
  %665 = vmatprep.subr.mxu0 0.0
  %666 = vmatpush1.msra.mxu0 %v73
  %667 = vmatprep.subr.mxu0 0.0
  %668 = vmatpush1.msra.mxu0 %v74
  %669 = vmatprep.subr.mxu0 0.0
  %670 = vmatpush1.msra.mxu0 %v75
  %671 = vmatprep.subr.mxu0 0.0
  %672 = vmatpush1.msra.mxu0 %v76
  %673 = vmatprep.subr.mxu0 0.0
  %674 = vmatpush1.msra.mxu0 %v77
  %675 = vmatprep.subr.mxu0 0.0
  %676 = vmatpush1.msra.mxu0 %v78
  %677 = vmatprep.subr.mxu0 0.0
  %678 = vmatpush1.msra.mxu0 %v79
  %679 = vmatprep.subr.mxu0 0.0
  %680 = vmatpush1.msra.mxu0 %v80
  %681 = vmatprep.subr.mxu0 0.0
  %682 = vmatpush1.msra.mxu0 %v81
  %683 = vmatprep.subr.mxu0 0.0
  %684 = vmatpush1.msra.mxu0 %v82
  %685 = vmatprep.subr.mxu0 0.0
  %686 = vmatpush1.msra.mxu0 %v83
  %687 = vmatprep.subr.mxu0 0.0
  %688 = vmatpush1.msra.mxu0 %v84
  %689 = vmatprep.subr.mxu0 0.0
  %690 = vmatpush1.msra.mxu0 %v85
  %691 = vmatprep.subr.mxu0 0.0
  %692 = vmatpush1.msra.mxu0 %v86
  %693 = vmatprep.subr.mxu0 0.0
  %694 = vmatpush1.msra.mxu0 %v87
  %695 = vmatprep.subr.mxu0 0.0
  %696 = vmatpush1.msra.mxu0 %v88
  %697 = vmatprep.subr.mxu0 0.0
  %698 = vmatpush1.msra.mxu0 %v89
  %699 = vmatprep.subr.mxu0 0.0
  %700 = vmatpush1.msra.mxu0 %v90
  %701 = vmatprep.subr.mxu0 0.0
  %702 = vmatpush1.msra.mxu0 %v91
  %703 = vmatprep.subr.mxu0 0.0
  %704 = vmatpush1.msra.mxu0 %v92
  %705 = vmatprep.mubr.f32.mxu0 %v451
  %706 = vmatmul.mubr.f32.gmra.mrb[0].mxu0 %v449
  %v707 = vpop.f32.mrb[0].mxu0
  %v708 = vadd.f32 %v638, %v707
  %v709 = vpop.f32.mrb[0].mxu0
  %710 = vdwg.mxu0
  %711 = vmatprep.subr.mxu0 0.0
  %712 = vmatpush1.msra.mxu0 %v93
  %713 = vmatprep.subr.mxu0 0.0
  %714 = vmatpush1.msra.mxu0 %v94
  %715 = vmatprep.subr.mxu0 0.0
  %716 = vmatpush1.msra.mxu0 %v95
  %717 = vmatprep.subr.mxu0 0.0
  %718 = vmatpush1.msra.mxu0 %v96
  %719 = vmatprep.subr.mxu0 0.0
  %720 = vmatpush1.msra.mxu0 %v97
  %721 = vmatprep.subr.mxu0 0.0
  %722 = vmatpush1.msra.mxu0 %v98
  %723 = vmatprep.subr.mxu0 0.0
  %724 = vmatpush1.msra.mxu0 %v99
  %725 = vmatprep.subr.mxu0 0.0
  %726 = vmatpush1.msra.mxu0 %v100
  %727 = vmatprep.subr.mxu0 0.0
  %728 = vmatpush1.msra.mxu0 %v101
  %729 = vmatprep.subr.mxu0 0.0
  %730 = vmatpush1.msra.mxu0 %v102
  %731 = vmatprep.subr.mxu0 0.0
  %732 = vmatpush1.msra.mxu0 %v103
  %733 = vmatprep.subr.mxu0 0.0
  %734 = vmatpush1.msra.mxu0 %v104
  %735 = vmatprep.subr.mxu0 0.0
  %736 = vmatpush1.msra.mxu0 %v105
  %737 = vmatprep.subr.mxu0 0.0
  %738 = vmatpush1.msra.mxu0 %v106
  %739 = vmatprep.subr.mxu0 0.0
  %740 = vmatpush1.msra.mxu0 %v107
  %741 = vmatprep.subr.mxu0 0.0
  %742 = vmatpush1.msra.mxu0 %v108
  %743 = vmatprep.subr.mxu0 0.0
  %744 = vmatpush1.msra.mxu0 %v109
  %745 = vmatprep.subr.mxu0 0.0
  %746 = vmatpush1.msra.mxu0 %v110
  %747 = vmatprep.subr.mxu0 0.0
  %748 = vmatpush1.msra.mxu0 %v111
  %749 = vmatprep.subr.mxu0 0.0
  %750 = vmatpush1.msra.mxu0 %v112
  %751 = vmatprep.subr.mxu0 0.0
  %752 = vmatpush1.msra.mxu0 %v113
  %753 = vmatprep.subr.mxu0 0.0
  %754 = vmatpush1.msra.mxu0 %v114
  %755 = vmatprep.subr.mxu0 0.0
  %756 = vmatpush1.msra.mxu0 %v115
  %757 = vmatprep.subr.mxu0 0.0
  %758 = vmatpush1.msra.mxu0 %v116
  %759 = vmatprep.subr.mxu0 0.0
  %760 = vmatpush1.msra.mxu0 %v117
  %761 = vmatprep.subr.mxu0 0.0
  %762 = vmatpush1.msra.mxu0 %v118
  %763 = vmatprep.subr.mxu0 0.0
  %764 = vmatpush1.msra.mxu0 %v119
  %765 = vmatprep.subr.mxu0 0.0
  %766 = vmatpush1.msra.mxu0 %v120
  %767 = vmatprep.subr.mxu0 0.0
  %768 = vmatpush1.msra.mxu0 %v121
  %769 = vmatprep.subr.mxu0 0.0
  %770 = vmatpush1.msra.mxu0 %v122
  %771 = vmatprep.subr.mxu0 0.0
  %772 = vmatpush1.msra.mxu0 %v123
  %773 = vmatprep.subr.mxu0 0.0
  %774 = vmatpush1.msra.mxu0 %v124
  %775 = vmatprep.mubr.f32.mxu0 %v467
  %776 = vmatmul.mubr.f32.gmra.mrb[0].mxu0 %v459
  %v777 = vpop.f32.mrb[0].mxu0
  %v778 = vadd.f32 %v708, %v777
  %v779 = vpop.f32.mrb[0].mxu0
  %780 = vdwg.mxu0
  %781 = vmatprep.subr.mxu0 0.0
  %782 = vmatpush1.msra.mxu0 %v125
  %783 = vmatprep.subr.mxu0 0.0
  %784 = vmatpush1.msra.mxu0 %v126
  %785 = vmatprep.subr.mxu0 0.0
  %786 = vmatpush1.msra.mxu0 %v127
  %787 = vmatprep.subr.mxu0 0.0
  %788 = vmatpush1.msra.mxu0 %v128
  %789 = vmatprep.subr.mxu0 0.0
  %790 = vmatpush1.msra.mxu0 %v129
  %791 = vmatprep.subr.mxu0 0.0
  %792 = vmatpush1.msra.mxu0 %v130
  %793 = vmatprep.subr.mxu0 0.0
  %794 = vmatpush1.msra.mxu0 %v131
  %795 = vmatprep.subr.mxu0 0.0
  %796 = vmatpush1.msra.mxu0 %v132
  %797 = vmatprep.subr.mxu0 0.0
  %798 = vmatpush1.msra.mxu0 %v133
  %799 = vmatprep.subr.mxu0 0.0
  %800 = vmatpush1.msra.mxu0 %v134
  %801 = vmatprep.subr.mxu0 0.0
  %802 = vmatpush1.msra.mxu0 %v135
  %803 = vmatprep.subr.mxu0 0.0
  %804 = vmatpush1.msra.mxu0 %v136
  %805 = vmatprep.subr.mxu0 0.0
  %806 = vmatpush1.msra.mxu0 %v137
  %807 = vmatprep.subr.mxu0 0.0
  %808 = vmatpush1.msra.mxu0 %v138
  %809 = vmatprep.subr.mxu0 0.0
  %810 = vmatpush1.msra.mxu0 %v139
  %811 = vmatprep.subr.mxu0 0.0
  %812 = vmatpush1.msra.mxu0 %v140
  %813 = vmatprep.subr.mxu0 0.0
  %814 = vmatpush1.msra.mxu0 %v141
  %815 = vmatprep.subr.mxu0 0.0
  %816 = vmatpush1.msra.mxu0 %v142
  %817 = vmatprep.subr.mxu0 0.0
  %818 = vmatpush1.msra.mxu0 %v143
  %819 = vmatprep.subr.mxu0 0.0
  %820 = vmatpush1.msra.mxu0 %v144
  %821 = vmatprep.subr.mxu0 0.0
  %822 = vmatpush1.msra.mxu0 %v145
  %823 = vmatprep.subr.mxu0 0.0
  %824 = vmatpush1.msra.mxu0 %v146
  %825 = vmatprep.subr.mxu0 0.0
  %826 = vmatpush1.msra.mxu0 %v147
  %827 = vmatprep.subr.mxu0 0.0
  %828 = vmatpush1.msra.mxu0 %v148
  %829 = vmatprep.subr.mxu0 0.0
  %830 = vmatpush1.msra.mxu0 %v149
  %831 = vmatprep.subr.mxu0 0.0
  %832 = vmatpush1.msra.mxu0 %v150
  %833 = vmatprep.subr.mxu0 0.0
  %834 = vmatpush1.msra.mxu0 %v151
  %835 = vmatprep.subr.mxu0 0.0
  %836 = vmatpush1.msra.mxu0 %v152
  %837 = vmatprep.subr.mxu0 0.0
  %838 = vmatpush1.msra.mxu0 %v153
  %839 = vmatprep.subr.mxu0 0.0
  %840 = vmatpush1.msra.mxu0 %v154
  %841 = vmatprep.subr.mxu0 0.0
  %842 = vmatpush1.msra.mxu0 %v155
  %843 = vmatprep.subr.mxu0 0.0
  %844 = vmatpush1.msra.mxu0 %v156
  %845 = vmatprep.mubr.f32.mxu0 %v468
  %846 = vmatmul.mubr.f32.gmra.mrb[0].mxu0 %v466
  %v847 = vpop.f32.mrb[0].mxu0
  %v848 = vadd.f32 %v778, %v847
  %v849 = vpop.f32.mrb[0].mxu0
  %850 = vdwg.mxu0
  %851 = vmatprep.subr.mxu0 0.0
  %852 = vmatpush1.msra.mxu0 %v157
  %853 = vmatprep.subr.mxu0 0.0
  %854 = vmatpush1.msra.mxu0 %v158
  %855 = vmatprep.subr.mxu0 0.0
  %856 = vmatpush1.msra.mxu0 %v159
  %857 = vmatprep.subr.mxu0 0.0
  %858 = vmatpush1.msra.mxu0 %v160
  %859 = vmatprep.subr.mxu0 0.0
  %860 = vmatpush1.msra.mxu0 %v161
  %861 = vmatprep.subr.mxu0 0.0
  %862 = vmatpush1.msra.mxu0 %v162
  %863 = vmatprep.subr.mxu0 0.0
  %864 = vmatpush1.msra.mxu0 %v163
  %865 = vmatprep.subr.mxu0 0.0
  %866 = vmatpush1.msra.mxu0 %v164
  %867 = vmatprep.subr.mxu0 0.0
  %868 = vmatpush1.msra.mxu0 %v165
  %869 = vmatprep.subr.mxu0 0.0
  %870 = vmatpush1.msra.mxu0 %v166
  %871 = vmatprep.subr.mxu0 0.0
  %872 = vmatpush1.msra.mxu0 %v167
  %873 = vmatprep.subr.mxu0 0.0
  %874 = vmatpush1.msra.mxu0 %v168
  %875 = vmatprep.subr.mxu0 0.0
  %876 = vmatpush1.msra.mxu0 %v169
  %877 = vmatprep.subr.mxu0 0.0
  %878 = vmatpush1.msra.mxu0 %v170
  %879 = vmatprep.subr.mxu0 0.0
  %880 = vmatpush1.msra.mxu0 %v171
  %881 = vmatprep.subr.mxu0 0.0
  %882 = vmatpush1.msra.mxu0 %v172
  %883 = vmatprep.subr.mxu0 0.0
  %884 = vmatpush1.msra.mxu0 %v173
  %885 = vmatprep.subr.mxu0 0.0
  %886 = vmatpush1.msra.mxu0 %v174
  %887 = vmatprep.subr.mxu0 0.0
  %888 = vmatpush1.msra.mxu0 %v175
  %889 = vmatprep.subr.mxu0 0.0
  %890 = vmatpush1.msra.mxu0 %v176
  %891 = vmatprep.subr.mxu0 0.0
  %892 = vmatpush1.msra.mxu0 %v177
  %893 = vmatprep.subr.mxu0 0.0
  %894 = vmatpush1.msra.mxu0 %v178
  %895 = vmatprep.subr.mxu0 0.0
  %896 = vmatpush1.msra.mxu0 %v179
  %897 = vmatprep.subr.mxu0 0.0
  %898 = vmatpush1.msra.mxu0 %v180
  %899 = vmatprep.subr.mxu0 0.0
  %900 = vmatpush1.msra.mxu0 %v181
  %901 = vmatprep.subr.mxu0 0.0
  %902 = vmatpush1.msra.mxu0 %v182
  %903 = vmatprep.subr.mxu0 0.0
  %904 = vmatpush1.msra.mxu0 %v183
  %905 = vmatprep.subr.mxu0 0.0
  %906 = vmatpush1.msra.mxu0 %v184
  %907 = vmatprep.subr.mxu0 0.0
  %908 = vmatpush1.msra.mxu0 %v185
  %909 = vmatprep.subr.mxu0 0.0
  %910 = vmatpush1.msra.mxu0 %v186
  %911 = vmatprep.subr.mxu0 0.0
  %912 = vmatpush1.msra.mxu0 %v187
  %913 = vmatprep.subr.mxu0 0.0
  %914 = vmatpush1.msra.mxu0 %v188
  %915 = vmatprep.mubr.f32.mxu0 %v484
  %916 = vmatmul.mubr.f32.gmra.mrb[0].mxu0 %v476
  %v917 = vpop.f32.mrb[0].mxu0
  %v918 = vadd.f32 %v848, %v917
  %v919 = vpop.f32.mrb[0].mxu0
  %920 = vdwg.mxu0
  %921 = vmatprep.subr.mxu0 0.0
  %922 = vmatpush1.msra.mxu0 %v189
  %923 = vmatprep.subr.mxu0 0.0
  %924 = vmatpush1.msra.mxu0 %v190
  %925 = vmatprep.subr.mxu0 0.0
  %926 = vmatpush1.msra.mxu0 %v191
  %927 = vmatprep.subr.mxu0 0.0
  %928 = vmatpush1.msra.mxu0 %v192
  %929 = vmatprep.subr.mxu0 0.0
  %930 = vmatpush1.msra.mxu0 %v193
  %931 = vmatprep.subr.mxu0 0.0
  %932 = vmatpush1.msra.mxu0 %v194
  %933 = vmatprep.subr.mxu0 0.0
  %934 = vmatpush1.msra.mxu0 %v195
  %935 = vmatprep.subr.mxu0 0.0
  %936 = vmatpush1.msra.mxu0 %v196
  %937 = vmatprep.subr.mxu0 0.0
  %938 = vmatpush1.msra.mxu0 %v197
  %939 = vmatprep.subr.mxu0 0.0
  %940 = vmatpush1.msra.mxu0 %v198
  %941 = vmatprep.subr.mxu0 0.0
  %942 = vmatpush1.msra.mxu0 %v199
  %943 = vmatprep.subr.mxu0 0.0
  %944 = vmatpush1.msra.mxu0 %v200
  %945 = vmatprep.subr.mxu0 0.0
  %946 = vmatpush1.msra.mxu0 %v201
  %947 = vmatprep.subr.mxu0 0.0
  %948 = vmatpush1.msra.mxu0 %v202
  %949 = vmatprep.subr.mxu0 0.0
  %950 = vmatpush1.msra.mxu0 %v203
  %951 = vmatprep.subr.mxu0 0.0
  %952 = vmatpush1.msra.mxu0 %v204
  %953 = vmatprep.subr.mxu0 0.0
  %954 = vmatpush1.msra.mxu0 %v205
  %955 = vmatprep.subr.mxu0 0.0
  %956 = vmatpush1.msra.mxu0 %v206
  %957 = vmatprep.subr.mxu0 0.0
  %958 = vmatpush1.msra.mxu0 %v207
  %959 = vmatprep.subr.mxu0 0.0
  %960 = vmatpush1.msra.mxu0 %v208
  %961 = vmatprep.subr.mxu0 0.0
  %962 = vmatpush1.msra.mxu0 %v209
  %963 = vmatprep.subr.mxu0 0.0
  %964 = vmatpush1.msra.mxu0 %v210
  %965 = vmatprep.subr.mxu0 0.0
  %966 = vmatpush1.msra.mxu0 %v211
  %967 = vmatprep.subr.mxu0 0.0
  %968 = vmatpush1.msra.mxu0 %v212
  %969 = vmatprep.subr.mxu0 0.0
  %970 = vmatpush1.msra.mxu0 %v213
  %971 = vmatprep.subr.mxu0 0.0
  %972 = vmatpush1.msra.mxu0 %v214
  %973 = vmatprep.subr.mxu0 0.0
  %974 = vmatpush1.msra.mxu0 %v215
  %975 = vmatprep.subr.mxu0 0.0
  %976 = vmatpush1.msra.mxu0 %v216
  %977 = vmatprep.subr.mxu0 0.0
  %978 = vmatpush1.msra.mxu0 %v217
  %979 = vmatprep.subr.mxu0 0.0
  %980 = vmatpush1.msra.mxu0 %v218
  %981 = vmatprep.subr.mxu0 0.0
  %982 = vmatpush1.msra.mxu0 %v219
  %983 = vmatprep.subr.mxu0 0.0
  %984 = vmatpush1.msra.mxu0 %v220
  %985 = vmatprep.mubr.f32.mxu0 %v485
  %986 = vmatmul.mubr.f32.gmra.mrb[0].mxu0 %v483
  %v987 = vpop.f32.mrb[0].mxu0
  %v988 = vadd.f32 %v918, %v987
  %v989 = vpop.f32.mrb[0].mxu0
  %990 = vdwg.mxu0
  %991 = vmatprep.subr.mxu0 0.0
  %992 = vmatpush1.msra.mxu0 %v221
  %993 = vmatprep.subr.mxu0 0.0
  %994 = vmatpush1.msra.mxu0 %v222
  %995 = vmatprep.subr.mxu0 0.0
  %996 = vmatpush1.msra.mxu0 %v223
  %997 = vmatprep.subr.mxu0 0.0
  %998 = vmatpush1.msra.mxu0 %v224
  %999 = vmatprep.subr.mxu0 0.0
  %1000 = vmatpush1.msra.mxu0 %v225
  %1001 = vmatprep.subr.mxu0 0.0
  %1002 = vmatpush1.msra.mxu0 %v226
  %1003 = vmatprep.subr.mxu0 0.0
  %1004 = vmatpush1.msra.mxu0 %v227
  %1005 = vmatprep.subr.mxu0 0.0
  %1006 = vmatpush1.msra.mxu0 %v228
  %1007 = vmatprep.subr.mxu0 0.0
  %1008 = vmatpush1.msra.mxu0 %v229
  %1009 = vmatprep.subr.mxu0 0.0
  %1010 = vmatpush1.msra.mxu0 %v230
  %1011 = vmatprep.subr.mxu0 0.0
  %1012 = vmatpush1.msra.mxu0 %v231
  %1013 = vmatprep.subr.mxu0 0.0
  %1014 = vmatpush1.msra.mxu0 %v232
  %1015 = vmatprep.subr.mxu0 0.0
  %1016 = vmatpush1.msra.mxu0 %v233
  %1017 = vmatprep.subr.mxu0 0.0
  %1018 = vmatpush1.msra.mxu0 %v234
  %1019 = vmatprep.subr.mxu0 0.0
  %1020 = vmatpush1.msra.mxu0 %v235
  %1021 = vmatprep.subr.mxu0 0.0
  %1022 = vmatpush1.msra.mxu0 %v236
  %1023 = vmatprep.subr.mxu0 0.0
  %1024 = vmatpush1.msra.mxu0 %v237
  %1025 = vmatprep.subr.mxu0 0.0
  %1026 = vmatpush1.msra.mxu0 %v238
  %1027 = vmatprep.subr.mxu0 0.0
  %1028 = vmatpush1.msra.mxu0 %v239
  %1029 = vmatprep.subr.mxu0 0.0
  %1030 = vmatpush1.msra.mxu0 %v240
  %1031 = vmatprep.subr.mxu0 0.0
  %1032 = vmatpush1.msra.mxu0 %v241
  %1033 = vmatprep.subr.mxu0 0.0
  %1034 = vmatpush1.msra.mxu0 %v242
  %1035 = vmatprep.subr.mxu0 0.0
  %1036 = vmatpush1.msra.mxu0 %v243
  %1037 = vmatprep.subr.mxu0 0.0
  %1038 = vmatpush1.msra.mxu0 %v244
  %1039 = vmatprep.subr.mxu0 0.0
  %1040 = vmatpush1.msra.mxu0 %v245
  %1041 = vmatprep.subr.mxu0 0.0
  %1042 = vmatpush1.msra.mxu0 %v246
  %1043 = vmatprep.subr.mxu0 0.0
  %1044 = vmatpush1.msra.mxu0 %v247
  %1045 = vmatprep.subr.mxu0 0.0
  %1046 = vmatpush1.msra.mxu0 %v248
  %1047 = vmatprep.subr.mxu0 0.0
  %1048 = vmatpush1.msra.mxu0 %v249
  %1049 = vmatprep.subr.mxu0 0.0
  %1050 = vmatpush1.msra.mxu0 %v250
  %1051 = vmatprep.subr.mxu0 0.0
  %1052 = vmatpush1.msra.mxu0 %v251
  %1053 = vmatprep.subr.mxu0 0.0
  %1054 = vmatpush1.msra.mxu0 %v252
  %1055 = vmatprep.mubr.f32.mxu0 %v501
  %1056 = vmatmul.mubr.f32.gmra.mrb[0].mxu0 %v493
  %v1057 = vpop.f32.mrb[0].mxu0
  %v1058 = vadd.f32 %v988, %v1057
  %v1059 = vpop.f32.mrb[0].mxu0
  %1060 = vdwg.mxu0
  %1061 = vmatprep.subr.mxu0 0.0
  %1062 = vmatpush1.msra.mxu0 %v253
  %1063 = vmatprep.subr.mxu0 0.0
  %1064 = vmatpush1.msra.mxu0 %v254
  %1065 = vmatprep.subr.mxu0 0.0
  %1066 = vmatpush1.msra.mxu0 %v255
  %1067 = vmatprep.subr.mxu0 0.0
  %1068 = vmatpush1.msra.mxu0 %v256
  %1069 = vmatprep.subr.mxu0 0.0
  %1070 = vmatpush1.msra.mxu0 %v257
  %1071 = vmatprep.subr.mxu0 0.0
  %1072 = vmatpush1.msra.mxu0 %v258
  %1073 = vmatprep.subr.mxu0 0.0
  %1074 = vmatpush1.msra.mxu0 %v259
  %1075 = vmatprep.subr.mxu0 0.0
  %1076 = vmatpush1.msra.mxu0 %v260
  %1077 = vmatprep.subr.mxu0 0.0
  %1078 = vmatpush1.msra.mxu0 %v261
  %1079 = vmatprep.subr.mxu0 0.0
  %1080 = vmatpush1.msra.mxu0 %v262
  %1081 = vmatprep.subr.mxu0 0.0
  %1082 = vmatpush1.msra.mxu0 %v263
  %1083 = vmatprep.subr.mxu0 0.0
  %1084 = vmatpush1.msra.mxu0 %v264
  %1085 = vmatprep.subr.mxu0 0.0
  %1086 = vmatpush1.msra.mxu0 %v265
  %1087 = vmatprep.subr.mxu0 0.0
  %1088 = vmatpush1.msra.mxu0 %v266
  %1089 = vmatprep.subr.mxu0 0.0
  %1090 = vmatpush1.msra.mxu0 %v267
  %1091 = vmatprep.subr.mxu0 0.0
  %1092 = vmatpush1.msra.mxu0 %v268
  %1093 = vmatprep.subr.mxu0 0.0
  %1094 = vmatpush1.msra.mxu0 %v269
  %1095 = vmatprep.subr.mxu0 0.0
  %1096 = vmatpush1.msra.mxu0 %v270
  %1097 = vmatprep.subr.mxu0 0.0
  %1098 = vmatpush1.msra.mxu0 %v271
  %1099 = vmatprep.subr.mxu0 0.0
  %1100 = vmatpush1.msra.mxu0 %v272
  %1101 = vmatprep.subr.mxu0 0.0
  %1102 = vmatpush1.msra.mxu0 %v273
  %1103 = vmatprep.subr.mxu0 0.0
  %1104 = vmatpush1.msra.mxu0 %v274
  %1105 = vmatprep.subr.mxu0 0.0
  %1106 = vmatpush1.msra.mxu0 %v275
  %1107 = vmatprep.subr.mxu0 0.0
  %1108 = vmatpush1.msra.mxu0 %v276
  %1109 = vmatprep.subr.mxu0 0.0
  %1110 = vmatpush1.msra.mxu0 %v277
  %1111 = vmatprep.subr.mxu0 0.0
  %1112 = vmatpush1.msra.mxu0 %v278
  %1113 = vmatprep.subr.mxu0 0.0
  %1114 = vmatpush1.msra.mxu0 %v279
  %1115 = vmatprep.subr.mxu0 0.0
  %1116 = vmatpush1.msra.mxu0 %v280
  %1117 = vmatprep.subr.mxu0 0.0
  %1118 = vmatpush1.msra.mxu0 %v281
  %1119 = vmatprep.subr.mxu0 0.0
  %1120 = vmatpush1.msra.mxu0 %v282
  %1121 = vmatprep.subr.mxu0 0.0
  %1122 = vmatpush1.msra.mxu0 %v283
  %1123 = vmatprep.subr.mxu0 0.0
  %1124 = vmatpush1.msra.mxu0 %v284
  %1125 = vmatprep.mubr.f32.mxu0 %v502
  %1126 = vmatmul.mubr.f32.gmra.mrb[0].mxu0 %v500
  %v1127 = vpop.f32.mrb[0].mxu0
  %v1128 = vadd.f32 %v1058, %v1127
  %v1129 = vpop.f32.mrb[0].mxu0
  %1130 = vdwg.mxu0
  %1131 = vmatprep.subr.mxu0 0.0
  %1132 = vmatpush1.msra.mxu0 %v285
  %1133 = vmatprep.subr.mxu0 0.0
  %1134 = vmatpush1.msra.mxu0 %v286
  %1135 = vmatprep.subr.mxu0 0.0
  %1136 = vmatpush1.msra.mxu0 %v287
  %1137 = vmatprep.subr.mxu0 0.0
  %1138 = vmatpush1.msra.mxu0 %v288
  %1139 = vmatprep.subr.mxu0 0.0
  %1140 = vmatpush1.msra.mxu0 %v289
  %1141 = vmatprep.subr.mxu0 0.0
  %1142 = vmatpush1.msra.mxu0 %v290
  %1143 = vmatprep.subr.mxu0 0.0
  %1144 = vmatpush1.msra.mxu0 %v291
  %1145 = vmatprep.subr.mxu0 0.0
  %1146 = vmatpush1.msra.mxu0 %v292
  %1147 = vmatprep.subr.mxu0 0.0
  %1148 = vmatpush1.msra.mxu0 %v293
  %1149 = vmatprep.subr.mxu0 0.0
  %1150 = vmatpush1.msra.mxu0 %v294
  %1151 = vmatprep.subr.mxu0 0.0
  %1152 = vmatpush1.msra.mxu0 %v295
  %1153 = vmatprep.subr.mxu0 0.0
  %1154 = vmatpush1.msra.mxu0 %v296
  %1155 = vmatprep.subr.mxu0 0.0
  %1156 = vmatpush1.msra.mxu0 %v297
  %1157 = vmatprep.subr.mxu0 0.0
  %1158 = vmatpush1.msra.mxu0 %v298
  %1159 = vmatprep.subr.mxu0 0.0
  %1160 = vmatpush1.msra.mxu0 %v299
  %1161 = vmatprep.subr.mxu0 0.0
  %1162 = vmatpush1.msra.mxu0 %v300
  %1163 = vmatprep.subr.mxu0 0.0
  %1164 = vmatpush1.msra.mxu0 %v301
  %1165 = vmatprep.subr.mxu0 0.0
  %1166 = vmatpush1.msra.mxu0 %v302
  %1167 = vmatprep.subr.mxu0 0.0
  %1168 = vmatpush1.msra.mxu0 %v303
  %1169 = vmatprep.subr.mxu0 0.0
  %1170 = vmatpush1.msra.mxu0 %v304
  %1171 = vmatprep.subr.mxu0 0.0
  %1172 = vmatpush1.msra.mxu0 %v305
  %1173 = vmatprep.subr.mxu0 0.0
  %1174 = vmatpush1.msra.mxu0 %v306
  %1175 = vmatprep.subr.mxu0 0.0
  %1176 = vmatpush1.msra.mxu0 %v307
  %1177 = vmatprep.subr.mxu0 0.0
  %1178 = vmatpush1.msra.mxu0 %v308
  %1179 = vmatprep.subr.mxu0 0.0
  %1180 = vmatpush1.msra.mxu0 %v309
  %1181 = vmatprep.subr.mxu0 0.0
  %1182 = vmatpush1.msra.mxu0 %v310
  %1183 = vmatprep.subr.mxu0 0.0
  %1184 = vmatpush1.msra.mxu0 %v311
  %1185 = vmatprep.subr.mxu0 0.0
  %1186 = vmatpush1.msra.mxu0 %v312
  %1187 = vmatprep.subr.mxu0 0.0
  %1188 = vmatpush1.msra.mxu0 %v313
  %1189 = vmatprep.subr.mxu0 0.0
  %1190 = vmatpush1.msra.mxu0 %v314
  %1191 = vmatprep.subr.mxu0 0.0
  %1192 = vmatpush1.msra.mxu0 %v315
  %1193 = vmatprep.subr.mxu0 0.0
  %1194 = vmatpush1.msra.mxu0 %v316
  %1195 = vmatprep.mubr.f32.mxu0 %v518
  %1196 = vmatmul.mubr.f32.gmra.mrb[0].mxu0 %v510
  %v1197 = vpop.f32.mrb[0].mxu0
  %v1198 = vadd.f32 %v1128, %v1197
  %v1199 = vpop.f32.mrb[0].mxu0
  %1200 = vdwg.mxu0
  %1201 = vmatprep.subr.mxu0 0.0
  %1202 = vmatpush1.msra.mxu0 %v317
  %1203 = vmatprep.subr.mxu0 0.0
  %1204 = vmatpush1.msra.mxu0 %v318
  %1205 = vmatprep.subr.mxu0 0.0
  %1206 = vmatpush1.msra.mxu0 %v319
  %1207 = vmatprep.subr.mxu0 0.0
  %1208 = vmatpush1.msra.mxu0 %v320
  %1209 = vmatprep.subr.mxu0 0.0
  %1210 = vmatpush1.msra.mxu0 %v321
  %1211 = vmatprep.subr.mxu0 0.0
  %1212 = vmatpush1.msra.mxu0 %v322
  %1213 = vmatprep.subr.mxu0 0.0
  %1214 = vmatpush1.msra.mxu0 %v323
  %1215 = vmatprep.subr.mxu0 0.0
  %1216 = vmatpush1.msra.mxu0 %v324
  %1217 = vmatprep.subr.mxu0 0.0
  %1218 = vmatpush1.msra.mxu0 %v325
  %1219 = vmatprep.subr.mxu0 0.0
  %1220 = vmatpush1.msra.mxu0 %v326
  %1221 = vmatprep.subr.mxu0 0.0
  %1222 = vmatpush1.msra.mxu0 %v327
  %1223 = vmatprep.subr.mxu0 0.0
  %1224 = vmatpush1.msra.mxu0 %v328
  %1225 = vmatprep.subr.mxu0 0.0
  %1226 = vmatpush1.msra.mxu0 %v329
  %1227 = vmatprep.subr.mxu0 0.0
  %1228 = vmatpush1.msra.mxu0 %v330
  %1229 = vmatprep.subr.mxu0 0.0
  %1230 = vmatpush1.msra.mxu0 %v331
  %1231 = vmatprep.subr.mxu0 0.0
  %1232 = vmatpush1.msra.mxu0 %v332
  %1233 = vmatprep.subr.mxu0 0.0
  %1234 = vmatpush1.msra.mxu0 %v333
  %1235 = vmatprep.subr.mxu0 0.0
  %1236 = vmatpush1.msra.mxu0 %v334
  %1237 = vmatprep.subr.mxu0 0.0
  %1238 = vmatpush1.msra.mxu0 %v335
  %1239 = vmatprep.subr.mxu0 0.0
  %1240 = vmatpush1.msra.mxu0 %v336
  %1241 = vmatprep.subr.mxu0 0.0
  %1242 = vmatpush1.msra.mxu0 %v337
  %1243 = vmatprep.subr.mxu0 0.0
  %1244 = vmatpush1.msra.mxu0 %v338
  %1245 = vmatprep.subr.mxu0 0.0
  %1246 = vmatpush1.msra.mxu0 %v339
  %1247 = vmatprep.subr.mxu0 0.0
  %1248 = vmatpush1.msra.mxu0 %v340
  %1249 = vmatprep.subr.mxu0 0.0
  %1250 = vmatpush1.msra.mxu0 %v341
  %1251 = vmatprep.subr.mxu0 0.0
  %1252 = vmatpush1.msra.mxu0 %v342
  %1253 = vmatprep.subr.mxu0 0.0
  %1254 = vmatpush1.msra.mxu0 %v343
  %1255 = vmatprep.subr.mxu0 0.0
  %1256 = vmatpush1.msra.mxu0 %v344
  %1257 = vmatprep.subr.mxu0 0.0
  %1258 = vmatpush1.msra.mxu0 %v345
  %1259 = vmatprep.subr.mxu0 0.0
  %1260 = vmatpush1.msra.mxu0 %v346
  %1261 = vmatprep.subr.mxu0 0.0
  %1262 = vmatpush1.msra.mxu0 %v347
  %1263 = vmatprep.subr.mxu0 0.0
  %1264 = vmatpush1.msra.mxu0 %v348
  %1265 = vmatprep.mubr.f32.mxu0 %v519
  %1266 = vmatmul.mubr.f32.gmra.mrb[0].mxu0 %v517
  %v1267 = vpop.f32.mrb[0].mxu0
  %v1268 = vadd.f32 %v1198, %v1267
  %v1269 = vpop.f32.mrb[0].mxu0
  %1270 = vdwg.mxu0
  %1271 = vmatprep.subr.mxu0 0.0
  %1272 = vmatpush1.msra.mxu0 %v349
  %1273 = vmatprep.subr.mxu0 0.0
  %1274 = vmatpush1.msra.mxu0 %v350
  %1275 = vmatprep.subr.mxu0 0.0
  %1276 = vmatpush1.msra.mxu0 %v351
  %1277 = vmatprep.subr.mxu0 0.0
  %1278 = vmatpush1.msra.mxu0 %v352
  %1279 = vmatprep.subr.mxu0 0.0
  %1280 = vmatpush1.msra.mxu0 %v353
  %1281 = vmatprep.subr.mxu0 0.0
  %1282 = vmatpush1.msra.mxu0 %v354
  %1283 = vmatprep.subr.mxu0 0.0
  %1284 = vmatpush1.msra.mxu0 %v355
  %1285 = vmatprep.subr.mxu0 0.0
  %1286 = vmatpush1.msra.mxu0 %v356
  %1287 = vmatprep.subr.mxu0 0.0
  %1288 = vmatpush1.msra.mxu0 %v357
  %1289 = vmatprep.subr.mxu0 0.0
  %1290 = vmatpush1.msra.mxu0 %v358
  %1291 = vmatprep.subr.mxu0 0.0
  %1292 = vmatpush1.msra.mxu0 %v359
  %1293 = vmatprep.subr.mxu0 0.0
  %1294 = vmatpush1.msra.mxu0 %v360
  %1295 = vmatprep.subr.mxu0 0.0
  %1296 = vmatpush1.msra.mxu0 %v361
  %1297 = vmatprep.subr.mxu0 0.0
  %1298 = vmatpush1.msra.mxu0 %v362
  %1299 = vmatprep.subr.mxu0 0.0
  %1300 = vmatpush1.msra.mxu0 %v363
  %1301 = vmatprep.subr.mxu0 0.0
  %1302 = vmatpush1.msra.mxu0 %v364
  %1303 = vmatprep.subr.mxu0 0.0
  %1304 = vmatpush1.msra.mxu0 %v365
  %1305 = vmatprep.subr.mxu0 0.0
  %1306 = vmatpush1.msra.mxu0 %v366
  %1307 = vmatprep.subr.mxu0 0.0
  %1308 = vmatpush1.msra.mxu0 %v367
  %1309 = vmatprep.subr.mxu0 0.0
  %1310 = vmatpush1.msra.mxu0 %v368
  %1311 = vmatprep.subr.mxu0 0.0
  %1312 = vmatpush1.msra.mxu0 %v369
  %1313 = vmatprep.subr.mxu0 0.0
  %1314 = vmatpush1.msra.mxu0 %v370
  %1315 = vmatprep.subr.mxu0 0.0
  %1316 = vmatpush1.msra.mxu0 %v371
  %1317 = vmatprep.subr.mxu0 0.0
  %1318 = vmatpush1.msra.mxu0 %v372
  %1319 = vmatprep.subr.mxu0 0.0
  %1320 = vmatpush1.msra.mxu0 %v373
  %1321 = vmatprep.subr.mxu0 0.0
  %1322 = vmatpush1.msra.mxu0 %v374
  %1323 = vmatprep.subr.mxu0 0.0
  %1324 = vmatpush1.msra.mxu0 %v375
  %1325 = vmatprep.subr.mxu0 0.0
  %1326 = vmatpush1.msra.mxu0 %v376
  %1327 = vmatprep.subr.mxu0 0.0
  %1328 = vmatpush1.msra.mxu0 %v377
  %1329 = vmatprep.subr.mxu0 0.0
  %1330 = vmatpush1.msra.mxu0 %v378
  %1331 = vmatprep.subr.mxu0 0.0
  %1332 = vmatpush1.msra.mxu0 %v379
  %1333 = vmatprep.subr.mxu0 0.0
  %1334 = vmatpush1.msra.mxu0 %v380
  %1335 = vmatprep.mubr.f32.mxu0 %v535
  %1336 = vmatmul.mubr.f32.gmra.mrb[0].mxu0 %v527
  %v1337 = vpop.f32.mrb[0].mxu0
  %v1338 = vadd.f32 %v1268, %v1337
  %v1339 = vpop.f32.mrb[0].mxu0
  %1340 = vdwg.mxu0
  %1341 = vmatprep.subr.mxu0 0.0
  %1342 = vmatpush1.msra.mxu0 %v381
  %1343 = vmatprep.subr.mxu0 0.0
  %1344 = vmatpush1.msra.mxu0 %v382
  %1345 = vmatprep.subr.mxu0 0.0
  %1346 = vmatpush1.msra.mxu0 %v383
  %1347 = vmatprep.subr.mxu0 0.0
  %1348 = vmatpush1.msra.mxu0 %v384
  %1349 = vmatprep.subr.mxu0 0.0
  %1350 = vmatpush1.msra.mxu0 %v385
  %1351 = vmatprep.subr.mxu0 0.0
  %1352 = vmatpush1.msra.mxu0 %v386
  %1353 = vmatprep.subr.mxu0 0.0
  %1354 = vmatpush1.msra.mxu0 %v387
  %1355 = vmatprep.subr.mxu0 0.0
  %1356 = vmatpush1.msra.mxu0 %v388
  %1357 = vmatprep.subr.mxu0 0.0
  %1358 = vmatpush1.msra.mxu0 %v389
  %1359 = vmatprep.subr.mxu0 0.0
  %1360 = vmatpush1.msra.mxu0 %v390
  %1361 = vmatprep.subr.mxu0 0.0
  %1362 = vmatpush1.msra.mxu0 %v391
  %1363 = vmatprep.subr.mxu0 0.0
  %1364 = vmatpush1.msra.mxu0 %v392
  %1365 = vmatprep.subr.mxu0 0.0
  %1366 = vmatpush1.msra.mxu0 %v393
  %1367 = vmatprep.subr.mxu0 0.0
  %1368 = vmatpush1.msra.mxu0 %v394
  %1369 = vmatprep.subr.mxu0 0.0
  %1370 = vmatpush1.msra.mxu0 %v395
  %1371 = vmatprep.subr.mxu0 0.0
  %1372 = vmatpush1.msra.mxu0 %v396
  %1373 = vmatprep.subr.mxu0 0.0
  %1374 = vmatpush1.msra.mxu0 %v397
  %1375 = vmatprep.subr.mxu0 0.0
  %1376 = vmatpush1.msra.mxu0 %v398
  %1377 = vmatprep.subr.mxu0 0.0
  %1378 = vmatpush1.msra.mxu0 %v399
  %1379 = vmatprep.subr.mxu0 0.0
  %1380 = vmatpush1.msra.mxu0 %v400
  %1381 = vmatprep.subr.mxu0 0.0
  %1382 = vmatpush1.msra.mxu0 %v401
  %1383 = vmatprep.subr.mxu0 0.0
  %1384 = vmatpush1.msra.mxu0 %v402
  %1385 = vmatprep.subr.mxu0 0.0
  %1386 = vmatpush1.msra.mxu0 %v403
  %1387 = vmatprep.subr.mxu0 0.0
  %1388 = vmatpush1.msra.mxu0 %v404
  %1389 = vmatprep.subr.mxu0 0.0
  %1390 = vmatpush1.msra.mxu0 %v405
  %1391 = vmatprep.subr.mxu0 0.0
  %1392 = vmatpush1.msra.mxu0 %v406
  %1393 = vmatprep.subr.mxu0 0.0
  %1394 = vmatpush1.msra.mxu0 %v407
  %1395 = vmatprep.subr.mxu0 0.0
  %1396 = vmatpush1.msra.mxu0 %v408
  %1397 = vmatprep.subr.mxu0 0.0
  %1398 = vmatpush1.msra.mxu0 %v409
  %1399 = vmatprep.subr.mxu0 0.0
  %1400 = vmatpush1.msra.mxu0 %v410
  %1401 = vmatprep.subr.mxu0 0.0
  %1402 = vmatpush1.msra.mxu0 %v411
  %1403 = vmatprep.subr.mxu0 0.0
  %1404 = vmatpush1.msra.mxu0 %v412
  %1405 = vmatprep.mubr.f32.mxu0 %v536
  %1406 = vmatmul.mubr.f32.gmra.mrb[0].mxu0 %v534
  %v1407 = vpop.f32.mrb[0].mxu0
  %v1408 = vadd.f32 %v1338, %v1407
  %v1409 = vpop.f32.mrb[0].mxu0
  %1410 = vdwg.mxu0
  %1411 = vmatprep.subr.mxu0 0.0
  %1412 = vmatpush1.msra.mxu0 %v413
  %1413 = vmatprep.subr.mxu0 0.0
  %1414 = vmatpush1.msra.mxu0 %v414
  %1415 = vmatprep.subr.mxu0 0.0
  %1416 = vmatpush1.msra.mxu0 %v415
  %1417 = vmatprep.subr.mxu0 0.0
  %1418 = vmatpush1.msra.mxu0 %v416
  %1419 = vmatprep.subr.mxu0 0.0
  %1420 = vmatpush1.msra.mxu0 %v417
  %1421 = vmatprep.subr.mxu0 0.0
  %1422 = vmatpush1.msra.mxu0 %v418
  %1423 = vmatprep.subr.mxu0 0.0
  %1424 = vmatpush1.msra.mxu0 %v419
  %1425 = vmatprep.subr.mxu0 0.0
  %1426 = vmatpush1.msra.mxu0 %v420
  %1427 = vmatprep.subr.mxu0 0.0
  %1428 = vmatpush1.msra.mxu0 0.0
  %1429 = vmatprep.subr.mxu0 0.0
  %1430 = vmatpush1.msra.mxu0 0.0
  %1431 = vmatprep.subr.mxu0 0.0
  %1432 = vmatpush1.msra.mxu0 0.0
  %1433 = vmatprep.subr.mxu0 0.0
  %1434 = vmatpush1.msra.mxu0 0.0
  %1435 = vmatprep.subr.mxu0 0.0
  %1436 = vmatpush1.msra.mxu0 0.0
  %1437 = vmatprep.subr.mxu0 0.0
  %1438 = vmatpush1.msra.mxu0 0.0
  %1439 = vmatprep.subr.mxu0 0.0
  %1440 = vmatpush1.msra.mxu0 0.0
  %1441 = vmatprep.subr.mxu0 0.0
  %1442 = vmatpush1.msra.mxu0 0.0
  %1443 = vmatprep.subr.mxu0 0.0
  %1444 = vmatpush1.msra.mxu0 0.0
  %1445 = vmatprep.subr.mxu0 0.0
  %1446 = vmatpush1.msra.mxu0 0.0
  %1447 = vmatprep.subr.mxu0 0.0
  %1448 = vmatpush1.msra.mxu0 0.0
  %1449 = vmatprep.subr.mxu0 0.0
  %1450 = vmatpush1.msra.mxu0 0.0
  %1451 = vmatprep.subr.mxu0 0.0
  %1452 = vmatpush1.msra.mxu0 0.0
  %1453 = vmatprep.subr.mxu0 0.0
  %1454 = vmatpush1.msra.mxu0 0.0
  %1455 = vmatprep.subr.mxu0 0.0
  %1456 = vmatpush1.msra.mxu0 0.0
  %1457 = vmatprep.subr.mxu0 0.0
  %1458 = vmatpush1.msra.mxu0 0.0
  %1459 = vmatprep.subr.mxu0 0.0
  %1460 = vmatpush1.msra.mxu0 0.0
  %1461 = vmatprep.subr.mxu0 0.0
  %1462 = vmatpush1.msra.mxu0 0.0
  %1463 = vmatprep.subr.mxu0 0.0
  %1464 = vmatpush1.msra.mxu0 0.0
  %1465 = vmatprep.subr.mxu0 0.0
  %1466 = vmatpush1.msra.mxu0 0.0
  %1467 = vmatprep.subr.mxu0 0.0
  %1468 = vmatpush1.msra.mxu0 0.0
  %1469 = vmatprep.subr.mxu0 0.0
  %1470 = vmatpush1.msra.mxu0 0.0
  %1471 = vmatprep.subr.mxu0 0.0
  %1472 = vmatpush1.msra.mxu0 0.0
  %1473 = vmatprep.subr.mxu0 0.0
  %1474 = vmatpush1.msra.mxu0 0.0
  %1475 = vmatprep.mubr.f32.mxu0 0.0
  %1476 = vmatmul.mubr.f32.gmra.mrb[0].mxu0 %v569
  %v1477 = vpop.f32.mrb[0].mxu0
  %v1478 = vadd.f32 %v1408, %v1477
  %v1479 = vpop.f32.mrb[0].mxu0
  %1480 = vdwg.mxu0
  %v1481 = vmax.f32 %v1478, 0.0
  %v1482 = vld [vmem:[%s3] sm:$0xff]
  %v1483 = vld [vmem:[%s3 + $0x8] sm:$0xff]
  %v1484 = vld [vmem:[%s3 + $0x10] sm:$0xff]
  %v1485 = vld [vmem:[%s3 + $0x18] sm:$0xff]
  %v1486 = vld [vmem:[%s3 + $0x20] sm:$0xff]
  %v1487 = vld [vmem:[%s3 + $0x28] sm:$0xff]
  %v1488 = vld [vmem:[%s3 + $0x30] sm:$0xff]
  %v1489 = vld [vmem:[%s3 + $0x38] sm:$0xff]
  %v1490 = vld [vmem:[%s3 + $0x40] sm:$0xff]
  %v1491 = vld [vmem:[%s3 + $0x48] sm:$0xff]
  %v1492 = vld [vmem:[%s3 + $0x50] sm:$0xff]
  %v1493 = vld [vmem:[%s3 + $0x58] sm:$0xff]
  %v1494 = vld [vmem:[%s3 + $0x60] sm:$0xff]
  %v1495 = vld [vmem:[%s3 + $0x68] sm:$0xff]
  %v1496 = vld [vmem:[%s3 + $0x70] sm:$0xff]
  %v1497 = vld [vmem:[%s3 + $0x78] sm:$0xff]
  %v1498 = vld [vmem:[#allocation2] sm:$0x1]
  %v1500 = vlaneseq
  %v1501 = vshrl.u32 %v1500, 7
  %v1502 = vsub.s32 0, %v1501
  %v1503 = vrot.slane %v1498, %v1502
  %1505 = vmatprep.subr.mxu0 0.0
  %1506 = vmatpush1.msra.mxu0 %v1482
  %1507 = vmatprep.subr.mxu0 0.0
  %1508 = vmatpush1.msra.mxu0 %v1483
  %1509 = vmatprep.subr.mxu0 0.0
  %1510 = vmatpush1.msra.mxu0 %v1484
  %1511 = vmatprep.subr.mxu0 0.0
  %1512 = vmatpush1.msra.mxu0 %v1485
  %1513 = vmatprep.subr.mxu0 0.0
  %1514 = vmatpush1.msra.mxu0 %v1486
  %1515 = vmatprep.subr.mxu0 0.0
  %1516 = vmatpush1.msra.mxu0 %v1487
  %1517 = vmatprep.subr.mxu0 0.0
  %1518 = vmatpush1.msra.mxu0 %v1488
  %1519 = vmatprep.subr.mxu0 0.0
  %1520 = vmatpush1.msra.mxu0 %v1489
  %1521 = vmatprep.subr.mxu0 0.0
  %1522 = vmatpush1.msra.mxu0 %v1490
  %1523 = vmatprep.subr.mxu0 0.0
  %1524 = vmatpush1.msra.mxu0 %v1491
  %1525 = vmatprep.subr.mxu0 0.0
  %1526 = vmatpush1.msra.mxu0 %v1492
  %1527 = vmatprep.subr.mxu0 0.0
  %1528 = vmatpush1.msra.mxu0 %v1493
  %1529 = vmatprep.subr.mxu0 0.0
  %1530 = vmatpush1.msra.mxu0 %v1494
  %1531 = vmatprep.subr.mxu0 0.0
  %1532 = vmatpush1.msra.mxu0 %v1495
  %1533 = vmatprep.subr.mxu0 0.0
  %1534 = vmatpush1.msra.mxu0 %v1496
  %1535 = vmatprep.subr.mxu0 0.0
  %1536 = vmatpush1.msra.mxu0 %v1497
  %1537 = vmatprep.subr.mxu0 0.0
  %1538 = vmatpush1.msra.mxu0 0.0
  %1539 = vmatprep.subr.mxu0 0.0
  %1540 = vmatpush1.msra.mxu0 0.0
  %1541 = vmatprep.subr.mxu0 0.0
  %1542 = vmatpush1.msra.mxu0 0.0
  %1543 = vmatprep.subr.mxu0 0.0
  %1544 = vmatpush1.msra.mxu0 0.0
  %1545 = vmatprep.subr.mxu0 0.0
  %1546 = vmatpush1.msra.mxu0 0.0
  %1547 = vmatprep.subr.mxu0 0.0
  %1548 = vmatpush1.msra.mxu0 0.0
  %1549 = vmatprep.subr.mxu0 0.0
  %1550 = vmatpush1.msra.mxu0 0.0
  %1551 = vmatprep.subr.mxu0 0.0
  %1552 = vmatpush1.msra.mxu0 0.0
  %1553 = vmatprep.subr.mxu0 0.0
  %1554 = vmatpush1.msra.mxu0 0.0
  %1555 = vmatprep.subr.mxu0 0.0
  %1556 = vmatpush1.msra.mxu0 0.0
  %1557 = vmatprep.subr.mxu0 0.0
  %1558 = vmatpush1.msra.mxu0 0.0
  %1559 = vmatprep.subr.mxu0 0.0
  %1560 = vmatpush1.msra.mxu0 0.0
  %1561 = vmatprep.subr.mxu0 0.0
  %1562 = vmatpush1.msra.mxu0 0.0
  %1563 = vmatprep.subr.mxu0 0.0
  %1564 = vmatpush1.msra.mxu0 0.0
  %1565 = vmatprep.subr.mxu0 0.0
  %1566 = vmatpush1.msra.mxu0 0.0
  %1567 = vmatprep.subr.mxu0 0.0
  %1568 = vmatpush1.msra.mxu0 0.0
  %1569 = vmatprep.mubr.f32.mxu0 0.0
  %1570 = vmatmul.mubr.f32.gmra.mrb[0].mxu0 %v1481
  %v1571 = vpop.f32.mrb[0].mxu0
  %v1572 = vadd.f32 %v1503, %v1571
  %v1573 = vpop.f32.mrb[0].mxu0
  %1574 = vdwg.mxu0
  %vm1575 = vcmask 1024
  %1576 = vst.msk [vmem:[%s5] sm:$0x3] %vm1575, %v1572
  // Predicated region
  $region22: #{circlenet_forward.3} parent=0 // pred_check
    _
  $region23: #{circlenet_forward.3} parent=0 // pred_check_branch
    %1578 = sbr.rel (0) target = $region25
  $region24: #{circlenet_forward.3} parent=0 // pred_region
    _
  $region25: #{circlenet_forward.3} parent=0 // pred_fallthru
    _
  // Predicated region
  $region26: #{circlenet_forward.3} parent=0 // pred_check
    _
  $region27: #{circlenet_forward.3} parent=0 // pred_check_branch
    %1580 = sbr.rel (0) target = $region29
  $region28: #{circlenet_forward.3} parent=0 // pred_region
    _
  $region29: #{circlenet_forward.3} parent=0 // pred_fallthru
    _

// kernel: circlenet_forward.2
$region0: #{circlenet_forward.2}
  #allocation0 [shape = 'u32[]', space=smem, size = 0x4, offset = 0x4, fixed_abs, tag = 'smem constant byte address 0x4 - core index']
  #allocation1 [shape = 'u32[144,128]{1,0:T(1,128)}', space=vmem, size = 0x12000, scoped, tag = 'internal scratch']
  %s0 = inlined_call_operand.vmem [shape: f32[2,28,28], index: 0, kind: input, shape index: {}]
  %s1 = inlined_call_operand.vmem [shape: f32[4,14,28], index: 1, kind: input, shape index: {}]
  %s2 = inlined_call_operand.hbm [shape: f32[6,28,224], index: 2, kind: input, shape index: {}]
  %s3 = inlined_call_operand.hbm [shape: f32[1,224], index: 3, kind: input, shape index: {}]
  %s4 = inlined_call_operand.vmem [shape: f32[4,7,14], index: 4, kind: input, shape index: {}]
  %s5 = inlined_call_operand.hbm [shape: f32[6,224,224], index: 5, kind: input, shape index: {}]
  %s6 = inlined_call_operand.hbm [shape: f32[1,224], index: 6, kind: input, shape index: {}]
  %s7 = inlined_call_operand.hbm [shape: f32[3,7,7], index: 7, kind: input, shape index: {}]
  %s8 = inlined_call_operand.hbm [shape: f32[3,224,448], index: 8, kind: input, shape index: {}]
  %s9 = inlined_call_operand.hbm [shape: f32[1,448], index: 9, kind: input, shape index: {}]
  %s10 = inlined_call_operand.vmem [shape: f32[2,7,448], index: 10, kind: output, shape index: {}]
  %s11 = sld [smem:[#allocation0]]
  $region101: #{circlenet_forward.2} parent=0
    _
  %s13 = ssub.s32 1, %s11
  %s14 = scalar_select 0, %s13, %s11
  $region1: #{circlenet_forward.2} parent=0
    #allocation2 [shape = 'u8[196608]{0}', space=vmem, size = 0x30000, scoped, tag = 'input window, operand 2, single buffered']
    #allocation3 [shape = 's32[2]{0}', space=sflag, size = 0x8, scoped, tag = 'scoped memory for circlenet_forward.2']
    #allocation4 [shape = 'u8[1024]{0}', space=vmem, size = 0x400, scoped, tag = 'input window, operand 3, single buffered']
    #allocation5 [shape = 's32[1]{0}', space=sflag, size = 0x4, scoped, tag = 'scoped memory for circlenet_forward.2']
    #allocation6 [shape = 'u8[1376256]{0}', space=vmem, size = 0x150000, scoped, tag = 'input window, operand 5, single buffered']
    #allocation7 [shape = 'u8[1024]{0}', space=vmem, size = 0x400, scoped, tag = 'input window, operand 6, single buffered']
    #allocation8 [shape = 's32[1]{0}', space=sflag, size = 0x4, scoped, tag = 'scoped memory for circlenet_forward.2']
    #allocation9 [shape = 'u8[12288]{0}', space=vmem, size = 0x3000, scoped, tag = 'input window, operand 7, single buffered']
    #allocation10 [shape = 'u8[1376256]{0}', space=vmem, size = 0x150000, scoped, tag = 'input window, operand 8, single buffered']
    #allocation11 [shape = 's32[1]{0}', space=sflag, size = 0x4, scoped, tag = 'scoped memory for circlenet_forward.2']
    #allocation12 [shape = 'u8[2048]{0}', space=vmem, size = 0x800, scoped, tag = 'input window, operand 9, single buffered']
    %15 = vsyncpa [#allocation3], 0
    %16 = vsyncpa [#allocation5], 0
    %17 = vsyncpa [#allocation8], 0
    %18 = vsyncpa [#allocation11], 0
    loop: start=0, step=1, limit=4
    $region2: #{circlenet_forward.2} parent=1 // loop_pre_header
      _
    $region3: #{circlenet_forward.2} parent=1 // loop_header
      %s20 = sphi 0, %s24
      %p21 = scmp.ge.s32.totalorder %s20, 4
      %s30 = sphi 0, %s32
      %s33 = sphi 0, %s30
      %s34 = sphi 0, %s33
      %s50 = sphi 0, %s34
      %s54 = sphi 0, %s54
      %s56 = sphi 0, %s54
      %s57 = sphi 0, %s56
      %s71 = sphi 0, %s57
      %s75 = sphi 0, %s75
      %s77 = sphi 0, %s75
      %s78 = sphi 0, %s77
      %s92 = sphi 0, %s78
      %s96 = sphi 0, %s96
      %s98 = sphi 0, %s96
      %s99 = sphi 0, %s98
      %s113 = sphi 0, %s99
      %s117 = sphi 0, %s117
      %s119 = sphi 0, %s117
      %s120 = sphi 0, %s119
      %s134 = sphi 0, %s120
      %s138 = sphi 0, %s138
      %s140 = sphi 0, %s138
      %s141 = sphi 0, %s140
      %s155 = sphi 0, %s141
      %s159 = sphi 0, %s159
      %s161 = sphi 0, %s159
      %s162 = sphi 0, %s161
      %s176 = sphi 0, %s162
      %s180 = sphi 0, %s180
      %s182 = sphi 0, %s180
      %s183 = sphi 0, %s182
      %s197 = sphi 0, %s183
      %s201 = sphi 0, %s201
      %s203 = sphi 0, %s201
      %s204 = sphi 0, %s203
      %s218 = sphi 0, %s204
      %s222 = sphi 0, %s222
      %s224 = sphi 0, %s222
      %s225 = sphi 0, %s224
      %s239 = sphi 0, %s225
      %s245 = sphi 0, %s247
      %s248 = sphi 0, %s245
      %s249 = sphi 0, %s248
      %s265 = sphi 0, %s249
    $region4: #{circlenet_forward.2} parent=1 // loop_header_branch
      %23 = sbr.rel (%p21) target = $region8
    $region5: #{circlenet_forward.2} parent=1 // loop_body
      %s25 = ssub.s32 %s20, 1
      %s26 = ssub.s32 %s20, 2
      %s27 = sadd.s32 %s20, 1
      %s28 = ssub.s32 %s20, %s27
      %p29 = scmp.eq.s32.totalorder %s28, 0
      %s31 = sadd.s32 %s30, 1
      %s32 = scalar_select %p29, %s30, %s31
      %p35 = pneg %p29
      %p36 = scmp.eq.s32.totalorder %s20, 1
      %p37 = por %p35, %p36
      %p38 = scmp.ne.s32.totalorder %s30, %s33
      %p39 = scmp.eq.s32.totalorder %s20, 0
      %p40 = por %p38, %p39
      %p41 = scmp.ne.s32.totalorder %s30, %s33
      %p42 = scmp.eq.s32.totalorder %s25, 1
      %p43 = por %p41, %p42
      %p44 = scmp.ne.s32.totalorder %s33, %s34
      %p45 = scmp.eq.s32.totalorder %s25, 0
      %p46 = por %p44, %p45
      %p47 = scmp.ne.s32.totalorder %s33, %s34
      %p48 = scmp.eq.s32.totalorder %s26, 1
      %p49 = por %p47, %p48
      %p51 = scmp.ne.s32.totalorder %s34, %s50
      %p52 = scmp.eq.s32.totalorder %s26, 0
      %p53 = por %p51, %p52
      %s55 = sadd.s32 %s54, 1
      %p58 = scmp.eq.s32.totalorder %s20, 1
      %p59 = scmp.ne.s32.totalorder %s54, %s56
      %p60 = scmp.eq.s32.totalorder %s20, 0
      %p61 = por %p59, %p60
      %p62 = scmp.ne.s32.totalorder %s54, %s56
      %p63 = scmp.eq.s32.totalorder %s25, 1
      %p64 = por %p62, %p63
      %p65 = scmp.ne.s32.totalorder %s56, %s57
      %p66 = scmp.eq.s32.totalorder %s25, 0
      %p67 = por %p65, %p66
      %p68 = scmp.ne.s32.totalorder %s56, %s57
      %p69 = scmp.eq.s32.totalorder %s26, 1
      %p70 = por %p68, %p69
      %p72 = scmp.ne.s32.totalorder %s57, %s71
      %p73 = scmp.eq.s32.totalorder %s26, 0
      %p74 = por %p72, %p73
      %s76 = sadd.s32 %s75, 1
      %p79 = scmp.eq.s32.totalorder %s20, 1
      %p80 = scmp.ne.s32.totalorder %s75, %s77
      %p81 = scmp.eq.s32.totalorder %s20, 0
      %p82 = por %p80, %p81
      %p83 = scmp.ne.s32.totalorder %s75, %s77
      %p84 = scmp.eq.s32.totalorder %s25, 1
      %p85 = por %p83, %p84
      %p86 = scmp.ne.s32.totalorder %s77, %s78
      %p87 = scmp.eq.s32.totalorder %s25, 0
      %p88 = por %p86, %p87
      %p89 = scmp.ne.s32.totalorder %s77, %s78
      %p90 = scmp.eq.s32.totalorder %s26, 1
      %p91 = por %p89, %p90
      %p93 = scmp.ne.s32.totalorder %s78, %s92
      %p94 = scmp.eq.s32.totalorder %s26, 0
      %p95 = por %p93, %p94
      %s97 = sadd.s32 %s96, 1
      %p100 = scmp.eq.s32.totalorder %s20, 1
      %p101 = scmp.ne.s32.totalorder %s96, %s98
      %p102 = scmp.eq.s32.totalorder %s20, 0
      %p103 = por %p101, %p102
      %p104 = scmp.ne.s32.totalorder %s96, %s98
      %p105 = scmp.eq.s32.totalorder %s25, 1
      %p106 = por %p104, %p105
      %p107 = scmp.ne.s32.totalorder %s98, %s99
      %p108 = scmp.eq.s32.totalorder %s25, 0
      %p109 = por %p107, %p108
      %p110 = scmp.ne.s32.totalorder %s98, %s99
      %p111 = scmp.eq.s32.totalorder %s26, 1
      %p112 = por %p110, %p111
      %p114 = scmp.ne.s32.totalorder %s99, %s113
      %p115 = scmp.eq.s32.totalorder %s26, 0
      %p116 = por %p114, %p115
      %s118 = sadd.s32 %s117, 1
      %p121 = scmp.eq.s32.totalorder %s20, 1
      %p122 = scmp.ne.s32.totalorder %s117, %s119
      %p123 = scmp.eq.s32.totalorder %s20, 0
      %p124 = por %p122, %p123
      %p125 = scmp.ne.s32.totalorder %s117, %s119
      %p126 = scmp.eq.s32.totalorder %s25, 1
      %p127 = por %p125, %p126
      %p128 = scmp.ne.s32.totalorder %s119, %s120
      %p129 = scmp.eq.s32.totalorder %s25, 0
      %p130 = por %p128, %p129
      %p131 = scmp.ne.s32.totalorder %s119, %s120
      %p132 = scmp.eq.s32.totalorder %s26, 1
      %p133 = por %p131, %p132
      %p135 = scmp.ne.s32.totalorder %s120, %s134
      %p136 = scmp.eq.s32.totalorder %s26, 0
      %p137 = por %p135, %p136
      %s139 = sadd.s32 %s138, 1
      %p142 = scmp.eq.s32.totalorder %s20, 1
      %p143 = scmp.ne.s32.totalorder %s138, %s140
      %p144 = scmp.eq.s32.totalorder %s20, 0
      %p145 = por %p143, %p144
      %p146 = scmp.ne.s32.totalorder %s138, %s140
      %p147 = scmp.eq.s32.totalorder %s25, 1
      %p148 = por %p146, %p147
      %p149 = scmp.ne.s32.totalorder %s140, %s141
      %p150 = scmp.eq.s32.totalorder %s25, 0
      %p151 = por %p149, %p150
      %p152 = scmp.ne.s32.totalorder %s140, %s141
      %p153 = scmp.eq.s32.totalorder %s26, 1
      %p154 = por %p152, %p153
      %p156 = scmp.ne.s32.totalorder %s141, %s155
      %p157 = scmp.eq.s32.totalorder %s26, 0
      %p158 = por %p156, %p157
      %s160 = sadd.s32 %s159, 1
      %p163 = scmp.eq.s32.totalorder %s20, 1
      %p164 = scmp.ne.s32.totalorder %s159, %s161
      %p165 = scmp.eq.s32.totalorder %s20, 0
      %p166 = por %p164, %p165
      %p167 = scmp.ne.s32.totalorder %s159, %s161
      %p168 = scmp.eq.s32.totalorder %s25, 1
      %p169 = por %p167, %p168
      %p170 = scmp.ne.s32.totalorder %s161, %s162
      %p171 = scmp.eq.s32.totalorder %s25, 0
      %p172 = por %p170, %p171
      %p173 = scmp.ne.s32.totalorder %s161, %s162
      %p174 = scmp.eq.s32.totalorder %s26, 1
      %p175 = por %p173, %p174
      %p177 = scmp.ne.s32.totalorder %s162, %s176
      %p178 = scmp.eq.s32.totalorder %s26, 0
      %p179 = por %p177, %p178
      %s181 = sadd.s32 %s180, 1
      %p184 = scmp.eq.s32.totalorder %s20, 1
      %p185 = scmp.ne.s32.totalorder %s180, %s182
      %p186 = scmp.eq.s32.totalorder %s20, 0
      %p187 = por %p185, %p186
      %p188 = scmp.ne.s32.totalorder %s180, %s182
      %p189 = scmp.eq.s32.totalorder %s25, 1
      %p190 = por %p188, %p189
      %p191 = scmp.ne.s32.totalorder %s182, %s183
      %p192 = scmp.eq.s32.totalorder %s25, 0
      %p193 = por %p191, %p192
      %p194 = scmp.ne.s32.totalorder %s182, %s183
      %p195 = scmp.eq.s32.totalorder %s26, 1
      %p196 = por %p194, %p195
      %p198 = scmp.ne.s32.totalorder %s183, %s197
      %p199 = scmp.eq.s32.totalorder %s26, 0
      %p200 = por %p198, %p199
      %s202 = sadd.s32 %s201, 1
      %p205 = scmp.eq.s32.totalorder %s20, 1
      %p206 = scmp.ne.s32.totalorder %s201, %s203
      %p207 = scmp.eq.s32.totalorder %s20, 0
      %p208 = por %p206, %p207
      %p209 = scmp.ne.s32.totalorder %s201, %s203
      %p210 = scmp.eq.s32.totalorder %s25, 1
      %p211 = por %p209, %p210
      %p212 = scmp.ne.s32.totalorder %s203, %s204
      %p213 = scmp.eq.s32.totalorder %s25, 0
      %p214 = por %p212, %p213
      %p215 = scmp.ne.s32.totalorder %s203, %s204
      %p216 = scmp.eq.s32.totalorder %s26, 1
      %p217 = por %p215, %p216
      %p219 = scmp.ne.s32.totalorder %s204, %s218
      %p220 = scmp.eq.s32.totalorder %s26, 0
      %p221 = por %p219, %p220
      %s223 = sadd.s32 %s222, 1
      %p226 = scmp.eq.s32.totalorder %s20, 1
      %p227 = scmp.ne.s32.totalorder %s222, %s224
      %p228 = scmp.eq.s32.totalorder %s20, 0
      %p229 = por %p227, %p228
      %p230 = scmp.ne.s32.totalorder %s222, %s224
      %p231 = scmp.eq.s32.totalorder %s25, 1
      %p232 = por %p230, %p231
      %p233 = scmp.ne.s32.totalorder %s224, %s225
      %p234 = scmp.eq.s32.totalorder %s25, 0
      %p235 = por %p233, %p234
      %p236 = scmp.ne.s32.totalorder %s224, %s225
      %p237 = scmp.eq.s32.totalorder %s26, 1
      %p238 = por %p236, %p237
      %p240 = scmp.ne.s32.totalorder %s225, %s239
      %p241 = scmp.eq.s32.totalorder %s26, 0
      %p242 = por %p240, %p241
      %s243 = ssub.s32 %s20, %s27
      %p244 = scmp.eq.s32.totalorder %s243, 0
      %s246 = sadd.s32 %s245, 1
      %s247 = scalar_select %p244, %s245, %s246
      %p250 = pneg %p244
      %p251 = scmp.eq.s32.totalorder %s20, 1
      %p252 = por %p250, %p251
      %p253 = scmp.ne.s32.totalorder %s245, %s248
      %p254 = scmp.eq.s32.totalorder %s20, 0
      %p255 = por %p253, %p254
      %p256 = scmp.ne.s32.totalorder %s245, %s248
      %p257 = scmp.eq.s32.totalorder %s25, 1
      %p258 = por %p256, %p257
      %p259 = scmp.ne.s32.totalorder %s248, %s249
      %p260 = scmp.eq.s32.totalorder %s25, 0
      %p261 = por %p259, %p260
      %p262 = scmp.ne.s32.totalorder %s248, %s249
      %p263 = scmp.eq.s32.totalorder %s26, 1
      %p264 = por %p262, %p263
      %p266 = scmp.ne.s32.totalorder %s249, %s265
      %p267 = scmp.eq.s32.totalorder %s26, 0
      %p268 = por %p266, %p267
      %p269 = scmp.le.s32.totalorder 1, %s20
      %p270 = scmp.lt.s32.totalorder %s20, 3
      %p271 = pnand %p269, %p270
      %p272 = pneg %p271
      // Predicated region
      $region9: #{circlenet_forward.2} parent=5 // pred_check
        _
      $region10: #{circlenet_forward.2} parent=5 // pred_check_branch
        %274 = sbr.rel (%p271) target = $region12
      $region11: #{circlenet_forward.2} parent=5 // pred_region
        %s275 = ssub.s32 %s20, 1
        // Predicated region
        $region13: #{circlenet_forward.2} parent=11 // pred_check
          %p276 = pneg %p67
        $region14: #{circlenet_forward.2} parent=11 // pred_check_branch
          %278 = sbr.rel (%p276) target = $region16
        $region15: #{circlenet_forward.2} parent=11 // pred_region
          _
        $region16: #{circlenet_forward.2} parent=11 // pred_fallthru
          _
        // Predicated region
        $region17: #{circlenet_forward.2} parent=11 // pred_check
          %p279 = pneg %p88
        $region18: #{circlenet_forward.2} parent=11 // pred_check_branch
          %281 = sbr.rel (%p279) target = $region20
        $region19: #{circlenet_forward.2} parent=11 // pred_region
          %s283 = ssub.s32 6144, 6144
          %284 = vsyncadd [#allocation3], %s283
          %s285 = sshll.u32 [#allocation2], 4
          %s286 = int_to_ptr.vmem [resolvable:$true] %s285
          %291 = dma.hbm_to_vmem [thread:$0]  %s2, 6144, %s286, [#allocation3], 256, 256, 16
        $region20: #{circlenet_forward.2} parent=11 // pred_fallthru
          _
        // Predicated region
        $region21: #{circlenet_forward.2} parent=11 // pred_check
          %p292 = pneg %p109
        $region22: #{circlenet_forward.2} parent=11 // pred_check_branch
          %294 = sbr.rel (%p292) target = $region24
        $region23: #{circlenet_forward.2} parent=11 // pred_region
          %s296 = ssub.s32 32, 32
          %297 = vsyncadd [#allocation5], %s296
          %s299 = sshll.u32 [#allocation4], 4
          %s300 = int_to_ptr.vmem [resolvable:$true] %s299
          %302 = dma.hbm_to_vmem [thread:$0]  %s3, 32, %s300, [#allocation5]
        $region24: #{circlenet_forward.2} parent=11 // pred_fallthru
          _
        // Predicated region
        $region25: #{circlenet_forward.2} parent=11 // pred_check
          %p303 = pneg %p130
        $region26: #{circlenet_forward.2} parent=11 // pred_check_branch
          %305 = sbr.rel (%p303) target = $region28
        $region27: #{circlenet_forward.2} parent=11 // pred_region
          _
        $region28: #{circlenet_forward.2} parent=11 // pred_fallthru
          _
        // Predicated region
        $region29: #{circlenet_forward.2} parent=11 // pred_check
          %p306 = pneg %p151
        $region30: #{circlenet_forward.2} parent=11 // pred_check_branch
          %308 = sbr.rel (%p306) target = $region32
        $region31: #{circlenet_forward.2} parent=11 // pred_region
          %s310 = ssub.s32 43008, 43008
          %311 = vsyncadd [#allocation5], %s310
          %s312 = sshll.u32 [#allocation6], 4
          %s313 = int_to_ptr.vmem [resolvable:$true] %s312
          %318 = dma.hbm_to_vmem [thread:$0]  %s5, 43008, %s313, [#allocation5], 256, 256, 16
        $region32: #{circlenet_forward.2} parent=11 // pred_fallthru
          _
        // Predicated region
        $region33: #{circlenet_forward.2} parent=11 // pred_check
          %p319 = pneg %p172
        $region34: #{circlenet_forward.2} parent=11 // pred_check_branch
          %321 = sbr.rel (%p319) target = $region36
        $region35: #{circlenet_forward.2} parent=11 // pred_region
          %s323 = ssub.s32 32, 32
          %324 = vsyncadd [#allocation8], %s323
          %s326 = sshll.u32 [#allocation7], 4
          %s327 = int_to_ptr.vmem [resolvable:$true] %s326
          %329 = dma.hbm_to_vmem [thread:$0]  %s6, 32, %s327, [#allocation8]
        $region36: #{circlenet_forward.2} parent=11 // pred_fallthru
          _
        // Predicated region
        $region37: #{circlenet_forward.2} parent=11 // pred_check
          %p330 = pneg %p193
        $region38: #{circlenet_forward.2} parent=11 // pred_check_branch
          %332 = sbr.rel (%p330) target = $region40
        $region39: #{circlenet_forward.2} parent=11 // pred_region
          %s334 = ssub.s32 384, 384
          %335 = vsyncadd [#allocation8], %s334
          %s336 = sshll.u32 [#allocation9], 4
          %s337 = int_to_ptr.vmem [resolvable:$true] %s336
          %342 = dma.hbm_to_vmem [thread:$0]  %s7, 384, %s337, [#allocation8], 128, 128, 8
        $region40: #{circlenet_forward.2} parent=11 // pred_fallthru
          _
        // Predicated region
        $region41: #{circlenet_forward.2} parent=11 // pred_check
          %p343 = pneg %p214
        $region42: #{circlenet_forward.2} parent=11 // pred_check_branch
          %345 = sbr.rel (%p343) target = $region44
        $region43: #{circlenet_forward.2} parent=11 // pred_region
          %s347 = ssub.s32 43008, 43008
          %348 = vsyncadd [#allocation11], %s347
          %s349 = sshll.u32 [#allocation10], 4
          %s350 = int_to_ptr.vmem [resolvable:$true] %s349
          %355 = dma.hbm_to_vmem [thread:$0]  %s8, 43008, %s350, [#allocation11], 512, 512, 32
        $region44: #{circlenet_forward.2} parent=11 // pred_fallthru
          _
        // Predicated region
        $region45: #{circlenet_forward.2} parent=11 // pred_check
          %p356 = pneg %p235
        $region46: #{circlenet_forward.2} parent=11 // pred_check_branch
          %358 = sbr.rel (%p356) target = $region48
        $region47: #{circlenet_forward.2} parent=11 // pred_region
          %s360 = ssub.s32 64, 64
          %361 = vsyncadd [#allocation11], %s360
          %s363 = sshll.u32 [#allocation12], 4
          %s364 = int_to_ptr.vmem [resolvable:$true] %s363
          %366 = dma.hbm_to_vmem [thread:$0]  %s9, 64, %s364, [#allocation11]
        $region48: #{circlenet_forward.2} parent=11 // pred_fallthru
          _
      $region12: #{circlenet_forward.2} parent=5 // pred_fallthru
        _
      %p367 = scmp.lt.s32.totalorder %s20, 2
      // Predicated region
      $region49: #{circlenet_forward.2} parent=5 // pred_check
        %p368 = pneg %p367
      $region50: #{circlenet_forward.2} parent=5 // pred_check_branch
        %370 = sbr.rel (%p368) target = $region52
      $region51: #{circlenet_forward.2} parent=5 // pred_region
        // Predicated region
        $region53: #{circlenet_forward.2} parent=51 // pred_check
          %p371 = pneg %p40
        $region54: #{circlenet_forward.2} parent=51 // pred_check_branch
          %373 = sbr.rel (%p371) target = $region56
        $region55: #{circlenet_forward.2} parent=51 // pred_region
          %p374 = scmp.lt.s32.totalorder %s20, 1
          %s375 = scalar_select %p374, %s20, 1
          %s376 = smul.addr %s375, 4
          %s377 = smul.addr %s376, 8
          %s378 = scalar_lea.vmem %s0, %s377
        $region56: #{circlenet_forward.2} parent=51 // pred_fallthru
          _
      $region52: #{circlenet_forward.2} parent=5 // pred_fallthru
        _
      %p379 = scmp.le.s32.totalorder 1, %s20
      %p380 = scmp.lt.s32.totalorder %s20, 3
      %p381 = pnand %p379, %p380
      %p382 = pneg %p381
      // Predicated region
      $region57: #{circlenet_forward.2} parent=5 // pred_check
        _
      $region58: #{circlenet_forward.2} parent=5 // pred_check_branch
        %384 = sbr.rel (%p381) target = $region60
      $region59: #{circlenet_forward.2} parent=5 // pred_region
        %s385 = ssub.s32 %s20, 1
        // Predicated region
        $region61: #{circlenet_forward.2} parent=59 // pred_check
          %p386 = pneg %p88
        $region62: #{circlenet_forward.2} parent=59 // pred_check_branch
          %388 = sbr.rel (%p386) target = $region64
        $region63: #{circlenet_forward.2} parent=59 // pred_region
          %389 = dma.done [#allocation3], 6144
        $region64: #{circlenet_forward.2} parent=59 // pred_fallthru
          _
        // Predicated region
        $region65: #{circlenet_forward.2} parent=59 // pred_check
          %p390 = pneg %p109
        $region66: #{circlenet_forward.2} parent=59 // pred_check_branch
          %392 = sbr.rel (%p390) target = $region68
        $region67: #{circlenet_forward.2} parent=59 // pred_region
          %393 = dma.done [#allocation5], 32
        $region68: #{circlenet_forward.2} parent=59 // pred_fallthru
          _
        // Predicated region
        $region69: #{circlenet_forward.2} parent=59 // pred_check
          %p394 = pneg %p151
        $region70: #{circlenet_forward.2} parent=59 // pred_check_branch
          %396 = sbr.rel (%p394) target = $region72
        $region71: #{circlenet_forward.2} parent=59 // pred_region
          %397 = dma.done [#allocation5], 43008
        $region72: #{circlenet_forward.2} parent=59 // pred_fallthru
          _
        // Predicated region
        $region73: #{circlenet_forward.2} parent=59 // pred_check
          %p398 = pneg %p172
        $region74: #{circlenet_forward.2} parent=59 // pred_check_branch
          %400 = sbr.rel (%p398) target = $region76
        $region75: #{circlenet_forward.2} parent=59 // pred_region
          %401 = dma.done [#allocation8], 32
        $region76: #{circlenet_forward.2} parent=59 // pred_fallthru
          _
        // Predicated region
        $region77: #{circlenet_forward.2} parent=59 // pred_check
          %p402 = pneg %p193
        $region78: #{circlenet_forward.2} parent=59 // pred_check_branch
          %404 = sbr.rel (%p402) target = $region80
        $region79: #{circlenet_forward.2} parent=59 // pred_region
          %405 = dma.done [#allocation8], 384
        $region80: #{circlenet_forward.2} parent=59 // pred_fallthru
          _
        // Predicated region
        $region81: #{circlenet_forward.2} parent=59 // pred_check
          %p406 = pneg %p214
        $region82: #{circlenet_forward.2} parent=59 // pred_check_branch
          %408 = sbr.rel (%p406) target = $region84
        $region83: #{circlenet_forward.2} parent=59 // pred_region
          %409 = dma.done [#allocation11], 43008
        $region84: #{circlenet_forward.2} parent=59 // pred_fallthru
          _
        // Predicated region
        $region85: #{circlenet_forward.2} parent=59 // pred_check
          %p410 = pneg %p235
        $region86: #{circlenet_forward.2} parent=59 // pred_check_branch
          %412 = sbr.rel (%p410) target = $region88
        $region87: #{circlenet_forward.2} parent=59 // pred_region
          %413 = dma.done [#allocation11], 64
        $region88: #{circlenet_forward.2} parent=59 // pred_fallthru
          _
        %p414 = scmp.lt.s32.totalorder %s25, 1
        %s415 = scalar_select %p414, %s25, 1
        %s416 = smul.addr %s415, 4
        %s417 = smul.addr %s416, 8
        %s418 = scalar_lea.vmem %s0, %s417
        %p419 = pneg %p46
        %p420 = pneg %p43
        %p421 = pneg %p67
        %p422 = pneg %p64
        %p423 = pneg %p88
        %p424 = pneg %p85
        %p425 = pneg %p109
        %p426 = pneg %p106
        %p427 = pneg %p130
        %p428 = pneg %p127
        %p429 = pneg %p151
        %p430 = pneg %p148
        %p431 = pneg %p172
        %p432 = pneg %p169
        %p433 = pneg %p193
        %p434 = pneg %p190
        %p435 = pneg %p214
        %p436 = pneg %p211
        %p437 = pneg %p235
        %p438 = pneg %p232
        %p439 = pneg %p261
        %p440 = pneg %p258
        %p441 = scmp.lt.s32.totalorder %s25, 1
        %s442 = scalar_select %p441, %s25, 1
        %s443 = smul.addr %s442, 4
        %s444 = smul.addr %s443, 8
        %s445 = scalar_lea.vmem %s10, %s444
        %p446 = scmp.lt.s32.totalorder %s25, 1
        %s447 = scalar_select %p446, %s25, 1
        %s448 = smul.addr %s447, 4
        %s449 = smul.addr %s448, 8
        %s450 = scalar_lea.vmem %s0, %s449
        %p451 = scmp.lt.s32.totalorder %s25, 1
        %s452 = scalar_select %p451, %s25, 1
        %s453 = smul.addr %s452, 4
        %s454 = smul.addr %s453, 8
        %s455 = scalar_lea.vmem %s10, %s454
        %v456 = vld [vmem:[%s450] sm:$0xff]
        %v457 = vld [vmem:[%s450 + $0x8] sm:$0xff]
        %v458 = vld [vmem:[%s450 + $0x10] sm:$0xff]
        %v459 = vld [vmem:[%s450 + $0x18] sm:$0xf]
        %v460 = vld [vmem:[%s1] sm:$0xff]
        %v461 = vld [vmem:[%s1 + $0x8] sm:$0x3f]
        %vm462 = vcmask 228352
        %v464 = vsel %vm462, %v460, 0
        %v467 = vsel %vm462, %v461, 0
        %vm469 = vcmask 1043456
        %v471 = vsel %vm469, %v459, 0
        %473 = vmatprep.subr.mxu0 0.0
        %474 = vmatpush1.msra.mxu0 %v456
        %475 = vmatprep.subr.mxu0 0.0
        %476 = vmatpush1.msra.mxu0 %v457
        %477 = vmatprep.subr.mxu0 0.0
        %478 = vmatpush1.msra.mxu0 %v458
        %479 = vmatprep.subr.mxu0 0.0
        %480 = vmatpush1.msra.mxu0 %v471
        %481 = vmatprep.subr.mxu0 0.0
        %482 = vmatpush1.msra.mxu0 0.0
        %483 = vmatprep.subr.mxu0 0.0
        %484 = vmatpush1.msra.mxu0 0.0
        %485 = vmatprep.subr.mxu0 0.0
        %486 = vmatpush1.msra.mxu0 0.0
        %487 = vmatprep.subr.mxu0 0.0
        %488 = vmatpush1.msra.mxu0 0.0
        %489 = vmatprep.subr.mxu0 0.0
        %490 = vmatpush1.msra.mxu0 0.0
        %491 = vmatprep.subr.mxu0 0.0
        %492 = vmatpush1.msra.mxu0 0.0
        %493 = vmatprep.subr.mxu0 0.0
        %494 = vmatpush1.msra.mxu0 0.0
        %495 = vmatprep.subr.mxu0 0.0
        %496 = vmatpush1.msra.mxu0 0.0
        %497 = vmatprep.subr.mxu0 0.0
        %498 = vmatpush1.msra.mxu0 0.0
        %499 = vmatprep.subr.mxu0 0.0
        %500 = vmatpush1.msra.mxu0 0.0
        %501 = vmatprep.subr.mxu0 0.0
        %502 = vmatpush1.msra.mxu0 0.0
        %503 = vmatprep.subr.mxu0 0.0
        %504 = vmatpush1.msra.mxu0 0.0
        %505 = vmatprep.subr.mxu0 0.0
        %506 = vmatpush1.msra.mxu0 0.0
        %507 = vmatprep.subr.mxu0 0.0
        %508 = vmatpush1.msra.mxu0 0.0
        %509 = vmatprep.subr.mxu0 0.0
        %510 = vmatpush1.msra.mxu0 0.0
        %511 = vmatprep.subr.mxu0 0.0
        %512 = vmatpush1.msra.mxu0 0.0
        %513 = vmatprep.subr.mxu0 0.0
        %514 = vmatpush1.msra.mxu0 0.0
        %515 = vmatprep.subr.mxu0 0.0
        %516 = vmatpush1.msra.mxu0 0.0
        %517 = vmatprep.subr.mxu0 0.0
        %518 = vmatpush1.msra.mxu0 0.0
        %519 = vmatprep.subr.mxu0 0.0
        %520 = vmatpush1.msra.mxu0 0.0
        %521 = vmatprep.subr.mxu0 0.0
        %522 = vmatpush1.msra.mxu0 0.0
        %523 = vmatprep.subr.mxu0 0.0
        %524 = vmatpush1.msra.mxu0 0.0
        %525 = vmatprep.subr.mxu0 0.0
        %526 = vmatpush1.msra.mxu0 0.0
        %527 = vmatprep.subr.mxu0 0.0
        %528 = vmatpush1.msra.mxu0 0.0
        %529 = vmatprep.subr.mxu0 0.0
        %530 = vmatpush1.msra.mxu0 0.0
        %531 = vmatprep.subr.mxu0 0.0
        %532 = vmatpush1.msra.mxu0 0.0
        %533 = vmatprep.subr.mxu0 0.0
        %534 = vmatpush1.msra.mxu0 0.0
        %535 = vmatprep.subr.mxu0 0.0
        %536 = vmatpush1.msra.mxu0 0.0
        %537 = vmatprep.mubr.f32.mxu0 0.0
        %538 = vmatmul.mubr.f32.gmra.mrb[0].mxu0 %v464
        %v539 = vpop.f32.mrb[0].mxu0
        %v540 = vadd.f32 0.0, %v539
        %v541 = vpop.f32.mrb[0].mxu0
        %542 = vmatprep.mubr.f32.mxu0 0.0
        %543 = vmatmul.mubr.f32.gmra.mrb[0].mxu0 %v467
        %v544 = vpop.f32.mrb[0].mxu0
        %v545 = vadd.f32 0.0, %v544
        %v546 = vpop.f32.mrb[0].mxu0
        %547 = vdwg.mxu0
        %s548 = scalar_lea.vmem %s1, 16
        %v549 = vld [vmem:[%s548] sm:$0xff]
        %v550 = vld [vmem:[%s548 + $0x8] sm:$0x3f]
        %v552 = vsel %vm462, %v549, 0
        %v555 = vsel %vm462, %v550, 0
        %557 = vmatprep.subr.mxu0 0.0
        %558 = vmatpush1.msra.mxu0 %v456
        %559 = vmatprep.subr.mxu0 0.0
        %560 = vmatpush1.msra.mxu0 %v457
        %561 = vmatprep.subr.mxu0 0.0
        %562 = vmatpush1.msra.mxu0 %v458
        %563 = vmatprep.subr.mxu0 0.0
        %564 = vmatpush1.msra.mxu0 %v471
        %565 = vmatprep.subr.mxu0 0.0
        %566 = vmatpush1.msra.mxu0 0.0
        %567 = vmatprep.subr.mxu0 0.0
        %568 = vmatpush1.msra.mxu0 0.0
        %569 = vmatprep.subr.mxu0 0.0
        %570 = vmatpush1.msra.mxu0 0.0
        %571 = vmatprep.subr.mxu0 0.0
        %572 = vmatpush1.msra.mxu0 0.0
        %573 = vmatprep.subr.mxu0 0.0
        %574 = vmatpush1.msra.mxu0 0.0
        %575 = vmatprep.subr.mxu0 0.0
        %576 = vmatpush1.msra.mxu0 0.0
        %577 = vmatprep.subr.mxu0 0.0
        %578 = vmatpush1.msra.mxu0 0.0
        %579 = vmatprep.subr.mxu0 0.0
        %580 = vmatpush1.msra.mxu0 0.0
        %581 = vmatprep.subr.mxu0 0.0
        %582 = vmatpush1.msra.mxu0 0.0
        %583 = vmatprep.subr.mxu0 0.0
        %584 = vmatpush1.msra.mxu0 0.0
        %585 = vmatprep.subr.mxu0 0.0
        %586 = vmatpush1.msra.mxu0 0.0
        %587 = vmatprep.subr.mxu0 0.0
        %588 = vmatpush1.msra.mxu0 0.0
        %589 = vmatprep.subr.mxu0 0.0
        %590 = vmatpush1.msra.mxu0 0.0
        %591 = vmatprep.subr.mxu0 0.0
        %592 = vmatpush1.msra.mxu0 0.0
        %593 = vmatprep.subr.mxu0 0.0
        %594 = vmatpush1.msra.mxu0 0.0
        %595 = vmatprep.subr.mxu0 0.0
        %596 = vmatpush1.msra.mxu0 0.0
        %597 = vmatprep.subr.mxu0 0.0
        %598 = vmatpush1.msra.mxu0 0.0
        %599 = vmatprep.subr.mxu0 0.0
        %600 = vmatpush1.msra.mxu0 0.0
        %601 = vmatprep.subr.mxu0 0.0
        %602 = vmatpush1.msra.mxu0 0.0
        %603 = vmatprep.subr.mxu0 0.0
        %604 = vmatpush1.msra.mxu0 0.0
        %605 = vmatprep.subr.mxu0 0.0
        %606 = vmatpush1.msra.mxu0 0.0
        %607 = vmatprep.subr.mxu0 0.0
        %608 = vmatpush1.msra.mxu0 0.0
        %609 = vmatprep.subr.mxu0 0.0
        %610 = vmatpush1.msra.mxu0 0.0
        %611 = vmatprep.subr.mxu0 0.0
        %612 = vmatpush1.msra.mxu0 0.0
        %613 = vmatprep.subr.mxu0 0.0
        %614 = vmatpush1.msra.mxu0 0.0
        %615 = vmatprep.subr.mxu0 0.0
        %616 = vmatpush1.msra.mxu0 0.0
        %617 = vmatprep.subr.mxu0 0.0
        %618 = vmatpush1.msra.mxu0 0.0
        %619 = vmatprep.subr.mxu0 0.0
        %620 = vmatpush1.msra.mxu0 0.0
        %621 = vmatprep.mubr.f32.mxu0 0.0
        %622 = vmatmul.mubr.f32.gmra.mrb[0].mxu0 %v552
        %v623 = vpop.f32.mrb[0].mxu0
        %v624 = vadd.f32 0.0, %v623
        %v625 = vpop.f32.mrb[0].mxu0
        %626 = vmatprep.mubr.f32.mxu0 0.0
        %627 = vmatmul.mubr.f32.gmra.mrb[0].mxu0 %v555
        %v628 = vpop.f32.mrb[0].mxu0
        %v629 = vadd.f32 0.0, %v628
        %v630 = vpop.f32.mrb[0].mxu0
        %631 = vdwg.mxu0
        %s632 = scalar_lea.vmem %s1, 32
        %v633 = vld [vmem:[%s632] sm:$0xff]
        %v634 = vld [vmem:[%s632 + $0x8] sm:$0x3f]
        %v636 = vsel %vm462, %v633, 0
        %v639 = vsel %vm462, %v634, 0
        %641 = vmatprep.subr.mxu0 0.0
        %642 = vmatpush1.msra.mxu0 %v456
        %643 = vmatprep.subr.mxu0 0.0
        %644 = vmatpush1.msra.mxu0 %v457
        %645 = vmatprep.subr.mxu0 0.0
        %646 = vmatpush1.msra.mxu0 %v458
        %647 = vmatprep.subr.mxu0 0.0
        %648 = vmatpush1.msra.mxu0 %v471
        %649 = vmatprep.subr.mxu0 0.0
        %650 = vmatpush1.msra.mxu0 0.0
        %651 = vmatprep.subr.mxu0 0.0
        %652 = vmatpush1.msra.mxu0 0.0
        %653 = vmatprep.subr.mxu0 0.0
        %654 = vmatpush1.msra.mxu0 0.0
        %655 = vmatprep.subr.mxu0 0.0
        %656 = vmatpush1.msra.mxu0 0.0
        %657 = vmatprep.subr.mxu0 0.0
        %658 = vmatpush1.msra.mxu0 0.0
        %659 = vmatprep.subr.mxu0 0.0
        %660 = vmatpush1.msra.mxu0 0.0
        %661 = vmatprep.subr.mxu0 0.0
        %662 = vmatpush1.msra.mxu0 0.0
        %663 = vmatprep.subr.mxu0 0.0
        %664 = vmatpush1.msra.mxu0 0.0
        %665 = vmatprep.subr.mxu0 0.0
        %666 = vmatpush1.msra.mxu0 0.0
        %667 = vmatprep.subr.mxu0 0.0
        %668 = vmatpush1.msra.mxu0 0.0
        %669 = vmatprep.subr.mxu0 0.0
        %670 = vmatpush1.msra.mxu0 0.0
        %671 = vmatprep.subr.mxu0 0.0
        %672 = vmatpush1.msra.mxu0 0.0
        %673 = vmatprep.subr.mxu0 0.0
        %674 = vmatpush1.msra.mxu0 0.0
        %675 = vmatprep.subr.mxu0 0.0
        %676 = vmatpush1.msra.mxu0 0.0
        %677 = vmatprep.subr.mxu0 0.0
        %678 = vmatpush1.msra.mxu0 0.0
        %679 = vmatprep.subr.mxu0 0.0
        %680 = vmatpush1.msra.mxu0 0.0
        %681 = vmatprep.subr.mxu0 0.0
        %682 = vmatpush1.msra.mxu0 0.0
        %683 = vmatprep.subr.mxu0 0.0
        %684 = vmatpush1.msra.mxu0 0.0
        %685 = vmatprep.subr.mxu0 0.0
        %686 = vmatpush1.msra.mxu0 0.0
        %687 = vmatprep.subr.mxu0 0.0
        %688 = vmatpush1.msra.mxu0 0.0
        %689 = vmatprep.subr.mxu0 0.0
        %690 = vmatpush1.msra.mxu0 0.0
        %691 = vmatprep.subr.mxu0 0.0
        %692 = vmatpush1.msra.mxu0 0.0
        %693 = vmatprep.subr.mxu0 0.0
        %694 = vmatpush1.msra.mxu0 0.0
        %695 = vmatprep.subr.mxu0 0.0
        %696 = vmatpush1.msra.mxu0 0.0
        %697 = vmatprep.subr.mxu0 0.0
        %698 = vmatpush1.msra.mxu0 0.0
        %699 = vmatprep.subr.mxu0 0.0
        %700 = vmatpush1.msra.mxu0 0.0
        %701 = vmatprep.subr.mxu0 0.0
        %702 = vmatpush1.msra.mxu0 0.0
        %703 = vmatprep.subr.mxu0 0.0
        %704 = vmatpush1.msra.mxu0 0.0
        %705 = vmatprep.mubr.f32.mxu0 0.0
        %706 = vmatmul.mubr.f32.gmra.mrb[0].mxu0 %v636
        %v707 = vpop.f32.mrb[0].mxu0
        %v708 = vadd.f32 0.0, %v707
        %v709 = vpop.f32.mrb[0].mxu0
        %710 = vmatprep.mubr.f32.mxu0 0.0
        %711 = vmatmul.mubr.f32.gmra.mrb[0].mxu0 %v639
        %v712 = vpop.f32.mrb[0].mxu0
        %v713 = vadd.f32 0.0, %v712
        %v714 = vpop.f32.mrb[0].mxu0
        %715 = vdwg.mxu0
        %s716 = scalar_lea.vmem %s1, 48
        %v717 = vld [vmem:[%s716] sm:$0xff]
        %v718 = vld [vmem:[%s716 + $0x8] sm:$0x3f]
        %v720 = vsel %vm462, %v717, 0
        %v723 = vsel %vm462, %v718, 0
        %725 = vmatprep.subr.mxu0 0.0
        %726 = vmatpush1.msra.mxu0 %v456
        %727 = vmatprep.subr.mxu0 0.0
        %728 = vmatpush1.msra.mxu0 %v457
        %729 = vmatprep.subr.mxu0 0.0
        %730 = vmatpush1.msra.mxu0 %v458
        %731 = vmatprep.subr.mxu0 0.0
        %732 = vmatpush1.msra.mxu0 %v471
        %733 = vmatprep.subr.mxu0 0.0
        %734 = vmatpush1.msra.mxu0 0.0
        %735 = vmatprep.subr.mxu0 0.0
        %736 = vmatpush1.msra.mxu0 0.0
        %737 = vmatprep.subr.mxu0 0.0
        %738 = vmatpush1.msra.mxu0 0.0
        %739 = vmatprep.subr.mxu0 0.0
        %740 = vmatpush1.msra.mxu0 0.0
        %741 = vmatprep.subr.mxu0 0.0
        %742 = vmatpush1.msra.mxu0 0.0
        %743 = vmatprep.subr.mxu0 0.0
        %744 = vmatpush1.msra.mxu0 0.0
        %745 = vmatprep.subr.mxu0 0.0
        %746 = vmatpush1.msra.mxu0 0.0
        %747 = vmatprep.subr.mxu0 0.0
        %748 = vmatpush1.msra.mxu0 0.0
        %749 = vmatprep.subr.mxu0 0.0
        %750 = vmatpush1.msra.mxu0 0.0
        %751 = vmatprep.subr.mxu0 0.0
        %752 = vmatpush1.msra.mxu0 0.0
        %753 = vmatprep.subr.mxu0 0.0
        %754 = vmatpush1.msra.mxu0 0.0
        %755 = vmatprep.subr.mxu0 0.0
        %756 = vmatpush1.msra.mxu0 0.0
        %757 = vmatprep.subr.mxu0 0.0
        %758 = vmatpush1.msra.mxu0 0.0
        %759 = vmatprep.subr.mxu0 0.0
        %760 = vmatpush1.msra.mxu0 0.0
        %761 = vmatprep.subr.mxu0 0.0
        %762 = vmatpush1.msra.mxu0 0.0
        %763 = vmatprep.subr.mxu0 0.0
        %764 = vmatpush1.msra.mxu0 0.0
        %765 = vmatprep.subr.mxu0 0.0
        %766 = vmatpush1.msra.mxu0 0.0
        %767 = vmatprep.subr.mxu0 0.0
        %768 = vmatpush1.msra.mxu0 0.0
        %769 = vmatprep.subr.mxu0 0.0
        %770 = vmatpush1.msra.mxu0 0.0
        %771 = vmatprep.subr.mxu0 0.0
        %772 = vmatpush1.msra.mxu0 0.0
        %773 = vmatprep.subr.mxu0 0.0
        %774 = vmatpush1.msra.mxu0 0.0
        %775 = vmatprep.subr.mxu0 0.0
        %776 = vmatpush1.msra.mxu0 0.0
        %777 = vmatprep.subr.mxu0 0.0
        %778 = vmatpush1.msra.mxu0 0.0
        %779 = vmatprep.subr.mxu0 0.0
        %780 = vmatpush1.msra.mxu0 0.0
        %781 = vmatprep.subr.mxu0 0.0
        %782 = vmatpush1.msra.mxu0 0.0
        %783 = vmatprep.subr.mxu0 0.0
        %784 = vmatpush1.msra.mxu0 0.0
        %785 = vmatprep.subr.mxu0 0.0
        %786 = vmatpush1.msra.mxu0 0.0
        %787 = vmatprep.subr.mxu0 0.0
        %788 = vmatpush1.msra.mxu0 0.0
        %789 = vmatprep.mubr.f32.mxu0 0.0
        %790 = vmatmul.mubr.f32.gmra.mrb[0].mxu0 %v720
        %v791 = vpop.f32.mrb[0].mxu0
        %v792 = vadd.f32 0.0, %v791
        %v793 = vpop.f32.mrb[0].mxu0
        %794 = vmatprep.mubr.f32.mxu0 0.0
        %795 = vmatmul.mubr.f32.gmra.mrb[0].mxu0 %v723
        %v796 = vpop.f32.mrb[0].mxu0
        %v797 = vadd.f32 0.0, %v796
        %v798 = vpop.f32.mrb[0].mxu0
        %799 = vdwg.mxu0
        %v800 = vld [vmem:[#allocation2] sm:$0xff]
        %v801 = vld [vmem:[#allocation2 + $0x8] sm:$0xff]
        %v802 = vld [vmem:[#allocation2 + $0x10] sm:$0xff]
        %v803 = vld [vmem:[#allocation2 + $0x18] sm:$0xff]
        %v804 = vld [vmem:[#allocation2 + $0x20] sm:$0xff]
        %v805 = vld [vmem:[#allocation2 + $0x28] sm:$0xff]
        %v806 = vld [vmem:[#allocation2 + $0x30] sm:$0xf]
        %v807 = vld [vmem:[#allocation2 + $0x38] sm:$0xf]
        %s808 = scalar_lea.vmem [#allocation2], 128
        %v809 = vld [vmem:[%s808] sm:$0xff]
        %v810 = vld [vmem:[%s808 + $0x8] sm:$0xff]
        %v811 = vld [vmem:[%s808 + $0x10] sm:$0xff]
        %v812 = vld [vmem:[%s808 + $0x18] sm:$0xff]
        %v813 = vld [vmem:[%s808 + $0x20] sm:$0xff]
        %v814 = vld [vmem:[%s808 + $0x28] sm:$0xff]
        %v815 = vld [vmem:[%s808 + $0x30] sm:$0xf]
        %v816 = vld [vmem:[%s808 + $0x38] sm:$0xf]
        %v818 = vsel %vm462, %v624, 0
        %v821 = vsel %vm462, %v629, 0
        %v824 = vsel %vm469, %v815, 0
        %v827 = vsel %vm469, %v816, 0
        %829 = vmatprep.subr.mxu0 %v810
        %830 = vmatpush1.msra.mxu0 %v809
        %831 = vmatprep.subr.mxu0 %v812
        %832 = vmatpush1.msra.mxu0 %v811
        %833 = vmatprep.subr.mxu0 %v814
        %834 = vmatpush1.msra.mxu0 %v813
        %835 = vmatprep.subr.mxu0 %v827
        %836 = vmatpush1.msra.mxu0 %v824
        %837 = vmatprep.subr.mxu0 0.0
        %838 = vmatpush1.msra.mxu0 0.0
        %839 = vmatprep.subr.mxu0 0.0
        %840 = vmatpush1.msra.mxu0 0.0
        %841 = vmatprep.subr.mxu0 0.0
        %842 = vmatpush1.msra.mxu0 0.0
        %843 = vmatprep.subr.mxu0 0.0
        %844 = vmatpush1.msra.mxu0 0.0
        %845 = vmatprep.subr.mxu0 0.0
        %846 = vmatpush1.msra.mxu0 0.0
        %847 = vmatprep.subr.mxu0 0.0
        %848 = vmatpush1.msra.mxu0 0.0
        %849 = vmatprep.subr.mxu0 0.0
        %850 = vmatpush1.msra.mxu0 0.0
        %851 = vmatprep.subr.mxu0 0.0
        %852 = vmatpush1.msra.mxu0 0.0
        %853 = vmatprep.subr.mxu0 0.0
        %854 = vmatpush1.msra.mxu0 0.0
        %855 = vmatprep.subr.mxu0 0.0
        %856 = vmatpush1.msra.mxu0 0.0
        %857 = vmatprep.subr.mxu0 0.0
        %858 = vmatpush1.msra.mxu0 0.0
        %859 = vmatprep.subr.mxu0 0.0
        %860 = vmatpush1.msra.mxu0 0.0
        %861 = vmatprep.subr.mxu0 0.0
        %862 = vmatpush1.msra.mxu0 0.0
        %863 = vmatprep.subr.mxu0 0.0
        %864 = vmatpush1.msra.mxu0 0.0
        %865 = vmatprep.subr.mxu0 0.0
        %866 = vmatpush1.msra.mxu0 0.0
        %867 = vmatprep.subr.mxu0 0.0
        %868 = vmatpush1.msra.mxu0 0.0
        %869 = vmatprep.subr.mxu0 0.0
        %870 = vmatpush1.msra.mxu0 0.0
        %871 = vmatprep.subr.mxu0 0.0
        %872 = vmatpush1.msra.mxu0 0.0
        %873 = vmatprep.subr.mxu0 0.0
        %874 = vmatpush1.msra.mxu0 0.0
        %875 = vmatprep.subr.mxu0 0.0
        %876 = vmatpush1.msra.mxu0 0.0
        %877 = vmatprep.subr.mxu0 0.0
        %878 = vmatpush1.msra.mxu0 0.0
        %879 = vmatprep.subr.mxu0 0.0
        %880 = vmatpush1.msra.mxu0 0.0
        %881 = vmatprep.subr.mxu0 0.0
        %882 = vmatpush1.msra.mxu0 0.0
        %883 = vmatprep.subr.mxu0 0.0
        %884 = vmatpush1.msra.mxu0 0.0
        %885 = vmatprep.subr.mxu0 0.0
        %886 = vmatpush1.msra.mxu0 0.0
        %887 = vmatprep.subr.mxu0 0.0
        %888 = vmatpush1.msra.mxu0 0.0
        %889 = vmatprep.subr.mxu0 0.0
        %890 = vmatpush1.msra.mxu0 0.0
        %891 = vmatprep.subr.mxu0 0.0
        %892 = vmatpush1.msra.mxu0 0.0
        %893 = vmatprep.mubr.f32.mxu0 0.0
        %894 = vmatmul.mubr.f32.gmra.mrb[0].mxu0 %v818
        %v895 = vpop.f32.mrb[0].mxu0
        %v896 = vadd.f32 0.0, %v895
        %v897 = vpop.f32.mrb[0].mxu0
        %v898 = vadd.f32 0.0, %v897
        %899 = vmatprep.mubr.f32.mxu0 0.0
        %900 = vmatmul.mubr.f32.gmra.mrb[0].mxu0 %v821
        %v901 = vpop.f32.mrb[0].mxu0
        %v902 = vadd.f32 0.0, %v901
        %v903 = vpop.f32.mrb[0].mxu0
        %v904 = vadd.f32 0.0, %v903
        %905 = vdwg.mxu0
        %v907 = vsel %vm462, %v540, 0
        %v910 = vsel %vm462, %v545, 0
        %v913 = vsel %vm469, %v806, 0
        %v916 = vsel %vm469, %v807, 0
        %918 = vmatprep.subr.mxu0 %v801
        %919 = vmatpush1.msra.mxu0 %v800
        %920 = vmatprep.subr.mxu0 %v803
        %921 = vmatpush1.msra.mxu0 %v802
        %922 = vmatprep.subr.mxu0 %v805
        %923 = vmatpush1.msra.mxu0 %v804
        %924 = vmatprep.subr.mxu0 %v916
        %925 = vmatpush1.msra.mxu0 %v913
        %926 = vmatprep.subr.mxu0 0.0
        %927 = vmatpush1.msra.mxu0 0.0
        %928 = vmatprep.subr.mxu0 0.0
        %929 = vmatpush1.msra.mxu0 0.0
        %930 = vmatprep.subr.mxu0 0.0
        %931 = vmatpush1.msra.mxu0 0.0
        %932 = vmatprep.subr.mxu0 0.0
        %933 = vmatpush1.msra.mxu0 0.0
        %934 = vmatprep.subr.mxu0 0.0
        %935 = vmatpush1.msra.mxu0 0.0
        %936 = vmatprep.subr.mxu0 0.0
        %937 = vmatpush1.msra.mxu0 0.0
        %938 = vmatprep.subr.mxu0 0.0
        %939 = vmatpush1.msra.mxu0 0.0
        %940 = vmatprep.subr.mxu0 0.0
        %941 = vmatpush1.msra.mxu0 0.0
        %942 = vmatprep.subr.mxu0 0.0
        %943 = vmatpush1.msra.mxu0 0.0
        %944 = vmatprep.subr.mxu0 0.0
        %945 = vmatpush1.msra.mxu0 0.0
        %946 = vmatprep.subr.mxu0 0.0
        %947 = vmatpush1.msra.mxu0 0.0
        %948 = vmatprep.subr.mxu0 0.0
        %949 = vmatpush1.msra.mxu0 0.0
        %950 = vmatprep.subr.mxu0 0.0
        %951 = vmatpush1.msra.mxu0 0.0
        %952 = vmatprep.subr.mxu0 0.0
        %953 = vmatpush1.msra.mxu0 0.0
        %954 = vmatprep.subr.mxu0 0.0
        %955 = vmatpush1.msra.mxu0 0.0
        %956 = vmatprep.subr.mxu0 0.0
        %957 = vmatpush1.msra.mxu0 0.0
        %958 = vmatprep.subr.mxu0 0.0
        %959 = vmatpush1.msra.mxu0 0.0
        %960 = vmatprep.subr.mxu0 0.0
        %961 = vmatpush1.msra.mxu0 0.0
        %962 = vmatprep.subr.mxu0 0.0
        %963 = vmatpush1.msra.mxu0 0.0
        %964 = vmatprep.subr.mxu0 0.0
        %965 = vmatpush1.msra.mxu0 0.0
        %966 = vmatprep.subr.mxu0 0.0
        %967 = vmatpush1.msra.mxu0 0.0
        %968 = vmatprep.subr.mxu0 0.0
        %969 = vmatpush1.msra.mxu0 0.0
        %970 = vmatprep.subr.mxu0 0.0
        %971 = vmatpush1.msra.mxu0 0.0
        %972 = vmatprep.subr.mxu0 0.0
        %973 = vmatpush1.msra.mxu0 0.0
        %974 = vmatprep.subr.mxu0 0.0
        %975 = vmatpush1.msra.mxu0 0.0
        %976 = vmatprep.subr.mxu0 0.0
        %977 = vmatpush1.msra.mxu0 0.0
        %978 = vmatprep.subr.mxu0 0.0
        %979 = vmatpush1.msra.mxu0 0.0
        %980 = vmatprep.subr.mxu0 0.0
        %981 = vmatpush1.msra.mxu0 0.0
        %982 = vmatprep.mubr.f32.mxu0 0.0
        %983 = vmatmul.mubr.f32.gmra.mrb[0].mxu0 %v907
        %v984 = vpop.f32.mrb[0].mxu0
        %v985 = vadd.f32 %v896, %v984
        %v986 = vpop.f32.mrb[0].mxu0
        %v987 = vadd.f32 %v898, %v986
        %988 = vmatprep.mubr.f32.mxu0 0.0
        %989 = vmatmul.mubr.f32.gmra.mrb[0].mxu0 %v910
        %v990 = vpop.f32.mrb[0].mxu0
        %v991 = vadd.f32 %v902, %v990
        %v992 = vpop.f32.mrb[0].mxu0
        %v993 = vadd.f32 %v904, %v992
        %994 = vdwg.mxu0
        %s995 = scalar_lea.vmem [#allocation2], 256
        %v996 = vld [vmem:[%s995] sm:$0xff]
        %v997 = vld [vmem:[%s995 + $0x8] sm:$0xff]
        %v998 = vld [vmem:[%s995 + $0x10] sm:$0xff]
        %v999 = vld [vmem:[%s995 + $0x18] sm:$0xff]
        %v1000 = vld [vmem:[%s995 + $0x20] sm:$0xff]
        %v1001 = vld [vmem:[%s995 + $0x28] sm:$0xff]
        %v1002 = vld [vmem:[%s995 + $0x30] sm:$0xf]
        %v1003 = vld [vmem:[%s995 + $0x38] sm:$0xf]
        %v1005 = vsel %vm462, %v708, 0
        %v1008 = vsel %vm462, %v713, 0
        %v1011 = vsel %vm469, %v1002, 0
        %v1014 = vsel %vm469, %v1003, 0
        %1016 = vmatprep.subr.mxu0 %v997
        %1017 = vmatpush1.msra.mxu0 %v996
        %1018 = vmatprep.subr.mxu0 %v999
        %1019 = vmatpush1.msra.mxu0 %v998
        %1020 = vmatprep.subr.mxu0 %v1001
        %1021 = vmatpush1.msra.mxu0 %v1000
        %1022 = vmatprep.subr.mxu0 %v1014
        %1023 = vmatpush1.msra.mxu0 %v1011
        %1024 = vmatprep.subr.mxu0 0.0
        %1025 = vmatpush1.msra.mxu0 0.0
        %1026 = vmatprep.subr.mxu0 0.0
        %1027 = vmatpush1.msra.mxu0 0.0
        %1028 = vmatprep.subr.mxu0 0.0
        %1029 = vmatpush1.msra.mxu0 0.0
        %1030 = vmatprep.subr.mxu0 0.0
        %1031 = vmatpush1.msra.mxu0 0.0
        %1032 = vmatprep.subr.mxu0 0.0
        %1033 = vmatpush1.msra.mxu0 0.0
        %1034 = vmatprep.subr.mxu0 0.0
        %1035 = vmatpush1.msra.mxu0 0.0
        %1036 = vmatprep.subr.mxu0 0.0
        %1037 = vmatpush1.msra.mxu0 0.0
        %1038 = vmatprep.subr.mxu0 0.0
        %1039 = vmatpush1.msra.mxu0 0.0
        %1040 = vmatprep.subr.mxu0 0.0
        %1041 = vmatpush1.msra.mxu0 0.0
        %1042 = vmatprep.subr.mxu0 0.0
        %1043 = vmatpush1.msra.mxu0 0.0
        %1044 = vmatprep.subr.mxu0 0.0
        %1045 = vmatpush1.msra.mxu0 0.0
        %1046 = vmatprep.subr.mxu0 0.0
        %1047 = vmatpush1.msra.mxu0 0.0
        %1048 = vmatprep.subr.mxu0 0.0
        %1049 = vmatpush1.msra.mxu0 0.0
        %1050 = vmatprep.subr.mxu0 0.0
        %1051 = vmatpush1.msra.mxu0 0.0
        %1052 = vmatprep.subr.mxu0 0.0
        %1053 = vmatpush1.msra.mxu0 0.0
        %1054 = vmatprep.subr.mxu0 0.0
        %1055 = vmatpush1.msra.mxu0 0.0
        %1056 = vmatprep.subr.mxu0 0.0
        %1057 = vmatpush1.msra.mxu0 0.0
        %1058 = vmatprep.subr.mxu0 0.0
        %1059 = vmatpush1.msra.mxu0 0.0
        %1060 = vmatprep.subr.mxu0 0.0
        %1061 = vmatpush1.msra.mxu0 0.0
        %1062 = vmatprep.subr.mxu0 0.0
        %1063 = vmatpush1.msra.mxu0 0.0
        %1064 = vmatprep.subr.mxu0 0.0
        %1065 = vmatpush1.msra.mxu0 0.0
        %1066 = vmatprep.subr.mxu0 0.0
        %1067 = vmatpush1.msra.mxu0 0.0
        %1068 = vmatprep.subr.mxu0 0.0
        %1069 = vmatpush1.msra.mxu0 0.0
        %1070 = vmatprep.subr.mxu0 0.0
        %1071 = vmatpush1.msra.mxu0 0.0
        %1072 = vmatprep.subr.mxu0 0.0
        %1073 = vmatpush1.msra.mxu0 0.0
        %1074 = vmatprep.subr.mxu0 0.0
        %1075 = vmatpush1.msra.mxu0 0.0
        %1076 = vmatprep.subr.mxu0 0.0
        %1077 = vmatpush1.msra.mxu0 0.0
        %1078 = vmatprep.subr.mxu0 0.0
        %1079 = vmatpush1.msra.mxu0 0.0
        %1080 = vmatprep.mubr.f32.mxu0 0.0
        %1081 = vmatmul.mubr.f32.gmra.mrb[0].mxu0 %v1005
        %v1082 = vpop.f32.mrb[0].mxu0
        %v1083 = vadd.f32 0.0, %v1082
        %v1084 = vpop.f32.mrb[0].mxu0
        %v1085 = vadd.f32 0.0, %v1084
        %1086 = vmatprep.mubr.f32.mxu0 0.0
        %1087 = vmatmul.mubr.f32.gmra.mrb[0].mxu0 %v1008
        %v1088 = vpop.f32.mrb[0].mxu0
        %v1089 = vadd.f32 0.0, %v1088
        %v1090 = vpop.f32.mrb[0].mxu0
        %v1091 = vadd.f32 0.0, %v1090
        %1092 = vdwg.mxu0
        %v1093 = vadd.f32 %v985, %v1083
        %v1094 = vadd.f32 %v987, %v1085
        %v1095 = vadd.f32 %v991, %v1089
        %v1096 = vadd.f32 %v993, %v1091
        %s1097 = scalar_lea.vmem [#allocation2], 64
        %v1098 = vld [vmem:[%s1097] sm:$0xff]
        %v1099 = vld [vmem:[%s1097 + $0x8] sm:$0xff]
        %v1100 = vld [vmem:[%s1097 + $0x10] sm:$0xff]
        %v1101 = vld [vmem:[%s1097 + $0x18] sm:$0xff]
        %v1102 = vld [vmem:[%s1097 + $0x20] sm:$0xff]
        %v1103 = vld [vmem:[%s1097 + $0x28] sm:$0xff]
        %v1104 = vld [vmem:[%s1097 + $0x30] sm:$0xf]
        %v1105 = vld [vmem:[%s1097 + $0x38] sm:$0xf]
        %s1106 = scalar_lea.vmem [#allocation2], 192
        %v1107 = vld [vmem:[%s1106] sm:$0xff]
        %v1108 = vld [vmem:[%s1106 + $0x8] sm:$0xff]
        %v1109 = vld [vmem:[%s1106 + $0x10] sm:$0xff]
        %v1110 = vld [vmem:[%s1106 + $0x18] sm:$0xff]
        %v1111 = vld [vmem:[%s1106 + $0x20] sm:$0xff]
        %v1112 = vld [vmem:[%s1106 + $0x28] sm:$0xff]
        %v1113 = vld [vmem:[%s1106 + $0x30] sm:$0xf]
        %v1114 = vld [vmem:[%s1106 + $0x38] sm:$0xf]
        %v1116 = vsel %vm469, %v1113, 0
        %v1119 = vsel %vm469, %v1114, 0
        %1121 = vmatprep.subr.mxu0 %v1108
        %1122 = vmatpush1.msra.mxu0 %v1107
        %1123 = vmatprep.subr.mxu0 %v1110
        %1124 = vmatpush1.msra.mxu0 %v1109
        %1125 = vmatprep.subr.mxu0 %v1112
        %1126 = vmatpush1.msra.mxu0 %v1111
        %1127 = vmatprep.subr.mxu0 %v1119
        %1128 = vmatpush1.msra.mxu0 %v1116
        %1129 = vmatprep.subr.mxu0 0.0
        %1130 = vmatpush1.msra.mxu0 0.0
        %1131 = vmatprep.subr.mxu0 0.0
        %1132 = vmatpush1.msra.mxu0 0.0
        %1133 = vmatprep.subr.mxu0 0.0
        %1134 = vmatpush1.msra.mxu0 0.0
        %1135 = vmatprep.subr.mxu0 0.0
        %1136 = vmatpush1.msra.mxu0 0.0
        %1137 = vmatprep.subr.mxu0 0.0
        %1138 = vmatpush1.msra.mxu0 0.0
        %1139 = vmatprep.subr.mxu0 0.0
        %1140 = vmatpush1.msra.mxu0 0.0
        %1141 = vmatprep.subr.mxu0 0.0
        %1142 = vmatpush1.msra.mxu0 0.0
        %1143 = vmatprep.subr.mxu0 0.0
        %1144 = vmatpush1.msra.mxu0 0.0
        %1145 = vmatprep.subr.mxu0 0.0
        %1146 = vmatpush1.msra.mxu0 0.0
        %1147 = vmatprep.subr.mxu0 0.0
        %1148 = vmatpush1.msra.mxu0 0.0
        %1149 = vmatprep.subr.mxu0 0.0
        %1150 = vmatpush1.msra.mxu0 0.0
        %1151 = vmatprep.subr.mxu0 0.0
        %1152 = vmatpush1.msra.mxu0 0.0
        %1153 = vmatprep.subr.mxu0 0.0
        %1154 = vmatpush1.msra.mxu0 0.0
        %1155 = vmatprep.subr.mxu0 0.0
        %1156 = vmatpush1.msra.mxu0 0.0
        %1157 = vmatprep.subr.mxu0 0.0
        %1158 = vmatpush1.msra.mxu0 0.0
        %1159 = vmatprep.subr.mxu0 0.0
        %1160 = vmatpush1.msra.mxu0 0.0
        %1161 = vmatprep.subr.mxu0 0.0
        %1162 = vmatpush1.msra.mxu0 0.0
        %1163 = vmatprep.subr.mxu0 0.0
        %1164 = vmatpush1.msra.mxu0 0.0
        %1165 = vmatprep.subr.mxu0 0.0
        %1166 = vmatpush1.msra.mxu0 0.0
        %1167 = vmatprep.subr.mxu0 0.0
        %1168 = vmatpush1.msra.mxu0 0.0
        %1169 = vmatprep.subr.mxu0 0.0
        %1170 = vmatpush1.msra.mxu0 0.0
        %1171 = vmatprep.subr.mxu0 0.0
        %1172 = vmatpush1.msra.mxu0 0.0
        %1173 = vmatprep.subr.mxu0 0.0
        %1174 = vmatpush1.msra.mxu0 0.0
        %1175 = vmatprep.subr.mxu0 0.0
        %1176 = vmatpush1.msra.mxu0 0.0
        %1177 = vmatprep.subr.mxu0 0.0
        %1178 = vmatpush1.msra.mxu0 0.0
        %1179 = vmatprep.subr.mxu0 0.0
        %1180 = vmatpush1.msra.mxu0 0.0
        %1181 = vmatprep.subr.mxu0 0.0
        %1182 = vmatpush1.msra.mxu0 0.0
        %1183 = vmatprep.subr.mxu0 0.0
        %1184 = vmatpush1.msra.mxu0 0.0
        %1185 = vmatprep.mubr.f32.mxu0 0.0
        %1186 = vmatmul.mubr.f32.gmra.mrb[0].mxu0 %v818
        %v1187 = vpop.f32.mrb[0].mxu0
        %v1188 = vadd.f32 0.0, %v1187
        %v1189 = vpop.f32.mrb[0].mxu0
        %v1190 = vadd.f32 0.0, %v1189
        %1191 = vmatprep.mubr.f32.mxu0 0.0
        %1192 = vmatmul.mubr.f32.gmra.mrb[0].mxu0 %v821
        %v1193 = vpop.f32.mrb[0].mxu0
        %v1194 = vadd.f32 0.0, %v1193
        %v1195 = vpop.f32.mrb[0].mxu0
        %v1196 = vadd.f32 0.0, %v1195
        %1197 = vdwg.mxu0
        %v1199 = vsel %vm469, %v1104, 0
        %v1202 = vsel %vm469, %v1105, 0
        %1204 = vmatprep.subr.mxu0 %v1099
        %1205 = vmatpush1.msra.mxu0 %v1098
        %1206 = vmatprep.subr.mxu0 %v1101
        %1207 = vmatpush1.msra.mxu0 %v1100
        %1208 = vmatprep.subr.mxu0 %v1103
        %1209 = vmatpush1.msra.mxu0 %v1102
        %1210 = vmatprep.subr.mxu0 %v1202
        %1211 = vmatpush1.msra.mxu0 %v1199
        %1212 = vmatprep.subr.mxu0 0.0
        %1213 = vmatpush1.msra.mxu0 0.0
        %1214 = vmatprep.subr.mxu0 0.0
        %1215 = vmatpush1.msra.mxu0 0.0
        %1216 = vmatprep.subr.mxu0 0.0
        %1217 = vmatpush1.msra.mxu0 0.0
        %1218 = vmatprep.subr.mxu0 0.0
        %1219 = vmatpush1.msra.mxu0 0.0
        %1220 = vmatprep.subr.mxu0 0.0
        %1221 = vmatpush1.msra.mxu0 0.0
        %1222 = vmatprep.subr.mxu0 0.0
        %1223 = vmatpush1.msra.mxu0 0.0
        %1224 = vmatprep.subr.mxu0 0.0
        %1225 = vmatpush1.msra.mxu0 0.0
        %1226 = vmatprep.subr.mxu0 0.0
        %1227 = vmatpush1.msra.mxu0 0.0
        %1228 = vmatprep.subr.mxu0 0.0
        %1229 = vmatpush1.msra.mxu0 0.0
        %1230 = vmatprep.subr.mxu0 0.0
        %1231 = vmatpush1.msra.mxu0 0.0
        %1232 = vmatprep.subr.mxu0 0.0
        %1233 = vmatpush1.msra.mxu0 0.0
        %1234 = vmatprep.subr.mxu0 0.0
        %1235 = vmatpush1.msra.mxu0 0.0
        %1236 = vmatprep.subr.mxu0 0.0
        %1237 = vmatpush1.msra.mxu0 0.0
        %1238 = vmatprep.subr.mxu0 0.0
        %1239 = vmatpush1.msra.mxu0 0.0
        %1240 = vmatprep.subr.mxu0 0.0
        %1241 = vmatpush1.msra.mxu0 0.0
        %1242 = vmatprep.subr.mxu0 0.0
        %1243 = vmatpush1.msra.mxu0 0.0
        %1244 = vmatprep.subr.mxu0 0.0
        %1245 = vmatpush1.msra.mxu0 0.0
        %1246 = vmatprep.subr.mxu0 0.0
        %1247 = vmatpush1.msra.mxu0 0.0
        %1248 = vmatprep.subr.mxu0 0.0
        %1249 = vmatpush1.msra.mxu0 0.0
        %1250 = vmatprep.subr.mxu0 0.0
        %1251 = vmatpush1.msra.mxu0 0.0
        %1252 = vmatprep.subr.mxu0 0.0
        %1253 = vmatpush1.msra.mxu0 0.0
        %1254 = vmatprep.subr.mxu0 0.0
        %1255 = vmatpush1.msra.mxu0 0.0
        %1256 = vmatprep.subr.mxu0 0.0
        %1257 = vmatpush1.msra.mxu0 0.0
        %1258 = vmatprep.subr.mxu0 0.0
        %1259 = vmatpush1.msra.mxu0 0.0
        %1260 = vmatprep.subr.mxu0 0.0
        %1261 = vmatpush1.msra.mxu0 0.0
        %1262 = vmatprep.subr.mxu0 0.0
        %1263 = vmatpush1.msra.mxu0 0.0
        %1264 = vmatprep.subr.mxu0 0.0
        %1265 = vmatpush1.msra.mxu0 0.0
        %1266 = vmatprep.subr.mxu0 0.0
        %1267 = vmatpush1.msra.mxu0 0.0
        %1268 = vmatprep.mubr.f32.mxu0 0.0
        %1269 = vmatmul.mubr.f32.gmra.mrb[0].mxu0 %v907
        %v1270 = vpop.f32.mrb[0].mxu0
        %v1271 = vadd.f32 %v1188, %v1270
        %v1272 = vpop.f32.mrb[0].mxu0
        %v1273 = vadd.f32 %v1190, %v1272
        %1274 = vmatprep.mubr.f32.mxu0 0.0
        %1275 = vmatmul.mubr.f32.gmra.mrb[0].mxu0 %v910
        %v1276 = vpop.f32.mrb[0].mxu0
        %v1277 = vadd.f32 %v1194, %v1276
        %v1278 = vpop.f32.mrb[0].mxu0
        %v1279 = vadd.f32 %v1196, %v1278
        %1280 = vdwg.mxu0
        %s1281 = scalar_lea.vmem [#allocation2], 320
        %v1282 = vld [vmem:[%s1281] sm:$0xff]
        %v1283 = vld [vmem:[%s1281 + $0x8] sm:$0xff]
        %v1284 = vld [vmem:[%s1281 + $0x10] sm:$0xff]
        %v1285 = vld [vmem:[%s1281 + $0x18] sm:$0xff]
        %v1286 = vld [vmem:[%s1281 + $0x20] sm:$0xff]
        %v1287 = vld [vmem:[%s1281 + $0x28] sm:$0xff]
        %v1288 = vld [vmem:[%s1281 + $0x30] sm:$0xf]
        %v1289 = vld [vmem:[%s1281 + $0x38] sm:$0xf]
        %v1291 = vsel %vm469, %v1288, 0
        %v1294 = vsel %vm469, %v1289, 0
        %1296 = vmatprep.subr.mxu0 %v1283
        %1297 = vmatpush1.msra.mxu0 %v1282
        %1298 = vmatprep.subr.mxu0 %v1285
        %1299 = vmatpush1.msra.mxu0 %v1284
        %1300 = vmatprep.subr.mxu0 %v1287
        %1301 = vmatpush1.msra.mxu0 %v1286
        %1302 = vmatprep.subr.mxu0 %v1294
        %1303 = vmatpush1.msra.mxu0 %v1291
        %1304 = vmatprep.subr.mxu0 0.0
        %1305 = vmatpush1.msra.mxu0 0.0
        %1306 = vmatprep.subr.mxu0 0.0
        %1307 = vmatpush1.msra.mxu0 0.0
        %1308 = vmatprep.subr.mxu0 0.0
        %1309 = vmatpush1.msra.mxu0 0.0
        %1310 = vmatprep.subr.mxu0 0.0
        %1311 = vmatpush1.msra.mxu0 0.0
        %1312 = vmatprep.subr.mxu0 0.0
        %1313 = vmatpush1.msra.mxu0 0.0
        %1314 = vmatprep.subr.mxu0 0.0
        %1315 = vmatpush1.msra.mxu0 0.0
        %1316 = vmatprep.subr.mxu0 0.0
        %1317 = vmatpush1.msra.mxu0 0.0
        %1318 = vmatprep.subr.mxu0 0.0
        %1319 = vmatpush1.msra.mxu0 0.0
        %1320 = vmatprep.subr.mxu0 0.0
        %1321 = vmatpush1.msra.mxu0 0.0
        %1322 = vmatprep.subr.mxu0 0.0
        %1323 = vmatpush1.msra.mxu0 0.0
        %1324 = vmatprep.subr.mxu0 0.0
        %1325 = vmatpush1.msra.mxu0 0.0
        %1326 = vmatprep.subr.mxu0 0.0
        %1327 = vmatpush1.msra.mxu0 0.0
        %1328 = vmatprep.subr.mxu0 0.0
        %1329 = vmatpush1.msra.mxu0 0.0
        %1330 = vmatprep.subr.mxu0 0.0
        %1331 = vmatpush1.msra.mxu0 0.0
        %1332 = vmatprep.subr.mxu0 0.0
        %1333 = vmatpush1.msra.mxu0 0.0
        %1334 = vmatprep.subr.mxu0 0.0
        %1335 = vmatpush1.msra.mxu0 0.0
        %1336 = vmatprep.subr.mxu0 0.0
        %1337 = vmatpush1.msra.mxu0 0.0
        %1338 = vmatprep.subr.mxu0 0.0
        %1339 = vmatpush1.msra.mxu0 0.0
        %1340 = vmatprep.subr.mxu0 0.0
        %1341 = vmatpush1.msra.mxu0 0.0
        %1342 = vmatprep.subr.mxu0 0.0
        %1343 = vmatpush1.msra.mxu0 0.0
        %1344 = vmatprep.subr.mxu0 0.0
        %1345 = vmatpush1.msra.mxu0 0.0
        %1346 = vmatprep.subr.mxu0 0.0
        %1347 = vmatpush1.msra.mxu0 0.0
        %1348 = vmatprep.subr.mxu0 0.0
        %1349 = vmatpush1.msra.mxu0 0.0
        %1350 = vmatprep.subr.mxu0 0.0
        %1351 = vmatpush1.msra.mxu0 0.0
        %1352 = vmatprep.subr.mxu0 0.0
        %1353 = vmatpush1.msra.mxu0 0.0
        %1354 = vmatprep.subr.mxu0 0.0
        %1355 = vmatpush1.msra.mxu0 0.0
        %1356 = vmatprep.subr.mxu0 0.0
        %1357 = vmatpush1.msra.mxu0 0.0
        %1358 = vmatprep.subr.mxu0 0.0
        %1359 = vmatpush1.msra.mxu0 0.0
        %1360 = vmatprep.mubr.f32.mxu0 0.0
        %1361 = vmatmul.mubr.f32.gmra.mrb[0].mxu0 %v1005
        %v1362 = vpop.f32.mrb[0].mxu0
        %v1363 = vadd.f32 0.0, %v1362
        %v1364 = vpop.f32.mrb[0].mxu0
        %v1365 = vadd.f32 0.0, %v1364
        %1366 = vmatprep.mubr.f32.mxu0 0.0
        %1367 = vmatmul.mubr.f32.gmra.mrb[0].mxu0 %v1008
        %v1368 = vpop.f32.mrb[0].mxu0
        %v1369 = vadd.f32 0.0, %v1368
        %v1370 = vpop.f32.mrb[0].mxu0
        %v1371 = vadd.f32 0.0, %v1370
        %1372 = vdwg.mxu0
        %v1373 = vadd.f32 %v1271, %v1363
        %v1374 = vadd.f32 %v1273, %v1365
        %v1375 = vadd.f32 %v1277, %v1369
        %v1376 = vadd.f32 %v1279, %v1371
        %v1377 = vmax.f32 %v1093, %v1373
        %v1378 = vmax.f32 %v1094, %v1374
        %v1379 = vmax.f32 %v1095, %v1375
        %v1380 = vmax.f32 %v1096, %v1376
        %1381 = vmatprep.subr.mxu0 %v810
        %1382 = vmatpush1.msra.mxu0 %v809
        %1383 = vmatprep.subr.mxu0 %v812
        %1384 = vmatpush1.msra.mxu0 %v811
        %1385 = vmatprep.subr.mxu0 %v814
        %1386 = vmatpush1.msra.mxu0 %v813
        %1387 = vmatprep.subr.mxu0 %v827
        %1388 = vmatpush1.msra.mxu0 %v824
        %1389 = vmatprep.subr.mxu0 0.0
        %1390 = vmatpush1.msra.mxu0 0.0
        %1391 = vmatprep.subr.mxu0 0.0
        %1392 = vmatpush1.msra.mxu0 0.0
        %1393 = vmatprep.subr.mxu0 0.0
        %1394 = vmatpush1.msra.mxu0 0.0
        %1395 = vmatprep.subr.mxu0 0.0
        %1396 = vmatpush1.msra.mxu0 0.0
        %1397 = vmatprep.subr.mxu0 0.0
        %1398 = vmatpush1.msra.mxu0 0.0
        %1399 = vmatprep.subr.mxu0 0.0
        %1400 = vmatpush1.msra.mxu0 0.0
        %1401 = vmatprep.subr.mxu0 0.0
        %1402 = vmatpush1.msra.mxu0 0.0
        %1403 = vmatprep.subr.mxu0 0.0
        %1404 = vmatpush1.msra.mxu0 0.0
        %1405 = vmatprep.subr.mxu0 0.0
        %1406 = vmatpush1.msra.mxu0 0.0
        %1407 = vmatprep.subr.mxu0 0.0
        %1408 = vmatpush1.msra.mxu0 0.0
        %1409 = vmatprep.subr.mxu0 0.0
        %1410 = vmatpush1.msra.mxu0 0.0
        %1411 = vmatprep.subr.mxu0 0.0
        %1412 = vmatpush1.msra.mxu0 0.0
        %1413 = vmatprep.subr.mxu0 0.0
        %1414 = vmatpush1.msra.mxu0 0.0
        %1415 = vmatprep.subr.mxu0 0.0
        %1416 = vmatpush1.msra.mxu0 0.0
        %1417 = vmatprep.subr.mxu0 0.0
        %1418 = vmatpush1.msra.mxu0 0.0
        %1419 = vmatprep.subr.mxu0 0.0
        %1420 = vmatpush1.msra.mxu0 0.0
        %1421 = vmatprep.subr.mxu0 0.0
        %1422 = vmatpush1.msra.mxu0 0.0
        %1423 = vmatprep.subr.mxu0 0.0
        %1424 = vmatpush1.msra.mxu0 0.0
        %1425 = vmatprep.subr.mxu0 0.0
        %1426 = vmatpush1.msra.mxu0 0.0
        %1427 = vmatprep.subr.mxu0 0.0
        %1428 = vmatpush1.msra.mxu0 0.0
        %1429 = vmatprep.subr.mxu0 0.0
        %1430 = vmatpush1.msra.mxu0 0.0
        %1431 = vmatprep.subr.mxu0 0.0
        %1432 = vmatpush1.msra.mxu0 0.0
        %1433 = vmatprep.subr.mxu0 0.0
        %1434 = vmatpush1.msra.mxu0 0.0
        %1435 = vmatprep.subr.mxu0 0.0
        %1436 = vmatpush1.msra.mxu0 0.0
        %1437 = vmatprep.subr.mxu0 0.0
        %1438 = vmatpush1.msra.mxu0 0.0
        %1439 = vmatprep.subr.mxu0 0.0
        %1440 = vmatpush1.msra.mxu0 0.0
        %1441 = vmatprep.subr.mxu0 0.0
        %1442 = vmatpush1.msra.mxu0 0.0
        %1443 = vmatprep.subr.mxu0 0.0
        %1444 = vmatpush1.msra.mxu0 0.0
        %1445 = vmatprep.mubr.f32.mxu0 0.0
        %1446 = vmatmul.mubr.f32.gmra.mrb[0].mxu0 %v1005
        %v1447 = vpop.f32.mrb[0].mxu0
        %v1448 = vadd.f32 0.0, %v1447
        %v1449 = vpop.f32.mrb[0].mxu0
        %v1450 = vadd.f32 0.0, %v1449
        %1451 = vmatprep.mubr.f32.mxu0 0.0
        %1452 = vmatmul.mubr.f32.gmra.mrb[0].mxu0 %v1008
        %v1453 = vpop.f32.mrb[0].mxu0
        %v1454 = vadd.f32 0.0, %v1453
        %v1455 = vpop.f32.mrb[0].mxu0
        %v1456 = vadd.f32 0.0, %v1455
        %1457 = vdwg.mxu0
        %1458 = vmatprep.subr.mxu0 %v801
        %1459 = vmatpush1.msra.mxu0 %v800
        %1460 = vmatprep.subr.mxu0 %v803
        %1461 = vmatpush1.msra.mxu0 %v802
        %1462 = vmatprep.subr.mxu0 %v805
        %1463 = vmatpush1.msra.mxu0 %v804
        %1464 = vmatprep.subr.mxu0 %v916
        %1465 = vmatpush1.msra.mxu0 %v913
        %1466 = vmatprep.subr.mxu0 0.0
        %1467 = vmatpush1.msra.mxu0 0.0
        %1468 = vmatprep.subr.mxu0 0.0
        %1469 = vmatpush1.msra.mxu0 0.0
        %1470 = vmatprep.subr.mxu0 0.0
        %1471 = vmatpush1.msra.mxu0 0.0
        %1472 = vmatprep.subr.mxu0 0.0
        %1473 = vmatpush1.msra.mxu0 0.0
        %1474 = vmatprep.subr.mxu0 0.0
        %1475 = vmatpush1.msra.mxu0 0.0
        %1476 = vmatprep.subr.mxu0 0.0
        %1477 = vmatpush1.msra.mxu0 0.0
        %1478 = vmatprep.subr.mxu0 0.0
        %1479 = vmatpush1.msra.mxu0 0.0
        %1480 = vmatprep.subr.mxu0 0.0
        %1481 = vmatpush1.msra.mxu0 0.0
        %1482 = vmatprep.subr.mxu0 0.0
        %1483 = vmatpush1.msra.mxu0 0.0
        %1484 = vmatprep.subr.mxu0 0.0
        %1485 = vmatpush1.msra.mxu0 0.0
        %1486 = vmatprep.subr.mxu0 0.0
        %1487 = vmatpush1.msra.mxu0 0.0
        %1488 = vmatprep.subr.mxu0 0.0
        %1489 = vmatpush1.msra.mxu0 0.0
        %1490 = vmatprep.subr.mxu0 0.0
        %1491 = vmatpush1.msra.mxu0 0.0
        %1492 = vmatprep.subr.mxu0 0.0
        %1493 = vmatpush1.msra.mxu0 0.0
        %1494 = vmatprep.subr.mxu0 0.0
        %1495 = vmatpush1.msra.mxu0 0.0
        %1496 = vmatprep.subr.mxu0 0.0
        %1497 = vmatpush1.msra.mxu0 0.0
        %1498 = vmatprep.subr.mxu0 0.0
        %1499 = vmatpush1.msra.mxu0 0.0
        %1500 = vmatprep.subr.mxu0 0.0
        %1501 = vmatpush1.msra.mxu0 0.0
        %1502 = vmatprep.subr.mxu0 0.0
        %1503 = vmatpush1.msra.mxu0 0.0
        %1504 = vmatprep.subr.mxu0 0.0
        %1505 = vmatpush1.msra.mxu0 0.0
        %1506 = vmatprep.subr.mxu0 0.0
        %1507 = vmatpush1.msra.mxu0 0.0
        %1508 = vmatprep.subr.mxu0 0.0
        %1509 = vmatpush1.msra.mxu0 0.0
        %1510 = vmatprep.subr.mxu0 0.0
        %1511 = vmatpush1.msra.mxu0 0.0
        %1512 = vmatprep.subr.mxu0 0.0
        %1513 = vmatpush1.msra.mxu0 0.0
        %1514 = vmatprep.subr.mxu0 0.0
        %1515 = vmatpush1.msra.mxu0 0.0
        %1516 = vmatprep.subr.mxu0 0.0
        %1517 = vmatpush1.msra.mxu0 0.0
        %1518 = vmatprep.subr.mxu0 0.0
        %1519 = vmatpush1.msra.mxu0 0.0
        %1520 = vmatprep.subr.mxu0 0.0
        %1521 = vmatpush1.msra.mxu0 0.0
        %1522 = vmatprep.mubr.f32.mxu0 0.0
        %1523 = vmatmul.mubr.f32.gmra.mrb[0].mxu0 %v818
        %v1524 = vpop.f32.mrb[0].mxu0
        %v1525 = vadd.f32 %v1448, %v1524
        %v1526 = vpop.f32.mrb[0].mxu0
        %v1527 = vadd.f32 %v1450, %v1526
        %1528 = vmatprep.mubr.f32.mxu0 0.0
        %1529 = vmatmul.mubr.f32.gmra.mrb[0].mxu0 %v821
        %v1530 = vpop.f32.mrb[0].mxu0
        %v1531 = vadd.f32 %v1454, %v1530
        %v1532 = vpop.f32.mrb[0].mxu0
        %v1533 = vadd.f32 %v1456, %v1532
        %1534 = vdwg.mxu0
        %v1536 = vsel %vm462, %v792, 0
        %v1539 = vsel %vm462, %v797, 0
        %1541 = vmatprep.subr.mxu0 %v997
        %1542 = vmatpush1.msra.mxu0 %v996
        %1543 = vmatprep.subr.mxu0 %v999
        %1544 = vmatpush1.msra.mxu0 %v998
        %1545 = vmatprep.subr.mxu0 %v1001
        %1546 = vmatpush1.msra.mxu0 %v1000
        %1547 = vmatprep.subr.mxu0 %v1014
        %1548 = vmatpush1.msra.mxu0 %v1011
        %1549 = vmatprep.subr.mxu0 0.0
        %1550 = vmatpush1.msra.mxu0 0.0
        %1551 = vmatprep.subr.mxu0 0.0
        %1552 = vmatpush1.msra.mxu0 0.0
        %1553 = vmatprep.subr.mxu0 0.0
        %1554 = vmatpush1.msra.mxu0 0.0
        %1555 = vmatprep.subr.mxu0 0.0
        %1556 = vmatpush1.msra.mxu0 0.0
        %1557 = vmatprep.subr.mxu0 0.0
        %1558 = vmatpush1.msra.mxu0 0.0
        %1559 = vmatprep.subr.mxu0 0.0
        %1560 = vmatpush1.msra.mxu0 0.0
        %1561 = vmatprep.subr.mxu0 0.0
        %1562 = vmatpush1.msra.mxu0 0.0
        %1563 = vmatprep.subr.mxu0 0.0
        %1564 = vmatpush1.msra.mxu0 0.0
        %1565 = vmatprep.subr.mxu0 0.0
        %1566 = vmatpush1.msra.mxu0 0.0
        %1567 = vmatprep.subr.mxu0 0.0
        %1568 = vmatpush1.msra.mxu0 0.0
        %1569 = vmatprep.subr.mxu0 0.0
        %1570 = vmatpush1.msra.mxu0 0.0
        %1571 = vmatprep.subr.mxu0 0.0
        %1572 = vmatpush1.msra.mxu0 0.0
        %1573 = vmatprep.subr.mxu0 0.0
        %1574 = vmatpush1.msra.mxu0 0.0
        %1575 = vmatprep.subr.mxu0 0.0
        %1576 = vmatpush1.msra.mxu0 0.0
        %1577 = vmatprep.subr.mxu0 0.0
        %1578 = vmatpush1.msra.mxu0 0.0
        %1579 = vmatprep.subr.mxu0 0.0
        %1580 = vmatpush1.msra.mxu0 0.0
        %1581 = vmatprep.subr.mxu0 0.0
        %1582 = vmatpush1.msra.mxu0 0.0
        %1583 = vmatprep.subr.mxu0 0.0
        %1584 = vmatpush1.msra.mxu0 0.0
        %1585 = vmatprep.subr.mxu0 0.0
        %1586 = vmatpush1.msra.mxu0 0.0
        %1587 = vmatprep.subr.mxu0 0.0
        %1588 = vmatpush1.msra.mxu0 0.0
        %1589 = vmatprep.subr.mxu0 0.0
        %1590 = vmatpush1.msra.mxu0 0.0
        %1591 = vmatprep.subr.mxu0 0.0
        %1592 = vmatpush1.msra.mxu0 0.0
        %1593 = vmatprep.subr.mxu0 0.0
        %1594 = vmatpush1.msra.mxu0 0.0
        %1595 = vmatprep.subr.mxu0 0.0
        %1596 = vmatpush1.msra.mxu0 0.0
        %1597 = vmatprep.subr.mxu0 0.0
        %1598 = vmatpush1.msra.mxu0 0.0
        %1599 = vmatprep.subr.mxu0 0.0
        %1600 = vmatpush1.msra.mxu0 0.0
        %1601 = vmatprep.subr.mxu0 0.0
        %1602 = vmatpush1.msra.mxu0 0.0
        %1603 = vmatprep.subr.mxu0 0.0
        %1604 = vmatpush1.msra.mxu0 0.0
        %1605 = vmatprep.mubr.f32.mxu0 0.0
        %1606 = vmatmul.mubr.f32.gmra.mrb[0].mxu0 %v1536
        %v1607 = vpop.f32.mrb[0].mxu0
        %v1608 = vadd.f32 0.0, %v1607
        %v1609 = vpop.f32.mrb[0].mxu0
        %v1610 = vadd.f32 0.0, %v1609
        %1611 = vmatprep.mubr.f32.mxu0 0.0
        %1612 = vmatmul.mubr.f32.gmra.mrb[0].mxu0 %v1539
        %v1613 = vpop.f32.mrb[0].mxu0
        %v1614 = vadd.f32 0.0, %v1613
        %v1615 = vpop.f32.mrb[0].mxu0
        %v1616 = vadd.f32 0.0, %v1615
        %1617 = vdwg.mxu0
        %v1618 = vadd.f32 %v1525, %v1608
        %v1619 = vadd.f32 %v1527, %v1610
        %v1620 = vadd.f32 %v1531, %v1614
        %v1621 = vadd.f32 %v1533, %v1616
        %v1622 = vmax.f32 %v1377, %v1618
        %v1623 = vmax.f32 %v1378, %v1619
        %v1624 = vmax.f32 %v1379, %v1620
        %v1625 = vmax.f32 %v1380, %v1621
        %1626 = vmatprep.subr.mxu0 %v1108
        %1627 = vmatpush1.msra.mxu0 %v1107
        %1628 = vmatprep.subr.mxu0 %v1110
        %1629 = vmatpush1.msra.mxu0 %v1109
        %1630 = vmatprep.subr.mxu0 %v1112
        %1631 = vmatpush1.msra.mxu0 %v1111
        %1632 = vmatprep.subr.mxu0 %v1119
        %1633 = vmatpush1.msra.mxu0 %v1116
        %1634 = vmatprep.subr.mxu0 0.0
        %1635 = vmatpush1.msra.mxu0 0.0
        %1636 = vmatprep.subr.mxu0 0.0
        %1637 = vmatpush1.msra.mxu0 0.0
        %1638 = vmatprep.subr.mxu0 0.0
        %1639 = vmatpush1.msra.mxu0 0.0
        %1640 = vmatprep.subr.mxu0 0.0
        %1641 = vmatpush1.msra.mxu0 0.0
        %1642 = vmatprep.subr.mxu0 0.0
        %1643 = vmatpush1.msra.mxu0 0.0
        %1644 = vmatprep.subr.mxu0 0.0
        %1645 = vmatpush1.msra.mxu0 0.0
        %1646 = vmatprep.subr.mxu0 0.0
        %1647 = vmatpush1.msra.mxu0 0.0
        %1648 = vmatprep.subr.mxu0 0.0
        %1649 = vmatpush1.msra.mxu0 0.0
        %1650 = vmatprep.subr.mxu0 0.0
        %1651 = vmatpush1.msra.mxu0 0.0
        %1652 = vmatprep.subr.mxu0 0.0
        %1653 = vmatpush1.msra.mxu0 0.0
        %1654 = vmatprep.subr.mxu0 0.0
        %1655 = vmatpush1.msra.mxu0 0.0
        %1656 = vmatprep.subr.mxu0 0.0
        %1657 = vmatpush1.msra.mxu0 0.0
        %1658 = vmatprep.subr.mxu0 0.0
        %1659 = vmatpush1.msra.mxu0 0.0
        %1660 = vmatprep.subr.mxu0 0.0
        %1661 = vmatpush1.msra.mxu0 0.0
        %1662 = vmatprep.subr.mxu0 0.0
        %1663 = vmatpush1.msra.mxu0 0.0
        %1664 = vmatprep.subr.mxu0 0.0
        %1665 = vmatpush1.msra.mxu0 0.0
        %1666 = vmatprep.subr.mxu0 0.0
        %1667 = vmatpush1.msra.mxu0 0.0
        %1668 = vmatprep.subr.mxu0 0.0
        %1669 = vmatpush1.msra.mxu0 0.0
        %1670 = vmatprep.subr.mxu0 0.0
        %1671 = vmatpush1.msra.mxu0 0.0
        %1672 = vmatprep.subr.mxu0 0.0
        %1673 = vmatpush1.msra.mxu0 0.0
        %1674 = vmatprep.subr.mxu0 0.0
        %1675 = vmatpush1.msra.mxu0 0.0
        %1676 = vmatprep.subr.mxu0 0.0
        %1677 = vmatpush1.msra.mxu0 0.0
        %1678 = vmatprep.subr.mxu0 0.0
        %1679 = vmatpush1.msra.mxu0 0.0
        %1680 = vmatprep.subr.mxu0 0.0
        %1681 = vmatpush1.msra.mxu0 0.0
        %1682 = vmatprep.subr.mxu0 0.0
        %1683 = vmatpush1.msra.mxu0 0.0
        %1684 = vmatprep.subr.mxu0 0.0
        %1685 = vmatpush1.msra.mxu0 0.0
        %1686 = vmatprep.subr.mxu0 0.0
        %1687 = vmatpush1.msra.mxu0 0.0
        %1688 = vmatprep.subr.mxu0 0.0
        %1689 = vmatpush1.msra.mxu0 0.0
        %1690 = vmatprep.mubr.f32.mxu0 0.0
        %1691 = vmatmul.mubr.f32.gmra.mrb[0].mxu0 %v1005
        %v1692 = vpop.f32.mrb[0].mxu0
        %v1693 = vadd.f32 0.0, %v1692
        %v1694 = vpop.f32.mrb[0].mxu0
        %v1695 = vadd.f32 0.0, %v1694
        %1696 = vmatprep.mubr.f32.mxu0 0.0
        %1697 = vmatmul.mubr.f32.gmra.mrb[0].mxu0 %v1008
        %v1698 = vpop.f32.mrb[0].mxu0
        %v1699 = vadd.f32 0.0, %v1698
        %v1700 = vpop.f32.mrb[0].mxu0
        %v1701 = vadd.f32 0.0, %v1700
        %1702 = vdwg.mxu0
        %1703 = vmatprep.subr.mxu0 %v1099
        %1704 = vmatpush1.msra.mxu0 %v1098
        %1705 = vmatprep.subr.mxu0 %v1101
        %1706 = vmatpush1.msra.mxu0 %v1100
        %1707 = vmatprep.subr.mxu0 %v1103
        %1708 = vmatpush1.msra.mxu0 %v1102
        %1709 = vmatprep.subr.mxu0 %v1202
        %1710 = vmatpush1.msra.mxu0 %v1199
        %1711 = vmatprep.subr.mxu0 0.0
        %1712 = vmatpush1.msra.mxu0 0.0
        %1713 = vmatprep.subr.mxu0 0.0
        %1714 = vmatpush1.msra.mxu0 0.0
        %1715 = vmatprep.subr.mxu0 0.0
        %1716 = vmatpush1.msra.mxu0 0.0
        %1717 = vmatprep.subr.mxu0 0.0
        %1718 = vmatpush1.msra.mxu0 0.0
        %1719 = vmatprep.subr.mxu0 0.0
        %1720 = vmatpush1.msra.mxu0 0.0
        %1721 = vmatprep.subr.mxu0 0.0
        %1722 = vmatpush1.msra.mxu0 0.0
        %1723 = vmatprep.subr.mxu0 0.0
        %1724 = vmatpush1.msra.mxu0 0.0
        %1725 = vmatprep.subr.mxu0 0.0
        %1726 = vmatpush1.msra.mxu0 0.0
        %1727 = vmatprep.subr.mxu0 0.0
        %1728 = vmatpush1.msra.mxu0 0.0
        %1729 = vmatprep.subr.mxu0 0.0
        %1730 = vmatpush1.msra.mxu0 0.0
        %1731 = vmatprep.subr.mxu0 0.0
        %1732 = vmatpush1.msra.mxu0 0.0
        %1733 = vmatprep.subr.mxu0 0.0
        %1734 = vmatpush1.msra.mxu0 0.0
        %1735 = vmatprep.subr.mxu0 0.0
        %1736 = vmatpush1.msra.mxu0 0.0
        %1737 = vmatprep.subr.mxu0 0.0
        %1738 = vmatpush1.msra.mxu0 0.0
        %1739 = vmatprep.subr.mxu0 0.0
        %1740 = vmatpush1.msra.mxu0 0.0
        %1741 = vmatprep.subr.mxu0 0.0
        %1742 = vmatpush1.msra.mxu0 0.0
        %1743 = vmatprep.subr.mxu0 0.0
        %1744 = vmatpush1.msra.mxu0 0.0
        %1745 = vmatprep.subr.mxu0 0.0
        %1746 = vmatpush1.msra.mxu0 0.0
        %1747 = vmatprep.subr.mxu0 0.0
        %1748 = vmatpush1.msra.mxu0 0.0
        %1749 = vmatprep.subr.mxu0 0.0
        %1750 = vmatpush1.msra.mxu0 0.0
        %1751 = vmatprep.subr.mxu0 0.0
        %1752 = vmatpush1.msra.mxu0 0.0
        %1753 = vmatprep.subr.mxu0 0.0
        %1754 = vmatpush1.msra.mxu0 0.0
        %1755 = vmatprep.subr.mxu0 0.0
        %1756 = vmatpush1.msra.mxu0 0.0
        %1757 = vmatprep.subr.mxu0 0.0
        %1758 = vmatpush1.msra.mxu0 0.0
        %1759 = vmatprep.subr.mxu0 0.0
        %1760 = vmatpush1.msra.mxu0 0.0
        %1761 = vmatprep.subr.mxu0 0.0
        %1762 = vmatpush1.msra.mxu0 0.0
        %1763 = vmatprep.subr.mxu0 0.0
        %1764 = vmatpush1.msra.mxu0 0.0
        %1765 = vmatprep.subr.mxu0 0.0
        %1766 = vmatpush1.msra.mxu0 0.0
        %1767 = vmatprep.mubr.f32.mxu0 0.0
        %1768 = vmatmul.mubr.f32.gmra.mrb[0].mxu0 %v818
        %v1769 = vpop.f32.mrb[0].mxu0
        %v1770 = vadd.f32 %v1693, %v1769
        %v1771 = vpop.f32.mrb[0].mxu0
        %v1772 = vadd.f32 %v1695, %v1771
        %1773 = vmatprep.mubr.f32.mxu0 0.0
        %1774 = vmatmul.mubr.f32.gmra.mrb[0].mxu0 %v821
        %v1775 = vpop.f32.mrb[0].mxu0
        %v1776 = vadd.f32 %v1699, %v1775
        %v1777 = vpop.f32.mrb[0].mxu0
        %v1778 = vadd.f32 %v1701, %v1777
        %1779 = vdwg.mxu0
        %1780 = vmatprep.subr.mxu0 %v1283
        %1781 = vmatpush1.msra.mxu0 %v1282
        %1782 = vmatprep.subr.mxu0 %v1285
        %1783 = vmatpush1.msra.mxu0 %v1284
        %1784 = vmatprep.subr.mxu0 %v1287
        %1785 = vmatpush1.msra.mxu0 %v1286
        %1786 = vmatprep.subr.mxu0 %v1294
        %1787 = vmatpush1.msra.mxu0 %v1291
        %1788 = vmatprep.subr.mxu0 0.0
        %1789 = vmatpush1.msra.mxu0 0.0
        %1790 = vmatprep.subr.mxu0 0.0
        %1791 = vmatpush1.msra.mxu0 0.0
        %1792 = vmatprep.subr.mxu0 0.0
        %1793 = vmatpush1.msra.mxu0 0.0
        %1794 = vmatprep.subr.mxu0 0.0
        %1795 = vmatpush1.msra.mxu0 0.0
        %1796 = vmatprep.subr.mxu0 0.0
        %1797 = vmatpush1.msra.mxu0 0.0
        %1798 = vmatprep.subr.mxu0 0.0
        %1799 = vmatpush1.msra.mxu0 0.0
        %1800 = vmatprep.subr.mxu0 0.0
        %1801 = vmatpush1.msra.mxu0 0.0
        %1802 = vmatprep.subr.mxu0 0.0
        %1803 = vmatpush1.msra.mxu0 0.0
        %1804 = vmatprep.subr.mxu0 0.0
        %1805 = vmatpush1.msra.mxu0 0.0
        %1806 = vmatprep.subr.mxu0 0.0
        %1807 = vmatpush1.msra.mxu0 0.0
        %1808 = vmatprep.subr.mxu0 0.0
        %1809 = vmatpush1.msra.mxu0 0.0
        %1810 = vmatprep.subr.mxu0 0.0
        %1811 = vmatpush1.msra.mxu0 0.0
        %1812 = vmatprep.subr.mxu0 0.0
        %1813 = vmatpush1.msra.mxu0 0.0
        %1814 = vmatprep.subr.mxu0 0.0
        %1815 = vmatpush1.msra.mxu0 0.0
        %1816 = vmatprep.subr.mxu0 0.0
        %1817 = vmatpush1.msra.mxu0 0.0
        %1818 = vmatprep.subr.mxu0 0.0
        %1819 = vmatpush1.msra.mxu0 0.0
        %1820 = vmatprep.subr.mxu0 0.0
        %1821 = vmatpush1.msra.mxu0 0.0
        %1822 = vmatprep.subr.mxu0 0.0
        %1823 = vmatpush1.msra.mxu0 0.0
        %1824 = vmatprep.subr.mxu0 0.0
        %1825 = vmatpush1.msra.mxu0 0.0
        %1826 = vmatprep.subr.mxu0 0.0
        %1827 = vmatpush1.msra.mxu0 0.0
        %1828 = vmatprep.subr.mxu0 0.0
        %1829 = vmatpush1.msra.mxu0 0.0
        %1830 = vmatprep.subr.mxu0 0.0
        %1831 = vmatpush1.msra.mxu0 0.0
        %1832 = vmatprep.subr.mxu0 0.0
        %1833 = vmatpush1.msra.mxu0 0.0
        %1834 = vmatprep.subr.mxu0 0.0
        %1835 = vmatpush1.msra.mxu0 0.0
        %1836 = vmatprep.subr.mxu0 0.0
        %1837 = vmatpush1.msra.mxu0 0.0
        %1838 = vmatprep.subr.mxu0 0.0
        %1839 = vmatpush1.msra.mxu0 0.0
        %1840 = vmatprep.subr.mxu0 0.0
        %1841 = vmatpush1.msra.mxu0 0.0
        %1842 = vmatprep.subr.mxu0 0.0
        %1843 = vmatpush1.msra.mxu0 0.0
        %1844 = vmatprep.mubr.f32.mxu0 0.0
        %1845 = vmatmul.mubr.f32.gmra.mrb[0].mxu0 %v1536
        %v1846 = vpop.f32.mrb[0].mxu0
        %v1847 = vadd.f32 0.0, %v1846
        %v1848 = vpop.f32.mrb[0].mxu0
        %v1849 = vadd.f32 0.0, %v1848
        %1850 = vmatprep.mubr.f32.mxu0 0.0
        %1851 = vmatmul.mubr.f32.gmra.mrb[0].mxu0 %v1539
        %v1852 = vpop.f32.mrb[0].mxu0
        %v1853 = vadd.f32 0.0, %v1852
        %v1854 = vpop.f32.mrb[0].mxu0
        %v1855 = vadd.f32 0.0, %v1854
        %1856 = vdwg.mxu0
        %v1857 = vadd.f32 %v1770, %v1847
        %v1858 = vadd.f32 %v1772, %v1849
        %v1859 = vadd.f32 %v1776, %v1853
        %v1860 = vadd.f32 %v1778, %v1855
        %v1861 = vmax.f32 %v1622, %v1857
        %v1862 = vmax.f32 %v1623, %v1858
        %v1863 = vmax.f32 %v1624, %v1859
        %v1864 = vmax.f32 %v1625, %v1860
        %v1865 = vld [vmem:[#allocation4] sm:$0x3]
        %v1867 = vlaneseq
        %v1868 = vshrl.u32 %v1867, 7
        %v1869 = vsub.s32 0, %v1868
        %v1870 = vrot.slane %v1865, %v1869
        %v1871 = vlaneseq
        %v1872 = vshrl.u32 %v1871, 7
        %v1873 = vsub.s32 1, %v1872
        %v1874 = vrot.slane %v1865, %v1873
        %v1877 = vadd.f32 %v1861, %v1870
        %v1878 = vadd.f32 %v1862, %v1874
        %v1879 = vadd.f32 %v1863, %v1870
        %v1880 = vadd.f32 %v1864, %v1874
        %v1881 = vmax.f32 %v1877, 0.0
        %v1882 = vmax.f32 %v1878, 0.0
        %v1883 = vmax.f32 %v1879, 0.0
        %v1884 = vmax.f32 %v1880, 0.0
        %v1885 = vld [vmem:[%s4] sm:$0x7f]
        %vm1886 = vcmask 113664
        %v1888 = vsel %vm1886, %v1885, 0
        %vm1890 = vcmask 1045504
        %v1892 = vsel %vm1890, %v1883, 0
        %v1895 = vsel %vm1890, %v1884, 0
        %1897 = vmatprep.subr.mxu0 %v1882
        %1898 = vmatpush1.msra.mxu0 %v1881
        %1899 = vmatprep.subr.mxu0 %v1895
        %1900 = vmatpush1.msra.mxu0 %v1892
        %1901 = vmatprep.subr.mxu0 0.0
        %1902 = vmatpush1.msra.mxu0 0.0
        %1903 = vmatprep.subr.mxu0 0.0
        %1904 = vmatpush1.msra.mxu0 0.0
        %1905 = vmatprep.subr.mxu0 0.0
        %1906 = vmatpush1.msra.mxu0 0.0
        %1907 = vmatprep.subr.mxu0 0.0
        %1908 = vmatpush1.msra.mxu0 0.0
        %1909 = vmatprep.subr.mxu0 0.0
        %1910 = vmatpush1.msra.mxu0 0.0
        %1911 = vmatprep.subr.mxu0 0.0
        %1912 = vmatpush1.msra.mxu0 0.0
        %1913 = vmatprep.subr.mxu0 0.0
        %1914 = vmatpush1.msra.mxu0 0.0
        %1915 = vmatprep.subr.mxu0 0.0
        %1916 = vmatpush1.msra.mxu0 0.0
        %1917 = vmatprep.subr.mxu0 0.0
        %1918 = vmatpush1.msra.mxu0 0.0
        %1919 = vmatprep.subr.mxu0 0.0
        %1920 = vmatpush1.msra.mxu0 0.0
        %1921 = vmatprep.subr.mxu0 0.0
        %1922 = vmatpush1.msra.mxu0 0.0
        %1923 = vmatprep.subr.mxu0 0.0
        %1924 = vmatpush1.msra.mxu0 0.0
        %1925 = vmatprep.subr.mxu0 0.0
        %1926 = vmatpush1.msra.mxu0 0.0
        %1927 = vmatprep.subr.mxu0 0.0
        %1928 = vmatpush1.msra.mxu0 0.0
        %1929 = vmatprep.subr.mxu0 0.0
        %1930 = vmatpush1.msra.mxu0 0.0
        %1931 = vmatprep.subr.mxu0 0.0
        %1932 = vmatpush1.msra.mxu0 0.0
        %1933 = vmatprep.subr.mxu0 0.0
        %1934 = vmatpush1.msra.mxu0 0.0
        %1935 = vmatprep.subr.mxu0 0.0
        %1936 = vmatpush1.msra.mxu0 0.0
        %1937 = vmatprep.subr.mxu0 0.0
        %1938 = vmatpush1.msra.mxu0 0.0
        %1939 = vmatprep.subr.mxu0 0.0
        %1940 = vmatpush1.msra.mxu0 0.0
        %1941 = vmatprep.subr.mxu0 0.0
        %1942 = vmatpush1.msra.mxu0 0.0
        %1943 = vmatprep.subr.mxu0 0.0
        %1944 = vmatpush1.msra.mxu0 0.0
        %1945 = vmatprep.subr.mxu0 0.0
        %1946 = vmatpush1.msra.mxu0 0.0
        %1947 = vmatprep.subr.mxu0 0.0
        %1948 = vmatpush1.msra.mxu0 0.0
        %1949 = vmatprep.subr.mxu0 0.0
        %1950 = vmatpush1.msra.mxu0 0.0
        %1951 = vmatprep.subr.mxu0 0.0
        %1952 = vmatpush1.msra.mxu0 0.0
        %1953 = vmatprep.subr.mxu0 0.0
        %1954 = vmatpush1.msra.mxu0 0.0
        %1955 = vmatprep.subr.mxu0 0.0
        %1956 = vmatpush1.msra.mxu0 0.0
        %1957 = vmatprep.subr.mxu0 0.0
        %1958 = vmatpush1.msra.mxu0 0.0
        %1959 = vmatprep.subr.mxu0 0.0
        %1960 = vmatpush1.msra.mxu0 0.0
        %1961 = vmatprep.mubr.f32.mxu0 0.0
        %1962 = vmatmul.mubr.f32.gmra.mrb[0].mxu0 %v1888
        %v1963 = vpop.f32.mrb[0].mxu0
        %v1964 = vadd.f32 0.0, %v1963
        %v1965 = vpop.f32.mrb[0].mxu0
        %v1966 = vadd.f32 0.0, %v1965
        %1967 = vdwg.mxu0
        %s1968 = scalar_lea.vmem %s4, 8
        %v1969 = vld [vmem:[%s1968] sm:$0x7f]
        %v1971 = vsel %vm1886, %v1969, 0
        %1973 = vmatprep.subr.mxu0 %v1882
        %1974 = vmatpush1.msra.mxu0 %v1881
        %1975 = vmatprep.subr.mxu0 %v1895
        %1976 = vmatpush1.msra.mxu0 %v1892
        %1977 = vmatprep.subr.mxu0 0.0
        %1978 = vmatpush1.msra.mxu0 0.0
        %1979 = vmatprep.subr.mxu0 0.0
        %1980 = vmatpush1.msra.mxu0 0.0
        %1981 = vmatprep.subr.mxu0 0.0
        %1982 = vmatpush1.msra.mxu0 0.0
        %1983 = vmatprep.subr.mxu0 0.0
        %1984 = vmatpush1.msra.mxu0 0.0
        %1985 = vmatprep.subr.mxu0 0.0
        %1986 = vmatpush1.msra.mxu0 0.0
        %1987 = vmatprep.subr.mxu0 0.0
        %1988 = vmatpush1.msra.mxu0 0.0
        %1989 = vmatprep.subr.mxu0 0.0
        %1990 = vmatpush1.msra.mxu0 0.0
        %1991 = vmatprep.subr.mxu0 0.0
        %1992 = vmatpush1.msra.mxu0 0.0
        %1993 = vmatprep.subr.mxu0 0.0
        %1994 = vmatpush1.msra.mxu0 0.0
        %1995 = vmatprep.subr.mxu0 0.0
        %1996 = vmatpush1.msra.mxu0 0.0
        %1997 = vmatprep.subr.mxu0 0.0
        %1998 = vmatpush1.msra.mxu0 0.0
        %1999 = vmatprep.subr.mxu0 0.0
        %2000 = vmatpush1.msra.mxu0 0.0
        %2001 = vmatprep.subr.mxu0 0.0
        %2002 = vmatpush1.msra.mxu0 0.0
        %2003 = vmatprep.subr.mxu0 0.0
        %2004 = vmatpush1.msra.mxu0 0.0
        %2005 = vmatprep.subr.mxu0 0.0
        %2006 = vmatpush1.msra.mxu0 0.0
        %2007 = vmatprep.subr.mxu0 0.0
        %2008 = vmatpush1.msra.mxu0 0.0
        %2009 = vmatprep.subr.mxu0 0.0
        %2010 = vmatpush1.msra.mxu0 0.0
        %2011 = vmatprep.subr.mxu0 0.0
        %2012 = vmatpush1.msra.mxu0 0.0
        %2013 = vmatprep.subr.mxu0 0.0
        %2014 = vmatpush1.msra.mxu0 0.0
        %2015 = vmatprep.subr.mxu0 0.0
        %2016 = vmatpush1.msra.mxu0 0.0
        %2017 = vmatprep.subr.mxu0 0.0
        %2018 = vmatpush1.msra.mxu0 0.0
        %2019 = vmatprep.subr.mxu0 0.0
        %2020 = vmatpush1.msra.mxu0 0.0
        %2021 = vmatprep.subr.mxu0 0.0
        %2022 = vmatpush1.msra.mxu0 0.0
        %2023 = vmatprep.subr.mxu0 0.0
        %2024 = vmatpush1.msra.mxu0 0.0
        %2025 = vmatprep.subr.mxu0 0.0
        %2026 = vmatpush1.msra.mxu0 0.0
        %2027 = vmatprep.subr.mxu0 0.0
        %2028 = vmatpush1.msra.mxu0 0.0
        %2029 = vmatprep.subr.mxu0 0.0
        %2030 = vmatpush1.msra.mxu0 0.0
        %2031 = vmatprep.subr.mxu0 0.0
        %2032 = vmatpush1.msra.mxu0 0.0
        %2033 = vmatprep.subr.mxu0 0.0
        %2034 = vmatpush1.msra.mxu0 0.0
        %2035 = vmatprep.subr.mxu0 0.0
        %2036 = vmatpush1.msra.mxu0 0.0
        %2037 = vmatprep.mubr.f32.mxu0 0.0
        %2038 = vmatmul.mubr.f32.gmra.mrb[0].mxu0 %v1971
        %v2039 = vpop.f32.mrb[0].mxu0
        %v2040 = vadd.f32 0.0, %v2039
        %v2041 = vpop.f32.mrb[0].mxu0
        %v2042 = vadd.f32 0.0, %v2041
        %2043 = vdwg.mxu0
        %s2044 = scalar_lea.vmem %s4, 16
        %v2045 = vld [vmem:[%s2044] sm:$0x7f]
        %v2047 = vsel %vm1886, %v2045, 0
        %2049 = vmatprep.subr.mxu0 %v1882
        %2050 = vmatpush1.msra.mxu0 %v1881
        %2051 = vmatprep.subr.mxu0 %v1895
        %2052 = vmatpush1.msra.mxu0 %v1892
        %2053 = vmatprep.subr.mxu0 0.0
        %2054 = vmatpush1.msra.mxu0 0.0
        %2055 = vmatprep.subr.mxu0 0.0
        %2056 = vmatpush1.msra.mxu0 0.0
        %2057 = vmatprep.subr.mxu0 0.0
        %2058 = vmatpush1.msra.mxu0 0.0
        %2059 = vmatprep.subr.mxu0 0.0
        %2060 = vmatpush1.msra.mxu0 0.0
        %2061 = vmatprep.subr.mxu0 0.0
        %2062 = vmatpush1.msra.mxu0 0.0
        %2063 = vmatprep.subr.mxu0 0.0
        %2064 = vmatpush1.msra.mxu0 0.0
        %2065 = vmatprep.subr.mxu0 0.0
        %2066 = vmatpush1.msra.mxu0 0.0
        %2067 = vmatprep.subr.mxu0 0.0
        %2068 = vmatpush1.msra.mxu0 0.0
        %2069 = vmatprep.subr.mxu0 0.0
        %2070 = vmatpush1.msra.mxu0 0.0
        %2071 = vmatprep.subr.mxu0 0.0
        %2072 = vmatpush1.msra.mxu0 0.0
        %2073 = vmatprep.subr.mxu0 0.0
        %2074 = vmatpush1.msra.mxu0 0.0
        %2075 = vmatprep.subr.mxu0 0.0
        %2076 = vmatpush1.msra.mxu0 0.0
        %2077 = vmatprep.subr.mxu0 0.0
        %2078 = vmatpush1.msra.mxu0 0.0
        %2079 = vmatprep.subr.mxu0 0.0
        %2080 = vmatpush1.msra.mxu0 0.0
        %2081 = vmatprep.subr.mxu0 0.0
        %2082 = vmatpush1.msra.mxu0 0.0
        %2083 = vmatprep.subr.mxu0 0.0
        %2084 = vmatpush1.msra.mxu0 0.0
        %2085 = vmatprep.subr.mxu0 0.0
        %2086 = vmatpush1.msra.mxu0 0.0
        %2087 = vmatprep.subr.mxu0 0.0
        %2088 = vmatpush1.msra.mxu0 0.0
        %2089 = vmatprep.subr.mxu0 0.0
        %2090 = vmatpush1.msra.mxu0 0.0
        %2091 = vmatprep.subr.mxu0 0.0
        %2092 = vmatpush1.msra.mxu0 0.0
        %2093 = vmatprep.subr.mxu0 0.0
        %2094 = vmatpush1.msra.mxu0 0.0
        %2095 = vmatprep.subr.mxu0 0.0
        %2096 = vmatpush1.msra.mxu0 0.0
        %2097 = vmatprep.subr.mxu0 0.0
        %2098 = vmatpush1.msra.mxu0 0.0
        %2099 = vmatprep.subr.mxu0 0.0
        %2100 = vmatpush1.msra.mxu0 0.0
        %2101 = vmatprep.subr.mxu0 0.0
        %2102 = vmatpush1.msra.mxu0 0.0
        %2103 = vmatprep.subr.mxu0 0.0
        %2104 = vmatpush1.msra.mxu0 0.0
        %2105 = vmatprep.subr.mxu0 0.0
        %2106 = vmatpush1.msra.mxu0 0.0
        %2107 = vmatprep.subr.mxu0 0.0
        %2108 = vmatpush1.msra.mxu0 0.0
        %2109 = vmatprep.subr.mxu0 0.0
        %2110 = vmatpush1.msra.mxu0 0.0
        %2111 = vmatprep.subr.mxu0 0.0
        %2112 = vmatpush1.msra.mxu0 0.0
        %2113 = vmatprep.mubr.f32.mxu0 0.0
        %2114 = vmatmul.mubr.f32.gmra.mrb[0].mxu0 %v2047
        %v2115 = vpop.f32.mrb[0].mxu0
        %v2116 = vadd.f32 0.0, %v2115
        %v2117 = vpop.f32.mrb[0].mxu0
        %v2118 = vadd.f32 0.0, %v2117
        %2119 = vdwg.mxu0
        %s2120 = scalar_lea.vmem %s4, 24
        %v2121 = vld [vmem:[%s2120] sm:$0x7f]
        %v2123 = vsel %vm1886, %v2121, 0
        %2125 = vmatprep.subr.mxu0 %v1882
        %2126 = vmatpush1.msra.mxu0 %v1881
        %2127 = vmatprep.subr.mxu0 %v1895
        %2128 = vmatpush1.msra.mxu0 %v1892
        %2129 = vmatprep.subr.mxu0 0.0
        %2130 = vmatpush1.msra.mxu0 0.0
        %2131 = vmatprep.subr.mxu0 0.0
        %2132 = vmatpush1.msra.mxu0 0.0
        %2133 = vmatprep.subr.mxu0 0.0
        %2134 = vmatpush1.msra.mxu0 0.0
        %2135 = vmatprep.subr.mxu0 0.0
        %2136 = vmatpush1.msra.mxu0 0.0
        %2137 = vmatprep.subr.mxu0 0.0
        %2138 = vmatpush1.msra.mxu0 0.0
        %2139 = vmatprep.subr.mxu0 0.0
        %2140 = vmatpush1.msra.mxu0 0.0
        %2141 = vmatprep.subr.mxu0 0.0
        %2142 = vmatpush1.msra.mxu0 0.0
        %2143 = vmatprep.subr.mxu0 0.0
        %2144 = vmatpush1.msra.mxu0 0.0
        %2145 = vmatprep.subr.mxu0 0.0
        %2146 = vmatpush1.msra.mxu0 0.0
        %2147 = vmatprep.subr.mxu0 0.0
        %2148 = vmatpush1.msra.mxu0 0.0
        %2149 = vmatprep.subr.mxu0 0.0
        %2150 = vmatpush1.msra.mxu0 0.0
        %2151 = vmatprep.subr.mxu0 0.0
        %2152 = vmatpush1.msra.mxu0 0.0
        %2153 = vmatprep.subr.mxu0 0.0
        %2154 = vmatpush1.msra.mxu0 0.0
        %2155 = vmatprep.subr.mxu0 0.0
        %2156 = vmatpush1.msra.mxu0 0.0
        %2157 = vmatprep.subr.mxu0 0.0
        %2158 = vmatpush1.msra.mxu0 0.0
        %2159 = vmatprep.subr.mxu0 0.0
        %2160 = vmatpush1.msra.mxu0 0.0
        %2161 = vmatprep.subr.mxu0 0.0
        %2162 = vmatpush1.msra.mxu0 0.0
        %2163 = vmatprep.subr.mxu0 0.0
        %2164 = vmatpush1.msra.mxu0 0.0
        %2165 = vmatprep.subr.mxu0 0.0
        %2166 = vmatpush1.msra.mxu0 0.0
        %2167 = vmatprep.subr.mxu0 0.0
        %2168 = vmatpush1.msra.mxu0 0.0
        %2169 = vmatprep.subr.mxu0 0.0
        %2170 = vmatpush1.msra.mxu0 0.0
        %2171 = vmatprep.subr.mxu0 0.0
        %2172 = vmatpush1.msra.mxu0 0.0
        %2173 = vmatprep.subr.mxu0 0.0
        %2174 = vmatpush1.msra.mxu0 0.0
        %2175 = vmatprep.subr.mxu0 0.0
        %2176 = vmatpush1.msra.mxu0 0.0
        %2177 = vmatprep.subr.mxu0 0.0
        %2178 = vmatpush1.msra.mxu0 0.0
        %2179 = vmatprep.subr.mxu0 0.0
        %2180 = vmatpush1.msra.mxu0 0.0
        %2181 = vmatprep.subr.mxu0 0.0
        %2182 = vmatpush1.msra.mxu0 0.0
        %2183 = vmatprep.subr.mxu0 0.0
        %2184 = vmatpush1.msra.mxu0 0.0
        %2185 = vmatprep.subr.mxu0 0.0
        %2186 = vmatpush1.msra.mxu0 0.0
        %2187 = vmatprep.subr.mxu0 0.0
        %2188 = vmatpush1.msra.mxu0 0.0
        %2189 = vmatprep.mubr.f32.mxu0 0.0
        %2190 = vmatmul.mubr.f32.gmra.mrb[0].mxu0 %v2123
        %v2191 = vpop.f32.mrb[0].mxu0
        %v2192 = vadd.f32 0.0, %v2191
        %v2193 = vpop.f32.mrb[0].mxu0
        %v2194 = vadd.f32 0.0, %v2193
        %2195 = vdwg.mxu0
        %v2196 = vld [vmem:[#allocation6] sm:$0xff]
        %v2197 = vld [vmem:[#allocation6 + $0x8] sm:$0xff]
        %v2198 = vld [vmem:[#allocation6 + $0x10] sm:$0xff]
        %v2199 = vld [vmem:[#allocation6 + $0x18] sm:$0xff]
        %v2200 = vld [vmem:[#allocation6 + $0x20] sm:$0xff]
        %v2201 = vld [vmem:[#allocation6 + $0x28] sm:$0xff]
        %v2202 = vld [vmem:[#allocation6 + $0x30] sm:$0xff]
        %v2203 = vld [vmem:[#allocation6 + $0x38] sm:$0xff]
        %v2204 = vld [vmem:[#allocation6 + $0x40] sm:$0xff]
        %v2205 = vld [vmem:[#allocation6 + $0x48] sm:$0xff]
        %v2206 = vld [vmem:[#allocation6 + $0x50] sm:$0xff]
        %v2207 = vld [vmem:[#allocation6 + $0x58] sm:$0xff]
        %v2208 = vld [vmem:[#allocation6 + $0x60] sm:$0xff]
        %v2209 = vld [vmem:[#allocation6 + $0x68] sm:$0xff]
        %v2210 = vld [vmem:[#allocation6 + $0x70] sm:$0xff]
        %v2211 = vld [vmem:[#allocation6 + $0x78] sm:$0xff]
        %v2212 = vld [vmem:[#allocation6 + $0x80] sm:$0xff]
        %v2213 = vld [vmem:[#allocation6 + $0x88] sm:$0xff]
        %v2214 = vld [vmem:[#allocation6 + $0x90] sm:$0xff]
        %v2215 = vld [vmem:[#allocation6 + $0x98] sm:$0xff]
        %v2216 = vld [vmem:[#allocation6 + $0xa0] sm:$0xff]
        %v2217 = vld [vmem:[#allocation6 + $0xa8] sm:$0xff]
        %v2218 = vld [vmem:[#allocation6 + $0xb0] sm:$0xff]
        %v2219 = vld [vmem:[#allocation6 + $0xb8] sm:$0xff]
        %v2220 = vld [vmem:[#allocation6 + $0xc0] sm:$0xff]
        %v2221 = vld [vmem:[#allocation6 + $0xc8] sm:$0xff]
        %v2222 = vld [vmem:[#allocation6 + $0xd0] sm:$0xff]
        %v2223 = vld [vmem:[#allocation6 + $0xd8] sm:$0xff]
        %v2224 = vld [vmem:[#allocation6 + $0xe0] sm:$0xff]
        %v2225 = vld [vmem:[#allocation6 + $0xe8] sm:$0xff]
        %v2226 = vld [vmem:[#allocation6 + $0xf0] sm:$0xff]
        %v2227 = vld [vmem:[#allocation6 + $0xf8] sm:$0xff]
        %v2228 = vld [vmem:[#allocation6 + $0x100] sm:$0xff]
        %v2229 = vld [vmem:[#allocation6 + $0x108] sm:$0xff]
        %v2230 = vld [vmem:[#allocation6 + $0x110] sm:$0xff]
        %v2231 = vld [vmem:[#allocation6 + $0x118] sm:$0xff]
        %v2232 = vld [vmem:[#allocation6 + $0x120] sm:$0xff]
        %v2233 = vld [vmem:[#allocation6 + $0x128] sm:$0xff]
        %v2234 = vld [vmem:[#allocation6 + $0x130] sm:$0xff]
        %v2235 = vld [vmem:[#allocation6 + $0x138] sm:$0xff]
        %v2236 = vld [vmem:[#allocation6 + $0x140] sm:$0xff]
        %v2237 = vld [vmem:[#allocation6 + $0x148] sm:$0xff]
        %v2238 = vld [vmem:[#allocation6 + $0x150] sm:$0xff]
        %v2239 = vld [vmem:[#allocation6 + $0x158] sm:$0xff]
        %v2240 = vld [vmem:[#allocation6 + $0x160] sm:$0xff]
        %v2241 = vld [vmem:[#allocation6 + $0x168] sm:$0xff]
        %v2242 = vld [vmem:[#allocation6 + $0x170] sm:$0xff]
        %v2243 = vld [vmem:[#allocation6 + $0x178] sm:$0xff]
        %v2244 = vld [vmem:[#allocation6 + $0x180] sm:$0xff]
        %v2245 = vld [vmem:[#allocation6 + $0x188] sm:$0xff]
        %v2246 = vld [vmem:[#allocation6 + $0x190] sm:$0xff]
        %v2247 = vld [vmem:[#allocation6 + $0x198] sm:$0xff]
        %v2248 = vld [vmem:[#allocation6 + $0x1a0] sm:$0xff]
        %v2249 = vld [vmem:[#allocation6 + $0x1a8] sm:$0xff]
        %v2250 = vld [vmem:[#allocation6 + $0x1b0] sm:$0xff]
        %v2251 = vld [vmem:[#allocation6 + $0x1b8] sm:$0xff]
        %s2252 = scalar_lea.vmem [#allocation6], 896
        %v2253 = vld [vmem:[%s2252] sm:$0xff]
        %v2254 = vld [vmem:[%s2252 + $0x8] sm:$0xff]
        %v2255 = vld [vmem:[%s2252 + $0x10] sm:$0xff]
        %v2256 = vld [vmem:[%s2252 + $0x18] sm:$0xff]
        %v2257 = vld [vmem:[%s2252 + $0x20] sm:$0xff]
        %v2258 = vld [vmem:[%s2252 + $0x28] sm:$0xff]
        %v2259 = vld [vmem:[%s2252 + $0x30] sm:$0xff]
        %v2260 = vld [vmem:[%s2252 + $0x38] sm:$0xff]
        %v2261 = vld [vmem:[%s2252 + $0x40] sm:$0xff]
        %v2262 = vld [vmem:[%s2252 + $0x48] sm:$0xff]
        %v2263 = vld [vmem:[%s2252 + $0x50] sm:$0xff]
        %v2264 = vld [vmem:[%s2252 + $0x58] sm:$0xff]
        %v2265 = vld [vmem:[%s2252 + $0x60] sm:$0xff]
        %v2266 = vld [vmem:[%s2252 + $0x68] sm:$0xff]
        %v2267 = vld [vmem:[%s2252 + $0x70] sm:$0xff]
        %v2268 = vld [vmem:[%s2252 + $0x78] sm:$0xff]
        %v2269 = vld [vmem:[%s2252 + $0x80] sm:$0xff]
        %v2270 = vld [vmem:[%s2252 + $0x88] sm:$0xff]
        %v2271 = vld [vmem:[%s2252 + $0x90] sm:$0xff]
        %v2272 = vld [vmem:[%s2252 + $0x98] sm:$0xff]
        %v2273 = vld [vmem:[%s2252 + $0xa0] sm:$0xff]
        %v2274 = vld [vmem:[%s2252 + $0xa8] sm:$0xff]
        %v2275 = vld [vmem:[%s2252 + $0xb0] sm:$0xff]
        %v2276 = vld [vmem:[%s2252 + $0xb8] sm:$0xff]
        %v2277 = vld [vmem:[%s2252 + $0xc0] sm:$0xff]
        %v2278 = vld [vmem:[%s2252 + $0xc8] sm:$0xff]
        %v2279 = vld [vmem:[%s2252 + $0xd0] sm:$0xff]
        %v2280 = vld [vmem:[%s2252 + $0xd8] sm:$0xff]
        %v2281 = vld [vmem:[%s2252 + $0xe0] sm:$0xff]
        %v2282 = vld [vmem:[%s2252 + $0xe8] sm:$0xff]
        %v2283 = vld [vmem:[%s2252 + $0xf0] sm:$0xff]
        %v2284 = vld [vmem:[%s2252 + $0xf8] sm:$0xff]
        %v2285 = vld [vmem:[%s2252 + $0x100] sm:$0xff]
        %v2286 = vld [vmem:[%s2252 + $0x108] sm:$0xff]
        %v2287 = vld [vmem:[%s2252 + $0x110] sm:$0xff]
        %v2288 = vld [vmem:[%s2252 + $0x118] sm:$0xff]
        %v2289 = vld [vmem:[%s2252 + $0x120] sm:$0xff]
        %v2290 = vld [vmem:[%s2252 + $0x128] sm:$0xff]
        %v2291 = vld [vmem:[%s2252 + $0x130] sm:$0xff]
        %v2292 = vld [vmem:[%s2252 + $0x138] sm:$0xff]
        %v2293 = vld [vmem:[%s2252 + $0x140] sm:$0xff]
        %v2294 = vld [vmem:[%s2252 + $0x148] sm:$0xff]
        %v2295 = vld [vmem:[%s2252 + $0x150] sm:$0xff]
        %v2296 = vld [vmem:[%s2252 + $0x158] sm:$0xff]
        %v2297 = vld [vmem:[%s2252 + $0x160] sm:$0xff]
        %v2298 = vld [vmem:[%s2252 + $0x168] sm:$0xff]
        %v2299 = vld [vmem:[%s2252 + $0x170] sm:$0xff]
        %v2300 = vld [vmem:[%s2252 + $0x178] sm:$0xff]
        %v2301 = vld [vmem:[%s2252 + $0x180] sm:$0xff]
        %v2302 = vld [vmem:[%s2252 + $0x188] sm:$0xff]
        %v2303 = vld [vmem:[%s2252 + $0x190] sm:$0xff]
        %v2304 = vld [vmem:[%s2252 + $0x198] sm:$0xff]
        %v2305 = vld [vmem:[%s2252 + $0x1a0] sm:$0xff]
        %v2306 = vld [vmem:[%s2252 + $0x1a8] sm:$0xff]
        %v2307 = vld [vmem:[%s2252 + $0x1b0] sm:$0xff]
        %v2308 = vld [vmem:[%s2252 + $0x1b8] sm:$0xff]
        %vm2309 = vcmask 785408
        %v2311 = vsel %vm2309, %v2042, 0
        %2313 = vmatprep.subr.mxu0 %v2254
        %2314 = vmatpush1.msra.mxu0 %v2253
        %2315 = vmatprep.subr.mxu0 %v2256
        %2316 = vmatpush1.msra.mxu0 %v2255
        %2317 = vmatprep.subr.mxu0 %v2258
        %2318 = vmatpush1.msra.mxu0 %v2257
        %2319 = vmatprep.subr.mxu0 %v2260
        %2320 = vmatpush1.msra.mxu0 %v2259
        %2321 = vmatprep.subr.mxu0 %v2262
        %2322 = vmatpush1.msra.mxu0 %v2261
        %2323 = vmatprep.subr.mxu0 %v2264
        %2324 = vmatpush1.msra.mxu0 %v2263
        %2325 = vmatprep.subr.mxu0 %v2266
        %2326 = vmatpush1.msra.mxu0 %v2265
        %2327 = vmatprep.subr.mxu0 %v2268
        %2328 = vmatpush1.msra.mxu0 %v2267
        %2329 = vmatprep.subr.mxu0 %v2270
        %2330 = vmatpush1.msra.mxu0 %v2269
        %2331 = vmatprep.subr.mxu0 %v2272
        %2332 = vmatpush1.msra.mxu0 %v2271
        %2333 = vmatprep.subr.mxu0 %v2274
        %2334 = vmatpush1.msra.mxu0 %v2273
        %2335 = vmatprep.subr.mxu0 %v2276
        %2336 = vmatpush1.msra.mxu0 %v2275
        %2337 = vmatprep.subr.mxu0 %v2278
        %2338 = vmatpush1.msra.mxu0 %v2277
        %2339 = vmatprep.subr.mxu0 %v2280
        %2340 = vmatpush1.msra.mxu0 %v2279
        %2341 = vmatprep.subr.mxu0 %v2282
        %2342 = vmatpush1.msra.mxu0 %v2281
        %2343 = vmatprep.subr.mxu0 %v2284
        %2344 = vmatpush1.msra.mxu0 %v2283
        %2345 = vmatprep.subr.mxu0 %v2286
        %2346 = vmatpush1.msra.mxu0 %v2285
        %2347 = vmatprep.subr.mxu0 %v2288
        %2348 = vmatpush1.msra.mxu0 %v2287
        %2349 = vmatprep.subr.mxu0 %v2290
        %2350 = vmatpush1.msra.mxu0 %v2289
        %2351 = vmatprep.subr.mxu0 %v2292
        %2352 = vmatpush1.msra.mxu0 %v2291
        %2353 = vmatprep.subr.mxu0 %v2294
        %2354 = vmatpush1.msra.mxu0 %v2293
        %2355 = vmatprep.subr.mxu0 %v2296
        %2356 = vmatpush1.msra.mxu0 %v2295
        %2357 = vmatprep.subr.mxu0 %v2298
        %2358 = vmatpush1.msra.mxu0 %v2297
        %2359 = vmatprep.subr.mxu0 %v2300
        %2360 = vmatpush1.msra.mxu0 %v2299
        %2361 = vmatprep.subr.mxu0 %v2302
        %2362 = vmatpush1.msra.mxu0 %v2301
        %2363 = vmatprep.subr.mxu0 %v2304
        %2364 = vmatpush1.msra.mxu0 %v2303
        %2365 = vmatprep.subr.mxu0 %v2306
        %2366 = vmatpush1.msra.mxu0 %v2305
        %2367 = vmatprep.subr.mxu0 %v2308
        %2368 = vmatpush1.msra.mxu0 %v2307
        %2369 = vmatprep.subr.mxu0 0.0
        %2370 = vmatpush1.msra.mxu0 0.0
        %2371 = vmatprep.subr.mxu0 0.0
        %2372 = vmatpush1.msra.mxu0 0.0
        %2373 = vmatprep.subr.mxu0 0.0
        %2374 = vmatpush1.msra.mxu0 0.0
        %2375 = vmatprep.subr.mxu0 0.0
        %2376 = vmatpush1.msra.mxu0 0.0
        %2377 = vmatprep.mubr.f32.mxu0 %v2311
        %2378 = vmatmul.mubr.f32.gmra.mrb[0].mxu0 %v2040
        %v2379 = vpop.f32.mrb[0].mxu0
        %v2380 = vadd.f32 0.0, %v2379
        %v2381 = vpop.f32.mrb[0].mxu0
        %v2382 = vadd.f32 0.0, %v2381
        %2383 = vdwg.mxu0
        %v2385 = vsel %vm2309, %v1966, 0
        %2387 = vmatprep.subr.mxu0 %v2197
        %2388 = vmatpush1.msra.mxu0 %v2196
        %2389 = vmatprep.subr.mxu0 %v2199
        %2390 = vmatpush1.msra.mxu0 %v2198
        %2391 = vmatprep.subr.mxu0 %v2201
        %2392 = vmatpush1.msra.mxu0 %v2200
        %2393 = vmatprep.subr.mxu0 %v2203
        %2394 = vmatpush1.msra.mxu0 %v2202
        %2395 = vmatprep.subr.mxu0 %v2205
        %2396 = vmatpush1.msra.mxu0 %v2204
        %2397 = vmatprep.subr.mxu0 %v2207
        %2398 = vmatpush1.msra.mxu0 %v2206
        %2399 = vmatprep.subr.mxu0 %v2209
        %2400 = vmatpush1.msra.mxu0 %v2208
        %2401 = vmatprep.subr.mxu0 %v2211
        %2402 = vmatpush1.msra.mxu0 %v2210
        %2403 = vmatprep.subr.mxu0 %v2213
        %2404 = vmatpush1.msra.mxu0 %v2212
        %2405 = vmatprep.subr.mxu0 %v2215
        %2406 = vmatpush1.msra.mxu0 %v2214
        %2407 = vmatprep.subr.mxu0 %v2217
        %2408 = vmatpush1.msra.mxu0 %v2216
        %2409 = vmatprep.subr.mxu0 %v2219
        %2410 = vmatpush1.msra.mxu0 %v2218
        %2411 = vmatprep.subr.mxu0 %v2221
        %2412 = vmatpush1.msra.mxu0 %v2220
        %2413 = vmatprep.subr.mxu0 %v2223
        %2414 = vmatpush1.msra.mxu0 %v2222
        %2415 = vmatprep.subr.mxu0 %v2225
        %2416 = vmatpush1.msra.mxu0 %v2224
        %2417 = vmatprep.subr.mxu0 %v2227
        %2418 = vmatpush1.msra.mxu0 %v2226
        %2419 = vmatprep.subr.mxu0 %v2229
        %2420 = vmatpush1.msra.mxu0 %v2228
        %2421 = vmatprep.subr.mxu0 %v2231
        %2422 = vmatpush1.msra.mxu0 %v2230
        %2423 = vmatprep.subr.mxu0 %v2233
        %2424 = vmatpush1.msra.mxu0 %v2232
        %2425 = vmatprep.subr.mxu0 %v2235
        %2426 = vmatpush1.msra.mxu0 %v2234
        %2427 = vmatprep.subr.mxu0 %v2237
        %2428 = vmatpush1.msra.mxu0 %v2236
        %2429 = vmatprep.subr.mxu0 %v2239
        %2430 = vmatpush1.msra.mxu0 %v2238
        %2431 = vmatprep.subr.mxu0 %v2241
        %2432 = vmatpush1.msra.mxu0 %v2240
        %2433 = vmatprep.subr.mxu0 %v2243
        %2434 = vmatpush1.msra.mxu0 %v2242
        %2435 = vmatprep.subr.mxu0 %v2245
        %2436 = vmatpush1.msra.mxu0 %v2244
        %2437 = vmatprep.subr.mxu0 %v2247
        %2438 = vmatpush1.msra.mxu0 %v2246
        %2439 = vmatprep.subr.mxu0 %v2249
        %2440 = vmatpush1.msra.mxu0 %v2248
        %2441 = vmatprep.subr.mxu0 %v2251
        %2442 = vmatpush1.msra.mxu0 %v2250
        %2443 = vmatprep.subr.mxu0 0.0
        %2444 = vmatpush1.msra.mxu0 0.0
        %2445 = vmatprep.subr.mxu0 0.0
        %2446 = vmatpush1.msra.mxu0 0.0
        %2447 = vmatprep.subr.mxu0 0.0
        %2448 = vmatpush1.msra.mxu0 0.0
        %2449 = vmatprep.subr.mxu0 0.0
        %2450 = vmatpush1.msra.mxu0 0.0
        %2451 = vmatprep.mubr.f32.mxu0 %v2385
        %2452 = vmatmul.mubr.f32.gmra.mrb[0].mxu0 %v1964
        %v2453 = vpop.f32.mrb[0].mxu0
        %v2454 = vadd.f32 %v2380, %v2453
        %v2455 = vpop.f32.mrb[0].mxu0
        %v2456 = vadd.f32 %v2382, %v2455
        %2457 = vdwg.mxu0
        %s2458 = scalar_lea.vmem [#allocation6], 1792
        %v2459 = vld [vmem:[%s2458] sm:$0xff]
        %v2460 = vld [vmem:[%s2458 + $0x8] sm:$0xff]
        %v2461 = vld [vmem:[%s2458 + $0x10] sm:$0xff]
        %v2462 = vld [vmem:[%s2458 + $0x18] sm:$0xff]
        %v2463 = vld [vmem:[%s2458 + $0x20] sm:$0xff]
        %v2464 = vld [vmem:[%s2458 + $0x28] sm:$0xff]
        %v2465 = vld [vmem:[%s2458 + $0x30] sm:$0xff]
        %v2466 = vld [vmem:[%s2458 + $0x38] sm:$0xff]
        %v2467 = vld [vmem:[%s2458 + $0x40] sm:$0xff]
        %v2468 = vld [vmem:[%s2458 + $0x48] sm:$0xff]
        %v2469 = vld [vmem:[%s2458 + $0x50] sm:$0xff]
        %v2470 = vld [vmem:[%s2458 + $0x58] sm:$0xff]
        %v2471 = vld [vmem:[%s2458 + $0x60] sm:$0xff]
        %v2472 = vld [vmem:[%s2458 + $0x68] sm:$0xff]
        %v2473 = vld [vmem:[%s2458 + $0x70] sm:$0xff]
        %v2474 = vld [vmem:[%s2458 + $0x78] sm:$0xff]
        %v2475 = vld [vmem:[%s2458 + $0x80] sm:$0xff]
        %v2476 = vld [vmem:[%s2458 + $0x88] sm:$0xff]
        %v2477 = vld [vmem:[%s2458 + $0x90] sm:$0xff]
        %v2478 = vld [vmem:[%s2458 + $0x98] sm:$0xff]
        %v2479 = vld [vmem:[%s2458 + $0xa0] sm:$0xff]
        %v2480 = vld [vmem:[%s2458 + $0xa8] sm:$0xff]
        %v2481 = vld [vmem:[%s2458 + $0xb0] sm:$0xff]
        %v2482 = vld [vmem:[%s2458 + $0xb8] sm:$0xff]
        %v2483 = vld [vmem:[%s2458 + $0xc0] sm:$0xff]
        %v2484 = vld [vmem:[%s2458 + $0xc8] sm:$0xff]
        %v2485 = vld [vmem:[%s2458 + $0xd0] sm:$0xff]
        %v2486 = vld [vmem:[%s2458 + $0xd8] sm:$0xff]
        %v2487 = vld [vmem:[%s2458 + $0xe0] sm:$0xff]
        %v2488 = vld [vmem:[%s2458 + $0xe8] sm:$0xff]
        %v2489 = vld [vmem:[%s2458 + $0xf0] sm:$0xff]
        %v2490 = vld [vmem:[%s2458 + $0xf8] sm:$0xff]
        %v2491 = vld [vmem:[%s2458 + $0x100] sm:$0xff]
        %v2492 = vld [vmem:[%s2458 + $0x108] sm:$0xff]
        %v2493 = vld [vmem:[%s2458 + $0x110] sm:$0xff]
        %v2494 = vld [vmem:[%s2458 + $0x118] sm:$0xff]
        %v2495 = vld [vmem:[%s2458 + $0x120] sm:$0xff]
        %v2496 = vld [vmem:[%s2458 + $0x128] sm:$0xff]
        %v2497 = vld [vmem:[%s2458 + $0x130] sm:$0xff]
        %v2498 = vld [vmem:[%s2458 + $0x138] sm:$0xff]
        %v2499 = vld [vmem:[%s2458 + $0x140] sm:$0xff]
        %v2500 = vld [vmem:[%s2458 + $0x148] sm:$0xff]
        %v2501 = vld [vmem:[%s2458 + $0x150] sm:$0xff]
        %v2502 = vld [vmem:[%s2458 + $0x158] sm:$0xff]
        %v2503 = vld [vmem:[%s2458 + $0x160] sm:$0xff]
        %v2504 = vld [vmem:[%s2458 + $0x168] sm:$0xff]
        %v2505 = vld [vmem:[%s2458 + $0x170] sm:$0xff]
        %v2506 = vld [vmem:[%s2458 + $0x178] sm:$0xff]
        %v2507 = vld [vmem:[%s2458 + $0x180] sm:$0xff]
        %v2508 = vld [vmem:[%s2458 + $0x188] sm:$0xff]
        %v2509 = vld [vmem:[%s2458 + $0x190] sm:$0xff]
        %v2510 = vld [vmem:[%s2458 + $0x198] sm:$0xff]
        %v2511 = vld [vmem:[%s2458 + $0x1a0] sm:$0xff]
        %v2512 = vld [vmem:[%s2458 + $0x1a8] sm:$0xff]
        %v2513 = vld [vmem:[%s2458 + $0x1b0] sm:$0xff]
        %v2514 = vld [vmem:[%s2458 + $0x1b8] sm:$0xff]
        %v2516 = vsel %vm2309, %v2118, 0
        %2518 = vmatprep.subr.mxu0 %v2460
        %2519 = vmatpush1.msra.mxu0 %v2459
        %2520 = vmatprep.subr.mxu0 %v2462
        %2521 = vmatpush1.msra.mxu0 %v2461
        %2522 = vmatprep.subr.mxu0 %v2464
        %2523 = vmatpush1.msra.mxu0 %v2463
        %2524 = vmatprep.subr.mxu0 %v2466
        %2525 = vmatpush1.msra.mxu0 %v2465
        %2526 = vmatprep.subr.mxu0 %v2468
        %2527 = vmatpush1.msra.mxu0 %v2467
        %2528 = vmatprep.subr.mxu0 %v2470
        %2529 = vmatpush1.msra.mxu0 %v2469
        %2530 = vmatprep.subr.mxu0 %v2472
        %2531 = vmatpush1.msra.mxu0 %v2471
        %2532 = vmatprep.subr.mxu0 %v2474
        %2533 = vmatpush1.msra.mxu0 %v2473
        %2534 = vmatprep.subr.mxu0 %v2476
        %2535 = vmatpush1.msra.mxu0 %v2475
        %2536 = vmatprep.subr.mxu0 %v2478
        %2537 = vmatpush1.msra.mxu0 %v2477
        %2538 = vmatprep.subr.mxu0 %v2480
        %2539 = vmatpush1.msra.mxu0 %v2479
        %2540 = vmatprep.subr.mxu0 %v2482
        %2541 = vmatpush1.msra.mxu0 %v2481
        %2542 = vmatprep.subr.mxu0 %v2484
        %2543 = vmatpush1.msra.mxu0 %v2483
        %2544 = vmatprep.subr.mxu0 %v2486
        %2545 = vmatpush1.msra.mxu0 %v2485
        %2546 = vmatprep.subr.mxu0 %v2488
        %2547 = vmatpush1.msra.mxu0 %v2487
        %2548 = vmatprep.subr.mxu0 %v2490
        %2549 = vmatpush1.msra.mxu0 %v2489
        %2550 = vmatprep.subr.mxu0 %v2492
        %2551 = vmatpush1.msra.mxu0 %v2491
        %2552 = vmatprep.subr.mxu0 %v2494
        %2553 = vmatpush1.msra.mxu0 %v2493
        %2554 = vmatprep.subr.mxu0 %v2496
        %2555 = vmatpush1.msra.mxu0 %v2495
        %2556 = vmatprep.subr.mxu0 %v2498
        %2557 = vmatpush1.msra.mxu0 %v2497
        %2558 = vmatprep.subr.mxu0 %v2500
        %2559 = vmatpush1.msra.mxu0 %v2499
        %2560 = vmatprep.subr.mxu0 %v2502
        %2561 = vmatpush1.msra.mxu0 %v2501
        %2562 = vmatprep.subr.mxu0 %v2504
        %2563 = vmatpush1.msra.mxu0 %v2503
        %2564 = vmatprep.subr.mxu0 %v2506
        %2565 = vmatpush1.msra.mxu0 %v2505
        %2566 = vmatprep.subr.mxu0 %v2508
        %2567 = vmatpush1.msra.mxu0 %v2507
        %2568 = vmatprep.subr.mxu0 %v2510
        %2569 = vmatpush1.msra.mxu0 %v2509
        %2570 = vmatprep.subr.mxu0 %v2512
        %2571 = vmatpush1.msra.mxu0 %v2511
        %2572 = vmatprep.subr.mxu0 %v2514
        %2573 = vmatpush1.msra.mxu0 %v2513
        %2574 = vmatprep.subr.mxu0 0.0
        %2575 = vmatpush1.msra.mxu0 0.0
        %2576 = vmatprep.subr.mxu0 0.0
        %2577 = vmatpush1.msra.mxu0 0.0
        %2578 = vmatprep.subr.mxu0 0.0
        %2579 = vmatpush1.msra.mxu0 0.0
        %2580 = vmatprep.subr.mxu0 0.0
        %2581 = vmatpush1.msra.mxu0 0.0
        %2582 = vmatprep.mubr.f32.mxu0 %v2516
        %2583 = vmatmul.mubr.f32.gmra.mrb[0].mxu0 %v2116
        %v2584 = vpop.f32.mrb[0].mxu0
        %v2585 = vadd.f32 0.0, %v2584
        %v2586 = vpop.f32.mrb[0].mxu0
        %v2587 = vadd.f32 0.0, %v2586
        %2588 = vdwg.mxu0
        %v2589 = vadd.f32 %v2454, %v2585
        %v2590 = vadd.f32 %v2456, %v2587
        %s2591 = scalar_lea.vmem [#allocation6], 448
        %v2592 = vld [vmem:[%s2591] sm:$0xff]
        %v2593 = vld [vmem:[%s2591 + $0x8] sm:$0xff]
        %v2594 = vld [vmem:[%s2591 + $0x10] sm:$0xff]
        %v2595 = vld [vmem:[%s2591 + $0x18] sm:$0xff]
        %v2596 = vld [vmem:[%s2591 + $0x20] sm:$0xff]
        %v2597 = vld [vmem:[%s2591 + $0x28] sm:$0xff]
        %v2598 = vld [vmem:[%s2591 + $0x30] sm:$0xff]
        %v2599 = vld [vmem:[%s2591 + $0x38] sm:$0xff]
        %v2600 = vld [vmem:[%s2591 + $0x40] sm:$0xff]
        %v2601 = vld [vmem:[%s2591 + $0x48] sm:$0xff]
        %v2602 = vld [vmem:[%s2591 + $0x50] sm:$0xff]
        %v2603 = vld [vmem:[%s2591 + $0x58] sm:$0xff]
        %v2604 = vld [vmem:[%s2591 + $0x60] sm:$0xff]
        %v2605 = vld [vmem:[%s2591 + $0x68] sm:$0xff]
        %v2606 = vld [vmem:[%s2591 + $0x70] sm:$0xff]
        %v2607 = vld [vmem:[%s2591 + $0x78] sm:$0xff]
        %v2608 = vld [vmem:[%s2591 + $0x80] sm:$0xff]
        %v2609 = vld [vmem:[%s2591 + $0x88] sm:$0xff]
        %v2610 = vld [vmem:[%s2591 + $0x90] sm:$0xff]
        %v2611 = vld [vmem:[%s2591 + $0x98] sm:$0xff]
        %v2612 = vld [vmem:[%s2591 + $0xa0] sm:$0xff]
        %v2613 = vld [vmem:[%s2591 + $0xa8] sm:$0xff]
        %v2614 = vld [vmem:[%s2591 + $0xb0] sm:$0xff]
        %v2615 = vld [vmem:[%s2591 + $0xb8] sm:$0xff]
        %v2616 = vld [vmem:[%s2591 + $0xc0] sm:$0xff]
        %v2617 = vld [vmem:[%s2591 + $0xc8] sm:$0xff]
        %v2618 = vld [vmem:[%s2591 + $0xd0] sm:$0xff]
        %v2619 = vld [vmem:[%s2591 + $0xd8] sm:$0xff]
        %v2620 = vld [vmem:[%s2591 + $0xe0] sm:$0xff]
        %v2621 = vld [vmem:[%s2591 + $0xe8] sm:$0xff]
        %v2622 = vld [vmem:[%s2591 + $0xf0] sm:$0xff]
        %v2623 = vld [vmem:[%s2591 + $0xf8] sm:$0xff]
        %v2624 = vld [vmem:[%s2591 + $0x100] sm:$0xff]
        %v2625 = vld [vmem:[%s2591 + $0x108] sm:$0xff]
        %v2626 = vld [vmem:[%s2591 + $0x110] sm:$0xff]
        %v2627 = vld [vmem:[%s2591 + $0x118] sm:$0xff]
        %v2628 = vld [vmem:[%s2591 + $0x120] sm:$0xff]
        %v2629 = vld [vmem:[%s2591 + $0x128] sm:$0xff]
        %v2630 = vld [vmem:[%s2591 + $0x130] sm:$0xff]
        %v2631 = vld [vmem:[%s2591 + $0x138] sm:$0xff]
        %v2632 = vld [vmem:[%s2591 + $0x140] sm:$0xff]
        %v2633 = vld [vmem:[%s2591 + $0x148] sm:$0xff]
        %v2634 = vld [vmem:[%s2591 + $0x150] sm:$0xff]
        %v2635 = vld [vmem:[%s2591 + $0x158] sm:$0xff]
        %v2636 = vld [vmem:[%s2591 + $0x160] sm:$0xff]
        %v2637 = vld [vmem:[%s2591 + $0x168] sm:$0xff]
        %v2638 = vld [vmem:[%s2591 + $0x170] sm:$0xff]
        %v2639 = vld [vmem:[%s2591 + $0x178] sm:$0xff]
        %v2640 = vld [vmem:[%s2591 + $0x180] sm:$0xff]
        %v2641 = vld [vmem:[%s2591 + $0x188] sm:$0xff]
        %v2642 = vld [vmem:[%s2591 + $0x190] sm:$0xff]
        %v2643 = vld [vmem:[%s2591 + $0x198] sm:$0xff]
        %v2644 = vld [vmem:[%s2591 + $0x1a0] sm:$0xff]
        %v2645 = vld [vmem:[%s2591 + $0x1a8] sm:$0xff]
        %v2646 = vld [vmem:[%s2591 + $0x1b0] sm:$0xff]
        %v2647 = vld [vmem:[%s2591 + $0x1b8] sm:$0xff]
        %s2648 = scalar_lea.vmem [#allocation6], 1344
        %v2649 = vld [vmem:[%s2648] sm:$0xff]
        %v2650 = vld [vmem:[%s2648 + $0x8] sm:$0xff]
        %v2651 = vld [vmem:[%s2648 + $0x10] sm:$0xff]
        %v2652 = vld [vmem:[%s2648 + $0x18] sm:$0xff]
        %v2653 = vld [vmem:[%s2648 + $0x20] sm:$0xff]
        %v2654 = vld [vmem:[%s2648 + $0x28] sm:$0xff]
        %v2655 = vld [vmem:[%s2648 + $0x30] sm:$0xff]
        %v2656 = vld [vmem:[%s2648 + $0x38] sm:$0xff]
        %v2657 = vld [vmem:[%s2648 + $0x40] sm:$0xff]
        %v2658 = vld [vmem:[%s2648 + $0x48] sm:$0xff]
        %v2659 = vld [vmem:[%s2648 + $0x50] sm:$0xff]
        %v2660 = vld [vmem:[%s2648 + $0x58] sm:$0xff]
        %v2661 = vld [vmem:[%s2648 + $0x60] sm:$0xff]
        %v2662 = vld [vmem:[%s2648 + $0x68] sm:$0xff]
        %v2663 = vld [vmem:[%s2648 + $0x70] sm:$0xff]
        %v2664 = vld [vmem:[%s2648 + $0x78] sm:$0xff]
        %v2665 = vld [vmem:[%s2648 + $0x80] sm:$0xff]
        %v2666 = vld [vmem:[%s2648 + $0x88] sm:$0xff]
        %v2667 = vld [vmem:[%s2648 + $0x90] sm:$0xff]
        %v2668 = vld [vmem:[%s2648 + $0x98] sm:$0xff]
        %v2669 = vld [vmem:[%s2648 + $0xa0] sm:$0xff]
        %v2670 = vld [vmem:[%s2648 + $0xa8] sm:$0xff]
        %v2671 = vld [vmem:[%s2648 + $0xb0] sm:$0xff]
        %v2672 = vld [vmem:[%s2648 + $0xb8] sm:$0xff]
        %v2673 = vld [vmem:[%s2648 + $0xc0] sm:$0xff]
        %v2674 = vld [vmem:[%s2648 + $0xc8] sm:$0xff]
        %v2675 = vld [vmem:[%s2648 + $0xd0] sm:$0xff]
        %v2676 = vld [vmem:[%s2648 + $0xd8] sm:$0xff]
        %v2677 = vld [vmem:[%s2648 + $0xe0] sm:$0xff]
        %v2678 = vld [vmem:[%s2648 + $0xe8] sm:$0xff]
        %v2679 = vld [vmem:[%s2648 + $0xf0] sm:$0xff]
        %v2680 = vld [vmem:[%s2648 + $0xf8] sm:$0xff]
        %v2681 = vld [vmem:[%s2648 + $0x100] sm:$0xff]
        %v2682 = vld [vmem:[%s2648 + $0x108] sm:$0xff]
        %v2683 = vld [vmem:[%s2648 + $0x110] sm:$0xff]
        %v2684 = vld [vmem:[%s2648 + $0x118] sm:$0xff]
        %v2685 = vld [vmem:[%s2648 + $0x120] sm:$0xff]
        %v2686 = vld [vmem:[%s2648 + $0x128] sm:$0xff]
        %v2687 = vld [vmem:[%s2648 + $0x130] sm:$0xff]
        %v2688 = vld [vmem:[%s2648 + $0x138] sm:$0xff]
        %v2689 = vld [vmem:[%s2648 + $0x140] sm:$0xff]
        %v2690 = vld [vmem:[%s2648 + $0x148] sm:$0xff]
        %v2691 = vld [vmem:[%s2648 + $0x150] sm:$0xff]
        %v2692 = vld [vmem:[%s2648 + $0x158] sm:$0xff]
        %v2693 = vld [vmem:[%s2648 + $0x160] sm:$0xff]
        %v2694 = vld [vmem:[%s2648 + $0x168] sm:$0xff]
        %v2695 = vld [vmem:[%s2648 + $0x170] sm:$0xff]
        %v2696 = vld [vmem:[%s2648 + $0x178] sm:$0xff]
        %v2697 = vld [vmem:[%s2648 + $0x180] sm:$0xff]
        %v2698 = vld [vmem:[%s2648 + $0x188] sm:$0xff]
        %v2699 = vld [vmem:[%s2648 + $0x190] sm:$0xff]
        %v2700 = vld [vmem:[%s2648 + $0x198] sm:$0xff]
        %v2701 = vld [vmem:[%s2648 + $0x1a0] sm:$0xff]
        %v2702 = vld [vmem:[%s2648 + $0x1a8] sm:$0xff]
        %v2703 = vld [vmem:[%s2648 + $0x1b0] sm:$0xff]
        %v2704 = vld [vmem:[%s2648 + $0x1b8] sm:$0xff]
        %2705 = vmatprep.subr.mxu0 %v2650
        %2706 = vmatpush1.msra.mxu0 %v2649
        %2707 = vmatprep.subr.mxu0 %v2652
        %2708 = vmatpush1.msra.mxu0 %v2651
        %2709 = vmatprep.subr.mxu0 %v2654
        %2710 = vmatpush1.msra.mxu0 %v2653
        %2711 = vmatprep.subr.mxu0 %v2656
        %2712 = vmatpush1.msra.mxu0 %v2655
        %2713 = vmatprep.subr.mxu0 %v2658
        %2714 = vmatpush1.msra.mxu0 %v2657
        %2715 = vmatprep.subr.mxu0 %v2660
        %2716 = vmatpush1.msra.mxu0 %v2659
        %2717 = vmatprep.subr.mxu0 %v2662
        %2718 = vmatpush1.msra.mxu0 %v2661
        %2719 = vmatprep.subr.mxu0 %v2664
        %2720 = vmatpush1.msra.mxu0 %v2663
        %2721 = vmatprep.subr.mxu0 %v2666
        %2722 = vmatpush1.msra.mxu0 %v2665
        %2723 = vmatprep.subr.mxu0 %v2668
        %2724 = vmatpush1.msra.mxu0 %v2667
        %2725 = vmatprep.subr.mxu0 %v2670
        %2726 = vmatpush1.msra.mxu0 %v2669
        %2727 = vmatprep.subr.mxu0 %v2672
        %2728 = vmatpush1.msra.mxu0 %v2671
        %2729 = vmatprep.subr.mxu0 %v2674
        %2730 = vmatpush1.msra.mxu0 %v2673
        %2731 = vmatprep.subr.mxu0 %v2676
        %2732 = vmatpush1.msra.mxu0 %v2675
        %2733 = vmatprep.subr.mxu0 %v2678
        %2734 = vmatpush1.msra.mxu0 %v2677
        %2735 = vmatprep.subr.mxu0 %v2680
        %2736 = vmatpush1.msra.mxu0 %v2679
        %2737 = vmatprep.subr.mxu0 %v2682
        %2738 = vmatpush1.msra.mxu0 %v2681
        %2739 = vmatprep.subr.mxu0 %v2684
        %2740 = vmatpush1.msra.mxu0 %v2683
        %2741 = vmatprep.subr.mxu0 %v2686
        %2742 = vmatpush1.msra.mxu0 %v2685
        %2743 = vmatprep.subr.mxu0 %v2688
        %2744 = vmatpush1.msra.mxu0 %v2687
        %2745 = vmatprep.subr.mxu0 %v2690
        %2746 = vmatpush1.msra.mxu0 %v2689
        %2747 = vmatprep.subr.mxu0 %v2692
        %2748 = vmatpush1.msra.mxu0 %v2691
        %2749 = vmatprep.subr.mxu0 %v2694
        %2750 = vmatpush1.msra.mxu0 %v2693
        %2751 = vmatprep.subr.mxu0 %v2696
        %2752 = vmatpush1.msra.mxu0 %v2695
        %2753 = vmatprep.subr.mxu0 %v2698
        %2754 = vmatpush1.msra.mxu0 %v2697
        %2755 = vmatprep.subr.mxu0 %v2700
        %2756 = vmatpush1.msra.mxu0 %v2699
        %2757 = vmatprep.subr.mxu0 %v2702
        %2758 = vmatpush1.msra.mxu0 %v2701
        %2759 = vmatprep.subr.mxu0 %v2704
        %2760 = vmatpush1.msra.mxu0 %v2703
        %2761 = vmatprep.subr.mxu0 0.0
        %2762 = vmatpush1.msra.mxu0 0.0
        %2763 = vmatprep.subr.mxu0 0.0
        %2764 = vmatpush1.msra.mxu0 0.0
        %2765 = vmatprep.subr.mxu0 0.0
        %2766 = vmatpush1.msra.mxu0 0.0
        %2767 = vmatprep.subr.mxu0 0.0
        %2768 = vmatpush1.msra.mxu0 0.0
        %2769 = vmatprep.mubr.f32.mxu0 %v2311
        %2770 = vmatmul.mubr.f32.gmra.mrb[0].mxu0 %v2040
        %v2771 = vpop.f32.mrb[0].mxu0
        %v2772 = vadd.f32 0.0, %v2771
        %v2773 = vpop.f32.mrb[0].mxu0
        %v2774 = vadd.f32 0.0, %v2773
        %2775 = vdwg.mxu0
        %2776 = vmatprep.subr.mxu0 %v2593
        %2777 = vmatpush1.msra.mxu0 %v2592
        %2778 = vmatprep.subr.mxu0 %v2595
        %2779 = vmatpush1.msra.mxu0 %v2594
        %2780 = vmatprep.subr.mxu0 %v2597
        %2781 = vmatpush1.msra.mxu0 %v2596
        %2782 = vmatprep.subr.mxu0 %v2599
        %2783 = vmatpush1.msra.mxu0 %v2598
        %2784 = vmatprep.subr.mxu0 %v2601
        %2785 = vmatpush1.msra.mxu0 %v2600
        %2786 = vmatprep.subr.mxu0 %v2603
        %2787 = vmatpush1.msra.mxu0 %v2602
        %2788 = vmatprep.subr.mxu0 %v2605
        %2789 = vmatpush1.msra.mxu0 %v2604
        %2790 = vmatprep.subr.mxu0 %v2607
        %2791 = vmatpush1.msra.mxu0 %v2606
        %2792 = vmatprep.subr.mxu0 %v2609
        %2793 = vmatpush1.msra.mxu0 %v2608
        %2794 = vmatprep.subr.mxu0 %v2611
        %2795 = vmatpush1.msra.mxu0 %v2610
        %2796 = vmatprep.subr.mxu0 %v2613
        %2797 = vmatpush1.msra.mxu0 %v2612
        %2798 = vmatprep.subr.mxu0 %v2615
        %2799 = vmatpush1.msra.mxu0 %v2614
        %2800 = vmatprep.subr.mxu0 %v2617
        %2801 = vmatpush1.msra.mxu0 %v2616
        %2802 = vmatprep.subr.mxu0 %v2619
        %2803 = vmatpush1.msra.mxu0 %v2618
        %2804 = vmatprep.subr.mxu0 %v2621
        %2805 = vmatpush1.msra.mxu0 %v2620
        %2806 = vmatprep.subr.mxu0 %v2623
        %2807 = vmatpush1.msra.mxu0 %v2622
        %2808 = vmatprep.subr.mxu0 %v2625
        %2809 = vmatpush1.msra.mxu0 %v2624
        %2810 = vmatprep.subr.mxu0 %v2627
        %2811 = vmatpush1.msra.mxu0 %v2626
        %2812 = vmatprep.subr.mxu0 %v2629
        %2813 = vmatpush1.msra.mxu0 %v2628
        %2814 = vmatprep.subr.mxu0 %v2631
        %2815 = vmatpush1.msra.mxu0 %v2630
        %2816 = vmatprep.subr.mxu0 %v2633
        %2817 = vmatpush1.msra.mxu0 %v2632
        %2818 = vmatprep.subr.mxu0 %v2635
        %2819 = vmatpush1.msra.mxu0 %v2634
        %2820 = vmatprep.subr.mxu0 %v2637
        %2821 = vmatpush1.msra.mxu0 %v2636
        %2822 = vmatprep.subr.mxu0 %v2639
        %2823 = vmatpush1.msra.mxu0 %v2638
        %2824 = vmatprep.subr.mxu0 %v2641
        %2825 = vmatpush1.msra.mxu0 %v2640
        %2826 = vmatprep.subr.mxu0 %v2643
        %2827 = vmatpush1.msra.mxu0 %v2642
        %2828 = vmatprep.subr.mxu0 %v2645
        %2829 = vmatpush1.msra.mxu0 %v2644
        %2830 = vmatprep.subr.mxu0 %v2647
        %2831 = vmatpush1.msra.mxu0 %v2646
        %2832 = vmatprep.subr.mxu0 0.0
        %2833 = vmatpush1.msra.mxu0 0.0
        %2834 = vmatprep.subr.mxu0 0.0
        %2835 = vmatpush1.msra.mxu0 0.0
        %2836 = vmatprep.subr.mxu0 0.0
        %2837 = vmatpush1.msra.mxu0 0.0
        %2838 = vmatprep.subr.mxu0 0.0
        %2839 = vmatpush1.msra.mxu0 0.0
        %2840 = vmatprep.mubr.f32.mxu0 %v2385
        %2841 = vmatmul.mubr.f32.gmra.mrb[0].mxu0 %v1964
        %v2842 = vpop.f32.mrb[0].mxu0
        %v2843 = vadd.f32 %v2772, %v2842
        %v2844 = vpop.f32.mrb[0].mxu0
        %v2845 = vadd.f32 %v2774, %v2844
        %2846 = vdwg.mxu0
        %s2847 = scalar_lea.vmem [#allocation6], 2240
        %v2848 = vld [vmem:[%s2847] sm:$0xff]
        %v2849 = vld [vmem:[%s2847 + $0x8] sm:$0xff]
        %v2850 = vld [vmem:[%s2847 + $0x10] sm:$0xff]
        %v2851 = vld [vmem:[%s2847 + $0x18] sm:$0xff]
        %v2852 = vld [vmem:[%s2847 + $0x20] sm:$0xff]
        %v2853 = vld [vmem:[%s2847 + $0x28] sm:$0xff]
        %v2854 = vld [vmem:[%s2847 + $0x30] sm:$0xff]
        %v2855 = vld [vmem:[%s2847 + $0x38] sm:$0xff]
        %v2856 = vld [vmem:[%s2847 + $0x40] sm:$0xff]
        %v2857 = vld [vmem:[%s2847 + $0x48] sm:$0xff]
        %v2858 = vld [vmem:[%s2847 + $0x50] sm:$0xff]
        %v2859 = vld [vmem:[%s2847 + $0x58] sm:$0xff]
        %v2860 = vld [vmem:[%s2847 + $0x60] sm:$0xff]
        %v2861 = vld [vmem:[%s2847 + $0x68] sm:$0xff]
        %v2862 = vld [vmem:[%s2847 + $0x70] sm:$0xff]
        %v2863 = vld [vmem:[%s2847 + $0x78] sm:$0xff]
        %v2864 = vld [vmem:[%s2847 + $0x80] sm:$0xff]
        %v2865 = vld [vmem:[%s2847 + $0x88] sm:$0xff]
        %v2866 = vld [vmem:[%s2847 + $0x90] sm:$0xff]
        %v2867 = vld [vmem:[%s2847 + $0x98] sm:$0xff]
        %v2868 = vld [vmem:[%s2847 + $0xa0] sm:$0xff]
        %v2869 = vld [vmem:[%s2847 + $0xa8] sm:$0xff]
        %v2870 = vld [vmem:[%s2847 + $0xb0] sm:$0xff]
        %v2871 = vld [vmem:[%s2847 + $0xb8] sm:$0xff]
        %v2872 = vld [vmem:[%s2847 + $0xc0] sm:$0xff]
        %v2873 = vld [vmem:[%s2847 + $0xc8] sm:$0xff]
        %v2874 = vld [vmem:[%s2847 + $0xd0] sm:$0xff]
        %v2875 = vld [vmem:[%s2847 + $0xd8] sm:$0xff]
        %v2876 = vld [vmem:[%s2847 + $0xe0] sm:$0xff]
        %v2877 = vld [vmem:[%s2847 + $0xe8] sm:$0xff]
        %v2878 = vld [vmem:[%s2847 + $0xf0] sm:$0xff]
        %v2879 = vld [vmem:[%s2847 + $0xf8] sm:$0xff]
        %v2880 = vld [vmem:[%s2847 + $0x100] sm:$0xff]
        %v2881 = vld [vmem:[%s2847 + $0x108] sm:$0xff]
        %v2882 = vld [vmem:[%s2847 + $0x110] sm:$0xff]
        %v2883 = vld [vmem:[%s2847 + $0x118] sm:$0xff]
        %v2884 = vld [vmem:[%s2847 + $0x120] sm:$0xff]
        %v2885 = vld [vmem:[%s2847 + $0x128] sm:$0xff]
        %v2886 = vld [vmem:[%s2847 + $0x130] sm:$0xff]
        %v2887 = vld [vmem:[%s2847 + $0x138] sm:$0xff]
        %v2888 = vld [vmem:[%s2847 + $0x140] sm:$0xff]
        %v2889 = vld [vmem:[%s2847 + $0x148] sm:$0xff]
        %v2890 = vld [vmem:[%s2847 + $0x150] sm:$0xff]
        %v2891 = vld [vmem:[%s2847 + $0x158] sm:$0xff]
        %v2892 = vld [vmem:[%s2847 + $0x160] sm:$0xff]
        %v2893 = vld [vmem:[%s2847 + $0x168] sm:$0xff]
        %v2894 = vld [vmem:[%s2847 + $0x170] sm:$0xff]
        %v2895 = vld [vmem:[%s2847 + $0x178] sm:$0xff]
        %v2896 = vld [vmem:[%s2847 + $0x180] sm:$0xff]
        %v2897 = vld [vmem:[%s2847 + $0x188] sm:$0xff]
        %v2898 = vld [vmem:[%s2847 + $0x190] sm:$0xff]
        %v2899 = vld [vmem:[%s2847 + $0x198] sm:$0xff]
        %v2900 = vld [vmem:[%s2847 + $0x1a0] sm:$0xff]
        %v2901 = vld [vmem:[%s2847 + $0x1a8] sm:$0xff]
        %v2902 = vld [vmem:[%s2847 + $0x1b0] sm:$0xff]
        %v2903 = vld [vmem:[%s2847 + $0x1b8] sm:$0xff]
        %2904 = vmatprep.subr.mxu0 %v2849
        %2905 = vmatpush1.msra.mxu0 %v2848
        %2906 = vmatprep.subr.mxu0 %v2851
        %2907 = vmatpush1.msra.mxu0 %v2850
        %2908 = vmatprep.subr.mxu0 %v2853
        %2909 = vmatpush1.msra.mxu0 %v2852
        %2910 = vmatprep.subr.mxu0 %v2855
        %2911 = vmatpush1.msra.mxu0 %v2854
        %2912 = vmatprep.subr.mxu0 %v2857
        %2913 = vmatpush1.msra.mxu0 %v2856
        %2914 = vmatprep.subr.mxu0 %v2859
        %2915 = vmatpush1.msra.mxu0 %v2858
        %2916 = vmatprep.subr.mxu0 %v2861
        %2917 = vmatpush1.msra.mxu0 %v2860
        %2918 = vmatprep.subr.mxu0 %v2863
        %2919 = vmatpush1.msra.mxu0 %v2862
        %2920 = vmatprep.subr.mxu0 %v2865
        %2921 = vmatpush1.msra.mxu0 %v2864
        %2922 = vmatprep.subr.mxu0 %v2867
        %2923 = vmatpush1.msra.mxu0 %v2866
        %2924 = vmatprep.subr.mxu0 %v2869
        %2925 = vmatpush1.msra.mxu0 %v2868
        %2926 = vmatprep.subr.mxu0 %v2871
        %2927 = vmatpush1.msra.mxu0 %v2870
        %2928 = vmatprep.subr.mxu0 %v2873
        %2929 = vmatpush1.msra.mxu0 %v2872
        %2930 = vmatprep.subr.mxu0 %v2875
        %2931 = vmatpush1.msra.mxu0 %v2874
        %2932 = vmatprep.subr.mxu0 %v2877
        %2933 = vmatpush1.msra.mxu0 %v2876
        %2934 = vmatprep.subr.mxu0 %v2879
        %2935 = vmatpush1.msra.mxu0 %v2878
        %2936 = vmatprep.subr.mxu0 %v2881
        %2937 = vmatpush1.msra.mxu0 %v2880
        %2938 = vmatprep.subr.mxu0 %v2883
        %2939 = vmatpush1.msra.mxu0 %v2882
        %2940 = vmatprep.subr.mxu0 %v2885
        %2941 = vmatpush1.msra.mxu0 %v2884
        %2942 = vmatprep.subr.mxu0 %v2887
        %2943 = vmatpush1.msra.mxu0 %v2886
        %2944 = vmatprep.subr.mxu0 %v2889
        %2945 = vmatpush1.msra.mxu0 %v2888
        %2946 = vmatprep.subr.mxu0 %v2891
        %2947 = vmatpush1.msra.mxu0 %v2890
        %2948 = vmatprep.subr.mxu0 %v2893
        %2949 = vmatpush1.msra.mxu0 %v2892
        %2950 = vmatprep.subr.mxu0 %v2895
        %2951 = vmatpush1.msra.mxu0 %v2894
        %2952 = vmatprep.subr.mxu0 %v2897
        %2953 = vmatpush1.msra.mxu0 %v2896
        %2954 = vmatprep.subr.mxu0 %v2899
        %2955 = vmatpush1.msra.mxu0 %v2898
        %2956 = vmatprep.subr.mxu0 %v2901
        %2957 = vmatpush1.msra.mxu0 %v2900
        %2958 = vmatprep.subr.mxu0 %v2903
        %2959 = vmatpush1.msra.mxu0 %v2902
        %2960 = vmatprep.subr.mxu0 0.0
        %2961 = vmatpush1.msra.mxu0 0.0
        %2962 = vmatprep.subr.mxu0 0.0
        %2963 = vmatpush1.msra.mxu0 0.0
        %2964 = vmatprep.subr.mxu0 0.0
        %2965 = vmatpush1.msra.mxu0 0.0
        %2966 = vmatprep.subr.mxu0 0.0
        %2967 = vmatpush1.msra.mxu0 0.0
        %2968 = vmatprep.mubr.f32.mxu0 %v2516
        %2969 = vmatmul.mubr.f32.gmra.mrb[0].mxu0 %v2116
        %v2970 = vpop.f32.mrb[0].mxu0
        %v2971 = vadd.f32 0.0, %v2970
        %v2972 = vpop.f32.mrb[0].mxu0
        %v2973 = vadd.f32 0.0, %v2972
        %2974 = vdwg.mxu0
        %v2975 = vadd.f32 %v2843, %v2971
        %v2976 = vadd.f32 %v2845, %v2973
        %v2977 = vmax.f32 %v2589, %v2975
        %v2978 = vmax.f32 %v2590, %v2976
        %2979 = vmatprep.subr.mxu0 %v2254
        %2980 = vmatpush1.msra.mxu0 %v2253
        %2981 = vmatprep.subr.mxu0 %v2256
        %2982 = vmatpush1.msra.mxu0 %v2255
        %2983 = vmatprep.subr.mxu0 %v2258
        %2984 = vmatpush1.msra.mxu0 %v2257
        %2985 = vmatprep.subr.mxu0 %v2260
        %2986 = vmatpush1.msra.mxu0 %v2259
        %2987 = vmatprep.subr.mxu0 %v2262
        %2988 = vmatpush1.msra.mxu0 %v2261
        %2989 = vmatprep.subr.mxu0 %v2264
        %2990 = vmatpush1.msra.mxu0 %v2263
        %2991 = vmatprep.subr.mxu0 %v2266
        %2992 = vmatpush1.msra.mxu0 %v2265
        %2993 = vmatprep.subr.mxu0 %v2268
        %2994 = vmatpush1.msra.mxu0 %v2267
        %2995 = vmatprep.subr.mxu0 %v2270
        %2996 = vmatpush1.msra.mxu0 %v2269
        %2997 = vmatprep.subr.mxu0 %v2272
        %2998 = vmatpush1.msra.mxu0 %v2271
        %2999 = vmatprep.subr.mxu0 %v2274
        %3000 = vmatpush1.msra.mxu0 %v2273
        %3001 = vmatprep.subr.mxu0 %v2276
        %3002 = vmatpush1.msra.mxu0 %v2275
        %3003 = vmatprep.subr.mxu0 %v2278
        %3004 = vmatpush1.msra.mxu0 %v2277
        %3005 = vmatprep.subr.mxu0 %v2280
        %3006 = vmatpush1.msra.mxu0 %v2279
        %3007 = vmatprep.subr.mxu0 %v2282
        %3008 = vmatpush1.msra.mxu0 %v2281
        %3009 = vmatprep.subr.mxu0 %v2284
        %3010 = vmatpush1.msra.mxu0 %v2283
        %3011 = vmatprep.subr.mxu0 %v2286
        %3012 = vmatpush1.msra.mxu0 %v2285
        %3013 = vmatprep.subr.mxu0 %v2288
        %3014 = vmatpush1.msra.mxu0 %v2287
        %3015 = vmatprep.subr.mxu0 %v2290
        %3016 = vmatpush1.msra.mxu0 %v2289
        %3017 = vmatprep.subr.mxu0 %v2292
        %3018 = vmatpush1.msra.mxu0 %v2291
        %3019 = vmatprep.subr.mxu0 %v2294
        %3020 = vmatpush1.msra.mxu0 %v2293
        %3021 = vmatprep.subr.mxu0 %v2296
        %3022 = vmatpush1.msra.mxu0 %v2295
        %3023 = vmatprep.subr.mxu0 %v2298
        %3024 = vmatpush1.msra.mxu0 %v2297
        %3025 = vmatprep.subr.mxu0 %v2300
        %3026 = vmatpush1.msra.mxu0 %v2299
        %3027 = vmatprep.subr.mxu0 %v2302
        %3028 = vmatpush1.msra.mxu0 %v2301
        %3029 = vmatprep.subr.mxu0 %v2304
        %3030 = vmatpush1.msra.mxu0 %v2303
        %3031 = vmatprep.subr.mxu0 %v2306
        %3032 = vmatpush1.msra.mxu0 %v2305
        %3033 = vmatprep.subr.mxu0 %v2308
        %3034 = vmatpush1.msra.mxu0 %v2307
        %3035 = vmatprep.subr.mxu0 0.0
        %3036 = vmatpush1.msra.mxu0 0.0
        %3037 = vmatprep.subr.mxu0 0.0
        %3038 = vmatpush1.msra.mxu0 0.0
        %3039 = vmatprep.subr.mxu0 0.0
        %3040 = vmatpush1.msra.mxu0 0.0
        %3041 = vmatprep.subr.mxu0 0.0
        %3042 = vmatpush1.msra.mxu0 0.0
        %3043 = vmatprep.mubr.f32.mxu0 %v2516
        %3044 = vmatmul.mubr.f32.gmra.mrb[0].mxu0 %v2116
        %v3045 = vpop.f32.mrb[0].mxu0
        %v3046 = vadd.f32 0.0, %v3045
        %v3047 = vpop.f32.mrb[0].mxu0
        %v3048 = vadd.f32 0.0, %v3047
        %3049 = vdwg.mxu0
        %3050 = vmatprep.subr.mxu0 %v2197
        %3051 = vmatpush1.msra.mxu0 %v2196
        %3052 = vmatprep.subr.mxu0 %v2199
        %3053 = vmatpush1.msra.mxu0 %v2198
        %3054 = vmatprep.subr.mxu0 %v2201
        %3055 = vmatpush1.msra.mxu0 %v2200
        %3056 = vmatprep.subr.mxu0 %v2203
        %3057 = vmatpush1.msra.mxu0 %v2202
        %3058 = vmatprep.subr.mxu0 %v2205
        %3059 = vmatpush1.msra.mxu0 %v2204
        %3060 = vmatprep.subr.mxu0 %v2207
        %3061 = vmatpush1.msra.mxu0 %v2206
        %3062 = vmatprep.subr.mxu0 %v2209
        %3063 = vmatpush1.msra.mxu0 %v2208
        %3064 = vmatprep.subr.mxu0 %v2211
        %3065 = vmatpush1.msra.mxu0 %v2210
        %3066 = vmatprep.subr.mxu0 %v2213
        %3067 = vmatpush1.msra.mxu0 %v2212
        %3068 = vmatprep.subr.mxu0 %v2215
        %3069 = vmatpush1.msra.mxu0 %v2214
        %3070 = vmatprep.subr.mxu0 %v2217
        %3071 = vmatpush1.msra.mxu0 %v2216
        %3072 = vmatprep.subr.mxu0 %v2219
        %3073 = vmatpush1.msra.mxu0 %v2218
        %3074 = vmatprep.subr.mxu0 %v2221
        %3075 = vmatpush1.msra.mxu0 %v2220
        %3076 = vmatprep.subr.mxu0 %v2223
        %3077 = vmatpush1.msra.mxu0 %v2222
        %3078 = vmatprep.subr.mxu0 %v2225
        %3079 = vmatpush1.msra.mxu0 %v2224
        %3080 = vmatprep.subr.mxu0 %v2227
        %3081 = vmatpush1.msra.mxu0 %v2226
        %3082 = vmatprep.subr.mxu0 %v2229
        %3083 = vmatpush1.msra.mxu0 %v2228
        %3084 = vmatprep.subr.mxu0 %v2231
        %3085 = vmatpush1.msra.mxu0 %v2230
        %3086 = vmatprep.subr.mxu0 %v2233
        %3087 = vmatpush1.msra.mxu0 %v2232
        %3088 = vmatprep.subr.mxu0 %v2235
        %3089 = vmatpush1.msra.mxu0 %v2234
        %3090 = vmatprep.subr.mxu0 %v2237
        %3091 = vmatpush1.msra.mxu0 %v2236
        %3092 = vmatprep.subr.mxu0 %v2239
        %3093 = vmatpush1.msra.mxu0 %v2238
        %3094 = vmatprep.subr.mxu0 %v2241
        %3095 = vmatpush1.msra.mxu0 %v2240
        %3096 = vmatprep.subr.mxu0 %v2243
        %3097 = vmatpush1.msra.mxu0 %v2242
        %3098 = vmatprep.subr.mxu0 %v2245
        %3099 = vmatpush1.msra.mxu0 %v2244
        %3100 = vmatprep.subr.mxu0 %v2247
        %3101 = vmatpush1.msra.mxu0 %v2246
        %3102 = vmatprep.subr.mxu0 %v2249
        %3103 = vmatpush1.msra.mxu0 %v2248
        %3104 = vmatprep.subr.mxu0 %v2251
        %3105 = vmatpush1.msra.mxu0 %v2250
        %3106 = vmatprep.subr.mxu0 0.0
        %3107 = vmatpush1.msra.mxu0 0.0
        %3108 = vmatprep.subr.mxu0 0.0
        %3109 = vmatpush1.msra.mxu0 0.0
        %3110 = vmatprep.subr.mxu0 0.0
        %3111 = vmatpush1.msra.mxu0 0.0
        %3112 = vmatprep.subr.mxu0 0.0
        %3113 = vmatpush1.msra.mxu0 0.0
        %3114 = vmatprep.mubr.f32.mxu0 %v2311
        %3115 = vmatmul.mubr.f32.gmra.mrb[0].mxu0 %v2040
        %v3116 = vpop.f32.mrb[0].mxu0
        %v3117 = vadd.f32 %v3046, %v3116
        %v3118 = vpop.f32.mrb[0].mxu0
        %v3119 = vadd.f32 %v3048, %v3118
        %3120 = vdwg.mxu0
        %v3122 = vsel %vm2309, %v2194, 0
        %3124 = vmatprep.subr.mxu0 %v2460
        %3125 = vmatpush1.msra.mxu0 %v2459
        %3126 = vmatprep.subr.mxu0 %v2462
        %3127 = vmatpush1.msra.mxu0 %v2461
        %3128 = vmatprep.subr.mxu0 %v2464
        %3129 = vmatpush1.msra.mxu0 %v2463
        %3130 = vmatprep.subr.mxu0 %v2466
        %3131 = vmatpush1.msra.mxu0 %v2465
        %3132 = vmatprep.subr.mxu0 %v2468
        %3133 = vmatpush1.msra.mxu0 %v2467
        %3134 = vmatprep.subr.mxu0 %v2470
        %3135 = vmatpush1.msra.mxu0 %v2469
        %3136 = vmatprep.subr.mxu0 %v2472
        %3137 = vmatpush1.msra.mxu0 %v2471
        %3138 = vmatprep.subr.mxu0 %v2474
        %3139 = vmatpush1.msra.mxu0 %v2473
        %3140 = vmatprep.subr.mxu0 %v2476
        %3141 = vmatpush1.msra.mxu0 %v2475
        %3142 = vmatprep.subr.mxu0 %v2478
        %3143 = vmatpush1.msra.mxu0 %v2477
        %3144 = vmatprep.subr.mxu0 %v2480
        %3145 = vmatpush1.msra.mxu0 %v2479
        %3146 = vmatprep.subr.mxu0 %v2482
        %3147 = vmatpush1.msra.mxu0 %v2481
        %3148 = vmatprep.subr.mxu0 %v2484
        %3149 = vmatpush1.msra.mxu0 %v2483
        %3150 = vmatprep.subr.mxu0 %v2486
        %3151 = vmatpush1.msra.mxu0 %v2485
        %3152 = vmatprep.subr.mxu0 %v2488
        %3153 = vmatpush1.msra.mxu0 %v2487
        %3154 = vmatprep.subr.mxu0 %v2490
        %3155 = vmatpush1.msra.mxu0 %v2489
        %3156 = vmatprep.subr.mxu0 %v2492
        %3157 = vmatpush1.msra.mxu0 %v2491
        %3158 = vmatprep.subr.mxu0 %v2494
        %3159 = vmatpush1.msra.mxu0 %v2493
        %3160 = vmatprep.subr.mxu0 %v2496
        %3161 = vmatpush1.msra.mxu0 %v2495
        %3162 = vmatprep.subr.mxu0 %v2498
        %3163 = vmatpush1.msra.mxu0 %v2497
        %3164 = vmatprep.subr.mxu0 %v2500
        %3165 = vmatpush1.msra.mxu0 %v2499
        %3166 = vmatprep.subr.mxu0 %v2502
        %3167 = vmatpush1.msra.mxu0 %v2501
        %3168 = vmatprep.subr.mxu0 %v2504
        %3169 = vmatpush1.msra.mxu0 %v2503
        %3170 = vmatprep.subr.mxu0 %v2506
        %3171 = vmatpush1.msra.mxu0 %v2505
        %3172 = vmatprep.subr.mxu0 %v2508
        %3173 = vmatpush1.msra.mxu0 %v2507
        %3174 = vmatprep.subr.mxu0 %v2510
        %3175 = vmatpush1.msra.mxu0 %v2509
        %3176 = vmatprep.subr.mxu0 %v2512
        %3177 = vmatpush1.msra.mxu0 %v2511
        %3178 = vmatprep.subr.mxu0 %v2514
        %3179 = vmatpush1.msra.mxu0 %v2513
        %3180 = vmatprep.subr.mxu0 0.0
        %3181 = vmatpush1.msra.mxu0 0.0
        %3182 = vmatprep.subr.mxu0 0.0
        %3183 = vmatpush1.msra.mxu0 0.0
        %3184 = vmatprep.subr.mxu0 0.0
        %3185 = vmatpush1.msra.mxu0 0.0
        %3186 = vmatprep.subr.mxu0 0.0
        %3187 = vmatpush1.msra.mxu0 0.0
        %3188 = vmatprep.mubr.f32.mxu0 %v3122
        %3189 = vmatmul.mubr.f32.gmra.mrb[0].mxu0 %v2192
        %v3190 = vpop.f32.mrb[0].mxu0
        %v3191 = vadd.f32 0.0, %v3190
        %v3192 = vpop.f32.mrb[0].mxu0
        %v3193 = vadd.f32 0.0, %v3192
        %3194 = vdwg.mxu0
        %v3195 = vadd.f32 %v3117, %v3191
        %v3196 = vadd.f32 %v3119, %v3193
        %v3197 = vmax.f32 %v2977, %v3195
        %v3198 = vmax.f32 %v2978, %v3196
        %3199 = vmatprep.subr.mxu0 %v2650
        %3200 = vmatpush1.msra.mxu0 %v2649
        %3201 = vmatprep.subr.mxu0 %v2652
        %3202 = vmatpush1.msra.mxu0 %v2651
        %3203 = vmatprep.subr.mxu0 %v2654
        %3204 = vmatpush1.msra.mxu0 %v2653
        %3205 = vmatprep.subr.mxu0 %v2656
        %3206 = vmatpush1.msra.mxu0 %v2655
        %3207 = vmatprep.subr.mxu0 %v2658
        %3208 = vmatpush1.msra.mxu0 %v2657
        %3209 = vmatprep.subr.mxu0 %v2660
        %3210 = vmatpush1.msra.mxu0 %v2659
        %3211 = vmatprep.subr.mxu0 %v2662
        %3212 = vmatpush1.msra.mxu0 %v2661
        %3213 = vmatprep.subr.mxu0 %v2664
        %3214 = vmatpush1.msra.mxu0 %v2663
        %3215 = vmatprep.subr.mxu0 %v2666
        %3216 = vmatpush1.msra.mxu0 %v2665
        %3217 = vmatprep.subr.mxu0 %v2668
        %3218 = vmatpush1.msra.mxu0 %v2667
        %3219 = vmatprep.subr.mxu0 %v2670
        %3220 = vmatpush1.msra.mxu0 %v2669
        %3221 = vmatprep.subr.mxu0 %v2672
        %3222 = vmatpush1.msra.mxu0 %v2671
        %3223 = vmatprep.subr.mxu0 %v2674
        %3224 = vmatpush1.msra.mxu0 %v2673
        %3225 = vmatprep.subr.mxu0 %v2676
        %3226 = vmatpush1.msra.mxu0 %v2675
        %3227 = vmatprep.subr.mxu0 %v2678
        %3228 = vmatpush1.msra.mxu0 %v2677
        %3229 = vmatprep.subr.mxu0 %v2680
        %3230 = vmatpush1.msra.mxu0 %v2679
        %3231 = vmatprep.subr.mxu0 %v2682
        %3232 = vmatpush1.msra.mxu0 %v2681
        %3233 = vmatprep.subr.mxu0 %v2684
        %3234 = vmatpush1.msra.mxu0 %v2683
        %3235 = vmatprep.subr.mxu0 %v2686
        %3236 = vmatpush1.msra.mxu0 %v2685
        %3237 = vmatprep.subr.mxu0 %v2688
        %3238 = vmatpush1.msra.mxu0 %v2687
        %3239 = vmatprep.subr.mxu0 %v2690
        %3240 = vmatpush1.msra.mxu0 %v2689
        %3241 = vmatprep.subr.mxu0 %v2692
        %3242 = vmatpush1.msra.mxu0 %v2691
        %3243 = vmatprep.subr.mxu0 %v2694
        %3244 = vmatpush1.msra.mxu0 %v2693
        %3245 = vmatprep.subr.mxu0 %v2696
        %3246 = vmatpush1.msra.mxu0 %v2695
        %3247 = vmatprep.subr.mxu0 %v2698
        %3248 = vmatpush1.msra.mxu0 %v2697
        %3249 = vmatprep.subr.mxu0 %v2700
        %3250 = vmatpush1.msra.mxu0 %v2699
        %3251 = vmatprep.subr.mxu0 %v2702
        %3252 = vmatpush1.msra.mxu0 %v2701
        %3253 = vmatprep.subr.mxu0 %v2704
        %3254 = vmatpush1.msra.mxu0 %v2703
        %3255 = vmatprep.subr.mxu0 0.0
        %3256 = vmatpush1.msra.mxu0 0.0
        %3257 = vmatprep.subr.mxu0 0.0
        %3258 = vmatpush1.msra.mxu0 0.0
        %3259 = vmatprep.subr.mxu0 0.0
        %3260 = vmatpush1.msra.mxu0 0.0
        %3261 = vmatprep.subr.mxu0 0.0
        %3262 = vmatpush1.msra.mxu0 0.0
        %3263 = vmatprep.mubr.f32.mxu0 %v2516
        %3264 = vmatmul.mubr.f32.gmra.mrb[0].mxu0 %v2116
        %v3265 = vpop.f32.mrb[0].mxu0
        %v3266 = vadd.f32 0.0, %v3265
        %v3267 = vpop.f32.mrb[0].mxu0
        %v3268 = vadd.f32 0.0, %v3267
        %3269 = vdwg.mxu0
        %3270 = vmatprep.subr.mxu0 %v2593
        %3271 = vmatpush1.msra.mxu0 %v2592
        %3272 = vmatprep.subr.mxu0 %v2595
        %3273 = vmatpush1.msra.mxu0 %v2594
        %3274 = vmatprep.subr.mxu0 %v2597
        %3275 = vmatpush1.msra.mxu0 %v2596
        %3276 = vmatprep.subr.mxu0 %v2599
        %3277 = vmatpush1.msra.mxu0 %v2598
        %3278 = vmatprep.subr.mxu0 %v2601
        %3279 = vmatpush1.msra.mxu0 %v2600
        %3280 = vmatprep.subr.mxu0 %v2603
        %3281 = vmatpush1.msra.mxu0 %v2602
        %3282 = vmatprep.subr.mxu0 %v2605
        %3283 = vmatpush1.msra.mxu0 %v2604
        %3284 = vmatprep.subr.mxu0 %v2607
        %3285 = vmatpush1.msra.mxu0 %v2606
        %3286 = vmatprep.subr.mxu0 %v2609
        %3287 = vmatpush1.msra.mxu0 %v2608
        %3288 = vmatprep.subr.mxu0 %v2611
        %3289 = vmatpush1.msra.mxu0 %v2610
        %3290 = vmatprep.subr.mxu0 %v2613
        %3291 = vmatpush1.msra.mxu0 %v2612
        %3292 = vmatprep.subr.mxu0 %v2615
        %3293 = vmatpush1.msra.mxu0 %v2614
        %3294 = vmatprep.subr.mxu0 %v2617
        %3295 = vmatpush1.msra.mxu0 %v2616
        %3296 = vmatprep.subr.mxu0 %v2619
        %3297 = vmatpush1.msra.mxu0 %v2618
        %3298 = vmatprep.subr.mxu0 %v2621
        %3299 = vmatpush1.msra.mxu0 %v2620
        %3300 = vmatprep.subr.mxu0 %v2623
        %3301 = vmatpush1.msra.mxu0 %v2622
        %3302 = vmatprep.subr.mxu0 %v2625
        %3303 = vmatpush1.msra.mxu0 %v2624
        %3304 = vmatprep.subr.mxu0 %v2627
        %3305 = vmatpush1.msra.mxu0 %v2626
        %3306 = vmatprep.subr.mxu0 %v2629
        %3307 = vmatpush1.msra.mxu0 %v2628
        %3308 = vmatprep.subr.mxu0 %v2631
        %3309 = vmatpush1.msra.mxu0 %v2630
        %3310 = vmatprep.subr.mxu0 %v2633
        %3311 = vmatpush1.msra.mxu0 %v2632
        %3312 = vmatprep.subr.mxu0 %v2635
        %3313 = vmatpush1.msra.mxu0 %v2634
        %3314 = vmatprep.subr.mxu0 %v2637
        %3315 = vmatpush1.msra.mxu0 %v2636
        %3316 = vmatprep.subr.mxu0 %v2639
        %3317 = vmatpush1.msra.mxu0 %v2638
        %3318 = vmatprep.subr.mxu0 %v2641
        %3319 = vmatpush1.msra.mxu0 %v2640
        %3320 = vmatprep.subr.mxu0 %v2643
        %3321 = vmatpush1.msra.mxu0 %v2642
        %3322 = vmatprep.subr.mxu0 %v2645
        %3323 = vmatpush1.msra.mxu0 %v2644
        %3324 = vmatprep.subr.mxu0 %v2647
        %3325 = vmatpush1.msra.mxu0 %v2646
        %3326 = vmatprep.subr.mxu0 0.0
        %3327 = vmatpush1.msra.mxu0 0.0
        %3328 = vmatprep.subr.mxu0 0.0
        %3329 = vmatpush1.msra.mxu0 0.0
        %3330 = vmatprep.subr.mxu0 0.0
        %3331 = vmatpush1.msra.mxu0 0.0
        %3332 = vmatprep.subr.mxu0 0.0
        %3333 = vmatpush1.msra.mxu0 0.0
        %3334 = vmatprep.mubr.f32.mxu0 %v2311
        %3335 = vmatmul.mubr.f32.gmra.mrb[0].mxu0 %v2040
        %v3336 = vpop.f32.mrb[0].mxu0
        %v3337 = vadd.f32 %v3266, %v3336
        %v3338 = vpop.f32.mrb[0].mxu0
        %v3339 = vadd.f32 %v3268, %v3338
        %3340 = vdwg.mxu0
        %3341 = vmatprep.subr.mxu0 %v2849
        %3342 = vmatpush1.msra.mxu0 %v2848
        %3343 = vmatprep.subr.mxu0 %v2851
        %3344 = vmatpush1.msra.mxu0 %v2850
        %3345 = vmatprep.subr.mxu0 %v2853
        %3346 = vmatpush1.msra.mxu0 %v2852
        %3347 = vmatprep.subr.mxu0 %v2855
        %3348 = vmatpush1.msra.mxu0 %v2854
        %3349 = vmatprep.subr.mxu0 %v2857
        %3350 = vmatpush1.msra.mxu0 %v2856
        %3351 = vmatprep.subr.mxu0 %v2859
        %3352 = vmatpush1.msra.mxu0 %v2858
        %3353 = vmatprep.subr.mxu0 %v2861
        %3354 = vmatpush1.msra.mxu0 %v2860
        %3355 = vmatprep.subr.mxu0 %v2863
        %3356 = vmatpush1.msra.mxu0 %v2862
        %3357 = vmatprep.subr.mxu0 %v2865
        %3358 = vmatpush1.msra.mxu0 %v2864
        %3359 = vmatprep.subr.mxu0 %v2867
        %3360 = vmatpush1.msra.mxu0 %v2866
        %3361 = vmatprep.subr.mxu0 %v2869
        %3362 = vmatpush1.msra.mxu0 %v2868
        %3363 = vmatprep.subr.mxu0 %v2871
        %3364 = vmatpush1.msra.mxu0 %v2870
        %3365 = vmatprep.subr.mxu0 %v2873
        %3366 = vmatpush1.msra.mxu0 %v2872
        %3367 = vmatprep.subr.mxu0 %v2875
        %3368 = vmatpush1.msra.mxu0 %v2874
        %3369 = vmatprep.subr.mxu0 %v2877
        %3370 = vmatpush1.msra.mxu0 %v2876
        %3371 = vmatprep.subr.mxu0 %v2879
        %3372 = vmatpush1.msra.mxu0 %v2878
        %3373 = vmatprep.subr.mxu0 %v2881
        %3374 = vmatpush1.msra.mxu0 %v2880
        %3375 = vmatprep.subr.mxu0 %v2883
        %3376 = vmatpush1.msra.mxu0 %v2882
        %3377 = vmatprep.subr.mxu0 %v2885
        %3378 = vmatpush1.msra.mxu0 %v2884
        %3379 = vmatprep.subr.mxu0 %v2887
        %3380 = vmatpush1.msra.mxu0 %v2886
        %3381 = vmatprep.subr.mxu0 %v2889
        %3382 = vmatpush1.msra.mxu0 %v2888
        %3383 = vmatprep.subr.mxu0 %v2891
        %3384 = vmatpush1.msra.mxu0 %v2890
        %3385 = vmatprep.subr.mxu0 %v2893
        %3386 = vmatpush1.msra.mxu0 %v2892
        %3387 = vmatprep.subr.mxu0 %v2895
        %3388 = vmatpush1.msra.mxu0 %v2894
        %3389 = vmatprep.subr.mxu0 %v2897
        %3390 = vmatpush1.msra.mxu0 %v2896
        %3391 = vmatprep.subr.mxu0 %v2899
        %3392 = vmatpush1.msra.mxu0 %v2898
        %3393 = vmatprep.subr.mxu0 %v2901
        %3394 = vmatpush1.msra.mxu0 %v2900
        %3395 = vmatprep.subr.mxu0 %v2903
        %3396 = vmatpush1.msra.mxu0 %v2902
        %3397 = vmatprep.subr.mxu0 0.0
        %3398 = vmatpush1.msra.mxu0 0.0
        %3399 = vmatprep.subr.mxu0 0.0
        %3400 = vmatpush1.msra.mxu0 0.0
        %3401 = vmatprep.subr.mxu0 0.0
        %3402 = vmatpush1.msra.mxu0 0.0
        %3403 = vmatprep.subr.mxu0 0.0
        %3404 = vmatpush1.msra.mxu0 0.0
        %3405 = vmatprep.mubr.f32.mxu0 %v3122
        %3406 = vmatmul.mubr.f32.gmra.mrb[0].mxu0 %v2192
        %v3407 = vpop.f32.mrb[0].mxu0
        %v3408 = vadd.f32 0.0, %v3407
        %v3409 = vpop.f32.mrb[0].mxu0
        %v3410 = vadd.f32 0.0, %v3409
        %3411 = vdwg.mxu0
        %v3412 = vadd.f32 %v3337, %v3408
        %v3413 = vadd.f32 %v3339, %v3410
        %v3414 = vmax.f32 %v3197, %v3412
        %v3415 = vmax.f32 %v3198, %v3413
        %v3416 = vld [vmem:[#allocation7] sm:$0x3]
        %v3418 = vlaneseq
        %v3419 = vshrl.u32 %v3418, 7
        %v3420 = vsub.s32 0, %v3419
        %v3421 = vrot.slane %v3416, %v3420
        %v3422 = vlaneseq
        %v3423 = vshrl.u32 %v3422, 7
        %v3424 = vsub.s32 1, %v3423
        %v3425 = vrot.slane %v3416, %v3424
        %v3428 = vadd.f32 %v3414, %v3421
        %v3429 = vadd.f32 %v3415, %v3425
        %v3430 = vmax.f32 %v3428, 0.0
        %v3431 = vmax.f32 %v3429, 0.0
        %v3432 = vld [vmem:[#allocation9] sm:$0x7f]
        %vm3433 = vcmask 56320
        %v3435 = vsel %vm3433, %v3432, 0
        %vm3437 = vcmask 1046528
        %v3439 = vsel %vm3437, %v3430, 0
        %v3442 = vsel %vm3437, %v3431, 0
        %3444 = vmatprep.subr.mxu0 %v3442
        %3445 = vmatpush1.msra.mxu0 %v3439
        %3446 = vmatprep.subr.mxu0 0.0
        %3447 = vmatpush1.msra.mxu0 0.0
        %3448 = vmatprep.subr.mxu0 0.0
        %3449 = vmatpush1.msra.mxu0 0.0
        %3450 = vmatprep.subr.mxu0 0.0
        %3451 = vmatpush1.msra.mxu0 0.0
        %3452 = vmatprep.subr.mxu0 0.0
        %3453 = vmatpush1.msra.mxu0 0.0
        %3454 = vmatprep.subr.mxu0 0.0
        %3455 = vmatpush1.msra.mxu0 0.0
        %3456 = vmatprep.subr.mxu0 0.0
        %3457 = vmatpush1.msra.mxu0 0.0
        %3458 = vmatprep.subr.mxu0 0.0
        %3459 = vmatpush1.msra.mxu0 0.0
        %3460 = vmatprep.subr.mxu0 0.0
        %3461 = vmatpush1.msra.mxu0 0.0
        %3462 = vmatprep.subr.mxu0 0.0
        %3463 = vmatpush1.msra.mxu0 0.0
        %3464 = vmatprep.subr.mxu0 0.0
        %3465 = vmatpush1.msra.mxu0 0.0
        %3466 = vmatprep.subr.mxu0 0.0
        %3467 = vmatpush1.msra.mxu0 0.0
        %3468 = vmatprep.subr.mxu0 0.0
        %3469 = vmatpush1.msra.mxu0 0.0
        %3470 = vmatprep.subr.mxu0 0.0
        %3471 = vmatpush1.msra.mxu0 0.0
        %3472 = vmatprep.subr.mxu0 0.0
        %3473 = vmatpush1.msra.mxu0 0.0
        %3474 = vmatprep.subr.mxu0 0.0
        %3475 = vmatpush1.msra.mxu0 0.0
        %3476 = vmatprep.subr.mxu0 0.0
        %3477 = vmatpush1.msra.mxu0 0.0
        %3478 = vmatprep.subr.mxu0 0.0
        %3479 = vmatpush1.msra.mxu0 0.0
        %3480 = vmatprep.subr.mxu0 0.0
        %3481 = vmatpush1.msra.mxu0 0.0
        %3482 = vmatprep.subr.mxu0 0.0
        %3483 = vmatpush1.msra.mxu0 0.0
        %3484 = vmatprep.subr.mxu0 0.0
        %3485 = vmatpush1.msra.mxu0 0.0
        %3486 = vmatprep.subr.mxu0 0.0
        %3487 = vmatpush1.msra.mxu0 0.0
        %3488 = vmatprep.subr.mxu0 0.0
        %3489 = vmatpush1.msra.mxu0 0.0
        %3490 = vmatprep.subr.mxu0 0.0
        %3491 = vmatpush1.msra.mxu0 0.0
        %3492 = vmatprep.subr.mxu0 0.0
        %3493 = vmatpush1.msra.mxu0 0.0
        %3494 = vmatprep.subr.mxu0 0.0
        %3495 = vmatpush1.msra.mxu0 0.0
        %3496 = vmatprep.subr.mxu0 0.0
        %3497 = vmatpush1.msra.mxu0 0.0
        %3498 = vmatprep.subr.mxu0 0.0
        %3499 = vmatpush1.msra.mxu0 0.0
        %3500 = vmatprep.subr.mxu0 0.0
        %3501 = vmatpush1.msra.mxu0 0.0
        %3502 = vmatprep.subr.mxu0 0.0
        %3503 = vmatpush1.msra.mxu0 0.0
        %3504 = vmatprep.subr.mxu0 0.0
        %3505 = vmatpush1.msra.mxu0 0.0
        %3506 = vmatprep.subr.mxu0 0.0
        %3507 = vmatpush1.msra.mxu0 0.0
        %3508 = vmatprep.mubr.f32.mxu0 0.0
        %3509 = vmatmul.mubr.f32.gmra.mrb[0].mxu0 %v3435
        %v3510 = vpop.f32.mrb[0].mxu0
        %v3511 = vadd.f32 0.0, %v3510
        %v3512 = vpop.f32.mrb[0].mxu0
        %v3513 = vadd.f32 0.0, %v3512
        %3514 = vdwg.mxu0
        %v3515 = vld [vmem:[#allocation10] sm:$0xff]
        %v3516 = vld [vmem:[#allocation10 + $0x8] sm:$0xff]
        %v3517 = vld [vmem:[#allocation10 + $0x10] sm:$0xff]
        %v3518 = vld [vmem:[#allocation10 + $0x18] sm:$0xff]
        %v3519 = vld [vmem:[#allocation10 + $0x20] sm:$0xff]
        %v3520 = vld [vmem:[#allocation10 + $0x28] sm:$0xff]
        %v3521 = vld [vmem:[#allocation10 + $0x30] sm:$0xff]
        %v3522 = vld [vmem:[#allocation10 + $0x38] sm:$0xff]
        %v3523 = vld [vmem:[#allocation10 + $0x40] sm:$0xff]
        %v3524 = vld [vmem:[#allocation10 + $0x48] sm:$0xff]
        %v3525 = vld [vmem:[#allocation10 + $0x50] sm:$0xff]
        %v3526 = vld [vmem:[#allocation10 + $0x58] sm:$0xff]
        %v3527 = vld [vmem:[#allocation10 + $0x60] sm:$0xff]
        %v3528 = vld [vmem:[#allocation10 + $0x68] sm:$0xff]
        %v3529 = vld [vmem:[#allocation10 + $0x70] sm:$0xff]
        %v3530 = vld [vmem:[#allocation10 + $0x78] sm:$0xff]
        %v3531 = vld [vmem:[#allocation10 + $0x80] sm:$0xff]
        %v3532 = vld [vmem:[#allocation10 + $0x88] sm:$0xff]
        %v3533 = vld [vmem:[#allocation10 + $0x90] sm:$0xff]
        %v3534 = vld [vmem:[#allocation10 + $0x98] sm:$0xff]
        %v3535 = vld [vmem:[#allocation10 + $0xa0] sm:$0xff]
        %v3536 = vld [vmem:[#allocation10 + $0xa8] sm:$0xff]
        %v3537 = vld [vmem:[#allocation10 + $0xb0] sm:$0xff]
        %v3538 = vld [vmem:[#allocation10 + $0xb8] sm:$0xff]
        %v3539 = vld [vmem:[#allocation10 + $0xc0] sm:$0xff]
        %v3540 = vld [vmem:[#allocation10 + $0xc8] sm:$0xff]
        %v3541 = vld [vmem:[#allocation10 + $0xd0] sm:$0xff]
        %v3542 = vld [vmem:[#allocation10 + $0xd8] sm:$0xff]
        %v3543 = vld [vmem:[#allocation10 + $0xe0] sm:$0xff]
        %v3544 = vld [vmem:[#allocation10 + $0xe8] sm:$0xff]
        %v3545 = vld [vmem:[#allocation10 + $0xf0] sm:$0xff]
        %v3546 = vld [vmem:[#allocation10 + $0xf8] sm:$0xff]
        %v3547 = vld [vmem:[#allocation10 + $0x100] sm:$0xff]
        %v3548 = vld [vmem:[#allocation10 + $0x108] sm:$0xff]
        %v3549 = vld [vmem:[#allocation10 + $0x110] sm:$0xff]
        %v3550 = vld [vmem:[#allocation10 + $0x118] sm:$0xff]
        %v3551 = vld [vmem:[#allocation10 + $0x120] sm:$0xff]
        %v3552 = vld [vmem:[#allocation10 + $0x128] sm:$0xff]
        %v3553 = vld [vmem:[#allocation10 + $0x130] sm:$0xff]
        %v3554 = vld [vmem:[#allocation10 + $0x138] sm:$0xff]
        %v3555 = vld [vmem:[#allocation10 + $0x140] sm:$0xff]
        %v3556 = vld [vmem:[#allocation10 + $0x148] sm:$0xff]
        %v3557 = vld [vmem:[#allocation10 + $0x150] sm:$0xff]
        %v3558 = vld [vmem:[#allocation10 + $0x158] sm:$0xff]
        %v3559 = vld [vmem:[#allocation10 + $0x160] sm:$0xff]
        %v3560 = vld [vmem:[#allocation10 + $0x168] sm:$0xff]
        %v3561 = vld [vmem:[#allocation10 + $0x170] sm:$0xff]
        %v3562 = vld [vmem:[#allocation10 + $0x178] sm:$0xff]
        %v3563 = vld [vmem:[#allocation10 + $0x180] sm:$0xff]
        %v3564 = vld [vmem:[#allocation10 + $0x188] sm:$0xff]
        %v3565 = vld [vmem:[#allocation10 + $0x190] sm:$0xff]
        %v3566 = vld [vmem:[#allocation10 + $0x198] sm:$0xff]
        %v3567 = vld [vmem:[#allocation10 + $0x1a0] sm:$0xff]
        %v3568 = vld [vmem:[#allocation10 + $0x1a8] sm:$0xff]
        %v3569 = vld [vmem:[#allocation10 + $0x1b0] sm:$0xff]
        %v3570 = vld [vmem:[#allocation10 + $0x1b8] sm:$0xff]
        %v3571 = vld [vmem:[#allocation10 + $0x1c0] sm:$0xff]
        %v3572 = vld [vmem:[#allocation10 + $0x1c8] sm:$0xff]
        %v3573 = vld [vmem:[#allocation10 + $0x1d0] sm:$0xff]
        %v3574 = vld [vmem:[#allocation10 + $0x1d8] sm:$0xff]
        %v3575 = vld [vmem:[#allocation10 + $0x1e0] sm:$0xff]
        %v3576 = vld [vmem:[#allocation10 + $0x1e8] sm:$0xff]
        %v3577 = vld [vmem:[#allocation10 + $0x1f0] sm:$0xff]
        %v3578 = vld [vmem:[#allocation10 + $0x1f8] sm:$0xff]
        %v3579 = vld [vmem:[#allocation10 + $0x200] sm:$0xff]
        %v3580 = vld [vmem:[#allocation10 + $0x208] sm:$0xff]
        %v3581 = vld [vmem:[#allocation10 + $0x210] sm:$0xff]
        %v3582 = vld [vmem:[#allocation10 + $0x218] sm:$0xff]
        %v3583 = vld [vmem:[#allocation10 + $0x220] sm:$0xff]
        %v3584 = vld [vmem:[#allocation10 + $0x228] sm:$0xff]
        %v3585 = vld [vmem:[#allocation10 + $0x230] sm:$0xff]
        %v3586 = vld [vmem:[#allocation10 + $0x238] sm:$0xff]
        %v3587 = vld [vmem:[#allocation10 + $0x240] sm:$0xff]
        %v3588 = vld [vmem:[#allocation10 + $0x248] sm:$0xff]
        %v3589 = vld [vmem:[#allocation10 + $0x250] sm:$0xff]
        %v3590 = vld [vmem:[#allocation10 + $0x258] sm:$0xff]
        %v3591 = vld [vmem:[#allocation10 + $0x260] sm:$0xff]
        %v3592 = vld [vmem:[#allocation10 + $0x268] sm:$0xff]
        %v3593 = vld [vmem:[#allocation10 + $0x270] sm:$0xff]
        %v3594 = vld [vmem:[#allocation10 + $0x278] sm:$0xff]
        %v3595 = vld [vmem:[#allocation10 + $0x280] sm:$0xff]
        %v3596 = vld [vmem:[#allocation10 + $0x288] sm:$0xff]
        %v3597 = vld [vmem:[#allocation10 + $0x290] sm:$0xff]
        %v3598 = vld [vmem:[#allocation10 + $0x298] sm:$0xff]
        %v3599 = vld [vmem:[#allocation10 + $0x2a0] sm:$0xff]
        %v3600 = vld [vmem:[#allocation10 + $0x2a8] sm:$0xff]
        %v3601 = vld [vmem:[#allocation10 + $0x2b0] sm:$0xff]
        %v3602 = vld [vmem:[#allocation10 + $0x2b8] sm:$0xff]
        %v3603 = vld [vmem:[#allocation10 + $0x2c0] sm:$0xff]
        %v3604 = vld [vmem:[#allocation10 + $0x2c8] sm:$0xff]
        %v3605 = vld [vmem:[#allocation10 + $0x2d0] sm:$0xff]
        %v3606 = vld [vmem:[#allocation10 + $0x2d8] sm:$0xff]
        %v3607 = vld [vmem:[#allocation10 + $0x2e0] sm:$0xff]
        %v3608 = vld [vmem:[#allocation10 + $0x2e8] sm:$0xff]
        %v3609 = vld [vmem:[#allocation10 + $0x2f0] sm:$0xff]
        %v3610 = vld [vmem:[#allocation10 + $0x2f8] sm:$0xff]
        %v3611 = vld [vmem:[#allocation10 + $0x300] sm:$0xff]
        %v3612 = vld [vmem:[#allocation10 + $0x308] sm:$0xff]
        %v3613 = vld [vmem:[#allocation10 + $0x310] sm:$0xff]
        %v3614 = vld [vmem:[#allocation10 + $0x318] sm:$0xff]
        %v3615 = vld [vmem:[#allocation10 + $0x320] sm:$0xff]
        %v3616 = vld [vmem:[#allocation10 + $0x328] sm:$0xff]
        %v3617 = vld [vmem:[#allocation10 + $0x330] sm:$0xff]
        %v3618 = vld [vmem:[#allocation10 + $0x338] sm:$0xff]
        %v3619 = vld [vmem:[#allocation10 + $0x340] sm:$0xff]
        %v3620 = vld [vmem:[#allocation10 + $0x348] sm:$0xff]
        %v3621 = vld [vmem:[#allocation10 + $0x350] sm:$0xff]
        %v3622 = vld [vmem:[#allocation10 + $0x358] sm:$0xff]
        %v3623 = vld [vmem:[#allocation10 + $0x360] sm:$0xff]
        %v3624 = vld [vmem:[#allocation10 + $0x368] sm:$0xff]
        %v3625 = vld [vmem:[#allocation10 + $0x370] sm:$0xff]
        %v3626 = vld [vmem:[#allocation10 + $0x378] sm:$0xff]
        %s3627 = scalar_lea.vmem [#allocation10], 896
        %v3628 = vld [vmem:[%s3627] sm:$0xff]
        %v3629 = vld [vmem:[%s3627 + $0x8] sm:$0xff]
        %v3630 = vld [vmem:[%s3627 + $0x10] sm:$0xff]
        %v3631 = vld [vmem:[%s3627 + $0x18] sm:$0xff]
        %v3632 = vld [vmem:[%s3627 + $0x20] sm:$0xff]
        %v3633 = vld [vmem:[%s3627 + $0x28] sm:$0xff]
        %v3634 = vld [vmem:[%s3627 + $0x30] sm:$0xff]
        %v3635 = vld [vmem:[%s3627 + $0x38] sm:$0xff]
        %v3636 = vld [vmem:[%s3627 + $0x40] sm:$0xff]
        %v3637 = vld [vmem:[%s3627 + $0x48] sm:$0xff]
        %v3638 = vld [vmem:[%s3627 + $0x50] sm:$0xff]
        %v3639 = vld [vmem:[%s3627 + $0x58] sm:$0xff]
        %v3640 = vld [vmem:[%s3627 + $0x60] sm:$0xff]
        %v3641 = vld [vmem:[%s3627 + $0x68] sm:$0xff]
        %v3642 = vld [vmem:[%s3627 + $0x70] sm:$0xff]
        %v3643 = vld [vmem:[%s3627 + $0x78] sm:$0xff]
        %v3644 = vld [vmem:[%s3627 + $0x80] sm:$0xff]
        %v3645 = vld [vmem:[%s3627 + $0x88] sm:$0xff]
        %v3646 = vld [vmem:[%s3627 + $0x90] sm:$0xff]
        %v3647 = vld [vmem:[%s3627 + $0x98] sm:$0xff]
        %v3648 = vld [vmem:[%s3627 + $0xa0] sm:$0xff]
        %v3649 = vld [vmem:[%s3627 + $0xa8] sm:$0xff]
        %v3650 = vld [vmem:[%s3627 + $0xb0] sm:$0xff]
        %v3651 = vld [vmem:[%s3627 + $0xb8] sm:$0xff]
        %v3652 = vld [vmem:[%s3627 + $0xc0] sm:$0xff]
        %v3653 = vld [vmem:[%s3627 + $0xc8] sm:$0xff]
        %v3654 = vld [vmem:[%s3627 + $0xd0] sm:$0xff]
        %v3655 = vld [vmem:[%s3627 + $0xd8] sm:$0xff]
        %v3656 = vld [vmem:[%s3627 + $0xe0] sm:$0xff]
        %v3657 = vld [vmem:[%s3627 + $0xe8] sm:$0xff]
        %v3658 = vld [vmem:[%s3627 + $0xf0] sm:$0xff]
        %v3659 = vld [vmem:[%s3627 + $0xf8] sm:$0xff]
        %v3660 = vld [vmem:[%s3627 + $0x100] sm:$0xff]
        %v3661 = vld [vmem:[%s3627 + $0x108] sm:$0xff]
        %v3662 = vld [vmem:[%s3627 + $0x110] sm:$0xff]
        %v3663 = vld [vmem:[%s3627 + $0x118] sm:$0xff]
        %v3664 = vld [vmem:[%s3627 + $0x120] sm:$0xff]
        %v3665 = vld [vmem:[%s3627 + $0x128] sm:$0xff]
        %v3666 = vld [vmem:[%s3627 + $0x130] sm:$0xff]
        %v3667 = vld [vmem:[%s3627 + $0x138] sm:$0xff]
        %v3668 = vld [vmem:[%s3627 + $0x140] sm:$0xff]
        %v3669 = vld [vmem:[%s3627 + $0x148] sm:$0xff]
        %v3670 = vld [vmem:[%s3627 + $0x150] sm:$0xff]
        %v3671 = vld [vmem:[%s3627 + $0x158] sm:$0xff]
        %v3672 = vld [vmem:[%s3627 + $0x160] sm:$0xff]
        %v3673 = vld [vmem:[%s3627 + $0x168] sm:$0xff]
        %v3674 = vld [vmem:[%s3627 + $0x170] sm:$0xff]
        %v3675 = vld [vmem:[%s3627 + $0x178] sm:$0xff]
        %v3676 = vld [vmem:[%s3627 + $0x180] sm:$0xff]
        %v3677 = vld [vmem:[%s3627 + $0x188] sm:$0xff]
        %v3678 = vld [vmem:[%s3627 + $0x190] sm:$0xff]
        %v3679 = vld [vmem:[%s3627 + $0x198] sm:$0xff]
        %v3680 = vld [vmem:[%s3627 + $0x1a0] sm:$0xff]
        %v3681 = vld [vmem:[%s3627 + $0x1a8] sm:$0xff]
        %v3682 = vld [vmem:[%s3627 + $0x1b0] sm:$0xff]
        %v3683 = vld [vmem:[%s3627 + $0x1b8] sm:$0xff]
        %v3684 = vld [vmem:[%s3627 + $0x1c0] sm:$0xff]
        %v3685 = vld [vmem:[%s3627 + $0x1c8] sm:$0xff]
        %v3686 = vld [vmem:[%s3627 + $0x1d0] sm:$0xff]
        %v3687 = vld [vmem:[%s3627 + $0x1d8] sm:$0xff]
        %v3688 = vld [vmem:[%s3627 + $0x1e0] sm:$0xff]
        %v3689 = vld [vmem:[%s3627 + $0x1e8] sm:$0xff]
        %v3690 = vld [vmem:[%s3627 + $0x1f0] sm:$0xff]
        %v3691 = vld [vmem:[%s3627 + $0x1f8] sm:$0xff]
        %v3692 = vld [vmem:[%s3627 + $0x200] sm:$0xff]
        %v3693 = vld [vmem:[%s3627 + $0x208] sm:$0xff]
        %v3694 = vld [vmem:[%s3627 + $0x210] sm:$0xff]
        %v3695 = vld [vmem:[%s3627 + $0x218] sm:$0xff]
        %v3696 = vld [vmem:[%s3627 + $0x220] sm:$0xff]
        %v3697 = vld [vmem:[%s3627 + $0x228] sm:$0xff]
        %v3698 = vld [vmem:[%s3627 + $0x230] sm:$0xff]
        %v3699 = vld [vmem:[%s3627 + $0x238] sm:$0xff]
        %v3700 = vld [vmem:[%s3627 + $0x240] sm:$0xff]
        %v3701 = vld [vmem:[%s3627 + $0x248] sm:$0xff]
        %v3702 = vld [vmem:[%s3627 + $0x250] sm:$0xff]
        %v3703 = vld [vmem:[%s3627 + $0x258] sm:$0xff]
        %v3704 = vld [vmem:[%s3627 + $0x260] sm:$0xff]
        %v3705 = vld [vmem:[%s3627 + $0x268] sm:$0xff]
        %v3706 = vld [vmem:[%s3627 + $0x270] sm:$0xff]
        %v3707 = vld [vmem:[%s3627 + $0x278] sm:$0xff]
        %v3708 = vld [vmem:[%s3627 + $0x280] sm:$0xff]
        %v3709 = vld [vmem:[%s3627 + $0x288] sm:$0xff]
        %v3710 = vld [vmem:[%s3627 + $0x290] sm:$0xff]
        %v3711 = vld [vmem:[%s3627 + $0x298] sm:$0xff]
        %v3712 = vld [vmem:[%s3627 + $0x2a0] sm:$0xff]
        %v3713 = vld [vmem:[%s3627 + $0x2a8] sm:$0xff]
        %v3714 = vld [vmem:[%s3627 + $0x2b0] sm:$0xff]
        %v3715 = vld [vmem:[%s3627 + $0x2b8] sm:$0xff]
        %v3716 = vld [vmem:[%s3627 + $0x2c0] sm:$0xff]
        %v3717 = vld [vmem:[%s3627 + $0x2c8] sm:$0xff]
        %v3718 = vld [vmem:[%s3627 + $0x2d0] sm:$0xff]
        %v3719 = vld [vmem:[%s3627 + $0x2d8] sm:$0xff]
        %v3720 = vld [vmem:[%s3627 + $0x2e0] sm:$0xff]
        %v3721 = vld [vmem:[%s3627 + $0x2e8] sm:$0xff]
        %v3722 = vld [vmem:[%s3627 + $0x2f0] sm:$0xff]
        %v3723 = vld [vmem:[%s3627 + $0x2f8] sm:$0xff]
        %v3724 = vld [vmem:[%s3627 + $0x300] sm:$0xff]
        %v3725 = vld [vmem:[%s3627 + $0x308] sm:$0xff]
        %v3726 = vld [vmem:[%s3627 + $0x310] sm:$0xff]
        %v3727 = vld [vmem:[%s3627 + $0x318] sm:$0xff]
        %v3728 = vld [vmem:[%s3627 + $0x320] sm:$0xff]
        %v3729 = vld [vmem:[%s3627 + $0x328] sm:$0xff]
        %v3730 = vld [vmem:[%s3627 + $0x330] sm:$0xff]
        %v3731 = vld [vmem:[%s3627 + $0x338] sm:$0xff]
        %v3732 = vld [vmem:[%s3627 + $0x340] sm:$0xff]
        %v3733 = vld [vmem:[%s3627 + $0x348] sm:$0xff]
        %v3734 = vld [vmem:[%s3627 + $0x350] sm:$0xff]
        %v3735 = vld [vmem:[%s3627 + $0x358] sm:$0xff]
        %v3736 = vld [vmem:[%s3627 + $0x360] sm:$0xff]
        %v3737 = vld [vmem:[%s3627 + $0x368] sm:$0xff]
        %v3738 = vld [vmem:[%s3627 + $0x370] sm:$0xff]
        %v3739 = vld [vmem:[%s3627 + $0x378] sm:$0xff]
        %v3740 = vsel %vm2309, %v3431, 0
        %3742 = vmatprep.subr.mxu0 %v3629
        %3743 = vmatpush1.msra.mxu0 %v3628
        %3744 = vmatprep.subr.mxu0 %v3633
        %3745 = vmatpush1.msra.mxu0 %v3632
        %3746 = vmatprep.subr.mxu0 %v3637
        %3747 = vmatpush1.msra.mxu0 %v3636
        %3748 = vmatprep.subr.mxu0 %v3641
        %3749 = vmatpush1.msra.mxu0 %v3640
        %3750 = vmatprep.subr.mxu0 %v3645
        %3751 = vmatpush1.msra.mxu0 %v3644
        %3752 = vmatprep.subr.mxu0 %v3649
        %3753 = vmatpush1.msra.mxu0 %v3648
        %3754 = vmatprep.subr.mxu0 %v3653
        %3755 = vmatpush1.msra.mxu0 %v3652
        %3756 = vmatprep.subr.mxu0 %v3657
        %3757 = vmatpush1.msra.mxu0 %v3656
        %3758 = vmatprep.subr.mxu0 %v3661
        %3759 = vmatpush1.msra.mxu0 %v3660
        %3760 = vmatprep.subr.mxu0 %v3665
        %3761 = vmatpush1.msra.mxu0 %v3664
        %3762 = vmatprep.subr.mxu0 %v3669
        %3763 = vmatpush1.msra.mxu0 %v3668
        %3764 = vmatprep.subr.mxu0 %v3673
        %3765 = vmatpush1.msra.mxu0 %v3672
        %3766 = vmatprep.subr.mxu0 %v3677
        %3767 = vmatpush1.msra.mxu0 %v3676
        %3768 = vmatprep.subr.mxu0 %v3681
        %3769 = vmatpush1.msra.mxu0 %v3680
        %3770 = vmatprep.subr.mxu0 %v3685
        %3771 = vmatpush1.msra.mxu0 %v3684
        %3772 = vmatprep.subr.mxu0 %v3689
        %3773 = vmatpush1.msra.mxu0 %v3688
        %3774 = vmatprep.subr.mxu0 %v3693
        %3775 = vmatpush1.msra.mxu0 %v3692
        %3776 = vmatprep.subr.mxu0 %v3697
        %3777 = vmatpush1.msra.mxu0 %v3696
        %3778 = vmatprep.subr.mxu0 %v3701
        %3779 = vmatpush1.msra.mxu0 %v3700
        %3780 = vmatprep.subr.mxu0 %v3705
        %3781 = vmatpush1.msra.mxu0 %v3704
        %3782 = vmatprep.subr.mxu0 %v3709
        %3783 = vmatpush1.msra.mxu0 %v3708
        %3784 = vmatprep.subr.mxu0 %v3713
        %3785 = vmatpush1.msra.mxu0 %v3712
        %3786 = vmatprep.subr.mxu0 %v3717
        %3787 = vmatpush1.msra.mxu0 %v3716
        %3788 = vmatprep.subr.mxu0 %v3721
        %3789 = vmatpush1.msra.mxu0 %v3720
        %3790 = vmatprep.subr.mxu0 %v3725
        %3791 = vmatpush1.msra.mxu0 %v3724
        %3792 = vmatprep.subr.mxu0 %v3729
        %3793 = vmatpush1.msra.mxu0 %v3728
        %3794 = vmatprep.subr.mxu0 %v3733
        %3795 = vmatpush1.msra.mxu0 %v3732
        %3796 = vmatprep.subr.mxu0 %v3737
        %3797 = vmatpush1.msra.mxu0 %v3736
        %3798 = vmatprep.subr.mxu0 0.0
        %3799 = vmatpush1.msra.mxu0 0.0
        %3800 = vmatprep.subr.mxu0 0.0
        %3801 = vmatpush1.msra.mxu0 0.0
        %3802 = vmatprep.subr.mxu0 0.0
        %3803 = vmatpush1.msra.mxu0 0.0
        %3804 = vmatprep.subr.mxu0 0.0
        %3805 = vmatpush1.msra.mxu0 0.0
        %3806 = vmatprep.mubr.f32.mxu0 %v3740
        %3807 = vmatmul.mubr.f32.gmra.mrb[0].mxu0 %v3430
        %v3808 = vpop.f32.mrb[0].mxu0
        %v3809 = vadd.f32 0.0, %v3808
        %v3810 = vpop.f32.mrb[0].mxu0
        %v3811 = vadd.f32 0.0, %v3810
        %3812 = vdwg.mxu0
        %3813 = vmatprep.subr.mxu0 %v3631
        %3814 = vmatpush1.msra.mxu0 %v3630
        %3815 = vmatprep.subr.mxu0 %v3635
        %3816 = vmatpush1.msra.mxu0 %v3634
        %3817 = vmatprep.subr.mxu0 %v3639
        %3818 = vmatpush1.msra.mxu0 %v3638
        %3819 = vmatprep.subr.mxu0 %v3643
        %3820 = vmatpush1.msra.mxu0 %v3642
        %3821 = vmatprep.subr.mxu0 %v3647
        %3822 = vmatpush1.msra.mxu0 %v3646
        %3823 = vmatprep.subr.mxu0 %v3651
        %3824 = vmatpush1.msra.mxu0 %v3650
        %3825 = vmatprep.subr.mxu0 %v3655
        %3826 = vmatpush1.msra.mxu0 %v3654
        %3827 = vmatprep.subr.mxu0 %v3659
        %3828 = vmatpush1.msra.mxu0 %v3658
        %3829 = vmatprep.subr.mxu0 %v3663
        %3830 = vmatpush1.msra.mxu0 %v3662
        %3831 = vmatprep.subr.mxu0 %v3667
        %3832 = vmatpush1.msra.mxu0 %v3666
        %3833 = vmatprep.subr.mxu0 %v3671
        %3834 = vmatpush1.msra.mxu0 %v3670
        %3835 = vmatprep.subr.mxu0 %v3675
        %3836 = vmatpush1.msra.mxu0 %v3674
        %3837 = vmatprep.subr.mxu0 %v3679
        %3838 = vmatpush1.msra.mxu0 %v3678
        %3839 = vmatprep.subr.mxu0 %v3683
        %3840 = vmatpush1.msra.mxu0 %v3682
        %3841 = vmatprep.subr.mxu0 %v3687
        %3842 = vmatpush1.msra.mxu0 %v3686
        %3843 = vmatprep.subr.mxu0 %v3691
        %3844 = vmatpush1.msra.mxu0 %v3690
        %3845 = vmatprep.subr.mxu0 %v3695
        %3846 = vmatpush1.msra.mxu0 %v3694
        %3847 = vmatprep.subr.mxu0 %v3699
        %3848 = vmatpush1.msra.mxu0 %v3698
        %3849 = vmatprep.subr.mxu0 %v3703
        %3850 = vmatpush1.msra.mxu0 %v3702
        %3851 = vmatprep.subr.mxu0 %v3707
        %3852 = vmatpush1.msra.mxu0 %v3706
        %3853 = vmatprep.subr.mxu0 %v3711
        %3854 = vmatpush1.msra.mxu0 %v3710
        %3855 = vmatprep.subr.mxu0 %v3715
        %3856 = vmatpush1.msra.mxu0 %v3714
        %3857 = vmatprep.subr.mxu0 %v3719
        %3858 = vmatpush1.msra.mxu0 %v3718
        %3859 = vmatprep.subr.mxu0 %v3723
        %3860 = vmatpush1.msra.mxu0 %v3722
        %3861 = vmatprep.subr.mxu0 %v3727
        %3862 = vmatpush1.msra.mxu0 %v3726
        %3863 = vmatprep.subr.mxu0 %v3731
        %3864 = vmatpush1.msra.mxu0 %v3730
        %3865 = vmatprep.subr.mxu0 %v3735
        %3866 = vmatpush1.msra.mxu0 %v3734
        %3867 = vmatprep.subr.mxu0 %v3739
        %3868 = vmatpush1.msra.mxu0 %v3738
        %3869 = vmatprep.subr.mxu0 0.0
        %3870 = vmatpush1.msra.mxu0 0.0
        %3871 = vmatprep.subr.mxu0 0.0
        %3872 = vmatpush1.msra.mxu0 0.0
        %3873 = vmatprep.subr.mxu0 0.0
        %3874 = vmatpush1.msra.mxu0 0.0
        %3875 = vmatprep.subr.mxu0 0.0
        %3876 = vmatpush1.msra.mxu0 0.0
        %3877 = vmatprep.mubr.f32.mxu0 %v3740
        %3878 = vmatmul.mubr.f32.gmra.mrb[0].mxu0 %v3430
        %v3879 = vpop.f32.mrb[0].mxu0
        %v3880 = vadd.f32 0.0, %v3879
        %v3881 = vpop.f32.mrb[0].mxu0
        %v3882 = vadd.f32 0.0, %v3881
        %3883 = vdwg.mxu0
        %v3885 = vsel %vm2309, %v3513, 0
        %3887 = vmatprep.subr.mxu0 %v3516
        %3888 = vmatpush1.msra.mxu0 %v3515
        %3889 = vmatprep.subr.mxu0 %v3520
        %3890 = vmatpush1.msra.mxu0 %v3519
        %3891 = vmatprep.subr.mxu0 %v3524
        %3892 = vmatpush1.msra.mxu0 %v3523
        %3893 = vmatprep.subr.mxu0 %v3528
        %3894 = vmatpush1.msra.mxu0 %v3527
        %3895 = vmatprep.subr.mxu0 %v3532
        %3896 = vmatpush1.msra.mxu0 %v3531
        %3897 = vmatprep.subr.mxu0 %v3536
        %3898 = vmatpush1.msra.mxu0 %v3535
        %3899 = vmatprep.subr.mxu0 %v3540
        %3900 = vmatpush1.msra.mxu0 %v3539
        %3901 = vmatprep.subr.mxu0 %v3544
        %3902 = vmatpush1.msra.mxu0 %v3543
        %3903 = vmatprep.subr.mxu0 %v3548
        %3904 = vmatpush1.msra.mxu0 %v3547
        %3905 = vmatprep.subr.mxu0 %v3552
        %3906 = vmatpush1.msra.mxu0 %v3551
        %3907 = vmatprep.subr.mxu0 %v3556
        %3908 = vmatpush1.msra.mxu0 %v3555
        %3909 = vmatprep.subr.mxu0 %v3560
        %3910 = vmatpush1.msra.mxu0 %v3559
        %3911 = vmatprep.subr.mxu0 %v3564
        %3912 = vmatpush1.msra.mxu0 %v3563
        %3913 = vmatprep.subr.mxu0 %v3568
        %3914 = vmatpush1.msra.mxu0 %v3567
        %3915 = vmatprep.subr.mxu0 %v3572
        %3916 = vmatpush1.msra.mxu0 %v3571
        %3917 = vmatprep.subr.mxu0 %v3576
        %3918 = vmatpush1.msra.mxu0 %v3575
        %3919 = vmatprep.subr.mxu0 %v3580
        %3920 = vmatpush1.msra.mxu0 %v3579
        %3921 = vmatprep.subr.mxu0 %v3584
        %3922 = vmatpush1.msra.mxu0 %v3583
        %3923 = vmatprep.subr.mxu0 %v3588
        %3924 = vmatpush1.msra.mxu0 %v3587
        %3925 = vmatprep.subr.mxu0 %v3592
        %3926 = vmatpush1.msra.mxu0 %v3591
        %3927 = vmatprep.subr.mxu0 %v3596
        %3928 = vmatpush1.msra.mxu0 %v3595
        %3929 = vmatprep.subr.mxu0 %v3600
        %3930 = vmatpush1.msra.mxu0 %v3599
        %3931 = vmatprep.subr.mxu0 %v3604
        %3932 = vmatpush1.msra.mxu0 %v3603
        %3933 = vmatprep.subr.mxu0 %v3608
        %3934 = vmatpush1.msra.mxu0 %v3607
        %3935 = vmatprep.subr.mxu0 %v3612
        %3936 = vmatpush1.msra.mxu0 %v3611
        %3937 = vmatprep.subr.mxu0 %v3616
        %3938 = vmatpush1.msra.mxu0 %v3615
        %3939 = vmatprep.subr.mxu0 %v3620
        %3940 = vmatpush1.msra.mxu0 %v3619
        %3941 = vmatprep.subr.mxu0 %v3624
        %3942 = vmatpush1.msra.mxu0 %v3623
        %3943 = vmatprep.subr.mxu0 0.0
        %3944 = vmatpush1.msra.mxu0 0.0
        %3945 = vmatprep.subr.mxu0 0.0
        %3946 = vmatpush1.msra.mxu0 0.0
        %3947 = vmatprep.subr.mxu0 0.0
        %3948 = vmatpush1.msra.mxu0 0.0
        %3949 = vmatprep.subr.mxu0 0.0
        %3950 = vmatpush1.msra.mxu0 0.0
        %3951 = vmatprep.mubr.f32.mxu0 %v3885
        %3952 = vmatmul.mubr.f32.gmra.mrb[0].mxu0 %v3511
        %v3953 = vpop.f32.mrb[0].mxu0
        %v3954 = vadd.f32 %v3809, %v3953
        %v3955 = vpop.f32.mrb[0].mxu0
        %v3956 = vadd.f32 %v3811, %v3955
        %3957 = vdwg.mxu0
        %3958 = vmatprep.subr.mxu0 %v3518
        %3959 = vmatpush1.msra.mxu0 %v3517
        %3960 = vmatprep.subr.mxu0 %v3522
        %3961 = vmatpush1.msra.mxu0 %v3521
        %3962 = vmatprep.subr.mxu0 %v3526
        %3963 = vmatpush1.msra.mxu0 %v3525
        %3964 = vmatprep.subr.mxu0 %v3530
        %3965 = vmatpush1.msra.mxu0 %v3529
        %3966 = vmatprep.subr.mxu0 %v3534
        %3967 = vmatpush1.msra.mxu0 %v3533
        %3968 = vmatprep.subr.mxu0 %v3538
        %3969 = vmatpush1.msra.mxu0 %v3537
        %3970 = vmatprep.subr.mxu0 %v3542
        %3971 = vmatpush1.msra.mxu0 %v3541
        %3972 = vmatprep.subr.mxu0 %v3546
        %3973 = vmatpush1.msra.mxu0 %v3545
        %3974 = vmatprep.subr.mxu0 %v3550
        %3975 = vmatpush1.msra.mxu0 %v3549
        %3976 = vmatprep.subr.mxu0 %v3554
        %3977 = vmatpush1.msra.mxu0 %v3553
        %3978 = vmatprep.subr.mxu0 %v3558
        %3979 = vmatpush1.msra.mxu0 %v3557
        %3980 = vmatprep.subr.mxu0 %v3562
        %3981 = vmatpush1.msra.mxu0 %v3561
        %3982 = vmatprep.subr.mxu0 %v3566
        %3983 = vmatpush1.msra.mxu0 %v3565
        %3984 = vmatprep.subr.mxu0 %v3570
        %3985 = vmatpush1.msra.mxu0 %v3569
        %3986 = vmatprep.subr.mxu0 %v3574
        %3987 = vmatpush1.msra.mxu0 %v3573
        %3988 = vmatprep.subr.mxu0 %v3578
        %3989 = vmatpush1.msra.mxu0 %v3577
        %3990 = vmatprep.subr.mxu0 %v3582
        %3991 = vmatpush1.msra.mxu0 %v3581
        %3992 = vmatprep.subr.mxu0 %v3586
        %3993 = vmatpush1.msra.mxu0 %v3585
        %3994 = vmatprep.subr.mxu0 %v3590
        %3995 = vmatpush1.msra.mxu0 %v3589
        %3996 = vmatprep.subr.mxu0 %v3594
        %3997 = vmatpush1.msra.mxu0 %v3593
        %3998 = vmatprep.subr.mxu0 %v3598
        %3999 = vmatpush1.msra.mxu0 %v3597
        %4000 = vmatprep.subr.mxu0 %v3602
        %4001 = vmatpush1.msra.mxu0 %v3601
        %4002 = vmatprep.subr.mxu0 %v3606
        %4003 = vmatpush1.msra.mxu0 %v3605
        %4004 = vmatprep.subr.mxu0 %v3610
        %4005 = vmatpush1.msra.mxu0 %v3609
        %4006 = vmatprep.subr.mxu0 %v3614
        %4007 = vmatpush1.msra.mxu0 %v3613
        %4008 = vmatprep.subr.mxu0 %v3618
        %4009 = vmatpush1.msra.mxu0 %v3617
        %4010 = vmatprep.subr.mxu0 %v3622
        %4011 = vmatpush1.msra.mxu0 %v3621
        %4012 = vmatprep.subr.mxu0 %v3626
        %4013 = vmatpush1.msra.mxu0 %v3625
        %4014 = vmatprep.subr.mxu0 0.0
        %4015 = vmatpush1.msra.mxu0 0.0
        %4016 = vmatprep.subr.mxu0 0.0
        %4017 = vmatpush1.msra.mxu0 0.0
        %4018 = vmatprep.subr.mxu0 0.0
        %4019 = vmatpush1.msra.mxu0 0.0
        %4020 = vmatprep.subr.mxu0 0.0
        %4021 = vmatpush1.msra.mxu0 0.0
        %4022 = vmatprep.mubr.f32.mxu0 %v3885
        %4023 = vmatmul.mubr.f32.gmra.mrb[0].mxu0 %v3511
        %v4024 = vpop.f32.mrb[0].mxu0
        %v4025 = vadd.f32 %v3880, %v4024
        %v4026 = vpop.f32.mrb[0].mxu0
        %v4027 = vadd.f32 %v3882, %v4026
        %4028 = vdwg.mxu0
        %s4029 = scalar_lea.vmem [#allocation9], 16
        %v4030 = vld [vmem:[%s4029] sm:$0x7f]
        %v4032 = vsel %vm3433, %v4030, 0
        %4034 = vmatprep.subr.mxu0 %v3442
        %4035 = vmatpush1.msra.mxu0 %v3439
        %4036 = vmatprep.subr.mxu0 0.0
        %4037 = vmatpush1.msra.mxu0 0.0
        %4038 = vmatprep.subr.mxu0 0.0
        %4039 = vmatpush1.msra.mxu0 0.0
        %4040 = vmatprep.subr.mxu0 0.0
        %4041 = vmatpush1.msra.mxu0 0.0
        %4042 = vmatprep.subr.mxu0 0.0
        %4043 = vmatpush1.msra.mxu0 0.0
        %4044 = vmatprep.subr.mxu0 0.0
        %4045 = vmatpush1.msra.mxu0 0.0
        %4046 = vmatprep.subr.mxu0 0.0
        %4047 = vmatpush1.msra.mxu0 0.0
        %4048 = vmatprep.subr.mxu0 0.0
        %4049 = vmatpush1.msra.mxu0 0.0
        %4050 = vmatprep.subr.mxu0 0.0
        %4051 = vmatpush1.msra.mxu0 0.0
        %4052 = vmatprep.subr.mxu0 0.0
        %4053 = vmatpush1.msra.mxu0 0.0
        %4054 = vmatprep.subr.mxu0 0.0
        %4055 = vmatpush1.msra.mxu0 0.0
        %4056 = vmatprep.subr.mxu0 0.0
        %4057 = vmatpush1.msra.mxu0 0.0
        %4058 = vmatprep.subr.mxu0 0.0
        %4059 = vmatpush1.msra.mxu0 0.0
        %4060 = vmatprep.subr.mxu0 0.0
        %4061 = vmatpush1.msra.mxu0 0.0
        %4062 = vmatprep.subr.mxu0 0.0
        %4063 = vmatpush1.msra.mxu0 0.0
        %4064 = vmatprep.subr.mxu0 0.0
        %4065 = vmatpush1.msra.mxu0 0.0
        %4066 = vmatprep.subr.mxu0 0.0
        %4067 = vmatpush1.msra.mxu0 0.0
        %4068 = vmatprep.subr.mxu0 0.0
        %4069 = vmatpush1.msra.mxu0 0.0
        %4070 = vmatprep.subr.mxu0 0.0
        %4071 = vmatpush1.msra.mxu0 0.0
        %4072 = vmatprep.subr.mxu0 0.0
        %4073 = vmatpush1.msra.mxu0 0.0
        %4074 = vmatprep.subr.mxu0 0.0
        %4075 = vmatpush1.msra.mxu0 0.0
        %4076 = vmatprep.subr.mxu0 0.0
        %4077 = vmatpush1.msra.mxu0 0.0
        %4078 = vmatprep.subr.mxu0 0.0
        %4079 = vmatpush1.msra.mxu0 0.0
        %4080 = vmatprep.subr.mxu0 0.0
        %4081 = vmatpush1.msra.mxu0 0.0
        %4082 = vmatprep.subr.mxu0 0.0
        %4083 = vmatpush1.msra.mxu0 0.0
        %4084 = vmatprep.subr.mxu0 0.0
        %4085 = vmatpush1.msra.mxu0 0.0
        %4086 = vmatprep.subr.mxu0 0.0
        %4087 = vmatpush1.msra.mxu0 0.0
        %4088 = vmatprep.subr.mxu0 0.0
        %4089 = vmatpush1.msra.mxu0 0.0
        %4090 = vmatprep.subr.mxu0 0.0
        %4091 = vmatpush1.msra.mxu0 0.0
        %4092 = vmatprep.subr.mxu0 0.0
        %4093 = vmatpush1.msra.mxu0 0.0
        %4094 = vmatprep.subr.mxu0 0.0
        %4095 = vmatpush1.msra.mxu0 0.0
        %4096 = vmatprep.subr.mxu0 0.0
        %4097 = vmatpush1.msra.mxu0 0.0
        %4098 = vmatprep.mubr.f32.mxu0 0.0
        %4099 = vmatmul.mubr.f32.gmra.mrb[0].mxu0 %v4032
        %v4100 = vpop.f32.mrb[0].mxu0
        %v4101 = vadd.f32 0.0, %v4100
        %v4102 = vpop.f32.mrb[0].mxu0
        %v4103 = vadd.f32 0.0, %v4102
        %4104 = vdwg.mxu0
        %s4105 = scalar_lea.vmem [#allocation10], 1792
        %v4106 = vld [vmem:[%s4105] sm:$0xff]
        %v4107 = vld [vmem:[%s4105 + $0x8] sm:$0xff]
        %v4108 = vld [vmem:[%s4105 + $0x10] sm:$0xff]
        %v4109 = vld [vmem:[%s4105 + $0x18] sm:$0xff]
        %v4110 = vld [vmem:[%s4105 + $0x20] sm:$0xff]
        %v4111 = vld [vmem:[%s4105 + $0x28] sm:$0xff]
        %v4112 = vld [vmem:[%s4105 + $0x30] sm:$0xff]
        %v4113 = vld [vmem:[%s4105 + $0x38] sm:$0xff]
        %v4114 = vld [vmem:[%s4105 + $0x40] sm:$0xff]
        %v4115 = vld [vmem:[%s4105 + $0x48] sm:$0xff]
        %v4116 = vld [vmem:[%s4105 + $0x50] sm:$0xff]
        %v4117 = vld [vmem:[%s4105 + $0x58] sm:$0xff]
        %v4118 = vld [vmem:[%s4105 + $0x60] sm:$0xff]
        %v4119 = vld [vmem:[%s4105 + $0x68] sm:$0xff]
        %v4120 = vld [vmem:[%s4105 + $0x70] sm:$0xff]
        %v4121 = vld [vmem:[%s4105 + $0x78] sm:$0xff]
        %v4122 = vld [vmem:[%s4105 + $0x80] sm:$0xff]
        %v4123 = vld [vmem:[%s4105 + $0x88] sm:$0xff]
        %v4124 = vld [vmem:[%s4105 + $0x90] sm:$0xff]
        %v4125 = vld [vmem:[%s4105 + $0x98] sm:$0xff]
        %v4126 = vld [vmem:[%s4105 + $0xa0] sm:$0xff]
        %v4127 = vld [vmem:[%s4105 + $0xa8] sm:$0xff]
        %v4128 = vld [vmem:[%s4105 + $0xb0] sm:$0xff]
        %v4129 = vld [vmem:[%s4105 + $0xb8] sm:$0xff]
        %v4130 = vld [vmem:[%s4105 + $0xc0] sm:$0xff]
        %v4131 = vld [vmem:[%s4105 + $0xc8] sm:$0xff]
        %v4132 = vld [vmem:[%s4105 + $0xd0] sm:$0xff]
        %v4133 = vld [vmem:[%s4105 + $0xd8] sm:$0xff]
        %v4134 = vld [vmem:[%s4105 + $0xe0] sm:$0xff]
        %v4135 = vld [vmem:[%s4105 + $0xe8] sm:$0xff]
        %v4136 = vld [vmem:[%s4105 + $0xf0] sm:$0xff]
        %v4137 = vld [vmem:[%s4105 + $0xf8] sm:$0xff]
        %v4138 = vld [vmem:[%s4105 + $0x100] sm:$0xff]
        %v4139 = vld [vmem:[%s4105 + $0x108] sm:$0xff]
        %v4140 = vld [vmem:[%s4105 + $0x110] sm:$0xff]
        %v4141 = vld [vmem:[%s4105 + $0x118] sm:$0xff]
        %v4142 = vld [vmem:[%s4105 + $0x120] sm:$0xff]
        %v4143 = vld [vmem:[%s4105 + $0x128] sm:$0xff]
        %v4144 = vld [vmem:[%s4105 + $0x130] sm:$0xff]
        %v4145 = vld [vmem:[%s4105 + $0x138] sm:$0xff]
        %v4146 = vld [vmem:[%s4105 + $0x140] sm:$0xff]
        %v4147 = vld [vmem:[%s4105 + $0x148] sm:$0xff]
        %v4148 = vld [vmem:[%s4105 + $0x150] sm:$0xff]
        %v4149 = vld [vmem:[%s4105 + $0x158] sm:$0xff]
        %v4150 = vld [vmem:[%s4105 + $0x160] sm:$0xff]
        %v4151 = vld [vmem:[%s4105 + $0x168] sm:$0xff]
        %v4152 = vld [vmem:[%s4105 + $0x170] sm:$0xff]
        %v4153 = vld [vmem:[%s4105 + $0x178] sm:$0xff]
        %v4154 = vld [vmem:[%s4105 + $0x180] sm:$0xff]
        %v4155 = vld [vmem:[%s4105 + $0x188] sm:$0xff]
        %v4156 = vld [vmem:[%s4105 + $0x190] sm:$0xff]
        %v4157 = vld [vmem:[%s4105 + $0x198] sm:$0xff]
        %v4158 = vld [vmem:[%s4105 + $0x1a0] sm:$0xff]
        %v4159 = vld [vmem:[%s4105 + $0x1a8] sm:$0xff]
        %v4160 = vld [vmem:[%s4105 + $0x1b0] sm:$0xff]
        %v4161 = vld [vmem:[%s4105 + $0x1b8] sm:$0xff]
        %v4162 = vld [vmem:[%s4105 + $0x1c0] sm:$0xff]
        %v4163 = vld [vmem:[%s4105 + $0x1c8] sm:$0xff]
        %v4164 = vld [vmem:[%s4105 + $0x1d0] sm:$0xff]
        %v4165 = vld [vmem:[%s4105 + $0x1d8] sm:$0xff]
        %v4166 = vld [vmem:[%s4105 + $0x1e0] sm:$0xff]
        %v4167 = vld [vmem:[%s4105 + $0x1e8] sm:$0xff]
        %v4168 = vld [vmem:[%s4105 + $0x1f0] sm:$0xff]
        %v4169 = vld [vmem:[%s4105 + $0x1f8] sm:$0xff]
        %v4170 = vld [vmem:[%s4105 + $0x200] sm:$0xff]
        %v4171 = vld [vmem:[%s4105 + $0x208] sm:$0xff]
        %v4172 = vld [vmem:[%s4105 + $0x210] sm:$0xff]
        %v4173 = vld [vmem:[%s4105 + $0x218] sm:$0xff]
        %v4174 = vld [vmem:[%s4105 + $0x220] sm:$0xff]
        %v4175 = vld [vmem:[%s4105 + $0x228] sm:$0xff]
        %v4176 = vld [vmem:[%s4105 + $0x230] sm:$0xff]
        %v4177 = vld [vmem:[%s4105 + $0x238] sm:$0xff]
        %v4178 = vld [vmem:[%s4105 + $0x240] sm:$0xff]
        %v4179 = vld [vmem:[%s4105 + $0x248] sm:$0xff]
        %v4180 = vld [vmem:[%s4105 + $0x250] sm:$0xff]
        %v4181 = vld [vmem:[%s4105 + $0x258] sm:$0xff]
        %v4182 = vld [vmem:[%s4105 + $0x260] sm:$0xff]
        %v4183 = vld [vmem:[%s4105 + $0x268] sm:$0xff]
        %v4184 = vld [vmem:[%s4105 + $0x270] sm:$0xff]
        %v4185 = vld [vmem:[%s4105 + $0x278] sm:$0xff]
        %v4186 = vld [vmem:[%s4105 + $0x280] sm:$0xff]
        %v4187 = vld [vmem:[%s4105 + $0x288] sm:$0xff]
        %v4188 = vld [vmem:[%s4105 + $0x290] sm:$0xff]
        %v4189 = vld [vmem:[%s4105 + $0x298] sm:$0xff]
        %v4190 = vld [vmem:[%s4105 + $0x2a0] sm:$0xff]
        %v4191 = vld [vmem:[%s4105 + $0x2a8] sm:$0xff]
        %v4192 = vld [vmem:[%s4105 + $0x2b0] sm:$0xff]
        %v4193 = vld [vmem:[%s4105 + $0x2b8] sm:$0xff]
        %v4194 = vld [vmem:[%s4105 + $0x2c0] sm:$0xff]
        %v4195 = vld [vmem:[%s4105 + $0x2c8] sm:$0xff]
        %v4196 = vld [vmem:[%s4105 + $0x2d0] sm:$0xff]
        %v4197 = vld [vmem:[%s4105 + $0x2d8] sm:$0xff]
        %v4198 = vld [vmem:[%s4105 + $0x2e0] sm:$0xff]
        %v4199 = vld [vmem:[%s4105 + $0x2e8] sm:$0xff]
        %v4200 = vld [vmem:[%s4105 + $0x2f0] sm:$0xff]
        %v4201 = vld [vmem:[%s4105 + $0x2f8] sm:$0xff]
        %v4202 = vld [vmem:[%s4105 + $0x300] sm:$0xff]
        %v4203 = vld [vmem:[%s4105 + $0x308] sm:$0xff]
        %v4204 = vld [vmem:[%s4105 + $0x310] sm:$0xff]
        %v4205 = vld [vmem:[%s4105 + $0x318] sm:$0xff]
        %v4206 = vld [vmem:[%s4105 + $0x320] sm:$0xff]
        %v4207 = vld [vmem:[%s4105 + $0x328] sm:$0xff]
        %v4208 = vld [vmem:[%s4105 + $0x330] sm:$0xff]
        %v4209 = vld [vmem:[%s4105 + $0x338] sm:$0xff]
        %v4210 = vld [vmem:[%s4105 + $0x340] sm:$0xff]
        %v4211 = vld [vmem:[%s4105 + $0x348] sm:$0xff]
        %v4212 = vld [vmem:[%s4105 + $0x350] sm:$0xff]
        %v4213 = vld [vmem:[%s4105 + $0x358] sm:$0xff]
        %v4214 = vld [vmem:[%s4105 + $0x360] sm:$0xff]
        %v4215 = vld [vmem:[%s4105 + $0x368] sm:$0xff]
        %v4216 = vld [vmem:[%s4105 + $0x370] sm:$0xff]
        %v4217 = vld [vmem:[%s4105 + $0x378] sm:$0xff]
        %v4219 = vsel %vm2309, %v4103, 0
        %4221 = vmatprep.subr.mxu0 %v4107
        %4222 = vmatpush1.msra.mxu0 %v4106
        %4223 = vmatprep.subr.mxu0 %v4111
        %4224 = vmatpush1.msra.mxu0 %v4110
        %4225 = vmatprep.subr.mxu0 %v4115
        %4226 = vmatpush1.msra.mxu0 %v4114
        %4227 = vmatprep.subr.mxu0 %v4119
        %4228 = vmatpush1.msra.mxu0 %v4118
        %4229 = vmatprep.subr.mxu0 %v4123
        %4230 = vmatpush1.msra.mxu0 %v4122
        %4231 = vmatprep.subr.mxu0 %v4127
        %4232 = vmatpush1.msra.mxu0 %v4126
        %4233 = vmatprep.subr.mxu0 %v4131
        %4234 = vmatpush1.msra.mxu0 %v4130
        %4235 = vmatprep.subr.mxu0 %v4135
        %4236 = vmatpush1.msra.mxu0 %v4134
        %4237 = vmatprep.subr.mxu0 %v4139
        %4238 = vmatpush1.msra.mxu0 %v4138
        %4239 = vmatprep.subr.mxu0 %v4143
        %4240 = vmatpush1.msra.mxu0 %v4142
        %4241 = vmatprep.subr.mxu0 %v4147
        %4242 = vmatpush1.msra.mxu0 %v4146
        %4243 = vmatprep.subr.mxu0 %v4151
        %4244 = vmatpush1.msra.mxu0 %v4150
        %4245 = vmatprep.subr.mxu0 %v4155
        %4246 = vmatpush1.msra.mxu0 %v4154
        %4247 = vmatprep.subr.mxu0 %v4159
        %4248 = vmatpush1.msra.mxu0 %v4158
        %4249 = vmatprep.subr.mxu0 %v4163
        %4250 = vmatpush1.msra.mxu0 %v4162
        %4251 = vmatprep.subr.mxu0 %v4167
        %4252 = vmatpush1.msra.mxu0 %v4166
        %4253 = vmatprep.subr.mxu0 %v4171
        %4254 = vmatpush1.msra.mxu0 %v4170
        %4255 = vmatprep.subr.mxu0 %v4175
        %4256 = vmatpush1.msra.mxu0 %v4174
        %4257 = vmatprep.subr.mxu0 %v4179
        %4258 = vmatpush1.msra.mxu0 %v4178
        %4259 = vmatprep.subr.mxu0 %v4183
        %4260 = vmatpush1.msra.mxu0 %v4182
        %4261 = vmatprep.subr.mxu0 %v4187
        %4262 = vmatpush1.msra.mxu0 %v4186
        %4263 = vmatprep.subr.mxu0 %v4191
        %4264 = vmatpush1.msra.mxu0 %v4190
        %4265 = vmatprep.subr.mxu0 %v4195
        %4266 = vmatpush1.msra.mxu0 %v4194
        %4267 = vmatprep.subr.mxu0 %v4199
        %4268 = vmatpush1.msra.mxu0 %v4198
        %4269 = vmatprep.subr.mxu0 %v4203
        %4270 = vmatpush1.msra.mxu0 %v4202
        %4271 = vmatprep.subr.mxu0 %v4207
        %4272 = vmatpush1.msra.mxu0 %v4206
        %4273 = vmatprep.subr.mxu0 %v4211
        %4274 = vmatpush1.msra.mxu0 %v4210
        %4275 = vmatprep.subr.mxu0 %v4215
        %4276 = vmatpush1.msra.mxu0 %v4214
        %4277 = vmatprep.subr.mxu0 0.0
        %4278 = vmatpush1.msra.mxu0 0.0
        %4279 = vmatprep.subr.mxu0 0.0
        %4280 = vmatpush1.msra.mxu0 0.0
        %4281 = vmatprep.subr.mxu0 0.0
        %4282 = vmatpush1.msra.mxu0 0.0
        %4283 = vmatprep.subr.mxu0 0.0
        %4284 = vmatpush1.msra.mxu0 0.0
        %4285 = vmatprep.mubr.f32.mxu0 %v4219
        %4286 = vmatmul.mubr.f32.gmra.mrb[0].mxu0 %v4101
        %v4287 = vpop.f32.mrb[0].mxu0
        %v4288 = vadd.f32 0.0, %v4287
        %v4289 = vpop.f32.mrb[0].mxu0
        %v4290 = vadd.f32 0.0, %v4289
        %4291 = vdwg.mxu0
        %4292 = vmatprep.subr.mxu0 %v4109
        %4293 = vmatpush1.msra.mxu0 %v4108
        %4294 = vmatprep.subr.mxu0 %v4113
        %4295 = vmatpush1.msra.mxu0 %v4112
        %4296 = vmatprep.subr.mxu0 %v4117
        %4297 = vmatpush1.msra.mxu0 %v4116
        %4298 = vmatprep.subr.mxu0 %v4121
        %4299 = vmatpush1.msra.mxu0 %v4120
        %4300 = vmatprep.subr.mxu0 %v4125
        %4301 = vmatpush1.msra.mxu0 %v4124
        %4302 = vmatprep.subr.mxu0 %v4129
        %4303 = vmatpush1.msra.mxu0 %v4128
        %4304 = vmatprep.subr.mxu0 %v4133
        %4305 = vmatpush1.msra.mxu0 %v4132
        %4306 = vmatprep.subr.mxu0 %v4137
        %4307 = vmatpush1.msra.mxu0 %v4136
        %4308 = vmatprep.subr.mxu0 %v4141
        %4309 = vmatpush1.msra.mxu0 %v4140
        %4310 = vmatprep.subr.mxu0 %v4145
        %4311 = vmatpush1.msra.mxu0 %v4144
        %4312 = vmatprep.subr.mxu0 %v4149
        %4313 = vmatpush1.msra.mxu0 %v4148
        %4314 = vmatprep.subr.mxu0 %v4153
        %4315 = vmatpush1.msra.mxu0 %v4152
        %4316 = vmatprep.subr.mxu0 %v4157
        %4317 = vmatpush1.msra.mxu0 %v4156
        %4318 = vmatprep.subr.mxu0 %v4161
        %4319 = vmatpush1.msra.mxu0 %v4160
        %4320 = vmatprep.subr.mxu0 %v4165
        %4321 = vmatpush1.msra.mxu0 %v4164
        %4322 = vmatprep.subr.mxu0 %v4169
        %4323 = vmatpush1.msra.mxu0 %v4168
        %4324 = vmatprep.subr.mxu0 %v4173
        %4325 = vmatpush1.msra.mxu0 %v4172
        %4326 = vmatprep.subr.mxu0 %v4177
        %4327 = vmatpush1.msra.mxu0 %v4176
        %4328 = vmatprep.subr.mxu0 %v4181
        %4329 = vmatpush1.msra.mxu0 %v4180
        %4330 = vmatprep.subr.mxu0 %v4185
        %4331 = vmatpush1.msra.mxu0 %v4184
        %4332 = vmatprep.subr.mxu0 %v4189
        %4333 = vmatpush1.msra.mxu0 %v4188
        %4334 = vmatprep.subr.mxu0 %v4193
        %4335 = vmatpush1.msra.mxu0 %v4192
        %4336 = vmatprep.subr.mxu0 %v4197
        %4337 = vmatpush1.msra.mxu0 %v4196
        %4338 = vmatprep.subr.mxu0 %v4201
        %4339 = vmatpush1.msra.mxu0 %v4200
        %4340 = vmatprep.subr.mxu0 %v4205
        %4341 = vmatpush1.msra.mxu0 %v4204
        %4342 = vmatprep.subr.mxu0 %v4209
        %4343 = vmatpush1.msra.mxu0 %v4208
        %4344 = vmatprep.subr.mxu0 %v4213
        %4345 = vmatpush1.msra.mxu0 %v4212
        %4346 = vmatprep.subr.mxu0 %v4217
        %4347 = vmatpush1.msra.mxu0 %v4216
        %4348 = vmatprep.subr.mxu0 0.0
        %4349 = vmatpush1.msra.mxu0 0.0
        %4350 = vmatprep.subr.mxu0 0.0
        %4351 = vmatpush1.msra.mxu0 0.0
        %4352 = vmatprep.subr.mxu0 0.0
        %4353 = vmatpush1.msra.mxu0 0.0
        %4354 = vmatprep.subr.mxu0 0.0
        %4355 = vmatpush1.msra.mxu0 0.0
        %4356 = vmatprep.mubr.f32.mxu0 %v4219
        %4357 = vmatmul.mubr.f32.gmra.mrb[0].mxu0 %v4101
        %v4358 = vpop.f32.mrb[0].mxu0
        %v4359 = vadd.f32 0.0, %v4358
        %v4360 = vpop.f32.mrb[0].mxu0
        %v4361 = vadd.f32 0.0, %v4360
        %4362 = vdwg.mxu0
        %v4363 = vadd.f32 %v3954, %v4288
        %v4364 = vadd.f32 %v3956, %v4290
        %v4365 = vadd.f32 %v4025, %v4359
        %v4366 = vadd.f32 %v4027, %v4361
        %v4367 = vld [vmem:[#allocation12] sm:$0xf]
        %v4369 = vlaneseq
        %v4370 = vshrl.u32 %v4369, 7
        %v4371 = vsub.s32 0, %v4370
        %v4372 = vrot.slane %v4367, %v4371
        %v4373 = vlaneseq
        %v4374 = vshrl.u32 %v4373, 7
        %v4375 = vsub.s32 1, %v4374
        %v4376 = vrot.slane %v4367, %v4375
        %v4377 = vlaneseq
        %v4378 = vshrl.u32 %v4377, 7
        %v4379 = vsub.s32 2, %v4378
        %v4380 = vrot.slane %v4367, %v4379
        %v4381 = vlaneseq
        %v4382 = vshrl.u32 %v4381, 7
        %v4383 = vsub.s32 3, %v4382
        %v4384 = vrot.slane %v4367, %v4383
        %v4389 = vadd.f32 %v4363, %v4372
        %v4390 = vadd.f32 %v4364, %v4376
        %v4391 = vadd.f32 %v4365, %v4380
        %v4392 = vadd.f32 %v4366, %v4384
        %v4393 = vmax.f32 %v4389, 0.0
        %v4394 = vmax.f32 %v4390, 0.0
        %v4395 = vmax.f32 %v4391, 0.0
        %v4396 = vmax.f32 %v4392, 0.0
        %4397 = vst [vmem:[%s455] sm:$0x7f] %v4393
        %4398 = vst [vmem:[%s455 + $0x8] sm:$0x7f] %v4394
        %4399 = vst [vmem:[%s455 + $0x10] sm:$0x7f] %v4395
        %vm4400 = vcmask 522240
        %4401 = vst.msk [vmem:[%s455 + $0x18] sm:$0x7f] %vm4400, %v4396
        %p4402 = scmp.lt.s32.totalorder %s25, 1
        %s4403 = scalar_select %p4402, %s25, 1
        %s4404 = smul.addr %s4403, 4
        %s4405 = smul.addr %s4404, 8
        %s4406 = scalar_lea.vmem %s10, %s4405
        // Predicated region
        $region89: #{circlenet_forward.2} parent=59 // pred_check
          %p4407 = pneg %p258
        $region90: #{circlenet_forward.2} parent=59 // pred_check_branch
          %4409 = sbr.rel (%p4407) target = $region92
        $region91: #{circlenet_forward.2} parent=59 // pred_region
          _
        $region92: #{circlenet_forward.2} parent=59 // pred_fallthru
          _
      $region60: #{circlenet_forward.2} parent=5 // pred_fallthru
        _
      %p4410 = scmp.le.s32.totalorder 2, %s20
      // Predicated region
      $region93: #{circlenet_forward.2} parent=5 // pred_check
        %p4411 = pneg %p4410
      $region94: #{circlenet_forward.2} parent=5 // pred_check_branch
        %4413 = sbr.rel (%p4411) target = $region96
      $region95: #{circlenet_forward.2} parent=5 // pred_region
        %s4414 = ssub.s32 %s20, 2
        // Predicated region
        $region97: #{circlenet_forward.2} parent=95 // pred_check
          %p4415 = pneg %p264
        $region98: #{circlenet_forward.2} parent=95 // pred_check_branch
          %4417 = sbr.rel (%p4415) target = $region100
        $region99: #{circlenet_forward.2} parent=95 // pred_region
          %p4418 = scmp.lt.s32.totalorder %s26, 1
          %s4419 = scalar_select %p4418, %s26, 1
          %s4420 = smul.addr %s4419, 4
          %s4421 = smul.addr %s4420, 8
          %s4422 = scalar_lea.vmem %s10, %s4421
        $region100: #{circlenet_forward.2} parent=95 // pred_fallthru
          _
      $region96: #{circlenet_forward.2} parent=5 // pred_fallthru
        _
    $region6: #{circlenet_forward.2} parent=1 // loop_footer
      %s24 = sadd.s32 1, %s20
    $region7: #{circlenet_forward.2} parent=1 // loop_footer_branch
      %19 = sbr.rel target = $region3
    $region8: #{circlenet_forward.2} parent=1 // loop_exit
      _
    %4423 = vsyncpa [#allocation3], 1
    %s4424 = scalar_lea.sflag [#allocation3], 1
    %4425 = vsyncpa %s4424, 1
    %4426 = vsyncpa [#allocation5], 1
    %4427 = vsyncpa [#allocation8], 1
    %4428 = vsyncpa [#allocation11], 1

</llo_original>
